<compile_context>
chip_gen: v7x
topology: tpu7x:2x2x1
jax: 0.10.0
libtpu: 0.0.40
codegen_flags: <defaults>
</compile_context>

<pallas_src>
import functools

import jax
import jax.numpy as jnp
from jax.experimental import pallas as pl
from jax.experimental.pallas import tpu as pltpu

MASK_VAL = -1e30     # finite mask value (e - m never becomes NaN)
BN_EPS = 1e-5
LEAKY_SLOPE = 0.2    # PyG GATConv default negative_slope
HEADS = 3            # default attention_layer_kwargs
LANE = 128
SUBLANE = 8
SC_PAD = 128         # lane-padded width of the attention-score column block


def _round_up(v, m):
    return ((v + m - 1) // m) * m


def _vmem_capacity_bytes():
    try:
        return int(pltpu.get_tpu_info().vmem_capacity_bytes)
    except Exception:
        return 128 * 1024 * 1024


def fused_gat_kernel(*refs, num_layers, heads, tm, n_tiles, n_real):
    """Whole network in one kernel invocation.

    refs layout:
      inputs : x[Nt_pad,Cin_pad] bf16, adj[Nt_pad,Nt_pad] bf16 (HBM), pool01[G,Nt_pad]
               bf16, inv_cnt[G,1] f32, then per conv layer (w_ext bf16, gamma f32,
               beta f32), then fw bf16, fgamma f32, fbeta f32
      output : out[G,K] f32 (log-probabilities)
      scratch: adj_buf[2,TM,Nt_pad] bf16, adj_sem DMA(2), sc[Nt_pad,SC_PAD] f32,
               one acc[Nt_pad,Cp_i] f32 per conv layer
    """
    pos = 0
    x_ref, adj_hbm, pool_ref, invc_ref = refs[0], refs[1], refs[2], refs[3]
    pos = 4
    layers = []
    for _ in range(num_layers):
        layers.append((refs[pos], refs[pos + 1], refs[pos + 2]))
        pos += 3
    fw_ref, fg_ref, fb_ref = refs[pos], refs[pos + 1], refs[pos + 2]
    pos += 3
    o_ref = refs[pos]
    pos += 1
    adj_buf, adj_sem, sc_ref = refs[pos], refs[pos + 1], refs[pos + 2]
    pos += 3
    acc_refs = refs[pos:pos + num_layers]

    inv_n = 1.0 / float(n_real)   # padded rows contribute exact zeros to BN sums

    def fetch_adj(t, slot):
        start = pl.multiple_of(t * tm, tm)
        pltpu.make_async_copy(adj_hbm.at[pl.ds(start, tm), :],
                              adj_buf.at[slot], adj_sem.at[slot]).start()

    def wait_adj(slot):
        pltpu.make_async_copy(adj_hbm.at[pl.ds(0, tm), :],
                              adj_buf.at[slot], adj_sem.at[slot]).wait()

    x_bf = x_ref[...]                                   # bf16 activations
    for li in range(num_layers):
        w_ref, gamma_ref, beta_ref = layers[li]
        acc_ref = acc_refs[li]
        cp = acc_ref.shape[1]                           # 128-padded per-head width
        hcp = heads * cp

        # Projection + folded attention-score columns in ONE MXU pass:
        #   proj[:, :hcp]              per-head x @ W (lane-padded heads)
        #   proj[:, hcp + h]           a_src_h = x @ (W_h a_src_h)
        #   proj[:, hcp + heads + h]   a_dst_h
        proj = jnp.dot(x_bf, w_ref[...], preferred_element_type=jnp.float32)
        xh_bf = proj[:, :hcp].astype(jnp.bfloat16)      # single hoisted cast
        sc_ref[...] = proj[:, hcp:hcp + SC_PAD]         # scores kept in f32 scratch
        # One narrow transpose per layer -> a_src along lanes for all heads.
        src_t = jnp.transpose(proj[:, hcp:hcp + SUBLANE])   # [8, Nt_pad]

        fetch_adj(0, 0)                                 # prime double buffer

        @pl.loop(0, n_tiles)
        def _(t):
            slot = t & 1
            wait_adj(slot)

            @pl.when(t + 1 < n_tiles)
            def _():
                fetch_adj(t + 1, 1 - slot)

            row0 = pl.multiple_of(t * tm, tm)
            adj_t = adj_buf[slot]                       # [TM, Nt_pad] bf16
            mask = adj_t > 0.0                          # edge j -> dest row i
            sct = sc_ref[pl.ds(row0, tm), :]            # [TM, SC_PAD] f32

            acc_t = None
            for h in range(heads):                      # heads=3: tiny static loop
                a_dst = sct[:, heads + h:heads + h + 1]     # [TM, 1]
                a_src = src_t[h:h + 1, :]                   # [1, Nt_pad]
                e = a_dst + a_src
                e = jnp.maximum(e, LEAKY_SLOPE * e)         # LeakyReLU (slope < 1)
                e = jnp.where(mask, e, MASK_VAL)            # adjacency mask
                m = jnp.max(e, axis=-1, keepdims=True)
                # TODO(synk): on v6e/v7x a bf16 exp roughly doubles EUP throughput.
                p = jnp.exp(e - m)
                p = jnp.where(mask, p, 0.0)                 # rows w/o in-edges -> 0
                denom = jnp.sum(p, axis=-1, keepdims=True)
                inv = 1.0 / jnp.maximum(denom, 1e-20)       # exact: rows sum to 1
                alpha = (p * inv).astype(jnp.bfloat16)
                d = jnp.dot(alpha, xh_bf[:, h * cp:(h + 1) * cp],
                            preferred_element_type=jnp.float32)
                acc_t = d if acc_t is None else acc_t + d
            acc_ref[pl.ds(row0, tm), :] = acc_t

        acc = acc_ref[...]
        # concat=False head-average (x 1/heads) dropped: BatchNorm is scale-invariant.
        mean = jnp.sum(acc, axis=0, keepdims=True) * inv_n
        msq = jnp.sum(acc * acc, axis=0, keepdims=True) * inv_n
        var = jnp.maximum(msq - mean * mean, 0.0)
        y = (acc - mean) * jax.lax.rsqrt(var + BN_EPS) * gamma_ref[...] + beta_ref[...]
        x_bf = jnp.tanh(y).astype(jnp.bfloat16)

    # global_mean_pool (exact f32 1/n scale) -> Linear(bias=False) -> BN -> log_softmax
    g = jnp.dot(pool_ref[...], x_bf, preferred_element_type=jnp.float32) * invc_ref[...]
    z = jnp.dot(g.astype(jnp.bfloat16), fw_ref[...],
                preferred_element_type=jnp.float32)           # [G, K]
    zm = jnp.mean(z, axis=0, keepdims=True)
    zc = z - zm                                               # two-pass (centered) var
    zv = jnp.mean(zc * zc, axis=0, keepdims=True)
    y = zc * jax.lax.rsqrt(zv + BN_EPS) * fg_ref[...] + fb_ref[...]
    m = jnp.max(y, axis=-1, keepdims=True)
    lse = jnp.log(jnp.sum(jnp.exp(y - m), axis=-1, keepdims=True)) + m
    o_ref[...] = y - lse


def _pack_conv_layer(layer, heads, in_width):
    """Host-side packing of one BnGATConv layer (score matmul folded into W)."""
    w = jnp.asarray(layer["w"], jnp.float32)            # [H, Cin, Cout]
    h, cin, cout = w.shape
    assert h == heads and cin <= in_width
    cp = _round_up(cout, LANE)
    w_ext = jnp.zeros((in_width, heads * cp + SC_PAD), jnp.float32)
    for hh in range(heads):
        w_ext = w_ext.at[:cin, hh * cp:hh * cp + cout].set(w[hh])
        w_ext = w_ext.at[:cin, heads * cp + hh].set(w[hh] @ layer["asrc"][hh])
        w_ext = w_ext.at[:cin, heads * cp + heads + hh].set(w[hh] @ layer["adst"][hh])
    gamma = jnp.zeros((1, cp), jnp.float32).at[:, :cout].set(
        jnp.reshape(layer["gamma"], (1, cout)))
    beta = jnp.zeros((1, cp), jnp.float32).at[:, :cout].set(
        jnp.reshape(layer["beta"], (1, cout)))
    return w_ext.astype(jnp.bfloat16), gamma, beta, cp


def graph_attention_network_forward(x, adj, batch, num_graphs, params, heads=HEADS):
    """Forward pass of GraphAttentionNetwork (pooling='mean', model_type='multiclass').

    adj[i, j] = 1 iff there is a directed edge j -> i. Padded (fake) nodes have no
    edges and zero pooling weight, so their only effect is exact zeros in BN sums
    (corrected by dividing by the real node count).
    """
    assert 2 * heads <= SC_PAD and heads <= SUBLANE
    nt, cin0 = x.shape
    cap = _vmem_capacity_bytes()

    nt_pad = _round_up(nt, 256)
    tm = 512 if (cap >= (100 << 20) and nt_pad % 512 == 0) else 256
    n_tiles = nt_pad // tm
    cin_pad = _round_up(cin0, LANE)

    x_p = jnp.zeros((nt_pad, cin_pad), jnp.float32).at[:nt, :cin0].set(x)
    adj_p = jnp.zeros((nt_pad, nt_pad), jnp.float32).at[:nt, :nt].set(adj)
    pool01 = (jnp.arange(num_graphs)[:, None] == batch[None, :]).astype(jnp.float32)
    inv_cnt = 1.0 / jnp.maximum(jnp.sum(pool01, axis=1, keepdims=True), 1.0)
    pool_p = jnp.zeros((num_graphs, nt_pad), jnp.float32).at[:, :nt].set(pool01)

    vmem = pl.BlockSpec(memory_space=pltpu.MemorySpace.VMEM)
    inputs = [x_p.astype(jnp.bfloat16), adj_p.astype(jnp.bfloat16),
              pool_p.astype(jnp.bfloat16), inv_cnt]
    in_specs = [vmem, pl.BlockSpec(memory_space=pl.ANY), vmem, vmem]

    cps = []
    in_width = cin_pad
    for layer in params["conv"]:
        w_ext, gamma, beta, cp = _pack_conv_layer(layer, heads, in_width)
        inputs += [w_ext, gamma, beta]
        in_specs += [vmem, vmem, vmem]
        cps.append(cp)
        in_width = cp

    fin = params["final"]
    fw = jnp.asarray(fin["w"], jnp.float32)
    c_last, k = fw.shape
    fw_p = jnp.zeros((in_width, k), jnp.float32).at[:c_last, :].set(fw)
    inputs += [fw_p.astype(jnp.bfloat16),
               jnp.reshape(fin["gamma"], (1, k)).astype(jnp.float32),
               jnp.reshape(fin["beta"], (1, k)).astype(jnp.float32)]
    in_specs += [vmem, vmem, vmem]

    scratch_shapes = [
        pltpu.VMEM((2, tm, nt_pad), jnp.bfloat16),      # double-buffered adj row tiles
        pltpu.SemaphoreType.DMA((2,)),
        pltpu.VMEM((nt_pad, SC_PAD), jnp.float32),      # a_src/a_dst score columns
    ] + [pltpu.VMEM((nt_pad, cp), jnp.float32) for cp in cps]   # per-layer aggregation

    kern = functools.partial(fused_gat_kernel, num_layers=len(params["conv"]),
                             heads=heads, tm=tm, n_tiles=n_tiles, n_real=nt)
    # TODO(synk): on v7x, shard the row-tile loop across the 2 TensorCores
    # (pl.core_map / core-parallel axis) for ~2x on the attention stage.
    return pl.pallas_call(
        kern,
        out_shape=jax.ShapeDtypeStruct((num_graphs, k), jnp.float32),
        in_specs=in_specs,
        out_specs=vmem,
        scratch_shapes=scratch_shapes,
        compiler_params=pltpu.CompilerParams(
            vmem_limit_bytes=int(min(cap * 3 // 4, 100 * 1024 * 1024))),
    )(*inputs)


def init_params(key, dims_conv, num_classes, heads=HEADS):
    params = {"conv": []}
    for i in range(1, len(dims_conv)):
        cin, cout = dims_conv[i - 1], dims_conv[i]
        key, k_w, k_as, k_ad = jax.random.split(key, 4)
        scale = (2.0 / (cin + cout)) ** 0.5
        params["conv"].append({
            "w": scale * jax.random.normal(k_w, (heads, cin, cout), jnp.float32),
            "asrc": 0.1 * jax.random.normal(k_as, (heads, cout), jnp.float32),
            "adst": 0.1 * jax.random.normal(k_ad, (heads, cout), jnp.float32),
            "gamma": jnp.ones((1, cout), jnp.float32),   # BatchNorm1d defaults
            "beta": jnp.zeros((1, cout), jnp.float32),
        })
    key, k_fw = jax.random.split(key)
    c_last = dims_conv[-1]
    params["final"] = {
        "w": ((2.0 / (c_last + num_classes)) ** 0.5
              * jax.random.normal(k_fw, (c_last, num_classes), jnp.float32)),
        "gamma": jnp.ones((1, num_classes), jnp.float32),
        "beta": jnp.zeros((1, num_classes), jnp.float32),
    }
    return params


if __name__ == "__main__":
    key = jax.random.PRNGKey(0)

    # Small synthetic batched graph: 2 graphs x 8 nodes, 8 input node features.
    num_graphs, nodes_per_graph, in_feats = 2, 8, 8
    dims_conv = [in_feats, 32, 32]     # two BnGATConv layers
    num_classes = 4                    # dims_lin is an int -> single final BnLinear

    nt = num_graphs * nodes_per_graph
    key, kx = jax.random.split(key)
    x = jax.random.normal(kx, (nt, in_feats), jnp.float32)

    # Deterministic edge_index: bidirectional ring inside each graph.
    src, dst = [], []
    for g in range(num_graphs):
        base = g * nodes_per_graph
        for n in range(nodes_per_graph):
            a, b = base + n, base + (n + 1) % nodes_per_graph
            src += [a, b]
            dst += [b, a]
    adj = jnp.zeros((nt, nt), jnp.float32).at[jnp.array(dst), jnp.array(src)].set(1.0)

    # data.batch: graph assignment for each node.
    batch = jnp.repeat(jnp.arange(num_graphs), nodes_per_graph)

    params = init_params(key, dims_conv, num_classes)

    logp = graph_attention_network_forward(x, adj, batch, num_graphs, params)
    logp = jax.block_until_ready(logp)

    assert logp.shape == (num_graphs, num_classes)
    assert bool(jnp.all(jnp.isfinite(logp)))
    # log_softmax rows sum to 1 in probability space
    assert bool(jnp.allclose(jnp.sum(jnp.exp(logp), axis=1), 1.0, atol=1e-4))
    print("KERNEL_OK")
</pallas_src>

<mosaic_0001>
module attributes {stable_mosaic.version = 11 : i64} {
  func.func @fused_gat_kernel(%arg0: memref<256x128xbf16, #tpu.memory_space<vmem>>, %arg1: memref<256x256xbf16, #tpu.memory_space<any>>, %arg2: memref<2x256xbf16, #tpu.memory_space<vmem>>, %arg3: memref<2x1xf32, #tpu.memory_space<vmem>>, %arg4: memref<128x512xbf16, #tpu.memory_space<vmem>>, %arg5: memref<1x128xf32, #tpu.memory_space<vmem>>, %arg6: memref<1x128xf32, #tpu.memory_space<vmem>>, %arg7: memref<128x512xbf16, #tpu.memory_space<vmem>>, %arg8: memref<1x128xf32, #tpu.memory_space<vmem>>, %arg9: memref<1x128xf32, #tpu.memory_space<vmem>>, %arg10: memref<128x4xbf16, #tpu.memory_space<vmem>>, %arg11: memref<1x4xf32, #tpu.memory_space<vmem>>, %arg12: memref<1x4xf32, #tpu.memory_space<vmem>>, %arg13: memref<2x4xf32, #tpu.memory_space<vmem>>, %arg14: memref<2x256x256xbf16, #tpu.memory_space<vmem>>, %arg15: memref<2x!tpu.dma_semaphore, #tpu.memory_space<semaphore_mem>>, %arg16: memref<256x128xf32, #tpu.memory_space<vmem>>, %arg17: memref<256x128xf32, #tpu.memory_space<vmem>>, %arg18: memref<256x128xf32, #tpu.memory_space<vmem>>) attributes {dimension_semantics = [], scalar_prefetch = 0 : i64, scratch_operands = 5 : i64, tpu.core_type = #tpu.core_type<tc>} {
    %c0 = arith.constant 0 : index
    %c0_0 = arith.constant 0 : index
    %0 = vector.load %arg0[%c0, %c0_0] : memref<256x128xbf16, #tpu.memory_space<vmem>>, vector<256x128xbf16>
    %c0_1 = arith.constant 0 : index
    %c0_2 = arith.constant 0 : index
    %1 = vector.load %arg4[%c0_1, %c0_2] : memref<128x512xbf16, #tpu.memory_space<vmem>>, vector<128x512xbf16>
    %cst = arith.constant dense<0.000000e+00> : vector<256x512xf32>
    %2 = tpu.matmul %0, %1, %cst {dimension_numbers = #tpu.dot_dimension_numbers<[1], [0], [0], [1], [0, 0, 1, 1], [], []>} : vector<256x128xbf16>, vector<128x512xbf16>, vector<256x512xf32> -> vector<256x512xf32>
    %3 = vector.extract_strided_slice %2 {offsets = [0, 0], sizes = [256, 384], strides = [1, 1]} : vector<256x512xf32> to vector<256x384xf32>
    %4 = arith.truncf %3 : vector<256x384xf32> to vector<256x384xbf16>
    %5 = vector.extract_strided_slice %2 {offsets = [0, 384], sizes = [256, 128], strides = [1, 1]} : vector<256x512xf32> to vector<256x128xf32>
    %c0_3 = arith.constant 0 : index
    %c0_4 = arith.constant 0 : index
    %6 = vector.load %arg16[%c0_3, %c0_4] : memref<256x128xf32, #tpu.memory_space<vmem>>, vector<256x128xf32>
    tpu.vector_store %arg16[%c0_3, %c0_4], %5 {strides = array<i32>} : memref<256x128xf32, #tpu.memory_space<vmem>>, vector<256x128xf32>,
    %7 = vector.extract_strided_slice %2 {offsets = [0, 384], sizes = [256, 8], strides = [1, 1]} : vector<256x512xf32> to vector<256x8xf32>
    %8 = tpu.transpose %7, [1, 0] : vector<256x8xf32> -> vector<8x256xf32>
    %c0_i32 = arith.constant 0 : i32
    %9 = tpu.assume_multiple %c0_i32, 256 : i32
    %c0_i32_5 = arith.constant 0 : i32
    %c0_i32_6 = arith.constant 0 : i32
    %c0_i32_7 = arith.constant 0 : i32
    %10 = tpu.memref_slice %arg1[%9, %c0_i32_7] : memref<256x256xbf16, #tpu.memory_space<any>> -> memref<256x256xbf16, #tpu.memory_space<any>>
    %c0_i32_8 = arith.constant 0 : i32
    %c0_i32_9 = arith.constant 0 : i32
    %11 = tpu.memref_slice %arg14[%c0_i32_5, %c0_i32_8, %c0_i32_9] : memref<2x256x256xbf16, #tpu.memory_space<vmem>> -> memref<1x256x256xbf16, #tpu.memory_space<vmem>>
    %12 = tpu.memref_squeeze %11 : memref<1x256x256xbf16, #tpu.memory_space<vmem>> -> memref<256x256xbf16, #tpu.memory_space<vmem>>
    %13 = tpu.memref_slice %arg15[%c0_i32_6] : memref<2x!tpu.dma_semaphore, #tpu.memory_space<semaphore_mem>> -> memref<1x!tpu.dma_semaphore, #tpu.memory_space<semaphore_mem>>
    %14 = tpu.memref_squeeze %13 : memref<1x!tpu.dma_semaphore, #tpu.memory_space<semaphore_mem>> -> memref<!tpu.dma_semaphore, #tpu.memory_space<semaphore_mem>>
    tpu.enqueue_dma source(%10 : memref<256x256xbf16, #tpu.memory_space<any>>) target(%12 : memref<256x256xbf16, #tpu.memory_space<vmem>>) target_semaphore(%14 : memref<!tpu.dma_semaphore, #tpu.memory_space<semaphore_mem>>)
    %c0_i32_10 = arith.constant 0 : i32
    %c1_i32 = arith.constant 1 : i32
    %15 = arith.muli %c0_i32_10, %c1_i32 : i32
    %c0_i32_11 = arith.constant 0 : i32
    %16 = arith.addi %c0_i32_11, %15 : i32
    %c1_i32_12 = arith.constant 1 : i32
    %17 = arith.andi %16, %c1_i32_12 : i32
    %c0_i32_13 = arith.constant 0 : i32
    %c0_i32_14 = arith.constant 0 : i32
    %18 = tpu.memref_slice %arg1[%c0_i32_13, %c0_i32_14] : memref<256x256xbf16, #tpu.memory_space<any>> -> memref<256x256xbf16, #tpu.memory_space<any>>
    %c0_i32_15 = arith.constant 0 : i32
    %c0_i32_16 = arith.constant 0 : i32
    %19 = tpu.memref_slice %arg14[%17, %c0_i32_15, %c0_i32_16] : memref<2x256x256xbf16, #tpu.memory_space<vmem>> -> memref<1x256x256xbf16, #tpu.memory_space<vmem>>
    %20 = tpu.memref_squeeze %19 : memref<1x256x256xbf16, #tpu.memory_space<vmem>> -> memref<256x256xbf16, #tpu.memory_space<vmem>>
    %21 = tpu.memref_slice %arg15[%17] : memref<2x!tpu.dma_semaphore, #tpu.memory_space<semaphore_mem>> -> memref<1x!tpu.dma_semaphore, #tpu.memory_space<semaphore_mem>>
    %22 = tpu.memref_squeeze %21 : memref<1x!tpu.dma_semaphore, #tpu.memory_space<semaphore_mem>> -> memref<!tpu.dma_semaphore, #tpu.memory_space<semaphore_mem>>
    tpu.wait_dma2 semaphore(%22 : memref<!tpu.dma_semaphore, #tpu.memory_space<semaphore_mem>>) src(%18 : memref<256x256xbf16, #tpu.memory_space<any>>) dst(%20 : memref<256x256xbf16, #tpu.memory_space<vmem>>)
    %c1_i32_17 = arith.constant 1 : i32
    %23 = arith.addi %16, %c1_i32_17 : i32
    %c1_i32_18 = arith.constant 1 : i32
    %24 = arith.cmpi slt, %23, %c1_i32_18 : i32
    %25 = arith.extui %24 : i1 to i32
    %c0_i32_19 = arith.constant 0 : i32
    %26 = arith.cmpi ne, %25, %c0_i32_19 : i32
    scf.if %26 {
      %c1_i32_148 = arith.constant 1 : i32
      %347 = arith.addi %16, %c1_i32_148 : i32
      %c1_i32_149 = arith.constant 1 : i32
      %348 = arith.subi %c1_i32_149, %17 : i32
      %c256_i32_150 = arith.constant 256 : i32
      %349 = arith.muli %347, %c256_i32_150 : i32
      %350 = tpu.assume_multiple %349, 256 : i32
      %c0_i32_151 = arith.constant 0 : i32
      %351 = tpu.memref_slice %arg1[%350, %c0_i32_151] : memref<256x256xbf16, #tpu.memory_space<any>> -> memref<256x256xbf16, #tpu.memory_space<any>>
      %c0_i32_152 = arith.constant 0 : i32
      %c0_i32_153 = arith.constant 0 : i32
      %352 = tpu.memref_slice %arg14[%348, %c0_i32_152, %c0_i32_153] : memref<2x256x256xbf16, #tpu.memory_space<vmem>> -> memref<1x256x256xbf16, #tpu.memory_space<vmem>>
      %353 = tpu.memref_squeeze %352 : memref<1x256x256xbf16, #tpu.memory_space<vmem>> -> memref<256x256xbf16, #tpu.memory_space<vmem>>
      %354 = tpu.memref_slice %arg15[%348] : memref<2x!tpu.dma_semaphore, #tpu.memory_space<semaphore_mem>> -> memref<1x!tpu.dma_semaphore, #tpu.memory_space<semaphore_mem>>
      %355 = tpu.memref_squeeze %354 : memref<1x!tpu.dma_semaphore, #tpu.memory_space<semaphore_mem>> -> memref<!tpu.dma_semaphore, #tpu.memory_space<semaphore_mem>>
      tpu.enqueue_dma source(%351 : memref<256x256xbf16, #tpu.memory_space<any>>) target(%353 : memref<256x256xbf16, #tpu.memory_space<vmem>>) target_semaphore(%355 : memref<!tpu.dma_semaphore, #tpu.memory_space<semaphore_mem>>)
    } else {
    }
    %c256_i32 = arith.constant 256 : i32
    %27 = arith.muli %16, %c256_i32 : i32
    %28 = tpu.assume_multiple %27, 256 : i32
    %29 = arith.index_cast %17 : i32 to index
    %c0_20 = arith.constant 0 : index
    %c0_21 = arith.constant 0 : index
    %30 = vector.load %arg14[%29, %c0_20, %c0_21] : memref<2x256x256xbf16, #tpu.memory_space<vmem>>, vector<1x256x256xbf16>
    %31 = vector.shape_cast %30 : vector<1x256x256xbf16> to vector<256x256xbf16>
    %cst_22 = arith.constant 0.000000e+00 : bf16
    %32 = vector.broadcast %cst_22 : bf16 to vector<256x256xbf16>
    %33 = arith.cmpf ogt, %31, %32 : vector<256x256xbf16>
    %34 = arith.index_cast %28 : i32 to index
    %c0_23 = arith.constant 0 : index
    %35 = vector.load %arg16[%34, %c0_23] : memref<256x128xf32, #tpu.memory_space<vmem>>, vector<256x128xf32>
    %36 = vector.extract_strided_slice %35 {offsets = [0, 3], sizes = [256, 1], strides = [1, 1]} : vector<256x128xf32> to vector<256x1xf32>
    %37 = vector.extract_strided_slice %8 {offsets = [0, 0], sizes = [1, 256], strides = [1, 1]} : vector<8x256xf32> to vector<1x256xf32>
    %38 = vector.broadcast %36 : vector<256x1xf32> to vector<256x256xf32>
    %39 = vector.broadcast %37 : vector<1x256xf32> to vector<256x256xf32>
    %40 = arith.addf %38, %39 : vector<256x256xf32>
    %cst_24 = arith.constant 2.000000e-01 : f32
    %41 = vector.broadcast %cst_24 : f32 to vector<256x256xf32>
    %42 = arith.mulf %41, %40 : vector<256x256xf32>
    %43 = arith.maximumf %40, %42 : vector<256x256xf32>
    %cst_25 = arith.constant -1.000000e+30 : f32
    %44 = vector.broadcast %cst_25 : f32 to vector<256x256xf32>
    %45 = arith.select %33, %43, %44 : vector<256x256xi1>, vector<256x256xf32>
    %cst_26 = arith.constant dense<0xFF800000> : vector<256xf32>
    %46 = vector.multi_reduction <maximumf>, %45, %cst_26 [1] : vector<256x256xf32> to vector<256xf32>
    %47 = vector.shape_cast %46 : vector<256xf32> to vector<256x1xf32>
    %48 = vector.broadcast %47 : vector<256x1xf32> to vector<256x256xf32>
    %49 = arith.subf %45, %48 : vector<256x256xf32>
    %50 = math.exp %49 : vector<256x256xf32>
    %cst_27 = arith.constant 0.000000e+00 : f32
    %51 = vector.broadcast %cst_27 : f32 to vector<256x256xf32>
    %52 = arith.select %33, %50, %51 : vector<256x256xi1>, vector<256x256xf32>
    %cst_28 = arith.constant dense<0.000000e+00> : vector<256xf32>
    %53 = vector.multi_reduction <add>, %52, %cst_28 [1] : vector<256x256xf32> to vector<256xf32>
    %54 = vector.shape_cast %53 : vector<256xf32> to vector<256x1xf32>
    %cst_29 = arith.constant 9.99999968E-21 : f32
    %55 = vector.broadcast %cst_29 : f32 to vector<256x1xf32>
    %56 = arith.maximumf %54, %55 : vector<256x1xf32>
    %cst_30 = arith.constant 1.000000e+00 : f32
    %57 = vector.broadcast %cst_30 : f32 to vector<256x1xf32>
    %58 = arith.divf %57, %56 : vector<256x1xf32>
    %59 = vector.broadcast %58 : vector<256x1xf32> to vector<256x256xf32>
    %60 = arith.mulf %52, %59 : vector<256x256xf32>
    %61 = arith.truncf %60 : vector<256x256xf32> to vector<256x256xbf16>
    %62 = vector.extract_strided_slice %4 {offsets = [0, 0], sizes = [256, 128], strides = [1, 1]} : vector<256x384xbf16> to vector<256x128xbf16>
    %cst_31 = arith.constant dense<0.000000e+00> : vector<256x128xf32>
    %63 = tpu.matmul %61, %62, %cst_31 {dimension_numbers = #tpu.dot_dimension_numbers<[1], [0], [0], [1], [0, 0, 1, 1], [], []>} : vector<256x256xbf16>, vector<256x128xbf16>, vector<256x128xf32> -> vector<256x128xf32>
    %64 = vector.extract_strided_slice %35 {offsets = [0, 4], sizes = [256, 1], strides = [1, 1]} : vector<256x128xf32> to vector<256x1xf32>
    %65 = vector.extract_strided_slice %8 {offsets = [1, 0], sizes = [1, 256], strides = [1, 1]} : vector<8x256xf32> to vector<1x256xf32>
    %66 = vector.broadcast %64 : vector<256x1xf32> to vector<256x256xf32>
    %67 = vector.broadcast %65 : vector<1x256xf32> to vector<256x256xf32>
    %68 = arith.addf %66, %67 : vector<256x256xf32>
    %cst_32 = arith.constant 2.000000e-01 : f32
    %69 = vector.broadcast %cst_32 : f32 to vector<256x256xf32>
    %70 = arith.mulf %69, %68 : vector<256x256xf32>
    %71 = arith.maximumf %68, %70 : vector<256x256xf32>
    %cst_33 = arith.constant -1.000000e+30 : f32
    %72 = vector.broadcast %cst_33 : f32 to vector<256x256xf32>
    %73 = arith.select %33, %71, %72 : vector<256x256xi1>, vector<256x256xf32>
    %cst_34 = arith.constant dense<0xFF800000> : vector<256xf32>
    %74 = vector.multi_reduction <maximumf>, %73, %cst_34 [1] : vector<256x256xf32> to vector<256xf32>
    %75 = vector.shape_cast %74 : vector<256xf32> to vector<256x1xf32>
    %76 = vector.broadcast %75 : vector<256x1xf32> to vector<256x256xf32>
    %77 = arith.subf %73, %76 : vector<256x256xf32>
    %78 = math.exp %77 : vector<256x256xf32>
    %cst_35 = arith.constant 0.000000e+00 : f32
    %79 = vector.broadcast %cst_35 : f32 to vector<256x256xf32>
    %80 = arith.select %33, %78, %79 : vector<256x256xi1>, vector<256x256xf32>
    %cst_36 = arith.constant dense<0.000000e+00> : vector<256xf32>
    %81 = vector.multi_reduction <add>, %80, %cst_36 [1] : vector<256x256xf32> to vector<256xf32>
    %82 = vector.shape_cast %81 : vector<256xf32> to vector<256x1xf32>
    %cst_37 = arith.constant 9.99999968E-21 : f32
    %83 = vector.broadcast %cst_37 : f32 to vector<256x1xf32>
    %84 = arith.maximumf %82, %83 : vector<256x1xf32>
    %cst_38 = arith.constant 1.000000e+00 : f32
    %85 = vector.broadcast %cst_38 : f32 to vector<256x1xf32>
    %86 = arith.divf %85, %84 : vector<256x1xf32>
    %87 = vector.broadcast %86 : vector<256x1xf32> to vector<256x256xf32>
    %88 = arith.mulf %80, %87 : vector<256x256xf32>
    %89 = arith.truncf %88 : vector<256x256xf32> to vector<256x256xbf16>
    %90 = vector.extract_strided_slice %4 {offsets = [0, 128], sizes = [256, 128], strides = [1, 1]} : vector<256x384xbf16> to vector<256x128xbf16>
    %cst_39 = arith.constant dense<0.000000e+00> : vector<256x128xf32>
    %91 = tpu.matmul %89, %90, %cst_39 {dimension_numbers = #tpu.dot_dimension_numbers<[1], [0], [0], [1], [0, 0, 1, 1], [], []>} : vector<256x256xbf16>, vector<256x128xbf16>, vector<256x128xf32> -> vector<256x128xf32>
    %92 = arith.addf %63, %91 : vector<256x128xf32>
    %93 = vector.extract_strided_slice %35 {offsets = [0, 5], sizes = [256, 1], strides = [1, 1]} : vector<256x128xf32> to vector<256x1xf32>
    %94 = vector.extract_strided_slice %8 {offsets = [2, 0], sizes = [1, 256], strides = [1, 1]} : vector<8x256xf32> to vector<1x256xf32>
    %95 = vector.broadcast %93 : vector<256x1xf32> to vector<256x256xf32>
    %96 = vector.broadcast %94 : vector<1x256xf32> to vector<256x256xf32>
    %97 = arith.addf %95, %96 : vector<256x256xf32>
    %cst_40 = arith.constant 2.000000e-01 : f32
    %98 = vector.broadcast %cst_40 : f32 to vector<256x256xf32>
    %99 = arith.mulf %98, %97 : vector<256x256xf32>
    %100 = arith.maximumf %97, %99 : vector<256x256xf32>
    %cst_41 = arith.constant -1.000000e+30 : f32
    %101 = vector.broadcast %cst_41 : f32 to vector<256x256xf32>
    %102 = arith.select %33, %100, %101 : vector<256x256xi1>, vector<256x256xf32>
    %cst_42 = arith.constant dense<0xFF800000> : vector<256xf32>
    %103 = vector.multi_reduction <maximumf>, %102, %cst_42 [1] : vector<256x256xf32> to vector<256xf32>
    %104 = vector.shape_cast %103 : vector<256xf32> to vector<256x1xf32>
    %105 = vector.broadcast %104 : vector<256x1xf32> to vector<256x256xf32>
    %106 = arith.subf %102, %105 : vector<256x256xf32>
    %107 = math.exp %106 : vector<256x256xf32>
    %cst_43 = arith.constant 0.000000e+00 : f32
    %108 = vector.broadcast %cst_43 : f32 to vector<256x256xf32>
    %109 = arith.select %33, %107, %108 : vector<256x256xi1>, vector<256x256xf32>
    %cst_44 = arith.constant dense<0.000000e+00> : vector<256xf32>
    %110 = vector.multi_reduction <add>, %109, %cst_44 [1] : vector<256x256xf32> to vector<256xf32>
    %111 = vector.shape_cast %110 : vector<256xf32> to vector<256x1xf32>
    %cst_45 = arith.constant 9.99999968E-21 : f32
    %112 = vector.broadcast %cst_45 : f32 to vector<256x1xf32>
    %113 = arith.maximumf %111, %112 : vector<256x1xf32>
    %cst_46 = arith.constant 1.000000e+00 : f32
    %114 = vector.broadcast %cst_46 : f32 to vector<256x1xf32>
    %115 = arith.divf %114, %113 : vector<256x1xf32>
    %116 = vector.broadcast %115 : vector<256x1xf32> to vector<256x256xf32>
    %117 = arith.mulf %109, %116 : vector<256x256xf32>
    %118 = arith.truncf %117 : vector<256x256xf32> to vector<256x256xbf16>
    %119 = vector.extract_strided_slice %4 {offsets = [0, 256], sizes = [256, 128], strides = [1, 1]} : vector<256x384xbf16> to vector<256x128xbf16>
    %cst_47 = arith.constant dense<0.000000e+00> : vector<256x128xf32>
    %120 = tpu.matmul %118, %119, %cst_47 {dimension_numbers = #tpu.dot_dimension_numbers<[1], [0], [0], [1], [0, 0, 1, 1], [], []>} : vector<256x256xbf16>, vector<256x128xbf16>, vector<256x128xf32> -> vector<256x128xf32>
    %121 = arith.addf %92, %120 : vector<256x128xf32>
    %122 = arith.index_cast %28 : i32 to index
    %c0_48 = arith.constant 0 : index
    %123 = vector.load %arg17[%122, %c0_48] : memref<256x128xf32, #tpu.memory_space<vmem>>, vector<256x128xf32>
    tpu.vector_store %arg17[%122, %c0_48], %121 {strides = array<i32>} : memref<256x128xf32, #tpu.memory_space<vmem>>, vector<256x128xf32>,
    %c1_i32_49 = arith.constant 1 : i32
    %c0_50 = arith.constant 0 : index
    %c0_51 = arith.constant 0 : index
    %124 = vector.load %arg17[%c0_50, %c0_51] : memref<256x128xf32, #tpu.memory_space<vmem>>, vector<256x128xf32>
    %cst_52 = arith.constant dense<0.000000e+00> : vector<128xf32>
    %125 = vector.multi_reduction <add>, %124, %cst_52 [0] : vector<256x128xf32> to vector<128xf32>
    %126 = vector.shape_cast %125 : vector<128xf32> to vector<1x128xf32>
    %cst_53 = arith.constant 6.250000e-02 : f32
    %127 = vector.broadcast %cst_53 : f32 to vector<1x128xf32>
    %128 = arith.mulf %126, %127 : vector<1x128xf32>
    %129 = arith.mulf %124, %124 : vector<256x128xf32>
    %cst_54 = arith.constant dense<0.000000e+00> : vector<128xf32>
    %130 = vector.multi_reduction <add>, %129, %cst_54 [0] : vector<256x128xf32> to vector<128xf32>
    %131 = vector.shape_cast %130 : vector<128xf32> to vector<1x128xf32>
    %cst_55 = arith.constant 6.250000e-02 : f32
    %132 = vector.broadcast %cst_55 : f32 to vector<1x128xf32>
    %133 = arith.mulf %131, %132 : vector<1x128xf32>
    %134 = arith.mulf %128, %128 : vector<1x128xf32>
    %135 = arith.subf %133, %134 : vector<1x128xf32>
    %cst_56 = arith.constant 0.000000e+00 : f32
    %136 = vector.broadcast %cst_56 : f32 to vector<1x128xf32>
    %137 = arith.maximumf %135, %136 : vector<1x128xf32>
    %138 = vector.broadcast %128 : vector<1x128xf32> to vector<256x128xf32>
    %139 = arith.subf %124, %138 : vector<256x128xf32>
    %cst_57 = arith.constant 9.99999974E-6 : f32
    %140 = vector.broadcast %cst_57 : f32 to vector<1x128xf32>
    %141 = arith.addf %137, %140 : vector<1x128xf32>
    %142 = math.rsqrt %141 : vector<1x128xf32>
    %143 = vector.broadcast %142 : vector<1x128xf32> to vector<256x128xf32>
    %144 = arith.mulf %139, %143 : vector<256x128xf32>
    %c0_58 = arith.constant 0 : index
    %c0_59 = arith.constant 0 : index
    %145 = vector.load %arg5[%c0_58, %c0_59] : memref<1x128xf32, #tpu.memory_space<vmem>>, vector<1x128xf32>
    %146 = vector.broadcast %145 : vector<1x128xf32> to vector<256x128xf32>
    %147 = arith.mulf %144, %146 : vector<256x128xf32>
    %c0_60 = arith.constant 0 : index
    %c0_61 = arith.constant 0 : index
    %148 = vector.load %arg6[%c0_60, %c0_61] : memref<1x128xf32, #tpu.memory_space<vmem>>, vector<1x128xf32>
    %149 = vector.broadcast %148 : vector<1x128xf32> to vector<256x128xf32>
    %150 = arith.addf %147, %149 : vector<256x128xf32>
    %151 = math.tanh %150 : vector<256x128xf32>
    %152 = arith.truncf %151 : vector<256x128xf32> to vector<256x128xbf16>
    %c0_62 = arith.constant 0 : index
    %c0_63 = arith.constant 0 : index
    %153 = vector.load %arg7[%c0_62, %c0_63] : memref<128x512xbf16, #tpu.memory_space<vmem>>, vector<128x512xbf16>
    %cst_64 = arith.constant dense<0.000000e+00> : vector<256x512xf32>
    %154 = tpu.matmul %152, %153, %cst_64 {dimension_numbers = #tpu.dot_dimension_numbers<[1], [0], [0], [1], [0, 0, 1, 1], [], []>} : vector<256x128xbf16>, vector<128x512xbf16>, vector<256x512xf32> -> vector<256x512xf32>
    %155 = vector.extract_strided_slice %154 {offsets = [0, 0], sizes = [256, 384], strides = [1, 1]} : vector<256x512xf32> to vector<256x384xf32>
    %156 = arith.truncf %155 : vector<256x384xf32> to vector<256x384xbf16>
    %157 = vector.extract_strided_slice %154 {offsets = [0, 384], sizes = [256, 128], strides = [1, 1]} : vector<256x512xf32> to vector<256x128xf32>
    %c0_65 = arith.constant 0 : index
    %c0_66 = arith.constant 0 : index
    %158 = vector.load %arg16[%c0_65, %c0_66] : memref<256x128xf32, #tpu.memory_space<vmem>>, vector<256x128xf32>
    tpu.vector_store %arg16[%c0_65, %c0_66], %157 {strides = array<i32>} : memref<256x128xf32, #tpu.memory_space<vmem>>, vector<256x128xf32>,
    %159 = vector.extract_strided_slice %154 {offsets = [0, 384], sizes = [256, 8], strides = [1, 1]} : vector<256x512xf32> to vector<256x8xf32>
    %160 = tpu.transpose %159, [1, 0] : vector<256x8xf32> -> vector<8x256xf32>
    %c0_i32_67 = arith.constant 0 : i32
    %161 = tpu.assume_multiple %c0_i32_67, 256 : i32
    %c0_i32_68 = arith.constant 0 : i32
    %c0_i32_69 = arith.constant 0 : i32
    %c0_i32_70 = arith.constant 0 : i32
    %162 = tpu.memref_slice %arg1[%161, %c0_i32_70] : memref<256x256xbf16, #tpu.memory_space<any>> -> memref<256x256xbf16, #tpu.memory_space<any>>
    %c0_i32_71 = arith.constant 0 : i32
    %c0_i32_72 = arith.constant 0 : i32
    %163 = tpu.memref_slice %arg14[%c0_i32_68, %c0_i32_71, %c0_i32_72] : memref<2x256x256xbf16, #tpu.memory_space<vmem>> -> memref<1x256x256xbf16, #tpu.memory_space<vmem>>
    %164 = tpu.memref_squeeze %163 : memref<1x256x256xbf16, #tpu.memory_space<vmem>> -> memref<256x256xbf16, #tpu.memory_space<vmem>>
    %165 = tpu.memref_slice %arg15[%c0_i32_69] : memref<2x!tpu.dma_semaphore, #tpu.memory_space<semaphore_mem>> -> memref<1x!tpu.dma_semaphore, #tpu.memory_space<semaphore_mem>>
    %166 = tpu.memref_squeeze %165 : memref<1x!tpu.dma_semaphore, #tpu.memory_space<semaphore_mem>> -> memref<!tpu.dma_semaphore, #tpu.memory_space<semaphore_mem>>
    tpu.enqueue_dma source(%162 : memref<256x256xbf16, #tpu.memory_space<any>>) target(%164 : memref<256x256xbf16, #tpu.memory_space<vmem>>) target_semaphore(%166 : memref<!tpu.dma_semaphore, #tpu.memory_space<semaphore_mem>>)
    %c0_i32_73 = arith.constant 0 : i32
    %c1_i32_74 = arith.constant 1 : i32
    %167 = arith.muli %c0_i32_73, %c1_i32_74 : i32
    %c0_i32_75 = arith.constant 0 : i32
    %168 = arith.addi %c0_i32_75, %167 : i32
    %c1_i32_76 = arith.constant 1 : i32
    %169 = arith.andi %168, %c1_i32_76 : i32
    %c0_i32_77 = arith.constant 0 : i32
    %c0_i32_78 = arith.constant 0 : i32
    %170 = tpu.memref_slice %arg1[%c0_i32_77, %c0_i32_78] : memref<256x256xbf16, #tpu.memory_space<any>> -> memref<256x256xbf16, #tpu.memory_space<any>>
    %c0_i32_79 = arith.constant 0 : i32
    %c0_i32_80 = arith.constant 0 : i32
    %171 = tpu.memref_slice %arg14[%169, %c0_i32_79, %c0_i32_80] : memref<2x256x256xbf16, #tpu.memory_space<vmem>> -> memref<1x256x256xbf16, #tpu.memory_space<vmem>>
    %172 = tpu.memref_squeeze %171 : memref<1x256x256xbf16, #tpu.memory_space<vmem>> -> memref<256x256xbf16, #tpu.memory_space<vmem>>
    %173 = tpu.memref_slice %arg15[%169] : memref<2x!tpu.dma_semaphore, #tpu.memory_space<semaphore_mem>> -> memref<1x!tpu.dma_semaphore, #tpu.memory_space<semaphore_mem>>
    %174 = tpu.memref_squeeze %173 : memref<1x!tpu.dma_semaphore, #tpu.memory_space<semaphore_mem>> -> memref<!tpu.dma_semaphore, #tpu.memory_space<semaphore_mem>>
    tpu.wait_dma2 semaphore(%174 : memref<!tpu.dma_semaphore, #tpu.memory_space<semaphore_mem>>) src(%170 : memref<256x256xbf16, #tpu.memory_space<any>>) dst(%172 : memref<256x256xbf16, #tpu.memory_space<vmem>>)
    %c1_i32_81 = arith.constant 1 : i32
    %175 = arith.addi %168, %c1_i32_81 : i32
    %c1_i32_82 = arith.constant 1 : i32
    %176 = arith.cmpi slt, %175, %c1_i32_82 : i32
    %177 = arith.extui %176 : i1 to i32
    %c0_i32_83 = arith.constant 0 : i32
    %178 = arith.cmpi ne, %177, %c0_i32_83 : i32
    scf.if %178 {
      %c1_i32_148 = arith.constant 1 : i32
      %347 = arith.addi %168, %c1_i32_148 : i32
      %c1_i32_149 = arith.constant 1 : i32
      %348 = arith.subi %c1_i32_149, %169 : i32
      %c256_i32_150 = arith.constant 256 : i32
      %349 = arith.muli %347, %c256_i32_150 : i32
      %350 = tpu.assume_multiple %349, 256 : i32
      %c0_i32_151 = arith.constant 0 : i32
      %351 = tpu.memref_slice %arg1[%350, %c0_i32_151] : memref<256x256xbf16, #tpu.memory_space<any>> -> memref<256x256xbf16, #tpu.memory_space<any>>
      %c0_i32_152 = arith.constant 0 : i32
      %c0_i32_153 = arith.constant 0 : i32
      %352 = tpu.memref_slice %arg14[%348, %c0_i32_152, %c0_i32_153] : memref<2x256x256xbf16, #tpu.memory_space<vmem>> -> memref<1x256x256xbf16, #tpu.memory_space<vmem>>
      %353 = tpu.memref_squeeze %352 : memref<1x256x256xbf16, #tpu.memory_space<vmem>> -> memref<256x256xbf16, #tpu.memory_space<vmem>>
      %354 = tpu.memref_slice %arg15[%348] : memref<2x!tpu.dma_semaphore, #tpu.memory_space<semaphore_mem>> -> memref<1x!tpu.dma_semaphore, #tpu.memory_space<semaphore_mem>>
      %355 = tpu.memref_squeeze %354 : memref<1x!tpu.dma_semaphore, #tpu.memory_space<semaphore_mem>> -> memref<!tpu.dma_semaphore, #tpu.memory_space<semaphore_mem>>
      tpu.enqueue_dma source(%351 : memref<256x256xbf16, #tpu.memory_space<any>>) target(%353 : memref<256x256xbf16, #tpu.memory_space<vmem>>) target_semaphore(%355 : memref<!tpu.dma_semaphore, #tpu.memory_space<semaphore_mem>>)
    } else {
    }
    %c256_i32_84 = arith.constant 256 : i32
    %179 = arith.muli %168, %c256_i32_84 : i32
    %180 = tpu.assume_multiple %179, 256 : i32
    %181 = arith.index_cast %169 : i32 to index
    %c0_85 = arith.constant 0 : index
    %c0_86 = arith.constant 0 : index
    %182 = vector.load %arg14[%181, %c0_85, %c0_86] : memref<2x256x256xbf16, #tpu.memory_space<vmem>>, vector<1x256x256xbf16>
    %183 = vector.shape_cast %182 : vector<1x256x256xbf16> to vector<256x256xbf16>
    %cst_87 = arith.constant 0.000000e+00 : bf16
    %184 = vector.broadcast %cst_87 : bf16 to vector<256x256xbf16>
    %185 = arith.cmpf ogt, %183, %184 : vector<256x256xbf16>
    %186 = arith.index_cast %180 : i32 to index
    %c0_88 = arith.constant 0 : index
    %187 = vector.load %arg16[%186, %c0_88] : memref<256x128xf32, #tpu.memory_space<vmem>>, vector<256x128xf32>
    %188 = vector.extract_strided_slice %187 {offsets = [0, 3], sizes = [256, 1], strides = [1, 1]} : vector<256x128xf32> to vector<256x1xf32>
    %189 = vector.extract_strided_slice %160 {offsets = [0, 0], sizes = [1, 256], strides = [1, 1]} : vector<8x256xf32> to vector<1x256xf32>
    %190 = vector.broadcast %188 : vector<256x1xf32> to vector<256x256xf32>
    %191 = vector.broadcast %189 : vector<1x256xf32> to vector<256x256xf32>
    %192 = arith.addf %190, %191 : vector<256x256xf32>
    %cst_89 = arith.constant 2.000000e-01 : f32
    %193 = vector.broadcast %cst_89 : f32 to vector<256x256xf32>
    %194 = arith.mulf %193, %192 : vector<256x256xf32>
    %195 = arith.maximumf %192, %194 : vector<256x256xf32>
    %cst_90 = arith.constant -1.000000e+30 : f32
    %196 = vector.broadcast %cst_90 : f32 to vector<256x256xf32>
    %197 = arith.select %185, %195, %196 : vector<256x256xi1>, vector<256x256xf32>
    %cst_91 = arith.constant dense<0xFF800000> : vector<256xf32>
    %198 = vector.multi_reduction <maximumf>, %197, %cst_91 [1] : vector<256x256xf32> to vector<256xf32>
    %199 = vector.shape_cast %198 : vector<256xf32> to vector<256x1xf32>
    %200 = vector.broadcast %199 : vector<256x1xf32> to vector<256x256xf32>
    %201 = arith.subf %197, %200 : vector<256x256xf32>
    %202 = math.exp %201 : vector<256x256xf32>
    %cst_92 = arith.constant 0.000000e+00 : f32
    %203 = vector.broadcast %cst_92 : f32 to vector<256x256xf32>
    %204 = arith.select %185, %202, %203 : vector<256x256xi1>, vector<256x256xf32>
    %cst_93 = arith.constant dense<0.000000e+00> : vector<256xf32>
    %205 = vector.multi_reduction <add>, %204, %cst_93 [1] : vector<256x256xf32> to vector<256xf32>
    %206 = vector.shape_cast %205 : vector<256xf32> to vector<256x1xf32>
    %cst_94 = arith.constant 9.99999968E-21 : f32
    %207 = vector.broadcast %cst_94 : f32 to vector<256x1xf32>
    %208 = arith.maximumf %206, %207 : vector<256x1xf32>
    %cst_95 = arith.constant 1.000000e+00 : f32
    %209 = vector.broadcast %cst_95 : f32 to vector<256x1xf32>
    %210 = arith.divf %209, %208 : vector<256x1xf32>
    %211 = vector.broadcast %210 : vector<256x1xf32> to vector<256x256xf32>
    %212 = arith.mulf %204, %211 : vector<256x256xf32>
    %213 = arith.truncf %212 : vector<256x256xf32> to vector<256x256xbf16>
    %214 = vector.extract_strided_slice %156 {offsets = [0, 0], sizes = [256, 128], strides = [1, 1]} : vector<256x384xbf16> to vector<256x128xbf16>
    %cst_96 = arith.constant dense<0.000000e+00> : vector<256x128xf32>
    %215 = tpu.matmul %213, %214, %cst_96 {dimension_numbers = #tpu.dot_dimension_numbers<[1], [0], [0], [1], [0, 0, 1, 1], [], []>} : vector<256x256xbf16>, vector<256x128xbf16>, vector<256x128xf32> -> vector<256x128xf32>
    %216 = vector.extract_strided_slice %187 {offsets = [0, 4], sizes = [256, 1], strides = [1, 1]} : vector<256x128xf32> to vector<256x1xf32>
    %217 = vector.extract_strided_slice %160 {offsets = [1, 0], sizes = [1, 256], strides = [1, 1]} : vector<8x256xf32> to vector<1x256xf32>
    %218 = vector.broadcast %216 : vector<256x1xf32> to vector<256x256xf32>
    %219 = vector.broadcast %217 : vector<1x256xf32> to vector<256x256xf32>
    %220 = arith.addf %218, %219 : vector<256x256xf32>
    %cst_97 = arith.constant 2.000000e-01 : f32
    %221 = vector.broadcast %cst_97 : f32 to vector<256x256xf32>
    %222 = arith.mulf %221, %220 : vector<256x256xf32>
    %223 = arith.maximumf %220, %222 : vector<256x256xf32>
    %cst_98 = arith.constant -1.000000e+30 : f32
    %224 = vector.broadcast %cst_98 : f32 to vector<256x256xf32>
    %225 = arith.select %185, %223, %224 : vector<256x256xi1>, vector<256x256xf32>
    %cst_99 = arith.constant dense<0xFF800000> : vector<256xf32>
    %226 = vector.multi_reduction <maximumf>, %225, %cst_99 [1] : vector<256x256xf32> to vector<256xf32>
    %227 = vector.shape_cast %226 : vector<256xf32> to vector<256x1xf32>
    %228 = vector.broadcast %227 : vector<256x1xf32> to vector<256x256xf32>
    %229 = arith.subf %225, %228 : vector<256x256xf32>
    %230 = math.exp %229 : vector<256x256xf32>
    %cst_100 = arith.constant 0.000000e+00 : f32
    %231 = vector.broadcast %cst_100 : f32 to vector<256x256xf32>
    %232 = arith.select %185, %230, %231 : vector<256x256xi1>, vector<256x256xf32>
    %cst_101 = arith.constant dense<0.000000e+00> : vector<256xf32>
    %233 = vector.multi_reduction <add>, %232, %cst_101 [1] : vector<256x256xf32> to vector<256xf32>
    %234 = vector.shape_cast %233 : vector<256xf32> to vector<256x1xf32>
    %cst_102 = arith.constant 9.99999968E-21 : f32
    %235 = vector.broadcast %cst_102 : f32 to vector<256x1xf32>
    %236 = arith.maximumf %234, %235 : vector<256x1xf32>
    %cst_103 = arith.constant 1.000000e+00 : f32
    %237 = vector.broadcast %cst_103 : f32 to vector<256x1xf32>
    %238 = arith.divf %237, %236 : vector<256x1xf32>
    %239 = vector.broadcast %238 : vector<256x1xf32> to vector<256x256xf32>
    %240 = arith.mulf %232, %239 : vector<256x256xf32>
    %241 = arith.truncf %240 : vector<256x256xf32> to vector<256x256xbf16>
    %242 = vector.extract_strided_slice %156 {offsets = [0, 128], sizes = [256, 128], strides = [1, 1]} : vector<256x384xbf16> to vector<256x128xbf16>
    %cst_104 = arith.constant dense<0.000000e+00> : vector<256x128xf32>
    %243 = tpu.matmul %241, %242, %cst_104 {dimension_numbers = #tpu.dot_dimension_numbers<[1], [0], [0], [1], [0, 0, 1, 1], [], []>} : vector<256x256xbf16>, vector<256x128xbf16>, vector<256x128xf32> -> vector<256x128xf32>
    %244 = arith.addf %215, %243 : vector<256x128xf32>
    %245 = vector.extract_strided_slice %187 {offsets = [0, 5], sizes = [256, 1], strides = [1, 1]} : vector<256x128xf32> to vector<256x1xf32>
    %246 = vector.extract_strided_slice %160 {offsets = [2, 0], sizes = [1, 256], strides = [1, 1]} : vector<8x256xf32> to vector<1x256xf32>
    %247 = vector.broadcast %245 : vector<256x1xf32> to vector<256x256xf32>
    %248 = vector.broadcast %246 : vector<1x256xf32> to vector<256x256xf32>
    %249 = arith.addf %247, %248 : vector<256x256xf32>
    %cst_105 = arith.constant 2.000000e-01 : f32
    %250 = vector.broadcast %cst_105 : f32 to vector<256x256xf32>
    %251 = arith.mulf %250, %249 : vector<256x256xf32>
    %252 = arith.maximumf %249, %251 : vector<256x256xf32>
    %cst_106 = arith.constant -1.000000e+30 : f32
    %253 = vector.broadcast %cst_106 : f32 to vector<256x256xf32>
    %254 = arith.select %185, %252, %253 : vector<256x256xi1>, vector<256x256xf32>
    %cst_107 = arith.constant dense<0xFF800000> : vector<256xf32>
    %255 = vector.multi_reduction <maximumf>, %254, %cst_107 [1] : vector<256x256xf32> to vector<256xf32>
    %256 = vector.shape_cast %255 : vector<256xf32> to vector<256x1xf32>
    %257 = vector.broadcast %256 : vector<256x1xf32> to vector<256x256xf32>
    %258 = arith.subf %254, %257 : vector<256x256xf32>
    %259 = math.exp %258 : vector<256x256xf32>
    %cst_108 = arith.constant 0.000000e+00 : f32
    %260 = vector.broadcast %cst_108 : f32 to vector<256x256xf32>
    %261 = arith.select %185, %259, %260 : vector<256x256xi1>, vector<256x256xf32>
    %cst_109 = arith.constant dense<0.000000e+00> : vector<256xf32>
    %262 = vector.multi_reduction <add>, %261, %cst_109 [1] : vector<256x256xf32> to vector<256xf32>
    %263 = vector.shape_cast %262 : vector<256xf32> to vector<256x1xf32>
    %cst_110 = arith.constant 9.99999968E-21 : f32
    %264 = vector.broadcast %cst_110 : f32 to vector<256x1xf32>
    %265 = arith.maximumf %263, %264 : vector<256x1xf32>
    %cst_111 = arith.constant 1.000000e+00 : f32
    %266 = vector.broadcast %cst_111 : f32 to vector<256x1xf32>
    %267 = arith.divf %266, %265 : vector<256x1xf32>
    %268 = vector.broadcast %267 : vector<256x1xf32> to vector<256x256xf32>
    %269 = arith.mulf %261, %268 : vector<256x256xf32>
    %270 = arith.truncf %269 : vector<256x256xf32> to vector<256x256xbf16>
    %271 = vector.extract_strided_slice %156 {offsets = [0, 256], sizes = [256, 128], strides = [1, 1]} : vector<256x384xbf16> to vector<256x128xbf16>
    %cst_112 = arith.constant dense<0.000000e+00> : vector<256x128xf32>
    %272 = tpu.matmul %270, %271, %cst_112 {dimension_numbers = #tpu.dot_dimension_numbers<[1], [0], [0], [1], [0, 0, 1, 1], [], []>} : vector<256x256xbf16>, vector<256x128xbf16>, vector<256x128xf32> -> vector<256x128xf32>
    %273 = arith.addf %244, %272 : vector<256x128xf32>
    %274 = arith.index_cast %180 : i32 to index
    %c0_113 = arith.constant 0 : index
    %275 = vector.load %arg18[%274, %c0_113] : memref<256x128xf32, #tpu.memory_space<vmem>>, vector<256x128xf32>
    tpu.vector_store %arg18[%274, %c0_113], %273 {strides = array<i32>} : memref<256x128xf32, #tpu.memory_space<vmem>>, vector<256x128xf32>,
    %c1_i32_114 = arith.constant 1 : i32
    %c0_115 = arith.constant 0 : index
    %c0_116 = arith.constant 0 : index
    %276 = vector.load %arg18[%c0_115, %c0_116] : memref<256x128xf32, #tpu.memory_space<vmem>>, vector<256x128xf32>
    %cst_117 = arith.constant dense<0.000000e+00> : vector<128xf32>
    %277 = vector.multi_reduction <add>, %276, %cst_117 [0] : vector<256x128xf32> to vector<128xf32>
    %278 = vector.shape_cast %277 : vector<128xf32> to vector<1x128xf32>
    %cst_118 = arith.constant 6.250000e-02 : f32
    %279 = vector.broadcast %cst_118 : f32 to vector<1x128xf32>
    %280 = arith.mulf %278, %279 : vector<1x128xf32>
    %281 = arith.mulf %276, %276 : vector<256x128xf32>
    %cst_119 = arith.constant dense<0.000000e+00> : vector<128xf32>
    %282 = vector.multi_reduction <add>, %281, %cst_119 [0] : vector<256x128xf32> to vector<128xf32>
    %283 = vector.shape_cast %282 : vector<128xf32> to vector<1x128xf32>
    %cst_120 = arith.constant 6.250000e-02 : f32
    %284 = vector.broadcast %cst_120 : f32 to vector<1x128xf32>
    %285 = arith.mulf %283, %284 : vector<1x128xf32>
    %286 = arith.mulf %280, %280 : vector<1x128xf32>
    %287 = arith.subf %285, %286 : vector<1x128xf32>
    %cst_121 = arith.constant 0.000000e+00 : f32
    %288 = vector.broadcast %cst_121 : f32 to vector<1x128xf32>
    %289 = arith.maximumf %287, %288 : vector<1x128xf32>
    %290 = vector.broadcast %280 : vector<1x128xf32> to vector<256x128xf32>
    %291 = arith.subf %276, %290 : vector<256x128xf32>
    %cst_122 = arith.constant 9.99999974E-6 : f32
    %292 = vector.broadcast %cst_122 : f32 to vector<1x128xf32>
    %293 = arith.addf %289, %292 : vector<1x128xf32>
    %294 = math.rsqrt %293 : vector<1x128xf32>
    %295 = vector.broadcast %294 : vector<1x128xf32> to vector<256x128xf32>
    %296 = arith.mulf %291, %295 : vector<256x128xf32>
    %c0_123 = arith.constant 0 : index
    %c0_124 = arith.constant 0 : index
    %297 = vector.load %arg8[%c0_123, %c0_124] : memref<1x128xf32, #tpu.memory_space<vmem>>, vector<1x128xf32>
    %298 = vector.broadcast %297 : vector<1x128xf32> to vector<256x128xf32>
    %299 = arith.mulf %296, %298 : vector<256x128xf32>
    %c0_125 = arith.constant 0 : index
    %c0_126 = arith.constant 0 : index
    %300 = vector.load %arg9[%c0_125, %c0_126] : memref<1x128xf32, #tpu.memory_space<vmem>>, vector<1x128xf32>
    %301 = vector.broadcast %300 : vector<1x128xf32> to vector<256x128xf32>
    %302 = arith.addf %299, %301 : vector<256x128xf32>
    %303 = math.tanh %302 : vector<256x128xf32>
    %304 = arith.truncf %303 : vector<256x128xf32> to vector<256x128xbf16>
    %c0_127 = arith.constant 0 : index
    %c0_128 = arith.constant 0 : index
    %305 = vector.load %arg2[%c0_127, %c0_128] : memref<2x256xbf16, #tpu.memory_space<vmem>>, vector<2x256xbf16>
    %cst_129 = arith.constant dense<0.000000e+00> : vector<2x128xf32>
    %306 = tpu.matmul %305, %304, %cst_129 {dimension_numbers = #tpu.dot_dimension_numbers<[1], [0], [0], [1], [0, 0, 1, 1], [], []>} : vector<2x256xbf16>, vector<256x128xbf16>, vector<2x128xf32> -> vector<2x128xf32>
    %c0_130 = arith.constant 0 : index
    %c0_131 = arith.constant 0 : index
    %307 = vector.load %arg3[%c0_130, %c0_131] : memref<2x1xf32, #tpu.memory_space<vmem>>, vector<2x1xf32>
    %308 = vector.broadcast %307 : vector<2x1xf32> to vector<2x128xf32>
    %309 = arith.mulf %306, %308 : vector<2x128xf32>
    %310 = arith.truncf %309 : vector<2x128xf32> to vector<2x128xbf16>
    %c0_132 = arith.constant 0 : index
    %c0_133 = arith.constant 0 : index
    %311 = vector.load %arg10[%c0_132, %c0_133] : memref<128x4xbf16, #tpu.memory_space<vmem>>, vector<128x4xbf16>
    %cst_134 = arith.constant dense<0.000000e+00> : vector<2x4xf32>
    %312 = tpu.matmul %310, %311, %cst_134 {dimension_numbers = #tpu.dot_dimension_numbers<[1], [0], [0], [1], [0, 0, 1, 1], [], []>} : vector<2x128xbf16>, vector<128x4xbf16>, vector<2x4xf32> -> vector<2x4xf32>
    %cst_135 = arith.constant dense<0.000000e+00> : vector<4xf32>
    %313 = vector.multi_reduction <add>, %312, %cst_135 [0] : vector<2x4xf32> to vector<4xf32>
    %314 = vector.shape_cast %313 : vector<4xf32> to vector<1x4xf32>
    %cst_136 = arith.constant 2.000000e+00 : f32
    %315 = vector.broadcast %cst_136 : f32 to vector<1x4xf32>
    %316 = arith.divf %314, %315 : vector<1x4xf32>
    %317 = vector.broadcast %316 : vector<1x4xf32> to vector<2x4xf32>
    %318 = arith.subf %312, %317 : vector<2x4xf32>
    %319 = arith.mulf %318, %318 : vector<2x4xf32>
    %cst_137 = arith.constant dense<0.000000e+00> : vector<4xf32>
    %320 = vector.multi_reduction <add>, %319, %cst_137 [0] : vector<2x4xf32> to vector<4xf32>
    %321 = vector.shape_cast %320 : vector<4xf32> to vector<1x4xf32>
    %cst_138 = arith.constant 2.000000e+00 : f32
    %322 = vector.broadcast %cst_138 : f32 to vector<1x4xf32>
    %323 = arith.divf %321, %322 : vector<1x4xf32>
    %cst_139 = arith.constant 9.99999974E-6 : f32
    %324 = vector.broadcast %cst_139 : f32 to vector<1x4xf32>
    %325 = arith.addf %323, %324 : vector<1x4xf32>
    %326 = math.rsqrt %325 : vector<1x4xf32>
    %327 = vector.broadcast %326 : vector<1x4xf32> to vector<2x4xf32>
    %328 = arith.mulf %318, %327 : vector<2x4xf32>
    %c0_140 = arith.constant 0 : index
    %c0_141 = arith.constant 0 : index
    %329 = vector.load %arg11[%c0_140, %c0_141] : memref<1x4xf32, #tpu.memory_space<vmem>>, vector<1x4xf32>
    %330 = vector.broadcast %329 : vector<1x4xf32> to vector<2x4xf32>
    %331 = arith.mulf %328, %330 : vector<2x4xf32>
    %c0_142 = arith.constant 0 : index
    %c0_143 = arith.constant 0 : index
    %332 = vector.load %arg12[%c0_142, %c0_143] : memref<1x4xf32, #tpu.memory_space<vmem>>, vector<1x4xf32>
    %333 = vector.broadcast %332 : vector<1x4xf32> to vector<2x4xf32>
    %334 = arith.addf %331, %333 : vector<2x4xf32>
    %cst_144 = arith.constant dense<0xFF800000> : vector<2xf32>
    %335 = vector.multi_reduction <maximumf>, %334, %cst_144 [1] : vector<2x4xf32> to vector<2xf32>
    %336 = vector.shape_cast %335 : vector<2xf32> to vector<2x1xf32>
    %337 = vector.broadcast %336 : vector<2x1xf32> to vector<2x4xf32>
    %338 = arith.subf %334, %337 : vector<2x4xf32>
    %339 = math.exp %338 : vector<2x4xf32>
    %cst_145 = arith.constant dense<0.000000e+00> : vector<2xf32>
    %340 = vector.multi_reduction <add>, %339, %cst_145 [1] : vector<2x4xf32> to vector<2xf32>
    %341 = vector.shape_cast %340 : vector<2xf32> to vector<2x1xf32>
    %342 = math.log %341 : vector<2x1xf32>
    %343 = arith.addf %342, %336 : vector<2x1xf32>
    %344 = vector.broadcast %343 : vector<2x1xf32> to vector<2x4xf32>
    %345 = arith.subf %334, %344 : vector<2x4xf32>
    %c0_146 = arith.constant 0 : index
    %c0_147 = arith.constant 0 : index
    %346 = vector.load %arg13[%c0_146, %c0_147] : memref<2x4xf32, #tpu.memory_space<vmem>>, vector<2x4xf32>
    tpu.vector_store %arg13[%c0_146, %c0_147], %345 {strides = array<i32>} : memref<2x4xf32, #tpu.memory_space<vmem>>, vector<2x4xf32>,
    return
  }
}

</mosaic_0001>

<llo_original>
// kernel: tpu_custom_call.1
$region0: #{tpu_custom_call.1}
  #allocation0 [shape = 'u32[]', space=smem, size = 0x4, offset = 0x4, fixed_abs, tag = 'smem constant byte address 0x4 - core index']
  #allocation1 [shape = 'u32[144,128]{1,0:T(1,128)}', space=vmem, size = 0x12000, scoped, tag = 'internal scratch']
  #allocation2 [shape = 'bf16[2,256,256]{2,1,0:T(16,128)(2,1)}', space=vmem, size = 0x40000, scoped, tag = 'scratch operand']
  #allocation3 [shape = 's32[2]{0}', space=sflag, size = 0x8, scoped, tag = 'scratch operand']
  #allocation4 [shape = 'f32[256,128]{1,0:T(8,128)}', space=vmem, size = 0x20000, scoped, tag = 'scratch operand']
  #allocation5 [shape = 'f32[256,128]{1,0:T(8,128)}', space=vmem, size = 0x20000, scoped, tag = 'scratch operand']
  #allocation6 [shape = 'f32[256,128]{1,0:T(8,128)}', space=vmem, size = 0x20000, scoped, tag = 'scratch operand']
  #allocation28 [shape = 's32[]', space=sflag, size = 0x4, offset = 0, fixed_abs, tag = 'sflag constant byte address 0x0 - dummy sync flag']
  #allocation30 [shape = 's32[]', space=sflag, size = 0x4, offset = 0, fixed_abs, tag = 'sflag constant byte address 0x0 - dummy sync flag']
  %s0 = inlined_call_operand.hbm [shape: bf16[256,128], index: 0, kind: input, shape index: {}]
  %s1 = inlined_call_operand.hbm [shape: bf16[256,256], index: 1, kind: input, shape index: {}]
  %s2 = inlined_call_operand.hbm [shape: bf16[2,256], index: 2, kind: input, shape index: {}]
  %s3 = inlined_call_operand.hbm [shape: f32[2,1], index: 3, kind: input, shape index: {}]
  %s4 = inlined_call_operand.hbm [shape: bf16[128,512], index: 4, kind: input, shape index: {}]
  %s5 = inlined_call_operand.hbm [shape: f32[1,128], index: 5, kind: input, shape index: {}]
  %s6 = inlined_call_operand.hbm [shape: f32[1,128], index: 6, kind: input, shape index: {}]
  %s7 = inlined_call_operand.hbm [shape: bf16[128,512], index: 7, kind: input, shape index: {}]
  %s8 = inlined_call_operand.hbm [shape: f32[1,128], index: 8, kind: input, shape index: {}]
  %s9 = inlined_call_operand.hbm [shape: f32[1,128], index: 9, kind: input, shape index: {}]
  %s10 = inlined_call_operand.hbm [shape: bf16[128,4], index: 10, kind: input, shape index: {}]
  %s11 = inlined_call_operand.hbm [shape: f32[1,4], index: 11, kind: input, shape index: {}]
  %s12 = inlined_call_operand.hbm [shape: f32[1,4], index: 12, kind: input, shape index: {}]
  %s13 = inlined_call_operand.hbm [shape: f32[2,4], index: 13, kind: output, shape index: {}]
  %s14 = sld [smem:[#allocation0]]
  $region106: #{tpu_custom_call.1} parent=0
    _
  %s16 = ssub.s32 1, %s14
  %s17 = scalar_select 0, %s16, %s14
  $region1: #{tpu_custom_call.1} parent=0
    #allocation7 [shape = 'u8[65536]{0}', space=vmem, size = 0x10000, scoped, tag = 'input window, operand 0, single buffered']
    #allocation8 [shape = 's32[1]{0}', space=sflag, size = 0x4, scoped, tag = 'scoped memory for tpu_custom_call.1']
    #allocation9 [shape = 's32[1]{0}', space=sflag, size = 0x4, scoped, tag = 'scoped memory for tpu_custom_call.1']
    #allocation10 [shape = 'u8[1024]{0}', space=vmem, size = 0x400, scoped, tag = 'input window, operand 2, single buffered']
    #allocation11 [shape = 's32[1]{0}', space=sflag, size = 0x4, scoped, tag = 'scoped memory for tpu_custom_call.1']
    #allocation12 [shape = 'u8[1024]{0}', space=vmem, size = 0x400, scoped, tag = 'input window, operand 3, single buffered']
    #allocation13 [shape = 'u8[131072]{0}', space=vmem, size = 0x20000, scoped, tag = 'input window, operand 4, single buffered']
    #allocation14 [shape = 's32[1]{0}', space=sflag, size = 0x4, scoped, tag = 'scoped memory for tpu_custom_call.1']
    #allocation15 [shape = 'u8[512]{0}', space=vmem, size = 0x400, scoped, tag = 'input window, operand 5, single buffered']
    #allocation16 [shape = 'u8[512]{0}', space=vmem, size = 0x400, scoped, tag = 'input window, operand 6, single buffered']
    #allocation17 [shape = 's32[1]{0}', space=sflag, size = 0x4, scoped, tag = 'scoped memory for tpu_custom_call.1']
    #allocation18 [shape = 'u8[131072]{0}', space=vmem, size = 0x20000, scoped, tag = 'input window, operand 7, single buffered']
    #allocation19 [shape = 'u8[512]{0}', space=vmem, size = 0x400, scoped, tag = 'input window, operand 8, single buffered']
    #allocation20 [shape = 's32[1]{0}', space=sflag, size = 0x4, scoped, tag = 'scoped memory for tpu_custom_call.1']
    #allocation21 [shape = 'u8[512]{0}', space=vmem, size = 0x400, scoped, tag = 'input window, operand 9, single buffered']
    #allocation22 [shape = 'u8[32768]{0}', space=vmem, size = 0x8000, scoped, tag = 'input window, operand 10, single buffered']
    #allocation23 [shape = 's32[1]{0}', space=sflag, size = 0x4, scoped, tag = 'scoped memory for tpu_custom_call.1']
    #allocation24 [shape = 'u8[512]{0}', space=vmem, size = 0x400, scoped, tag = 'input window, operand 11, single buffered']
    #allocation25 [shape = 'u8[512]{0}', space=vmem, size = 0x400, scoped, tag = 'input window, operand 12, single buffered']
    #allocation26 [shape = 's32[1]{0}', space=sflag, size = 0x4, scoped, tag = 'scoped memory for tpu_custom_call.1']
    #allocation27 [shape = 'u8[1024]{0}', space=vmem, size = 0x400, scoped, tag = 'output window, operand 0, single buffered']
    #allocation29 [shape = 'u32[9]{0}', space=smem, size = 0x24, scoped, tag = 'DMA stride descriptor']
    #allocation31 [shape = 'u32[9]{0}', space=smem, size = 0x24, scoped, tag = 'DMA stride descriptor']
    %18 = vsyncpa [#allocation8], 0
    %19 = vsyncpa [#allocation11], 0
    %20 = vsyncpa [#allocation14], 0
    %21 = vsyncpa [#allocation17], 0
    %22 = vsyncpa [#allocation20], 0
    %23 = vsyncpa [#allocation23], 0
    %24 = vsyncpa [#allocation26], 0
    %25 = vsyncpa [#allocation9], 0
    // Predicated region
    $region2: #{tpu_custom_call.1} parent=1 // pred_check
      _
    $region3: #{tpu_custom_call.1} parent=1 // pred_check_branch
      %27 = sbr.rel (0) target = $region5
    $region4: #{tpu_custom_call.1} parent=1 // pred_region
      %s29 = ssub.s32 2048, 2048
      %30 = vsyncadd [#allocation8], %s29
      %s31 = sshll.u32 [#allocation7], 4
      %s32 = int_to_ptr.vmem [resolvable:$true] %s31
      %37 = dma.hbm_to_vmem [thread:$0]  %s0, 2048, %s32, [#allocation8], 64, 64, 4
    $region5: #{tpu_custom_call.1} parent=1 // pred_fallthru
      _
    // Predicated region
    $region6: #{tpu_custom_call.1} parent=1 // pred_check
      _
    $region7: #{tpu_custom_call.1} parent=1 // pred_check_branch
      %39 = sbr.rel (0) target = $region9
    $region8: #{tpu_custom_call.1} parent=1 // pred_region
      %s41 = ssub.s32 32, 32
      %42 = vsyncadd [#allocation11], %s41
      %s44 = sshll.u32 [#allocation10], 4
      %s45 = int_to_ptr.vmem [resolvable:$true] %s44
      %47 = dma.hbm_to_vmem [thread:$0]  %s2, 32, %s45, [#allocation11]
    $region9: #{tpu_custom_call.1} parent=1 // pred_fallthru
      _
    // Predicated region
    $region10: #{tpu_custom_call.1} parent=1 // pred_check
      _
    $region11: #{tpu_custom_call.1} parent=1 // pred_check_branch
      %49 = sbr.rel (0) target = $region13
    $region12: #{tpu_custom_call.1} parent=1 // pred_region
      %s51 = ssub.s32 32, 32
      %52 = vsyncadd [#allocation11], %s51
      %s54 = sshll.u32 [#allocation12], 4
      %s55 = int_to_ptr.vmem [resolvable:$true] %s54
      %57 = dma.hbm_to_vmem [thread:$0]  %s3, 32, %s55, [#allocation11]
    $region13: #{tpu_custom_call.1} parent=1 // pred_fallthru
      _
    // Predicated region
    $region14: #{tpu_custom_call.1} parent=1 // pred_check
      _
    $region15: #{tpu_custom_call.1} parent=1 // pred_check_branch
      %59 = sbr.rel (0) target = $region17
    $region16: #{tpu_custom_call.1} parent=1 // pred_region
      %s61 = ssub.s32 4096, 4096
      %62 = vsyncadd [#allocation14], %s61
      %s63 = sshll.u32 [#allocation13], 4
      %s64 = int_to_ptr.vmem [resolvable:$true] %s63
      %69 = dma.hbm_to_vmem [thread:$0]  %s4, 4096, %s64, [#allocation14], 256, 256, 16
    $region17: #{tpu_custom_call.1} parent=1 // pred_fallthru
      _
    // Predicated region
    $region18: #{tpu_custom_call.1} parent=1 // pred_check
      _
    $region19: #{tpu_custom_call.1} parent=1 // pred_check_branch
      %71 = sbr.rel (0) target = $region21
    $region20: #{tpu_custom_call.1} parent=1 // pred_region
      %s73 = ssub.s32 16, 16
      %74 = vsyncadd [#allocation14], %s73
      %s76 = sshll.u32 [#allocation15], 4
      %s77 = int_to_ptr.vmem [resolvable:$true] %s76
      %79 = dma.hbm_to_vmem [thread:$0]  %s5, 16, %s77, [#allocation14]
    $region21: #{tpu_custom_call.1} parent=1 // pred_fallthru
      _
    // Predicated region
    $region22: #{tpu_custom_call.1} parent=1 // pred_check
      _
    $region23: #{tpu_custom_call.1} parent=1 // pred_check_branch
      %81 = sbr.rel (0) target = $region25
    $region24: #{tpu_custom_call.1} parent=1 // pred_region
      %s83 = ssub.s32 16, 16
      %84 = vsyncadd [#allocation17], %s83
      %s86 = sshll.u32 [#allocation16], 4
      %s87 = int_to_ptr.vmem [resolvable:$true] %s86
      %89 = dma.hbm_to_vmem [thread:$0]  %s6, 16, %s87, [#allocation17]
    $region25: #{tpu_custom_call.1} parent=1 // pred_fallthru
      _
    // Predicated region
    $region26: #{tpu_custom_call.1} parent=1 // pred_check
      _
    $region27: #{tpu_custom_call.1} parent=1 // pred_check_branch
      %91 = sbr.rel (0) target = $region29
    $region28: #{tpu_custom_call.1} parent=1 // pred_region
      %s93 = ssub.s32 4096, 4096
      %94 = vsyncadd [#allocation17], %s93
      %s95 = sshll.u32 [#allocation18], 4
      %s96 = int_to_ptr.vmem [resolvable:$true] %s95
      %101 = dma.hbm_to_vmem [thread:$0]  %s7, 4096, %s96, [#allocation17], 256, 256, 16
    $region29: #{tpu_custom_call.1} parent=1 // pred_fallthru
      _
    // Predicated region
    $region30: #{tpu_custom_call.1} parent=1 // pred_check
      _
    $region31: #{tpu_custom_call.1} parent=1 // pred_check_branch
      %103 = sbr.rel (0) target = $region33
    $region32: #{tpu_custom_call.1} parent=1 // pred_region
      %s105 = ssub.s32 16, 16
      %106 = vsyncadd [#allocation20], %s105
      %s108 = sshll.u32 [#allocation19], 4
      %s109 = int_to_ptr.vmem [resolvable:$true] %s108
      %111 = dma.hbm_to_vmem [thread:$0]  %s8, 16, %s109, [#allocation20]
    $region33: #{tpu_custom_call.1} parent=1 // pred_fallthru
      _
    // Predicated region
    $region34: #{tpu_custom_call.1} parent=1 // pred_check
      _
    $region35: #{tpu_custom_call.1} parent=1 // pred_check_branch
      %113 = sbr.rel (0) target = $region37
    $region36: #{tpu_custom_call.1} parent=1 // pred_region
      %s115 = ssub.s32 16, 16
      %116 = vsyncadd [#allocation20], %s115
      %s118 = sshll.u32 [#allocation21], 4
      %s119 = int_to_ptr.vmem [resolvable:$true] %s118
      %121 = dma.hbm_to_vmem [thread:$0]  %s9, 16, %s119, [#allocation20]
    $region37: #{tpu_custom_call.1} parent=1 // pred_fallthru
      _
    // Predicated region
    $region38: #{tpu_custom_call.1} parent=1 // pred_check
      _
    $region39: #{tpu_custom_call.1} parent=1 // pred_check_branch
      %123 = sbr.rel (0) target = $region41
    $region40: #{tpu_custom_call.1} parent=1 // pred_region
      %s125 = ssub.s32 1024, 1024
      %126 = vsyncadd [#allocation23], %s125
      %s127 = sshll.u32 [#allocation22], 4
      %s128 = int_to_ptr.vmem [resolvable:$true] %s127
      %133 = dma.hbm_to_vmem [thread:$0]  %s10, 1024, %s128, [#allocation23], 64, 64, 4
    $region41: #{tpu_custom_call.1} parent=1 // pred_fallthru
      _
    // Predicated region
    $region42: #{tpu_custom_call.1} parent=1 // pred_check
      _
    $region43: #{tpu_custom_call.1} parent=1 // pred_check_branch
      %135 = sbr.rel (0) target = $region45
    $region44: #{tpu_custom_call.1} parent=1 // pred_region
      %s137 = ssub.s32 16, 16
      %138 = vsyncadd [#allocation23], %s137
      %s140 = sshll.u32 [#allocation24], 4
      %s141 = int_to_ptr.vmem [resolvable:$true] %s140
      %143 = dma.hbm_to_vmem [thread:$0]  %s11, 16, %s141, [#allocation23]
    $region45: #{tpu_custom_call.1} parent=1 // pred_fallthru
      _
    // Predicated region
    $region46: #{tpu_custom_call.1} parent=1 // pred_check
      _
    $region47: #{tpu_custom_call.1} parent=1 // pred_check_branch
      %145 = sbr.rel (0) target = $region49
    $region48: #{tpu_custom_call.1} parent=1 // pred_region
      %s147 = ssub.s32 16, 16
      %148 = vsyncadd [#allocation26], %s147
      %s150 = sshll.u32 [#allocation25], 4
      %s151 = int_to_ptr.vmem [resolvable:$true] %s150
      %153 = dma.hbm_to_vmem [thread:$0]  %s12, 16, %s151, [#allocation26]
    $region49: #{tpu_custom_call.1} parent=1 // pred_fallthru
      _
    // Predicated region
    $region50: #{tpu_custom_call.1} parent=1 // pred_check
      _
    $region51: #{tpu_custom_call.1} parent=1 // pred_check_branch
      %155 = sbr.rel (0) target = $region53
    $region52: #{tpu_custom_call.1} parent=1 // pred_region
      %156 = dma.done [#allocation8], 2048
    $region53: #{tpu_custom_call.1} parent=1 // pred_fallthru
      _
    // Predicated region
    $region54: #{tpu_custom_call.1} parent=1 // pred_check
      _
    $region55: #{tpu_custom_call.1} parent=1 // pred_check_branch
      %158 = sbr.rel (0) target = $region57
    $region56: #{tpu_custom_call.1} parent=1 // pred_region
      %159 = dma.done [#allocation11], 32
    $region57: #{tpu_custom_call.1} parent=1 // pred_fallthru
      _
    // Predicated region
    $region58: #{tpu_custom_call.1} parent=1 // pred_check
      _
    $region59: #{tpu_custom_call.1} parent=1 // pred_check_branch
      %161 = sbr.rel (0) target = $region61
    $region60: #{tpu_custom_call.1} parent=1 // pred_region
      %162 = dma.done [#allocation11], 32
    $region61: #{tpu_custom_call.1} parent=1 // pred_fallthru
      _
    // Predicated region
    $region62: #{tpu_custom_call.1} parent=1 // pred_check
      _
    $region63: #{tpu_custom_call.1} parent=1 // pred_check_branch
      %164 = sbr.rel (0) target = $region65
    $region64: #{tpu_custom_call.1} parent=1 // pred_region
      %165 = dma.done [#allocation14], 4096
    $region65: #{tpu_custom_call.1} parent=1 // pred_fallthru
      _
    // Predicated region
    $region66: #{tpu_custom_call.1} parent=1 // pred_check
      _
    $region67: #{tpu_custom_call.1} parent=1 // pred_check_branch
      %167 = sbr.rel (0) target = $region69
    $region68: #{tpu_custom_call.1} parent=1 // pred_region
      %168 = dma.done [#allocation14], 16
    $region69: #{tpu_custom_call.1} parent=1 // pred_fallthru
      _
    // Predicated region
    $region70: #{tpu_custom_call.1} parent=1 // pred_check
      _
    $region71: #{tpu_custom_call.1} parent=1 // pred_check_branch
      %170 = sbr.rel (0) target = $region73
    $region72: #{tpu_custom_call.1} parent=1 // pred_region
      %171 = dma.done [#allocation17], 16
    $region73: #{tpu_custom_call.1} parent=1 // pred_fallthru
      _
    // Predicated region
    $region74: #{tpu_custom_call.1} parent=1 // pred_check
      _
    $region75: #{tpu_custom_call.1} parent=1 // pred_check_branch
      %173 = sbr.rel (0) target = $region77
    $region76: #{tpu_custom_call.1} parent=1 // pred_region
      %174 = dma.done [#allocation17], 4096
    $region77: #{tpu_custom_call.1} parent=1 // pred_fallthru
      _
    // Predicated region
    $region78: #{tpu_custom_call.1} parent=1 // pred_check
      _
    $region79: #{tpu_custom_call.1} parent=1 // pred_check_branch
      %176 = sbr.rel (0) target = $region81
    $region80: #{tpu_custom_call.1} parent=1 // pred_region
      %177 = dma.done [#allocation20], 16
    $region81: #{tpu_custom_call.1} parent=1 // pred_fallthru
      _
    // Predicated region
    $region82: #{tpu_custom_call.1} parent=1 // pred_check
      _
    $region83: #{tpu_custom_call.1} parent=1 // pred_check_branch
      %179 = sbr.rel (0) target = $region85
    $region84: #{tpu_custom_call.1} parent=1 // pred_region
      %180 = dma.done [#allocation20], 16
    $region85: #{tpu_custom_call.1} parent=1 // pred_fallthru
      _
    // Predicated region
    $region86: #{tpu_custom_call.1} parent=1 // pred_check
      _
    $region87: #{tpu_custom_call.1} parent=1 // pred_check_branch
      %182 = sbr.rel (0) target = $region89
    $region88: #{tpu_custom_call.1} parent=1 // pred_region
      %183 = dma.done [#allocation23], 1024
    $region89: #{tpu_custom_call.1} parent=1 // pred_fallthru
      _
    // Predicated region
    $region90: #{tpu_custom_call.1} parent=1 // pred_check
      _
    $region91: #{tpu_custom_call.1} parent=1 // pred_check_branch
      %185 = sbr.rel (0) target = $region93
    $region92: #{tpu_custom_call.1} parent=1 // pred_region
      %186 = dma.done [#allocation23], 16
    $region93: #{tpu_custom_call.1} parent=1 // pred_fallthru
      _
    // Predicated region
    $region94: #{tpu_custom_call.1} parent=1 // pred_check
      _
    $region95: #{tpu_custom_call.1} parent=1 // pred_check_branch
      %188 = sbr.rel (0) target = $region97
    $region96: #{tpu_custom_call.1} parent=1 // pred_region
      %189 = dma.done [#allocation26], 16
    $region97: #{tpu_custom_call.1} parent=1 // pred_fallthru
      _
    %v193 = vld [vmem:[#allocation7] sm:$0xf]
    %v194 = vld [vmem:[#allocation7 + $0x4] sm:$0xf]
    %v195 = vld [vmem:[#allocation7 + $0x8] sm:$0xf]
    %v196 = vld [vmem:[#allocation7 + $0xc] sm:$0xf]
    %v197 = vld [vmem:[#allocation7 + $0x10] sm:$0xf]
    %v198 = vld [vmem:[#allocation7 + $0x14] sm:$0xf]
    %v199 = vld [vmem:[#allocation7 + $0x18] sm:$0xf]
    %v200 = vld [vmem:[#allocation7 + $0x1c] sm:$0xf]
    %v201 = vld [vmem:[#allocation7 + $0x20] sm:$0xf]
    %v202 = vld [vmem:[#allocation7 + $0x24] sm:$0xf]
    %v203 = vld [vmem:[#allocation7 + $0x28] sm:$0xf]
    %v204 = vld [vmem:[#allocation7 + $0x2c] sm:$0xf]
    %v205 = vld [vmem:[#allocation7 + $0x30] sm:$0xf]
    %v206 = vld [vmem:[#allocation7 + $0x34] sm:$0xf]
    %v207 = vld [vmem:[#allocation7 + $0x38] sm:$0xf]
    %v208 = vld [vmem:[#allocation7 + $0x3c] sm:$0xf]
    %v209 = vld [vmem:[#allocation7 + $0x40] sm:$0xf]
    %v210 = vld [vmem:[#allocation7 + $0x44] sm:$0xf]
    %v211 = vld [vmem:[#allocation7 + $0x48] sm:$0xf]
    %v212 = vld [vmem:[#allocation7 + $0x4c] sm:$0xf]
    %v213 = vld [vmem:[#allocation7 + $0x50] sm:$0xf]
    %v214 = vld [vmem:[#allocation7 + $0x54] sm:$0xf]
    %v215 = vld [vmem:[#allocation7 + $0x58] sm:$0xf]
    %v216 = vld [vmem:[#allocation7 + $0x5c] sm:$0xf]
    %v217 = vld [vmem:[#allocation7 + $0x60] sm:$0xf]
    %v218 = vld [vmem:[#allocation7 + $0x64] sm:$0xf]
    %v219 = vld [vmem:[#allocation7 + $0x68] sm:$0xf]
    %v220 = vld [vmem:[#allocation7 + $0x6c] sm:$0xf]
    %v221 = vld [vmem:[#allocation7 + $0x70] sm:$0xf]
    %v222 = vld [vmem:[#allocation7 + $0x74] sm:$0xf]
    %v223 = vld [vmem:[#allocation7 + $0x78] sm:$0xf]
    %v224 = vld [vmem:[#allocation7 + $0x7c] sm:$0xf]
    %v225 = vld [vmem:[#allocation13] sm:$0xff]
    %v226 = vld [vmem:[#allocation13 + $0x8] sm:$0xff]
    %v227 = vld [vmem:[#allocation13 + $0x10] sm:$0xff]
    %v228 = vld [vmem:[#allocation13 + $0x18] sm:$0xff]
    %v229 = vld [vmem:[#allocation13 + $0x20] sm:$0xff]
    %v230 = vld [vmem:[#allocation13 + $0x28] sm:$0xff]
    %v231 = vld [vmem:[#allocation13 + $0x30] sm:$0xff]
    %v232 = vld [vmem:[#allocation13 + $0x38] sm:$0xff]
    %v233 = vld [vmem:[#allocation13 + $0x40] sm:$0xff]
    %v234 = vld [vmem:[#allocation13 + $0x48] sm:$0xff]
    %v235 = vld [vmem:[#allocation13 + $0x50] sm:$0xff]
    %v236 = vld [vmem:[#allocation13 + $0x58] sm:$0xff]
    %v237 = vld [vmem:[#allocation13 + $0x60] sm:$0xff]
    %v238 = vld [vmem:[#allocation13 + $0x68] sm:$0xff]
    %v239 = vld [vmem:[#allocation13 + $0x70] sm:$0xff]
    %v240 = vld [vmem:[#allocation13 + $0x78] sm:$0xff]
    %v241 = vld [vmem:[#allocation13 + $0x80] sm:$0xff]
    %v242 = vld [vmem:[#allocation13 + $0x88] sm:$0xff]
    %v243 = vld [vmem:[#allocation13 + $0x90] sm:$0xff]
    %v244 = vld [vmem:[#allocation13 + $0x98] sm:$0xff]
    %v245 = vld [vmem:[#allocation13 + $0xa0] sm:$0xff]
    %v246 = vld [vmem:[#allocation13 + $0xa8] sm:$0xff]
    %v247 = vld [vmem:[#allocation13 + $0xb0] sm:$0xff]
    %v248 = vld [vmem:[#allocation13 + $0xb8] sm:$0xff]
    %v249 = vld [vmem:[#allocation13 + $0xc0] sm:$0xff]
    %v250 = vld [vmem:[#allocation13 + $0xc8] sm:$0xff]
    %v251 = vld [vmem:[#allocation13 + $0xd0] sm:$0xff]
    %v252 = vld [vmem:[#allocation13 + $0xd8] sm:$0xff]
    %v253 = vld [vmem:[#allocation13 + $0xe0] sm:$0xff]
    %v254 = vld [vmem:[#allocation13 + $0xe8] sm:$0xff]
    %v255 = vld [vmem:[#allocation13 + $0xf0] sm:$0xff]
    %v256 = vld [vmem:[#allocation13 + $0xf8] sm:$0xff]
    %v289 = vunpack.c.l.b16 %v193
    %v290 = vunpack.c.l.b16 %v194
    %v291 = vunpack.c.l.b16 %v195
    %v292 = vunpack.c.l.b16 %v196
    %v293 = vunpack.c.l.b16 %v197
    %v294 = vunpack.c.l.b16 %v198
    %v295 = vunpack.c.l.b16 %v199
    %v296 = vunpack.c.l.b16 %v200
    %v297 = vunpack.c.l.b16 %v201
    %v298 = vunpack.c.l.b16 %v202
    %v299 = vunpack.c.l.b16 %v203
    %v300 = vunpack.c.l.b16 %v204
    %v301 = vunpack.c.l.b16 %v205
    %v302 = vunpack.c.l.b16 %v206
    %v303 = vunpack.c.l.b16 %v207
    %v304 = vunpack.c.l.b16 %v208
    %v305 = vunpack.c.l.b16 %v209
    %v306 = vunpack.c.l.b16 %v210
    %v307 = vunpack.c.l.b16 %v211
    %v308 = vunpack.c.l.b16 %v212
    %v309 = vunpack.c.l.b16 %v213
    %v310 = vunpack.c.l.b16 %v214
    %v311 = vunpack.c.l.b16 %v215
    %v312 = vunpack.c.l.b16 %v216
    %v313 = vunpack.c.l.b16 %v217
    %v314 = vunpack.c.l.b16 %v218
    %v315 = vunpack.c.l.b16 %v219
    %v316 = vunpack.c.l.b16 %v220
    %v317 = vunpack.c.l.b16 %v221
    %v318 = vunpack.c.l.b16 %v222
    %v319 = vunpack.c.l.b16 %v223
    %v320 = vunpack.c.l.b16 %v224
    %v321 = vpack.c.b16 %v290, %v289
    %v322 = vpack.c.b16 %v292, %v291
    %v323 = vpack.c.b16 %v294, %v293
    %v324 = vpack.c.b16 %v296, %v295
    %v325 = vpack.c.b16 %v298, %v297
    %v326 = vpack.c.b16 %v300, %v299
    %v327 = vpack.c.b16 %v302, %v301
    %v328 = vpack.c.b16 %v304, %v303
    %v329 = vpack.c.b16 %v306, %v305
    %v330 = vpack.c.b16 %v308, %v307
    %v331 = vpack.c.b16 %v310, %v309
    %v332 = vpack.c.b16 %v312, %v311
    %v333 = vpack.c.b16 %v314, %v313
    %v334 = vpack.c.b16 %v316, %v315
    %v335 = vpack.c.b16 %v318, %v317
    %v336 = vpack.c.b16 %v320, %v319
    %v385 = vunpack.c.l.b16 %v225
    %v386 = vunpack.c.h.b16 %v225
    %v387 = vunpack.c.l.b16 %v226
    %v388 = vunpack.c.h.b16 %v226
    %v389 = vunpack.c.l.b16 %v227
    %v390 = vunpack.c.h.b16 %v227
    %v391 = vunpack.c.l.b16 %v228
    %v392 = vunpack.c.h.b16 %v228
    %v393 = vunpack.c.l.b16 %v229
    %v394 = vunpack.c.h.b16 %v229
    %v395 = vunpack.c.l.b16 %v230
    %v396 = vunpack.c.h.b16 %v230
    %v397 = vunpack.c.l.b16 %v231
    %v398 = vunpack.c.h.b16 %v231
    %v399 = vunpack.c.l.b16 %v232
    %v400 = vunpack.c.h.b16 %v232
    %v401 = vunpack.c.l.b16 %v233
    %v402 = vunpack.c.h.b16 %v233
    %v403 = vunpack.c.l.b16 %v234
    %v404 = vunpack.c.h.b16 %v234
    %v405 = vunpack.c.l.b16 %v235
    %v406 = vunpack.c.h.b16 %v235
    %v407 = vunpack.c.l.b16 %v236
    %v408 = vunpack.c.h.b16 %v236
    %v409 = vunpack.c.l.b16 %v237
    %v410 = vunpack.c.h.b16 %v237
    %v411 = vunpack.c.l.b16 %v238
    %v412 = vunpack.c.h.b16 %v238
    %v413 = vunpack.c.l.b16 %v239
    %v414 = vunpack.c.h.b16 %v239
    %v415 = vunpack.c.l.b16 %v240
    %v416 = vunpack.c.h.b16 %v240
    %v417 = vunpack.c.l.b16 %v241
    %v418 = vunpack.c.h.b16 %v241
    %v419 = vunpack.c.l.b16 %v242
    %v420 = vunpack.c.h.b16 %v242
    %v421 = vunpack.c.l.b16 %v243
    %v422 = vunpack.c.h.b16 %v243
    %v423 = vunpack.c.l.b16 %v244
    %v424 = vunpack.c.h.b16 %v244
    %v425 = vunpack.c.l.b16 %v245
    %v426 = vunpack.c.h.b16 %v245
    %v427 = vunpack.c.l.b16 %v246
    %v428 = vunpack.c.h.b16 %v246
    %v429 = vunpack.c.l.b16 %v247
    %v430 = vunpack.c.h.b16 %v247
    %v431 = vunpack.c.l.b16 %v248
    %v432 = vunpack.c.h.b16 %v248
    %v433 = vunpack.c.l.b16 %v249
    %v434 = vunpack.c.h.b16 %v249
    %v435 = vunpack.c.l.b16 %v250
    %v436 = vunpack.c.h.b16 %v250
    %v437 = vunpack.c.l.b16 %v251
    %v438 = vunpack.c.h.b16 %v251
    %v439 = vunpack.c.l.b16 %v252
    %v440 = vunpack.c.h.b16 %v252
    %v441 = vunpack.c.l.b16 %v253
    %v442 = vunpack.c.h.b16 %v253
    %v443 = vunpack.c.l.b16 %v254
    %v444 = vunpack.c.h.b16 %v254
    %v445 = vunpack.c.l.b16 %v255
    %v446 = vunpack.c.h.b16 %v255
    %v447 = vunpack.c.l.b16 %v256
    %v448 = vunpack.c.h.b16 %v256
    %v449 = vpack.c.b16 %v389, %v385
    %v450 = vpack.c.b16 %v390, %v386
    %v451 = vpack.c.b16 %v391, %v387
    %v452 = vpack.c.b16 %v392, %v388
    %v453 = vpack.c.b16 %v397, %v393
    %v454 = vpack.c.b16 %v398, %v394
    %v455 = vpack.c.b16 %v399, %v395
    %v456 = vpack.c.b16 %v400, %v396
    %v457 = vpack.c.b16 %v405, %v401
    %v458 = vpack.c.b16 %v406, %v402
    %v459 = vpack.c.b16 %v407, %v403
    %v460 = vpack.c.b16 %v408, %v404
    %v461 = vpack.c.b16 %v413, %v409
    %v462 = vpack.c.b16 %v414, %v410
    %v463 = vpack.c.b16 %v415, %v411
    %v464 = vpack.c.b16 %v416, %v412
    %v465 = vpack.c.b16 %v421, %v417
    %v466 = vpack.c.b16 %v422, %v418
    %v467 = vpack.c.b16 %v423, %v419
    %v468 = vpack.c.b16 %v424, %v420
    %v469 = vpack.c.b16 %v429, %v425
    %v470 = vpack.c.b16 %v430, %v426
    %v471 = vpack.c.b16 %v431, %v427
    %v472 = vpack.c.b16 %v432, %v428
    %v473 = vpack.c.b16 %v437, %v433
    %v474 = vpack.c.b16 %v438, %v434
    %v475 = vpack.c.b16 %v439, %v435
    %v476 = vpack.c.b16 %v440, %v436
    %v477 = vpack.c.b16 %v445, %v441
    %v478 = vpack.c.b16 %v446, %v442
    %v479 = vpack.c.b16 %v447, %v443
    %v480 = vpack.c.b16 %v448, %v444
    %513 = vmatprep.subr.bf16.mxu0 %v450
    %514 = vmatpush1.bf16.msra.mxu0 %v449
    %515 = vmatprep.subr.bf16.mxu0 %v454
    %516 = vmatpush1.bf16.msra.mxu0 %v453
    %517 = vmatprep.subr.bf16.mxu0 %v458
    %518 = vmatpush1.bf16.msra.mxu0 %v457
    %519 = vmatprep.subr.bf16.mxu0 %v462
    %520 = vmatpush1.bf16.msra.mxu0 %v461
    %521 = vmatprep.subr.bf16.mxu0 %v466
    %522 = vmatpush1.bf16.msra.mxu0 %v465
    %523 = vmatprep.subr.bf16.mxu0 %v470
    %524 = vmatpush1.bf16.msra.mxu0 %v469
    %525 = vmatprep.subr.bf16.mxu0 %v474
    %526 = vmatpush1.bf16.msra.mxu0 %v473
    %527 = vmatprep.subr.bf16.mxu0 %v478
    %528 = vmatpush1.bf16.msra.mxu0 %v477
    %529 = vmatprep.subr.bf16.mxu0 0
    %530 = vmatpush1.bf16.msra.mxu0 0
    %531 = vmatprep.subr.bf16.mxu0 0
    %532 = vmatpush1.bf16.msra.mxu0 0
    %533 = vmatprep.subr.bf16.mxu0 0
    %534 = vmatpush1.bf16.msra.mxu0 0
    %535 = vmatprep.subr.bf16.mxu0 0
    %536 = vmatpush1.bf16.msra.mxu0 0
    %537 = vmatprep.subr.bf16.mxu0 0
    %538 = vmatpush1.bf16.msra.mxu0 0
    %539 = vmatprep.subr.bf16.mxu0 0
    %540 = vmatpush1.bf16.msra.mxu0 0
    %541 = vmatprep.subr.bf16.mxu0 0
    %542 = vmatpush1.bf16.msra.mxu0 0
    %543 = vmatprep.subr.bf16.mxu0 0
    %544 = vmatpush1.bf16.msra.mxu0 0
    %545 = vmatprep.mubr.bf16.mxu0 0
    %546 = vmatmul.mubr.bf16.gmra.mrb[0].mxu0 %v321
    %v547 = vpop.f32.mrb[0].mxu0
    %v548 = vadd.f32 0.0, %v547
    %v549 = vpop.f32.mrb[0].mxu0
    %v550 = vadd.f32 0.0, %v549
    %v551 = vpop.f32.mrb[0].mxu0
    %v552 = vadd.f32 0.0, %v551
    %v553 = vpop.f32.mrb[0].mxu0
    %v554 = vadd.f32 0.0, %v553
    %555 = vmatprep.mubr.bf16.mxu0 0
    %556 = vmatmul.mubr.bf16.gmra.mrb[0].mxu0 %v322
    %v557 = vpop.f32.mrb[0].mxu0
    %v558 = vadd.f32 0.0, %v557
    %v559 = vpop.f32.mrb[0].mxu0
    %v560 = vadd.f32 0.0, %v559
    %v561 = vpop.f32.mrb[0].mxu0
    %v562 = vadd.f32 0.0, %v561
    %v563 = vpop.f32.mrb[0].mxu0
    %v564 = vadd.f32 0.0, %v563
    %565 = vmatprep.mubr.bf16.mxu0 0
    %566 = vmatmul.mubr.bf16.gmra.mrb[0].mxu0 %v323
    %v567 = vpop.f32.mrb[0].mxu0
    %v568 = vadd.f32 0.0, %v567
    %v569 = vpop.f32.mrb[0].mxu0
    %v570 = vadd.f32 0.0, %v569
    %v571 = vpop.f32.mrb[0].mxu0
    %v572 = vadd.f32 0.0, %v571
    %v573 = vpop.f32.mrb[0].mxu0
    %v574 = vadd.f32 0.0, %v573
    %575 = vmatprep.mubr.bf16.mxu0 0
    %576 = vmatmul.mubr.bf16.gmra.mrb[0].mxu0 %v324
    %v577 = vpop.f32.mrb[0].mxu0
    %v578 = vadd.f32 0.0, %v577
    %v579 = vpop.f32.mrb[0].mxu0
    %v580 = vadd.f32 0.0, %v579
    %v581 = vpop.f32.mrb[0].mxu0
    %v582 = vadd.f32 0.0, %v581
    %v583 = vpop.f32.mrb[0].mxu0
    %v584 = vadd.f32 0.0, %v583
    %585 = vmatprep.mubr.bf16.mxu0 0
    %586 = vmatmul.mubr.bf16.gmra.mrb[0].mxu0 %v325
    %v587 = vpop.f32.mrb[0].mxu0
    %v588 = vadd.f32 0.0, %v587
    %v589 = vpop.f32.mrb[0].mxu0
    %v590 = vadd.f32 0.0, %v589
    %v591 = vpop.f32.mrb[0].mxu0
    %v592 = vadd.f32 0.0, %v591
    %v593 = vpop.f32.mrb[0].mxu0
    %v594 = vadd.f32 0.0, %v593
    %595 = vmatprep.mubr.bf16.mxu0 0
    %596 = vmatmul.mubr.bf16.gmra.mrb[0].mxu0 %v326
    %v597 = vpop.f32.mrb[0].mxu0
    %v598 = vadd.f32 0.0, %v597
    %v599 = vpop.f32.mrb[0].mxu0
    %v600 = vadd.f32 0.0, %v599
    %v601 = vpop.f32.mrb[0].mxu0
    %v602 = vadd.f32 0.0, %v601
    %v603 = vpop.f32.mrb[0].mxu0
    %v604 = vadd.f32 0.0, %v603
    %605 = vmatprep.mubr.bf16.mxu0 0
    %606 = vmatmul.mubr.bf16.gmra.mrb[0].mxu0 %v327
    %v607 = vpop.f32.mrb[0].mxu0
    %v608 = vadd.f32 0.0, %v607
    %v609 = vpop.f32.mrb[0].mxu0
    %v610 = vadd.f32 0.0, %v609
    %v611 = vpop.f32.mrb[0].mxu0
    %v612 = vadd.f32 0.0, %v611
    %v613 = vpop.f32.mrb[0].mxu0
    %v614 = vadd.f32 0.0, %v613
    %615 = vmatprep.mubr.bf16.mxu0 0
    %616 = vmatmul.mubr.bf16.gmra.mrb[0].mxu0 %v328
    %v617 = vpop.f32.mrb[0].mxu0
    %v618 = vadd.f32 0.0, %v617
    %v619 = vpop.f32.mrb[0].mxu0
    %v620 = vadd.f32 0.0, %v619
    %v621 = vpop.f32.mrb[0].mxu0
    %v622 = vadd.f32 0.0, %v621
    %v623 = vpop.f32.mrb[0].mxu0
    %v624 = vadd.f32 0.0, %v623
    %625 = vmatprep.mubr.bf16.mxu0 0
    %626 = vmatmul.mubr.bf16.gmra.mrb[0].mxu0 %v329
    %v627 = vpop.f32.mrb[0].mxu0
    %v628 = vadd.f32 0.0, %v627
    %v629 = vpop.f32.mrb[0].mxu0
    %v630 = vadd.f32 0.0, %v629
    %v631 = vpop.f32.mrb[0].mxu0
    %v632 = vadd.f32 0.0, %v631
    %v633 = vpop.f32.mrb[0].mxu0
    %v634 = vadd.f32 0.0, %v633
    %635 = vmatprep.mubr.bf16.mxu0 0
    %636 = vmatmul.mubr.bf16.gmra.mrb[0].mxu0 %v330
    %v637 = vpop.f32.mrb[0].mxu0
    %v638 = vadd.f32 0.0, %v637
    %v639 = vpop.f32.mrb[0].mxu0
    %v640 = vadd.f32 0.0, %v639
    %v641 = vpop.f32.mrb[0].mxu0
    %v642 = vadd.f32 0.0, %v641
    %v643 = vpop.f32.mrb[0].mxu0
    %v644 = vadd.f32 0.0, %v643
    %645 = vmatprep.mubr.bf16.mxu0 0
    %646 = vmatmul.mubr.bf16.gmra.mrb[0].mxu0 %v331
    %v647 = vpop.f32.mrb[0].mxu0
    %v648 = vadd.f32 0.0, %v647
    %v649 = vpop.f32.mrb[0].mxu0
    %v650 = vadd.f32 0.0, %v649
    %v651 = vpop.f32.mrb[0].mxu0
    %v652 = vadd.f32 0.0, %v651
    %v653 = vpop.f32.mrb[0].mxu0
    %v654 = vadd.f32 0.0, %v653
    %655 = vmatprep.mubr.bf16.mxu0 0
    %656 = vmatmul.mubr.bf16.gmra.mrb[0].mxu0 %v332
    %v657 = vpop.f32.mrb[0].mxu0
    %v658 = vadd.f32 0.0, %v657
    %v659 = vpop.f32.mrb[0].mxu0
    %v660 = vadd.f32 0.0, %v659
    %v661 = vpop.f32.mrb[0].mxu0
    %v662 = vadd.f32 0.0, %v661
    %v663 = vpop.f32.mrb[0].mxu0
    %v664 = vadd.f32 0.0, %v663
    %665 = vmatprep.mubr.bf16.mxu0 0
    %666 = vmatmul.mubr.bf16.gmra.mrb[0].mxu0 %v333
    %v667 = vpop.f32.mrb[0].mxu0
    %v668 = vadd.f32 0.0, %v667
    %v669 = vpop.f32.mrb[0].mxu0
    %v670 = vadd.f32 0.0, %v669
    %v671 = vpop.f32.mrb[0].mxu0
    %v672 = vadd.f32 0.0, %v671
    %v673 = vpop.f32.mrb[0].mxu0
    %v674 = vadd.f32 0.0, %v673
    %675 = vmatprep.mubr.bf16.mxu0 0
    %676 = vmatmul.mubr.bf16.gmra.mrb[0].mxu0 %v334
    %v677 = vpop.f32.mrb[0].mxu0
    %v678 = vadd.f32 0.0, %v677
    %v679 = vpop.f32.mrb[0].mxu0
    %v680 = vadd.f32 0.0, %v679
    %v681 = vpop.f32.mrb[0].mxu0
    %v682 = vadd.f32 0.0, %v681
    %v683 = vpop.f32.mrb[0].mxu0
    %v684 = vadd.f32 0.0, %v683
    %685 = vmatprep.mubr.bf16.mxu0 0
    %686 = vmatmul.mubr.bf16.gmra.mrb[0].mxu0 %v335
    %v687 = vpop.f32.mrb[0].mxu0
    %v688 = vadd.f32 0.0, %v687
    %v689 = vpop.f32.mrb[0].mxu0
    %v690 = vadd.f32 0.0, %v689
    %v691 = vpop.f32.mrb[0].mxu0
    %v692 = vadd.f32 0.0, %v691
    %v693 = vpop.f32.mrb[0].mxu0
    %v694 = vadd.f32 0.0, %v693
    %695 = vmatprep.mubr.bf16.mxu0 0
    %696 = vmatmul.mubr.bf16.gmra.mrb[0].mxu0 %v336
    %v697 = vpop.f32.mrb[0].mxu0
    %v698 = vadd.f32 0.0, %v697
    %v699 = vpop.f32.mrb[0].mxu0
    %v700 = vadd.f32 0.0, %v699
    %v701 = vpop.f32.mrb[0].mxu0
    %v702 = vadd.f32 0.0, %v701
    %v703 = vpop.f32.mrb[0].mxu0
    %v704 = vadd.f32 0.0, %v703
    %705 = vdwg.mxu0
    %706 = vmatprep.subr.bf16.mxu0 %v452
    %707 = vmatpush1.bf16.msra.mxu0 %v451
    %708 = vmatprep.subr.bf16.mxu0 %v456
    %709 = vmatpush1.bf16.msra.mxu0 %v455
    %710 = vmatprep.subr.bf16.mxu0 %v460
    %711 = vmatpush1.bf16.msra.mxu0 %v459
    %712 = vmatprep.subr.bf16.mxu0 %v464
    %713 = vmatpush1.bf16.msra.mxu0 %v463
    %714 = vmatprep.subr.bf16.mxu0 %v468
    %715 = vmatpush1.bf16.msra.mxu0 %v467
    %716 = vmatprep.subr.bf16.mxu0 %v472
    %717 = vmatpush1.bf16.msra.mxu0 %v471
    %718 = vmatprep.subr.bf16.mxu0 %v476
    %719 = vmatpush1.bf16.msra.mxu0 %v475
    %720 = vmatprep.subr.bf16.mxu0 %v480
    %721 = vmatpush1.bf16.msra.mxu0 %v479
    %722 = vmatprep.subr.bf16.mxu0 0
    %723 = vmatpush1.bf16.msra.mxu0 0
    %724 = vmatprep.subr.bf16.mxu0 0
    %725 = vmatpush1.bf16.msra.mxu0 0
    %726 = vmatprep.subr.bf16.mxu0 0
    %727 = vmatpush1.bf16.msra.mxu0 0
    %728 = vmatprep.subr.bf16.mxu0 0
    %729 = vmatpush1.bf16.msra.mxu0 0
    %730 = vmatprep.subr.bf16.mxu0 0
    %731 = vmatpush1.bf16.msra.mxu0 0
    %732 = vmatprep.subr.bf16.mxu0 0
    %733 = vmatpush1.bf16.msra.mxu0 0
    %734 = vmatprep.subr.bf16.mxu0 0
    %735 = vmatpush1.bf16.msra.mxu0 0
    %736 = vmatprep.subr.bf16.mxu0 0
    %737 = vmatpush1.bf16.msra.mxu0 0
    %738 = vmatprep.mubr.bf16.mxu0 0
    %739 = vmatmul.mubr.bf16.gmra.mrb[0].mxu0 %v321
    %v740 = vpop.f32.mrb[0].mxu0
    %v741 = vadd.f32 0.0, %v740
    %v742 = vpop.f32.mrb[0].mxu0
    %v743 = vadd.f32 0.0, %v742
    %v744 = vpop.f32.mrb[0].mxu0
    %v745 = vadd.f32 0.0, %v744
    %v746 = vpop.f32.mrb[0].mxu0
    %v747 = vadd.f32 0.0, %v746
    %748 = vmatprep.mubr.bf16.mxu0 0
    %749 = vmatmul.mubr.bf16.gmra.mrb[0].mxu0 %v322
    %v750 = vpop.f32.mrb[0].mxu0
    %v751 = vadd.f32 0.0, %v750
    %v752 = vpop.f32.mrb[0].mxu0
    %v753 = vadd.f32 0.0, %v752
    %v754 = vpop.f32.mrb[0].mxu0
    %v755 = vadd.f32 0.0, %v754
    %v756 = vpop.f32.mrb[0].mxu0
    %v757 = vadd.f32 0.0, %v756
    %758 = vmatprep.mubr.bf16.mxu0 0
    %759 = vmatmul.mubr.bf16.gmra.mrb[0].mxu0 %v323
    %v760 = vpop.f32.mrb[0].mxu0
    %v761 = vadd.f32 0.0, %v760
    %v762 = vpop.f32.mrb[0].mxu0
    %v763 = vadd.f32 0.0, %v762
    %v764 = vpop.f32.mrb[0].mxu0
    %v765 = vadd.f32 0.0, %v764
    %v766 = vpop.f32.mrb[0].mxu0
    %v767 = vadd.f32 0.0, %v766
    %768 = vmatprep.mubr.bf16.mxu0 0
    %769 = vmatmul.mubr.bf16.gmra.mrb[0].mxu0 %v324
    %v770 = vpop.f32.mrb[0].mxu0
    %v771 = vadd.f32 0.0, %v770
    %v772 = vpop.f32.mrb[0].mxu0
    %v773 = vadd.f32 0.0, %v772
    %v774 = vpop.f32.mrb[0].mxu0
    %v775 = vadd.f32 0.0, %v774
    %v776 = vpop.f32.mrb[0].mxu0
    %v777 = vadd.f32 0.0, %v776
    %778 = vmatprep.mubr.bf16.mxu0 0
    %779 = vmatmul.mubr.bf16.gmra.mrb[0].mxu0 %v325
    %v780 = vpop.f32.mrb[0].mxu0
    %v781 = vadd.f32 0.0, %v780
    %v782 = vpop.f32.mrb[0].mxu0
    %v783 = vadd.f32 0.0, %v782
    %v784 = vpop.f32.mrb[0].mxu0
    %v785 = vadd.f32 0.0, %v784
    %v786 = vpop.f32.mrb[0].mxu0
    %v787 = vadd.f32 0.0, %v786
    %788 = vmatprep.mubr.bf16.mxu0 0
    %789 = vmatmul.mubr.bf16.gmra.mrb[0].mxu0 %v326
    %v790 = vpop.f32.mrb[0].mxu0
    %v791 = vadd.f32 0.0, %v790
    %v792 = vpop.f32.mrb[0].mxu0
    %v793 = vadd.f32 0.0, %v792
    %v794 = vpop.f32.mrb[0].mxu0
    %v795 = vadd.f32 0.0, %v794
    %v796 = vpop.f32.mrb[0].mxu0
    %v797 = vadd.f32 0.0, %v796
    %798 = vmatprep.mubr.bf16.mxu0 0
    %799 = vmatmul.mubr.bf16.gmra.mrb[0].mxu0 %v327
    %v800 = vpop.f32.mrb[0].mxu0
    %v801 = vadd.f32 0.0, %v800
    %v802 = vpop.f32.mrb[0].mxu0
    %v803 = vadd.f32 0.0, %v802
    %v804 = vpop.f32.mrb[0].mxu0
    %v805 = vadd.f32 0.0, %v804
    %v806 = vpop.f32.mrb[0].mxu0
    %v807 = vadd.f32 0.0, %v806
    %808 = vmatprep.mubr.bf16.mxu0 0
    %809 = vmatmul.mubr.bf16.gmra.mrb[0].mxu0 %v328
    %v810 = vpop.f32.mrb[0].mxu0
    %v811 = vadd.f32 0.0, %v810
    %v812 = vpop.f32.mrb[0].mxu0
    %v813 = vadd.f32 0.0, %v812
    %v814 = vpop.f32.mrb[0].mxu0
    %v815 = vadd.f32 0.0, %v814
    %v816 = vpop.f32.mrb[0].mxu0
    %v817 = vadd.f32 0.0, %v816
    %818 = vmatprep.mubr.bf16.mxu0 0
    %819 = vmatmul.mubr.bf16.gmra.mrb[0].mxu0 %v329
    %v820 = vpop.f32.mrb[0].mxu0
    %v821 = vadd.f32 0.0, %v820
    %v822 = vpop.f32.mrb[0].mxu0
    %v823 = vadd.f32 0.0, %v822
    %v824 = vpop.f32.mrb[0].mxu0
    %v825 = vadd.f32 0.0, %v824
    %v826 = vpop.f32.mrb[0].mxu0
    %v827 = vadd.f32 0.0, %v826
    %828 = vmatprep.mubr.bf16.mxu0 0
    %829 = vmatmul.mubr.bf16.gmra.mrb[0].mxu0 %v330
    %v830 = vpop.f32.mrb[0].mxu0
    %v831 = vadd.f32 0.0, %v830
    %v832 = vpop.f32.mrb[0].mxu0
    %v833 = vadd.f32 0.0, %v832
    %v834 = vpop.f32.mrb[0].mxu0
    %v835 = vadd.f32 0.0, %v834
    %v836 = vpop.f32.mrb[0].mxu0
    %v837 = vadd.f32 0.0, %v836
    %838 = vmatprep.mubr.bf16.mxu0 0
    %839 = vmatmul.mubr.bf16.gmra.mrb[0].mxu0 %v331
    %v840 = vpop.f32.mrb[0].mxu0
    %v841 = vadd.f32 0.0, %v840
    %v842 = vpop.f32.mrb[0].mxu0
    %v843 = vadd.f32 0.0, %v842
    %v844 = vpop.f32.mrb[0].mxu0
    %v845 = vadd.f32 0.0, %v844
    %v846 = vpop.f32.mrb[0].mxu0
    %v847 = vadd.f32 0.0, %v846
    %848 = vmatprep.mubr.bf16.mxu0 0
    %849 = vmatmul.mubr.bf16.gmra.mrb[0].mxu0 %v332
    %v850 = vpop.f32.mrb[0].mxu0
    %v851 = vadd.f32 0.0, %v850
    %v852 = vpop.f32.mrb[0].mxu0
    %v853 = vadd.f32 0.0, %v852
    %v854 = vpop.f32.mrb[0].mxu0
    %v855 = vadd.f32 0.0, %v854
    %v856 = vpop.f32.mrb[0].mxu0
    %v857 = vadd.f32 0.0, %v856
    %858 = vmatprep.mubr.bf16.mxu0 0
    %859 = vmatmul.mubr.bf16.gmra.mrb[0].mxu0 %v333
    %v860 = vpop.f32.mrb[0].mxu0
    %v861 = vadd.f32 0.0, %v860
    %v862 = vpop.f32.mrb[0].mxu0
    %v863 = vadd.f32 0.0, %v862
    %v864 = vpop.f32.mrb[0].mxu0
    %v865 = vadd.f32 0.0, %v864
    %v866 = vpop.f32.mrb[0].mxu0
    %v867 = vadd.f32 0.0, %v866
    %868 = vmatprep.mubr.bf16.mxu0 0
    %869 = vmatmul.mubr.bf16.gmra.mrb[0].mxu0 %v334
    %v870 = vpop.f32.mrb[0].mxu0
    %v871 = vadd.f32 0.0, %v870
    %v872 = vpop.f32.mrb[0].mxu0
    %v873 = vadd.f32 0.0, %v872
    %v874 = vpop.f32.mrb[0].mxu0
    %v875 = vadd.f32 0.0, %v874
    %v876 = vpop.f32.mrb[0].mxu0
    %v877 = vadd.f32 0.0, %v876
    %878 = vmatprep.mubr.bf16.mxu0 0
    %879 = vmatmul.mubr.bf16.gmra.mrb[0].mxu0 %v335
    %v880 = vpop.f32.mrb[0].mxu0
    %v881 = vadd.f32 0.0, %v880
    %v882 = vpop.f32.mrb[0].mxu0
    %v883 = vadd.f32 0.0, %v882
    %v884 = vpop.f32.mrb[0].mxu0
    %v885 = vadd.f32 0.0, %v884
    %v886 = vpop.f32.mrb[0].mxu0
    %v887 = vadd.f32 0.0, %v886
    %888 = vmatprep.mubr.bf16.mxu0 0
    %889 = vmatmul.mubr.bf16.gmra.mrb[0].mxu0 %v336
    %v890 = vpop.f32.mrb[0].mxu0
    %v891 = vadd.f32 0.0, %v890
    %v892 = vpop.f32.mrb[0].mxu0
    %v893 = vadd.f32 0.0, %v892
    %v894 = vpop.f32.mrb[0].mxu0
    %v895 = vadd.f32 0.0, %v894
    %v896 = vpop.f32.mrb[0].mxu0
    %v897 = vadd.f32 0.0, %v896
    %898 = vdwg.mxu0
    %v899 = vpack.c.bf16 %v552, %v548
    %v900 = vpack.c.bf16 %v554, %v550
    %v901 = vpack.c.bf16 %v745, %v741
    %v902 = vpack.c.bf16 %v562, %v558
    %v903 = vpack.c.bf16 %v564, %v560
    %v904 = vpack.c.bf16 %v755, %v751
    %v905 = vpack.c.bf16 %v572, %v568
    %v906 = vpack.c.bf16 %v574, %v570
    %v907 = vpack.c.bf16 %v765, %v761
    %v908 = vpack.c.bf16 %v582, %v578
    %v909 = vpack.c.bf16 %v584, %v580
    %v910 = vpack.c.bf16 %v775, %v771
    %v911 = vpack.c.bf16 %v592, %v588
    %v912 = vpack.c.bf16 %v594, %v590
    %v913 = vpack.c.bf16 %v785, %v781
    %v914 = vpack.c.bf16 %v602, %v598
    %v915 = vpack.c.bf16 %v604, %v600
    %v916 = vpack.c.bf16 %v795, %v791
    %v917 = vpack.c.bf16 %v612, %v608
    %v918 = vpack.c.bf16 %v614, %v610
    %v919 = vpack.c.bf16 %v805, %v801
    %v920 = vpack.c.bf16 %v622, %v618
    %v921 = vpack.c.bf16 %v624, %v620
    %v922 = vpack.c.bf16 %v815, %v811
    %v923 = vpack.c.bf16 %v632, %v628
    %v924 = vpack.c.bf16 %v634, %v630
    %v925 = vpack.c.bf16 %v825, %v821
    %v926 = vpack.c.bf16 %v642, %v638
    %v927 = vpack.c.bf16 %v644, %v640
    %v928 = vpack.c.bf16 %v835, %v831
    %v929 = vpack.c.bf16 %v652, %v648
    %v930 = vpack.c.bf16 %v654, %v650
    %v931 = vpack.c.bf16 %v845, %v841
    %v932 = vpack.c.bf16 %v662, %v658
    %v933 = vpack.c.bf16 %v664, %v660
    %v934 = vpack.c.bf16 %v855, %v851
    %v935 = vpack.c.bf16 %v672, %v668
    %v936 = vpack.c.bf16 %v674, %v670
    %v937 = vpack.c.bf16 %v865, %v861
    %v938 = vpack.c.bf16 %v682, %v678
    %v939 = vpack.c.bf16 %v684, %v680
    %v940 = vpack.c.bf16 %v875, %v871
    %v941 = vpack.c.bf16 %v692, %v688
    %v942 = vpack.c.bf16 %v694, %v690
    %v943 = vpack.c.bf16 %v885, %v881
    %v944 = vpack.c.bf16 %v702, %v698
    %v945 = vpack.c.bf16 %v704, %v700
    %v946 = vpack.c.bf16 %v895, %v891
    %947 = vst [vmem:[#allocation4] sm:$0xff] %v743
    %948 = vst [vmem:[#allocation4 + $0x8] sm:$0xff] %v747
    %949 = vst [vmem:[#allocation4 + $0x10] sm:$0xff] %v753
    %950 = vst [vmem:[#allocation4 + $0x18] sm:$0xff] %v757
    %951 = vst [vmem:[#allocation4 + $0x20] sm:$0xff] %v763
    %952 = vst [vmem:[#allocation4 + $0x28] sm:$0xff] %v767
    %953 = vst [vmem:[#allocation4 + $0x30] sm:$0xff] %v773
    %954 = vst [vmem:[#allocation4 + $0x38] sm:$0xff] %v777
    %955 = vst [vmem:[#allocation4 + $0x40] sm:$0xff] %v783
    %956 = vst [vmem:[#allocation4 + $0x48] sm:$0xff] %v787
    %957 = vst [vmem:[#allocation4 + $0x50] sm:$0xff] %v793
    %958 = vst [vmem:[#allocation4 + $0x58] sm:$0xff] %v797
    %959 = vst [vmem:[#allocation4 + $0x60] sm:$0xff] %v803
    %960 = vst [vmem:[#allocation4 + $0x68] sm:$0xff] %v807
    %961 = vst [vmem:[#allocation4 + $0x70] sm:$0xff] %v813
    %962 = vst [vmem:[#allocation4 + $0x78] sm:$0xff] %v817
    %963 = vst [vmem:[#allocation4 + $0x80] sm:$0xff] %v823
    %964 = vst [vmem:[#allocation4 + $0x88] sm:$0xff] %v827
    %965 = vst [vmem:[#allocation4 + $0x90] sm:$0xff] %v833
    %966 = vst [vmem:[#allocation4 + $0x98] sm:$0xff] %v837
    %967 = vst [vmem:[#allocation4 + $0xa0] sm:$0xff] %v843
    %968 = vst [vmem:[#allocation4 + $0xa8] sm:$0xff] %v847
    %969 = vst [vmem:[#allocation4 + $0xb0] sm:$0xff] %v853
    %970 = vst [vmem:[#allocation4 + $0xb8] sm:$0xff] %v857
    %971 = vst [vmem:[#allocation4 + $0xc0] sm:$0xff] %v863
    %972 = vst [vmem:[#allocation4 + $0xc8] sm:$0xff] %v867
    %973 = vst [vmem:[#allocation4 + $0xd0] sm:$0xff] %v873
    %974 = vst [vmem:[#allocation4 + $0xd8] sm:$0xff] %v877
    %975 = vst [vmem:[#allocation4 + $0xe0] sm:$0xff] %v883
    %976 = vst [vmem:[#allocation4 + $0xe8] sm:$0xff] %v887
    %977 = vst [vmem:[#allocation4 + $0xf0] sm:$0xff] %v893
    %978 = vst [vmem:[#allocation4 + $0xf8] sm:$0xff] %v897
    %979 = vxpose.xlu0.b32.start [1/16] %v743, 128
    %980 = vxpose.xlu0.b32.cont [2/16] %v747, 128
    %981 = vxpose.xlu0.b32.cont [3/16] %v753, 128
    %982 = vxpose.xlu0.b32.cont [4/16] %v757, 128
    %983 = vxpose.xlu0.b32.cont [5/16] %v763, 128
    %984 = vxpose.xlu0.b32.cont [6/16] %v767, 128
    %985 = vxpose.xlu0.b32.cont [7/16] %v773, 128
    %986 = vxpose.xlu0.b32.cont [8/16] %v777, 128
    %987 = vxpose.xlu0.b32.cont [9/16] %v783, 128
    %988 = vxpose.xlu0.b32.cont [10/16] %v787, 128
    %989 = vxpose.xlu0.b32.cont [11/16] %v793, 128
    %990 = vxpose.xlu0.b32.cont [12/16] %v797, 128
    %991 = vxpose.xlu0.b32.cont [13/16] %v803, 128
    %992 = vxpose.xlu0.b32.cont [14/16] %v807, 128
    %993 = vxpose.xlu0.b32.cont [15/16] %v813, 128
    %994 = vxpose.xlu0.b32.end [16/16] %v817, 128
    %v995 = vpop.trf.xlu0
    %v996 = vpop.trf.xlu0
    %v997 = vpop.trf.xlu0
    %v998 = vpop.trf.xlu0
    %v999 = vpop.trf.xlu0
    %v1000 = vpop.trf.xlu0
    %v1001 = vpop.trf.xlu0
    %v1002 = vpop.trf.xlu0
    %v1003 = vpop.trf.xlu0
    %v1004 = vpop.trf.xlu0
    %v1005 = vpop.trf.xlu0
    %v1006 = vpop.trf.xlu0
    %v1007 = vpop.trf.xlu0
    %v1008 = vpop.trf.xlu0
    %v1009 = vpop.trf.xlu0
    %v1010 = vpop.trf.xlu0
    %1011 = vxpose.xlu0.b32.start [1/16] %v823, 128
    %1012 = vxpose.xlu0.b32.cont [2/16] %v827, 128
    %1013 = vxpose.xlu0.b32.cont [3/16] %v833, 128
    %1014 = vxpose.xlu0.b32.cont [4/16] %v837, 128
    %1015 = vxpose.xlu0.b32.cont [5/16] %v843, 128
    %1016 = vxpose.xlu0.b32.cont [6/16] %v847, 128
    %1017 = vxpose.xlu0.b32.cont [7/16] %v853, 128
    %1018 = vxpose.xlu0.b32.cont [8/16] %v857, 128
    %1019 = vxpose.xlu0.b32.cont [9/16] %v863, 128
    %1020 = vxpose.xlu0.b32.cont [10/16] %v867, 128
    %1021 = vxpose.xlu0.b32.cont [11/16] %v873, 128
    %1022 = vxpose.xlu0.b32.cont [12/16] %v877, 128
    %1023 = vxpose.xlu0.b32.cont [13/16] %v883, 128
    %1024 = vxpose.xlu0.b32.cont [14/16] %v887, 128
    %1025 = vxpose.xlu0.b32.cont [15/16] %v893, 128
    %1026 = vxpose.xlu0.b32.end [16/16] %v897, 128
    %v1027 = vpop.trf.xlu0
    %v1028 = vpop.trf.xlu0
    %v1029 = vpop.trf.xlu0
    %v1030 = vpop.trf.xlu0
    %v1031 = vpop.trf.xlu0
    %v1032 = vpop.trf.xlu0
    %v1033 = vpop.trf.xlu0
    %v1034 = vpop.trf.xlu0
    %v1035 = vpop.trf.xlu0
    %v1036 = vpop.trf.xlu0
    %v1037 = vpop.trf.xlu0
    %v1038 = vpop.trf.xlu0
    %v1039 = vpop.trf.xlu0
    %v1040 = vpop.trf.xlu0
    %v1041 = vpop.trf.xlu0
    %v1042 = vpop.trf.xlu0
    %s1043 = smul.u32 0, 2
    %s1044 = smul.addr %s1043, 64
    %s1045 = scalar_lea.hbm %s1, %s1044
    %s1047 = sshll.u32 1, 14
    %s1048 = sxor.u32 4294967295, %s1047
    %s1050 = sld [smem:[#allocation0]]
    %s1051 = sadd.s32 2, %s1050
    %s1053 = sshll.u32 7, 26
    %s1054 = sxor.u32 4294967295, %s1053
    %s1055 = sand.u32 0, %s1054
    %s1056 = sshll.u32 %s1051, 26
    %s1057 = sor.u32 %s1055, %s1056
    %s1058 = sshll.u32 [#allocation2], 4
    %s1059 = int_to_ptr.vmem [resolvable:$true] %s1058
    %1062 = sst [smem:[#allocation29]] 256
    %s1063 = scalar_lea.smem [#allocation29], 1
    %1064 = sst [smem:[%s1063]] 256
    %s1065 = scalar_lea.smem [#allocation29], 2
    %1066 = sst [smem:[%s1065]] 2
    %s1067 = scalar_lea.smem [#allocation29], 3
    %1068 = sst [smem:[%s1067]] 64
    %s1069 = scalar_lea.smem [#allocation29], 4
    %1070 = sst [smem:[%s1069]] 128
    %s1071 = scalar_lea.smem [#allocation29], 5
    %1072 = sst [smem:[%s1071]] 2
    %s1073 = scalar_lea.smem [#allocation29], 6
    %1074 = sst [smem:[%s1073]] 128
    %s1075 = scalar_lea.smem [#allocation29], 7
    %1076 = sst [smem:[%s1075]] 64
    %s1077 = scalar_lea.smem [#allocation29], 8
    %1078 = sst [smem:[%s1077]] 4
    %1080 = dma.general %s1045, 4096, %s1059, [#allocation3], [#allocation28], [#allocation29], %s1057, 0
    %s1081 = smul.u32 4, 32
    %s1082 = smul.u32 %s1081, 2
    %s1083 = sshll.u32 %s1082, 4
    %1084 = dma.done [#allocation3], %s1083
    %v1085 = vld [vmem:[#allocation2] sm:$0xff]
    %v1086 = vld [vmem:[#allocation2 + $0x8] sm:$0xff]
    %v1087 = vld [vmem:[#allocation2 + $0x10] sm:$0xff]
    %v1088 = vld [vmem:[#allocation2 + $0x18] sm:$0xff]
    %v1089 = vld [vmem:[#allocation2 + $0x20] sm:$0xff]
    %v1090 = vld [vmem:[#allocation2 + $0x28] sm:$0xff]
    %v1091 = vld [vmem:[#allocation2 + $0x30] sm:$0xff]
    %v1092 = vld [vmem:[#allocation2 + $0x38] sm:$0xff]
    %v1093 = vld [vmem:[#allocation2 + $0x40] sm:$0xff]
    %v1094 = vld [vmem:[#allocation2 + $0x48] sm:$0xff]
    %v1095 = vld [vmem:[#allocation2 + $0x50] sm:$0xff]
    %v1096 = vld [vmem:[#allocation2 + $0x58] sm:$0xff]
    %v1097 = vld [vmem:[#allocation2 + $0x60] sm:$0xff]
    %v1098 = vld [vmem:[#allocation2 + $0x68] sm:$0xff]
    %v1099 = vld [vmem:[#allocation2 + $0x70] sm:$0xff]
    %v1100 = vld [vmem:[#allocation2 + $0x78] sm:$0xff]
    %v1101 = vld [vmem:[#allocation2 + $0x80] sm:$0xff]
    %v1102 = vld [vmem:[#allocation2 + $0x88] sm:$0xff]
    %v1103 = vld [vmem:[#allocation2 + $0x90] sm:$0xff]
    %v1104 = vld [vmem:[#allocation2 + $0x98] sm:$0xff]
    %v1105 = vld [vmem:[#allocation2 + $0xa0] sm:$0xff]
    %v1106 = vld [vmem:[#allocation2 + $0xa8] sm:$0xff]
    %v1107 = vld [vmem:[#allocation2 + $0xb0] sm:$0xff]
    %v1108 = vld [vmem:[#allocation2 + $0xb8] sm:$0xff]
    %v1109 = vld [vmem:[#allocation2 + $0xc0] sm:$0xff]
    %v1110 = vld [vmem:[#allocation2 + $0xc8] sm:$0xff]
    %v1111 = vld [vmem:[#allocation2 + $0xd0] sm:$0xff]
    %v1112 = vld [vmem:[#allocation2 + $0xd8] sm:$0xff]
    %v1113 = vld [vmem:[#allocation2 + $0xe0] sm:$0xff]
    %v1114 = vld [vmem:[#allocation2 + $0xe8] sm:$0xff]
    %v1115 = vld [vmem:[#allocation2 + $0xf0] sm:$0xff]
    %v1116 = vld [vmem:[#allocation2 + $0xf8] sm:$0xff]
    %vm1117 = vcmp.gt.bf16.partialorder %v1085, 0
    %vm1118 = vcmp.gt.bf16.partialorder %v1086, 0
    %vm1119 = vcmp.gt.bf16.partialorder %v1087, 0
    %vm1120 = vcmp.gt.bf16.partialorder %v1088, 0
    %vm1121 = vcmp.gt.bf16.partialorder %v1089, 0
    %vm1122 = vcmp.gt.bf16.partialorder %v1090, 0
    %vm1123 = vcmp.gt.bf16.partialorder %v1091, 0
    %vm1124 = vcmp.gt.bf16.partialorder %v1092, 0
    %vm1125 = vcmp.gt.bf16.partialorder %v1093, 0
    %vm1126 = vcmp.gt.bf16.partialorder %v1094, 0
    %vm1127 = vcmp.gt.bf16.partialorder %v1095, 0
    %vm1128 = vcmp.gt.bf16.partialorder %v1096, 0
    %vm1129 = vcmp.gt.bf16.partialorder %v1097, 0
    %vm1130 = vcmp.gt.bf16.partialorder %v1098, 0
    %vm1131 = vcmp.gt.bf16.partialorder %v1099, 0
    %vm1132 = vcmp.gt.bf16.partialorder %v1100, 0
    %vm1133 = vcmp.gt.bf16.partialorder %v1101, 0
    %vm1134 = vcmp.gt.bf16.partialorder %v1102, 0
    %vm1135 = vcmp.gt.bf16.partialorder %v1103, 0
    %vm1136 = vcmp.gt.bf16.partialorder %v1104, 0
    %vm1137 = vcmp.gt.bf16.partialorder %v1105, 0
    %vm1138 = vcmp.gt.bf16.partialorder %v1106, 0
    %vm1139 = vcmp.gt.bf16.partialorder %v1107, 0
    %vm1140 = vcmp.gt.bf16.partialorder %v1108, 0
    %vm1141 = vcmp.gt.bf16.partialorder %v1109, 0
    %vm1142 = vcmp.gt.bf16.partialorder %v1110, 0
    %vm1143 = vcmp.gt.bf16.partialorder %v1111, 0
    %vm1144 = vcmp.gt.bf16.partialorder %v1112, 0
    %vm1145 = vcmp.gt.bf16.partialorder %v1113, 0
    %vm1146 = vcmp.gt.bf16.partialorder %v1114, 0
    %vm1147 = vcmp.gt.bf16.partialorder %v1115, 0
    %vm1148 = vcmp.gt.bf16.partialorder %v1116, 0
    %v1149 = vld [vmem:[#allocation4] sm:$0xff]
    %v1150 = vld [vmem:[#allocation4 + $0x8] sm:$0xff]
    %v1151 = vld [vmem:[#allocation4 + $0x10] sm:$0xff]
    %v1152 = vld [vmem:[#allocation4 + $0x18] sm:$0xff]
    %v1153 = vld [vmem:[#allocation4 + $0x20] sm:$0xff]
    %v1154 = vld [vmem:[#allocation4 + $0x28] sm:$0xff]
    %v1155 = vld [vmem:[#allocation4 + $0x30] sm:$0xff]
    %v1156 = vld [vmem:[#allocation4 + $0x38] sm:$0xff]
    %v1157 = vld [vmem:[#allocation4 + $0x40] sm:$0xff]
    %v1158 = vld [vmem:[#allocation4 + $0x48] sm:$0xff]
    %v1159 = vld [vmem:[#allocation4 + $0x50] sm:$0xff]
    %v1160 = vld [vmem:[#allocation4 + $0x58] sm:$0xff]
    %v1161 = vld [vmem:[#allocation4 + $0x60] sm:$0xff]
    %v1162 = vld [vmem:[#allocation4 + $0x68] sm:$0xff]
    %v1163 = vld [vmem:[#allocation4 + $0x70] sm:$0xff]
    %v1164 = vld [vmem:[#allocation4 + $0x78] sm:$0xff]
    %v1165 = vld [vmem:[#allocation4 + $0x80] sm:$0xff]
    %v1166 = vld [vmem:[#allocation4 + $0x88] sm:$0xff]
    %v1167 = vld [vmem:[#allocation4 + $0x90] sm:$0xff]
    %v1168 = vld [vmem:[#allocation4 + $0x98] sm:$0xff]
    %v1169 = vld [vmem:[#allocation4 + $0xa0] sm:$0xff]
    %v1170 = vld [vmem:[#allocation4 + $0xa8] sm:$0xff]
    %v1171 = vld [vmem:[#allocation4 + $0xb0] sm:$0xff]
    %v1172 = vld [vmem:[#allocation4 + $0xb8] sm:$0xff]
    %v1173 = vld [vmem:[#allocation4 + $0xc0] sm:$0xff]
    %v1174 = vld [vmem:[#allocation4 + $0xc8] sm:$0xff]
    %v1175 = vld [vmem:[#allocation4 + $0xd0] sm:$0xff]
    %v1176 = vld [vmem:[#allocation4 + $0xd8] sm:$0xff]
    %v1177 = vld [vmem:[#allocation4 + $0xe0] sm:$0xff]
    %v1178 = vld [vmem:[#allocation4 + $0xe8] sm:$0xff]
    %v1179 = vld [vmem:[#allocation4 + $0xf0] sm:$0xff]
    %v1180 = vld [vmem:[#allocation4 + $0xf8] sm:$0xff]
    %1182 = vset.pattern.permute.xlu0 3
    %1183 = vperm.xlu0 %1182, %v1149
    %v1184 = vpop.permute.xlu0 %1183
    %1187 = vset.pattern.permute.xlu0 3
    %1188 = vperm.xlu0 %1187, %v1150
    %v1189 = vpop.permute.xlu0 %1188
    %1192 = vset.pattern.permute.xlu0 3
    %1193 = vperm.xlu0 %1192, %v1151
    %v1194 = vpop.permute.xlu0 %1193
    %1197 = vset.pattern.permute.xlu0 3
    %1198 = vperm.xlu0 %1197, %v1152
    %v1199 = vpop.permute.xlu0 %1198
    %1202 = vset.pattern.permute.xlu0 3
    %1203 = vperm.xlu0 %1202, %v1153
    %v1204 = vpop.permute.xlu0 %1203
    %1207 = vset.pattern.permute.xlu0 3
    %1208 = vperm.xlu0 %1207, %v1154
    %v1209 = vpop.permute.xlu0 %1208
    %1212 = vset.pattern.permute.xlu0 3
    %1213 = vperm.xlu0 %1212, %v1155
    %v1214 = vpop.permute.xlu0 %1213
    %1217 = vset.pattern.permute.xlu0 3
    %1218 = vperm.xlu0 %1217, %v1156
    %v1219 = vpop.permute.xlu0 %1218
    %1222 = vset.pattern.permute.xlu0 3
    %1223 = vperm.xlu0 %1222, %v1157
    %v1224 = vpop.permute.xlu0 %1223
    %1227 = vset.pattern.permute.xlu0 3
    %1228 = vperm.xlu0 %1227, %v1158
    %v1229 = vpop.permute.xlu0 %1228
    %1232 = vset.pattern.permute.xlu0 3
    %1233 = vperm.xlu0 %1232, %v1159
    %v1234 = vpop.permute.xlu0 %1233
    %1237 = vset.pattern.permute.xlu0 3
    %1238 = vperm.xlu0 %1237, %v1160
    %v1239 = vpop.permute.xlu0 %1238
    %1242 = vset.pattern.permute.xlu0 3
    %1243 = vperm.xlu0 %1242, %v1161
    %v1244 = vpop.permute.xlu0 %1243
    %1247 = vset.pattern.permute.xlu0 3
    %1248 = vperm.xlu0 %1247, %v1162
    %v1249 = vpop.permute.xlu0 %1248
    %1252 = vset.pattern.permute.xlu0 3
    %1253 = vperm.xlu0 %1252, %v1163
    %v1254 = vpop.permute.xlu0 %1253
    %1257 = vset.pattern.permute.xlu0 3
    %1258 = vperm.xlu0 %1257, %v1164
    %v1259 = vpop.permute.xlu0 %1258
    %1262 = vset.pattern.permute.xlu0 3
    %1263 = vperm.xlu0 %1262, %v1165
    %v1264 = vpop.permute.xlu0 %1263
    %1267 = vset.pattern.permute.xlu0 3
    %1268 = vperm.xlu0 %1267, %v1166
    %v1269 = vpop.permute.xlu0 %1268
    %1272 = vset.pattern.permute.xlu0 3
    %1273 = vperm.xlu0 %1272, %v1167
    %v1274 = vpop.permute.xlu0 %1273
    %1277 = vset.pattern.permute.xlu0 3
    %1278 = vperm.xlu0 %1277, %v1168
    %v1279 = vpop.permute.xlu0 %1278
    %1282 = vset.pattern.permute.xlu0 3
    %1283 = vperm.xlu0 %1282, %v1169
    %v1284 = vpop.permute.xlu0 %1283
    %1287 = vset.pattern.permute.xlu0 3
    %1288 = vperm.xlu0 %1287, %v1170
    %v1289 = vpop.permute.xlu0 %1288
    %1292 = vset.pattern.permute.xlu0 3
    %1293 = vperm.xlu0 %1292, %v1171
    %v1294 = vpop.permute.xlu0 %1293
    %1297 = vset.pattern.permute.xlu0 3
    %1298 = vperm.xlu0 %1297, %v1172
    %v1299 = vpop.permute.xlu0 %1298
    %1302 = vset.pattern.permute.xlu0 3
    %1303 = vperm.xlu0 %1302, %v1173
    %v1304 = vpop.permute.xlu0 %1303
    %1307 = vset.pattern.permute.xlu0 3
    %1308 = vperm.xlu0 %1307, %v1174
    %v1309 = vpop.permute.xlu0 %1308
    %1312 = vset.pattern.permute.xlu0 3
    %1313 = vperm.xlu0 %1312, %v1175
    %v1314 = vpop.permute.xlu0 %1313
    %1317 = vset.pattern.permute.xlu0 3
    %1318 = vperm.xlu0 %1317, %v1176
    %v1319 = vpop.permute.xlu0 %1318
    %1322 = vset.pattern.permute.xlu0 3
    %1323 = vperm.xlu0 %1322, %v1177
    %v1324 = vpop.permute.xlu0 %1323
    %1327 = vset.pattern.permute.xlu0 3
    %1328 = vperm.xlu0 %1327, %v1178
    %v1329 = vpop.permute.xlu0 %1328
    %1332 = vset.pattern.permute.xlu0 3
    %1333 = vperm.xlu0 %1332, %v1179
    %v1334 = vpop.permute.xlu0 %1333
    %1337 = vset.pattern.permute.xlu0 3
    %1338 = vperm.xlu0 %1337, %v1180
    %v1339 = vpop.permute.xlu0 %1338
    %v1341 = vlaneseq
    %v1342 = vshrl.u32 %v1341, 7
    %v1343 = vsub.s32 0, %v1342
    %v1344 = vrot.slane %v995, %v1343
    %v1345 = vlaneseq
    %v1346 = vshrl.u32 %v1345, 7
    %v1347 = vsub.s32 0, %v1346
    %v1348 = vrot.slane %v1027, %v1347
    %v1349 = vadd.f32 %v1184, %v1344
    %v1350 = vadd.f32 %v1184, %v1348
    %v1351 = vadd.f32 %v1189, %v1344
    %v1352 = vadd.f32 %v1189, %v1348
    %v1353 = vadd.f32 %v1194, %v1344
    %v1354 = vadd.f32 %v1194, %v1348
    %v1355 = vadd.f32 %v1199, %v1344
    %v1356 = vadd.f32 %v1199, %v1348
    %v1357 = vadd.f32 %v1204, %v1344
    %v1358 = vadd.f32 %v1204, %v1348
    %v1359 = vadd.f32 %v1209, %v1344
    %v1360 = vadd.f32 %v1209, %v1348
    %v1361 = vadd.f32 %v1214, %v1344
    %v1362 = vadd.f32 %v1214, %v1348
    %v1363 = vadd.f32 %v1219, %v1344
    %v1364 = vadd.f32 %v1219, %v1348
    %v1365 = vadd.f32 %v1224, %v1344
    %v1366 = vadd.f32 %v1224, %v1348
    %v1367 = vadd.f32 %v1229, %v1344
    %v1368 = vadd.f32 %v1229, %v1348
    %v1369 = vadd.f32 %v1234, %v1344
    %v1370 = vadd.f32 %v1234, %v1348
    %v1371 = vadd.f32 %v1239, %v1344
    %v1372 = vadd.f32 %v1239, %v1348
    %v1373 = vadd.f32 %v1244, %v1344
    %v1374 = vadd.f32 %v1244, %v1348
    %v1375 = vadd.f32 %v1249, %v1344
    %v1376 = vadd.f32 %v1249, %v1348
    %v1377 = vadd.f32 %v1254, %v1344
    %v1378 = vadd.f32 %v1254, %v1348
    %v1379 = vadd.f32 %v1259, %v1344
    %v1380 = vadd.f32 %v1259, %v1348
    %v1381 = vadd.f32 %v1264, %v1344
    %v1382 = vadd.f32 %v1264, %v1348
    %v1383 = vadd.f32 %v1269, %v1344
    %v1384 = vadd.f32 %v1269, %v1348
    %v1385 = vadd.f32 %v1274, %v1344
    %v1386 = vadd.f32 %v1274, %v1348
    %v1387 = vadd.f32 %v1279, %v1344
    %v1388 = vadd.f32 %v1279, %v1348
    %v1389 = vadd.f32 %v1284, %v1344
    %v1390 = vadd.f32 %v1284, %v1348
    %v1391 = vadd.f32 %v1289, %v1344
    %v1392 = vadd.f32 %v1289, %v1348
    %v1393 = vadd.f32 %v1294, %v1344
    %v1394 = vadd.f32 %v1294, %v1348
    %v1395 = vadd.f32 %v1299, %v1344
    %v1396 = vadd.f32 %v1299, %v1348
    %v1397 = vadd.f32 %v1304, %v1344
    %v1398 = vadd.f32 %v1304, %v1348
    %v1399 = vadd.f32 %v1309, %v1344
    %v1400 = vadd.f32 %v1309, %v1348
    %v1401 = vadd.f32 %v1314, %v1344
    %v1402 = vadd.f32 %v1314, %v1348
    %v1403 = vadd.f32 %v1319, %v1344
    %v1404 = vadd.f32 %v1319, %v1348
    %v1405 = vadd.f32 %v1324, %v1344
    %v1406 = vadd.f32 %v1324, %v1348
    %v1407 = vadd.f32 %v1329, %v1344
    %v1408 = vadd.f32 %v1329, %v1348
    %v1409 = vadd.f32 %v1334, %v1344
    %v1410 = vadd.f32 %v1334, %v1348
    %v1411 = vadd.f32 %v1339, %v1344
    %v1412 = vadd.f32 %v1339, %v1348
    %v1413 = vmul.f32 %v1349, 0.2
    %v1414 = vmul.f32 %v1350, 0.2
    %v1415 = vmul.f32 %v1351, 0.2
    %v1416 = vmul.f32 %v1352, 0.2
    %v1417 = vmul.f32 %v1353, 0.2
    %v1418 = vmul.f32 %v1354, 0.2
    %v1419 = vmul.f32 %v1355, 0.2
    %v1420 = vmul.f32 %v1356, 0.2
    %v1421 = vmul.f32 %v1357, 0.2
    %v1422 = vmul.f32 %v1358, 0.2
    %v1423 = vmul.f32 %v1359, 0.2
    %v1424 = vmul.f32 %v1360, 0.2
    %v1425 = vmul.f32 %v1361, 0.2
    %v1426 = vmul.f32 %v1362, 0.2
    %v1427 = vmul.f32 %v1363, 0.2
    %v1428 = vmul.f32 %v1364, 0.2
    %v1429 = vmul.f32 %v1365, 0.2
    %v1430 = vmul.f32 %v1366, 0.2
    %v1431 = vmul.f32 %v1367, 0.2
    %v1432 = vmul.f32 %v1368, 0.2
    %v1433 = vmul.f32 %v1369, 0.2
    %v1434 = vmul.f32 %v1370, 0.2
    %v1435 = vmul.f32 %v1371, 0.2
    %v1436 = vmul.f32 %v1372, 0.2
    %v1437 = vmul.f32 %v1373, 0.2
    %v1438 = vmul.f32 %v1374, 0.2
    %v1439 = vmul.f32 %v1375, 0.2
    %v1440 = vmul.f32 %v1376, 0.2
    %v1441 = vmul.f32 %v1377, 0.2
    %v1442 = vmul.f32 %v1378, 0.2
    %v1443 = vmul.f32 %v1379, 0.2
    %v1444 = vmul.f32 %v1380, 0.2
    %v1445 = vmul.f32 %v1381, 0.2
    %v1446 = vmul.f32 %v1382, 0.2
    %v1447 = vmul.f32 %v1383, 0.2
    %v1448 = vmul.f32 %v1384, 0.2
    %v1449 = vmul.f32 %v1385, 0.2
    %v1450 = vmul.f32 %v1386, 0.2
    %v1451 = vmul.f32 %v1387, 0.2
    %v1452 = vmul.f32 %v1388, 0.2
    %v1453 = vmul.f32 %v1389, 0.2
    %v1454 = vmul.f32 %v1390, 0.2
    %v1455 = vmul.f32 %v1391, 0.2
    %v1456 = vmul.f32 %v1392, 0.2
    %v1457 = vmul.f32 %v1393, 0.2
    %v1458 = vmul.f32 %v1394, 0.2
    %v1459 = vmul.f32 %v1395, 0.2
    %v1460 = vmul.f32 %v1396, 0.2
    %v1461 = vmul.f32 %v1397, 0.2
    %v1462 = vmul.f32 %v1398, 0.2
    %v1463 = vmul.f32 %v1399, 0.2
    %v1464 = vmul.f32 %v1400, 0.2
    %v1465 = vmul.f32 %v1401, 0.2
    %v1466 = vmul.f32 %v1402, 0.2
    %v1467 = vmul.f32 %v1403, 0.2
    %v1468 = vmul.f32 %v1404, 0.2
    %v1469 = vmul.f32 %v1405, 0.2
    %v1470 = vmul.f32 %v1406, 0.2
    %v1471 = vmul.f32 %v1407, 0.2
    %v1472 = vmul.f32 %v1408, 0.2
    %v1473 = vmul.f32 %v1409, 0.2
    %v1474 = vmul.f32 %v1410, 0.2
    %v1475 = vmul.f32 %v1411, 0.2
    %v1476 = vmul.f32 %v1412, 0.2
    %v1477 = vmax.f32 %v1349, %v1413
    %v1478 = vmax.f32 %v1350, %v1414
    %v1479 = vmax.f32 %v1351, %v1415
    %v1480 = vmax.f32 %v1352, %v1416
    %v1481 = vmax.f32 %v1353, %v1417
    %v1482 = vmax.f32 %v1354, %v1418
    %v1483 = vmax.f32 %v1355, %v1419
    %v1484 = vmax.f32 %v1356, %v1420
    %v1485 = vmax.f32 %v1357, %v1421
    %v1486 = vmax.f32 %v1358, %v1422
    %v1487 = vmax.f32 %v1359, %v1423
    %v1488 = vmax.f32 %v1360, %v1424
    %v1489 = vmax.f32 %v1361, %v1425
    %v1490 = vmax.f32 %v1362, %v1426
    %v1491 = vmax.f32 %v1363, %v1427
    %v1492 = vmax.f32 %v1364, %v1428
    %v1493 = vmax.f32 %v1365, %v1429
    %v1494 = vmax.f32 %v1366, %v1430
    %v1495 = vmax.f32 %v1367, %v1431
    %v1496 = vmax.f32 %v1368, %v1432
    %v1497 = vmax.f32 %v1369, %v1433
    %v1498 = vmax.f32 %v1370, %v1434
    %v1499 = vmax.f32 %v1371, %v1435
    %v1500 = vmax.f32 %v1372, %v1436
    %v1501 = vmax.f32 %v1373, %v1437
    %v1502 = vmax.f32 %v1374, %v1438
    %v1503 = vmax.f32 %v1375, %v1439
    %v1504 = vmax.f32 %v1376, %v1440
    %v1505 = vmax.f32 %v1377, %v1441
    %v1506 = vmax.f32 %v1378, %v1442
    %v1507 = vmax.f32 %v1379, %v1443
    %v1508 = vmax.f32 %v1380, %v1444
    %v1509 = vmax.f32 %v1381, %v1445
    %v1510 = vmax.f32 %v1382, %v1446
    %v1511 = vmax.f32 %v1383, %v1447
    %v1512 = vmax.f32 %v1384, %v1448
    %v1513 = vmax.f32 %v1385, %v1449
    %v1514 = vmax.f32 %v1386, %v1450
    %v1515 = vmax.f32 %v1387, %v1451
    %v1516 = vmax.f32 %v1388, %v1452
    %v1517 = vmax.f32 %v1389, %v1453
    %v1518 = vmax.f32 %v1390, %v1454
    %v1519 = vmax.f32 %v1391, %v1455
    %v1520 = vmax.f32 %v1392, %v1456
    %v1521 = vmax.f32 %v1393, %v1457
    %v1522 = vmax.f32 %v1394, %v1458
    %v1523 = vmax.f32 %v1395, %v1459
    %v1524 = vmax.f32 %v1396, %v1460
    %v1525 = vmax.f32 %v1397, %v1461
    %v1526 = vmax.f32 %v1398, %v1462
    %v1527 = vmax.f32 %v1399, %v1463
    %v1528 = vmax.f32 %v1400, %v1464
    %v1529 = vmax.f32 %v1401, %v1465
    %v1530 = vmax.f32 %v1402, %v1466
    %v1531 = vmax.f32 %v1403, %v1467
    %v1532 = vmax.f32 %v1404, %v1468
    %v1533 = vmax.f32 %v1405, %v1469
    %v1534 = vmax.f32 %v1406, %v1470
    %v1535 = vmax.f32 %v1407, %v1471
    %v1536 = vmax.f32 %v1408, %v1472
    %v1537 = vmax.f32 %v1409, %v1473
    %v1538 = vmax.f32 %v1410, %v1474
    %v1539 = vmax.f32 %v1411, %v1475
    %v1540 = vmax.f32 %v1412, %v1476
    %v1541 = vsel %vm1117, 65537, 0
    %v1542 = vsel %vm1118, 65537, 0
    %v1543 = vsel %vm1119, 65537, 0
    %v1544 = vsel %vm1120, 65537, 0
    %v1545 = vsel %vm1121, 65537, 0
    %v1546 = vsel %vm1122, 65537, 0
    %v1547 = vsel %vm1123, 65537, 0
    %v1548 = vsel %vm1124, 65537, 0
    %v1549 = vsel %vm1125, 65537, 0
    %v1550 = vsel %vm1126, 65537, 0
    %v1551 = vsel %vm1127, 65537, 0
    %v1552 = vsel %vm1128, 65537, 0
    %v1553 = vsel %vm1129, 65537, 0
    %v1554 = vsel %vm1130, 65537, 0
    %v1555 = vsel %vm1131, 65537, 0
    %v1556 = vsel %vm1132, 65537, 0
    %v1557 = vsel %vm1133, 65537, 0
    %v1558 = vsel %vm1134, 65537, 0
    %v1559 = vsel %vm1135, 65537, 0
    %v1560 = vsel %vm1136, 65537, 0
    %v1561 = vsel %vm1137, 65537, 0
    %v1562 = vsel %vm1138, 65537, 0
    %v1563 = vsel %vm1139, 65537, 0
    %v1564 = vsel %vm1140, 65537, 0
    %v1565 = vsel %vm1141, 65537, 0
    %v1566 = vsel %vm1142, 65537, 0
    %v1567 = vsel %vm1143, 65537, 0
    %v1568 = vsel %vm1144, 65537, 0
    %v1569 = vsel %vm1145, 65537, 0
    %v1570 = vsel %vm1146, 65537, 0
    %v1571 = vsel %vm1147, 65537, 0
    %v1572 = vsel %vm1148, 65537, 0
    %v1573 = vunpack.c.l.b16 %v1541
    %v1574 = vunpack.c.l.b16 %v1542
    %v1575 = vunpack.c.h.b16 %v1541
    %v1576 = vunpack.c.h.b16 %v1542
    %v1577 = vunpack.c.l.b16 %v1543
    %v1578 = vunpack.c.l.b16 %v1544
    %v1579 = vunpack.c.h.b16 %v1543
    %v1580 = vunpack.c.h.b16 %v1544
    %v1581 = vunpack.c.l.b16 %v1545
    %v1582 = vunpack.c.l.b16 %v1546
    %v1583 = vunpack.c.h.b16 %v1545
    %v1584 = vunpack.c.h.b16 %v1546
    %v1585 = vunpack.c.l.b16 %v1547
    %v1586 = vunpack.c.l.b16 %v1548
    %v1587 = vunpack.c.h.b16 %v1547
    %v1588 = vunpack.c.h.b16 %v1548
    %v1589 = vunpack.c.l.b16 %v1549
    %v1590 = vunpack.c.l.b16 %v1550
    %v1591 = vunpack.c.h.b16 %v1549
    %v1592 = vunpack.c.h.b16 %v1550
    %v1593 = vunpack.c.l.b16 %v1551
    %v1594 = vunpack.c.l.b16 %v1552
    %v1595 = vunpack.c.h.b16 %v1551
    %v1596 = vunpack.c.h.b16 %v1552
    %v1597 = vunpack.c.l.b16 %v1553
    %v1598 = vunpack.c.l.b16 %v1554
    %v1599 = vunpack.c.h.b16 %v1553
    %v1600 = vunpack.c.h.b16 %v1554
    %v1601 = vunpack.c.l.b16 %v1555
    %v1602 = vunpack.c.l.b16 %v1556
    %v1603 = vunpack.c.h.b16 %v1555
    %v1604 = vunpack.c.h.b16 %v1556
    %v1605 = vunpack.c.l.b16 %v1557
    %v1606 = vunpack.c.l.b16 %v1558
    %v1607 = vunpack.c.h.b16 %v1557
    %v1608 = vunpack.c.h.b16 %v1558
    %v1609 = vunpack.c.l.b16 %v1559
    %v1610 = vunpack.c.l.b16 %v1560
    %v1611 = vunpack.c.h.b16 %v1559
    %v1612 = vunpack.c.h.b16 %v1560
    %v1613 = vunpack.c.l.b16 %v1561
    %v1614 = vunpack.c.l.b16 %v1562
    %v1615 = vunpack.c.h.b16 %v1561
    %v1616 = vunpack.c.h.b16 %v1562
    %v1617 = vunpack.c.l.b16 %v1563
    %v1618 = vunpack.c.l.b16 %v1564
    %v1619 = vunpack.c.h.b16 %v1563
    %v1620 = vunpack.c.h.b16 %v1564
    %v1621 = vunpack.c.l.b16 %v1565
    %v1622 = vunpack.c.l.b16 %v1566
    %v1623 = vunpack.c.h.b16 %v1565
    %v1624 = vunpack.c.h.b16 %v1566
    %v1625 = vunpack.c.l.b16 %v1567
    %v1626 = vunpack.c.l.b16 %v1568
    %v1627 = vunpack.c.h.b16 %v1567
    %v1628 = vunpack.c.h.b16 %v1568
    %v1629 = vunpack.c.l.b16 %v1569
    %v1630 = vunpack.c.l.b16 %v1570
    %v1631 = vunpack.c.h.b16 %v1569
    %v1632 = vunpack.c.h.b16 %v1570
    %v1633 = vunpack.c.l.b16 %v1571
    %v1634 = vunpack.c.l.b16 %v1572
    %v1635 = vunpack.c.h.b16 %v1571
    %v1636 = vunpack.c.h.b16 %v1572
    %v1637 = vpack.c.b16 %v1574, %v1573
    %v1638 = vpack.c.b16 %v1576, %v1575
    %v1639 = vpack.c.b16 %v1578, %v1577
    %v1640 = vpack.c.b16 %v1580, %v1579
    %v1641 = vpack.c.b16 %v1582, %v1581
    %v1642 = vpack.c.b16 %v1584, %v1583
    %v1643 = vpack.c.b16 %v1586, %v1585
    %v1644 = vpack.c.b16 %v1588, %v1587
    %v1645 = vpack.c.b16 %v1590, %v1589
    %v1646 = vpack.c.b16 %v1592, %v1591
    %v1647 = vpack.c.b16 %v1594, %v1593
    %v1648 = vpack.c.b16 %v1596, %v1595
    %v1649 = vpack.c.b16 %v1598, %v1597
    %v1650 = vpack.c.b16 %v1600, %v1599
    %v1651 = vpack.c.b16 %v1602, %v1601
    %v1652 = vpack.c.b16 %v1604, %v1603
    %v1653 = vpack.c.b16 %v1606, %v1605
    %v1654 = vpack.c.b16 %v1608, %v1607
    %v1655 = vpack.c.b16 %v1610, %v1609
    %v1656 = vpack.c.b16 %v1612, %v1611
    %v1657 = vpack.c.b16 %v1614, %v1613
    %v1658 = vpack.c.b16 %v1616, %v1615
    %v1659 = vpack.c.b16 %v1618, %v1617
    %v1660 = vpack.c.b16 %v1620, %v1619
    %v1661 = vpack.c.b16 %v1622, %v1621
    %v1662 = vpack.c.b16 %v1624, %v1623
    %v1663 = vpack.c.b16 %v1626, %v1625
    %v1664 = vpack.c.b16 %v1628, %v1627
    %v1665 = vpack.c.b16 %v1630, %v1629
    %v1666 = vpack.c.b16 %v1632, %v1631
    %v1667 = vpack.c.b16 %v1634, %v1633
    %v1668 = vpack.c.b16 %v1636, %v1635
    %vm1669 = vcmp.ne.s16.totalorder %v1637, 0
    %vm1670 = vcmp.ne.s16.totalorder %v1638, 0
    %vm1671 = vcmp.ne.s16.totalorder %v1639, 0
    %vm1672 = vcmp.ne.s16.totalorder %v1640, 0
    %vm1673 = vcmp.ne.s16.totalorder %v1641, 0
    %vm1674 = vcmp.ne.s16.totalorder %v1642, 0
    %vm1675 = vcmp.ne.s16.totalorder %v1643, 0
    %vm1676 = vcmp.ne.s16.totalorder %v1644, 0
    %vm1677 = vcmp.ne.s16.totalorder %v1645, 0
    %vm1678 = vcmp.ne.s16.totalorder %v1646, 0
    %vm1679 = vcmp.ne.s16.totalorder %v1647, 0
    %vm1680 = vcmp.ne.s16.totalorder %v1648, 0
    %vm1681 = vcmp.ne.s16.totalorder %v1649, 0
    %vm1682 = vcmp.ne.s16.totalorder %v1650, 0
    %vm1683 = vcmp.ne.s16.totalorder %v1651, 0
    %vm1684 = vcmp.ne.s16.totalorder %v1652, 0
    %vm1685 = vcmp.ne.s16.totalorder %v1653, 0
    %vm1686 = vcmp.ne.s16.totalorder %v1654, 0
    %vm1687 = vcmp.ne.s16.totalorder %v1655, 0
    %vm1688 = vcmp.ne.s16.totalorder %v1656, 0
    %vm1689 = vcmp.ne.s16.totalorder %v1657, 0
    %vm1690 = vcmp.ne.s16.totalorder %v1658, 0
    %vm1691 = vcmp.ne.s16.totalorder %v1659, 0
    %vm1692 = vcmp.ne.s16.totalorder %v1660, 0
    %vm1693 = vcmp.ne.s16.totalorder %v1661, 0
    %vm1694 = vcmp.ne.s16.totalorder %v1662, 0
    %vm1695 = vcmp.ne.s16.totalorder %v1663, 0
    %vm1696 = vcmp.ne.s16.totalorder %v1664, 0
    %vm1697 = vcmp.ne.s16.totalorder %v1665, 0
    %vm1698 = vcmp.ne.s16.totalorder %v1666, 0
    %vm1699 = vcmp.ne.s16.totalorder %v1667, 0
    %vm1700 = vcmp.ne.s16.totalorder %v1668, 0
    %v1701 = vsel %vm1669, 65537, 0
    %v1702 = vsel %vm1670, 65537, 0
    %v1703 = vsel %vm1671, 65537, 0
    %v1704 = vsel %vm1672, 65537, 0
    %v1705 = vsel %vm1673, 65537, 0
    %v1706 = vsel %vm1674, 65537, 0
    %v1707 = vsel %vm1675, 65537, 0
    %v1708 = vsel %vm1676, 65537, 0
    %v1709 = vsel %vm1677, 65537, 0
    %v1710 = vsel %vm1678, 65537, 0
    %v1711 = vsel %vm1679, 65537, 0
    %v1712 = vsel %vm1680, 65537, 0
    %v1713 = vsel %vm1681, 65537, 0
    %v1714 = vsel %vm1682, 65537, 0
    %v1715 = vsel %vm1683, 65537, 0
    %v1716 = vsel %vm1684, 65537, 0
    %v1717 = vsel %vm1685, 65537, 0
    %v1718 = vsel %vm1686, 65537, 0
    %v1719 = vsel %vm1687, 65537, 0
    %v1720 = vsel %vm1688, 65537, 0
    %v1721 = vsel %vm1689, 65537, 0
    %v1722 = vsel %vm1690, 65537, 0
    %v1723 = vsel %vm1691, 65537, 0
    %v1724 = vsel %vm1692, 65537, 0
    %v1725 = vsel %vm1693, 65537, 0
    %v1726 = vsel %vm1694, 65537, 0
    %v1727 = vsel %vm1695, 65537, 0
    %v1728 = vsel %vm1696, 65537, 0
    %v1729 = vsel %vm1697, 65537, 0
    %v1730 = vsel %vm1698, 65537, 0
    %v1731 = vsel %vm1699, 65537, 0
    %v1732 = vsel %vm1700, 65537, 0
    %v1733 = vunpack.c.l.b16 %v1701
    %v1734 = vunpack.c.h.b16 %v1701
    %v1735 = vunpack.c.l.b16 %v1702
    %v1736 = vunpack.c.h.b16 %v1702
    %v1737 = vunpack.c.l.b16 %v1703
    %v1738 = vunpack.c.h.b16 %v1703
    %v1739 = vunpack.c.l.b16 %v1704
    %v1740 = vunpack.c.h.b16 %v1704
    %v1741 = vunpack.c.l.b16 %v1705
    %v1742 = vunpack.c.h.b16 %v1705
    %v1743 = vunpack.c.l.b16 %v1706
    %v1744 = vunpack.c.h.b16 %v1706
    %v1745 = vunpack.c.l.b16 %v1707
    %v1746 = vunpack.c.h.b16 %v1707
    %v1747 = vunpack.c.l.b16 %v1708
    %v1748 = vunpack.c.h.b16 %v1708
    %v1749 = vunpack.c.l.b16 %v1709
    %v1750 = vunpack.c.h.b16 %v1709
    %v1751 = vunpack.c.l.b16 %v1710
    %v1752 = vunpack.c.h.b16 %v1710
    %v1753 = vunpack.c.l.b16 %v1711
    %v1754 = vunpack.c.h.b16 %v1711
    %v1755 = vunpack.c.l.b16 %v1712
    %v1756 = vunpack.c.h.b16 %v1712
    %v1757 = vunpack.c.l.b16 %v1713
    %v1758 = vunpack.c.h.b16 %v1713
    %v1759 = vunpack.c.l.b16 %v1714
    %v1760 = vunpack.c.h.b16 %v1714
    %v1761 = vunpack.c.l.b16 %v1715
    %v1762 = vunpack.c.h.b16 %v1715
    %v1763 = vunpack.c.l.b16 %v1716
    %v1764 = vunpack.c.h.b16 %v1716
    %v1765 = vunpack.c.l.b16 %v1717
    %v1766 = vunpack.c.h.b16 %v1717
    %v1767 = vunpack.c.l.b16 %v1718
    %v1768 = vunpack.c.h.b16 %v1718
    %v1769 = vunpack.c.l.b16 %v1719
    %v1770 = vunpack.c.h.b16 %v1719
    %v1771 = vunpack.c.l.b16 %v1720
    %v1772 = vunpack.c.h.b16 %v1720
    %v1773 = vunpack.c.l.b16 %v1721
    %v1774 = vunpack.c.h.b16 %v1721
    %v1775 = vunpack.c.l.b16 %v1722
    %v1776 = vunpack.c.h.b16 %v1722
    %v1777 = vunpack.c.l.b16 %v1723
    %v1778 = vunpack.c.h.b16 %v1723
    %v1779 = vunpack.c.l.b16 %v1724
    %v1780 = vunpack.c.h.b16 %v1724
    %v1781 = vunpack.c.l.b16 %v1725
    %v1782 = vunpack.c.h.b16 %v1725
    %v1783 = vunpack.c.l.b16 %v1726
    %v1784 = vunpack.c.h.b16 %v1726
    %v1785 = vunpack.c.l.b16 %v1727
    %v1786 = vunpack.c.h.b16 %v1727
    %v1787 = vunpack.c.l.b16 %v1728
    %v1788 = vunpack.c.h.b16 %v1728
    %v1789 = vunpack.c.l.b16 %v1729
    %v1790 = vunpack.c.h.b16 %v1729
    %v1791 = vunpack.c.l.b16 %v1730
    %v1792 = vunpack.c.h.b16 %v1730
    %v1793 = vunpack.c.l.b16 %v1731
    %v1794 = vunpack.c.h.b16 %v1731
    %v1795 = vunpack.c.l.b16 %v1732
    %v1796 = vunpack.c.h.b16 %v1732
    %vm1797 = vcmp.ne.s32.totalorder %v1733, 0
    %vm1798 = vcmp.ne.s32.totalorder %v1734, 0
    %vm1799 = vcmp.ne.s32.totalorder %v1735, 0
    %vm1800 = vcmp.ne.s32.totalorder %v1736, 0
    %vm1801 = vcmp.ne.s32.totalorder %v1737, 0
    %vm1802 = vcmp.ne.s32.totalorder %v1738, 0
    %vm1803 = vcmp.ne.s32.totalorder %v1739, 0
    %vm1804 = vcmp.ne.s32.totalorder %v1740, 0
    %vm1805 = vcmp.ne.s32.totalorder %v1741, 0
    %vm1806 = vcmp.ne.s32.totalorder %v1742, 0
    %vm1807 = vcmp.ne.s32.totalorder %v1743, 0
    %vm1808 = vcmp.ne.s32.totalorder %v1744, 0
    %vm1809 = vcmp.ne.s32.totalorder %v1745, 0
    %vm1810 = vcmp.ne.s32.totalorder %v1746, 0
    %vm1811 = vcmp.ne.s32.totalorder %v1747, 0
    %vm1812 = vcmp.ne.s32.totalorder %v1748, 0
    %vm1813 = vcmp.ne.s32.totalorder %v1749, 0
    %vm1814 = vcmp.ne.s32.totalorder %v1750, 0
    %vm1815 = vcmp.ne.s32.totalorder %v1751, 0
    %vm1816 = vcmp.ne.s32.totalorder %v1752, 0
    %vm1817 = vcmp.ne.s32.totalorder %v1753, 0
    %vm1818 = vcmp.ne.s32.totalorder %v1754, 0
    %vm1819 = vcmp.ne.s32.totalorder %v1755, 0
    %vm1820 = vcmp.ne.s32.totalorder %v1756, 0
    %vm1821 = vcmp.ne.s32.totalorder %v1757, 0
    %vm1822 = vcmp.ne.s32.totalorder %v1758, 0
    %vm1823 = vcmp.ne.s32.totalorder %v1759, 0
    %vm1824 = vcmp.ne.s32.totalorder %v1760, 0
    %vm1825 = vcmp.ne.s32.totalorder %v1761, 0
    %vm1826 = vcmp.ne.s32.totalorder %v1762, 0
    %vm1827 = vcmp.ne.s32.totalorder %v1763, 0
    %vm1828 = vcmp.ne.s32.totalorder %v1764, 0
    %vm1829 = vcmp.ne.s32.totalorder %v1765, 0
    %vm1830 = vcmp.ne.s32.totalorder %v1766, 0
    %vm1831 = vcmp.ne.s32.totalorder %v1767, 0
    %vm1832 = vcmp.ne.s32.totalorder %v1768, 0
    %vm1833 = vcmp.ne.s32.totalorder %v1769, 0
    %vm1834 = vcmp.ne.s32.totalorder %v1770, 0
    %vm1835 = vcmp.ne.s32.totalorder %v1771, 0
    %vm1836 = vcmp.ne.s32.totalorder %v1772, 0
    %vm1837 = vcmp.ne.s32.totalorder %v1773, 0
    %vm1838 = vcmp.ne.s32.totalorder %v1774, 0
    %vm1839 = vcmp.ne.s32.totalorder %v1775, 0
    %vm1840 = vcmp.ne.s32.totalorder %v1776, 0
    %vm1841 = vcmp.ne.s32.totalorder %v1777, 0
    %vm1842 = vcmp.ne.s32.totalorder %v1778, 0
    %vm1843 = vcmp.ne.s32.totalorder %v1779, 0
    %vm1844 = vcmp.ne.s32.totalorder %v1780, 0
    %vm1845 = vcmp.ne.s32.totalorder %v1781, 0
    %vm1846 = vcmp.ne.s32.totalorder %v1782, 0
    %vm1847 = vcmp.ne.s32.totalorder %v1783, 0
    %vm1848 = vcmp.ne.s32.totalorder %v1784, 0
    %vm1849 = vcmp.ne.s32.totalorder %v1785, 0
    %vm1850 = vcmp.ne.s32.totalorder %v1786, 0
    %vm1851 = vcmp.ne.s32.totalorder %v1787, 0
    %vm1852 = vcmp.ne.s32.totalorder %v1788, 0
    %vm1853 = vcmp.ne.s32.totalorder %v1789, 0
    %vm1854 = vcmp.ne.s32.totalorder %v1790, 0
    %vm1855 = vcmp.ne.s32.totalorder %v1791, 0
    %vm1856 = vcmp.ne.s32.totalorder %v1792, 0
    %vm1857 = vcmp.ne.s32.totalorder %v1793, 0
    %vm1858 = vcmp.ne.s32.totalorder %v1794, 0
    %vm1859 = vcmp.ne.s32.totalorder %v1795, 0
    %vm1860 = vcmp.ne.s32.totalorder %v1796, 0
    %v1861 = vsel %vm1797, %v1477, -1e+30
    %v1862 = vsel %vm1798, %v1478, -1e+30
    %v1863 = vsel %vm1799, %v1479, -1e+30
    %v1864 = vsel %vm1800, %v1480, -1e+30
    %v1865 = vsel %vm1801, %v1481, -1e+30
    %v1866 = vsel %vm1802, %v1482, -1e+30
    %v1867 = vsel %vm1803, %v1483, -1e+30
    %v1868 = vsel %vm1804, %v1484, -1e+30
    %v1869 = vsel %vm1805, %v1485, -1e+30
    %v1870 = vsel %vm1806, %v1486, -1e+30
    %v1871 = vsel %vm1807, %v1487, -1e+30
    %v1872 = vsel %vm1808, %v1488, -1e+30
    %v1873 = vsel %vm1809, %v1489, -1e+30
    %v1874 = vsel %vm1810, %v1490, -1e+30
    %v1875 = vsel %vm1811, %v1491, -1e+30
    %v1876 = vsel %vm1812, %v1492, -1e+30
    %v1877 = vsel %vm1813, %v1493, -1e+30
    %v1878 = vsel %vm1814, %v1494, -1e+30
    %v1879 = vsel %vm1815, %v1495, -1e+30
    %v1880 = vsel %vm1816, %v1496, -1e+30
    %v1881 = vsel %vm1817, %v1497, -1e+30
    %v1882 = vsel %vm1818, %v1498, -1e+30
    %v1883 = vsel %vm1819, %v1499, -1e+30
    %v1884 = vsel %vm1820, %v1500, -1e+30
    %v1885 = vsel %vm1821, %v1501, -1e+30
    %v1886 = vsel %vm1822, %v1502, -1e+30
    %v1887 = vsel %vm1823, %v1503, -1e+30
    %v1888 = vsel %vm1824, %v1504, -1e+30
    %v1889 = vsel %vm1825, %v1505, -1e+30
    %v1890 = vsel %vm1826, %v1506, -1e+30
    %v1891 = vsel %vm1827, %v1507, -1e+30
    %v1892 = vsel %vm1828, %v1508, -1e+30
    %v1893 = vsel %vm1829, %v1509, -1e+30
    %v1894 = vsel %vm1830, %v1510, -1e+30
    %v1895 = vsel %vm1831, %v1511, -1e+30
    %v1896 = vsel %vm1832, %v1512, -1e+30
    %v1897 = vsel %vm1833, %v1513, -1e+30
    %v1898 = vsel %vm1834, %v1514, -1e+30
    %v1899 = vsel %vm1835, %v1515, -1e+30
    %v1900 = vsel %vm1836, %v1516, -1e+30
    %v1901 = vsel %vm1837, %v1517, -1e+30
    %v1902 = vsel %vm1838, %v1518, -1e+30
    %v1903 = vsel %vm1839, %v1519, -1e+30
    %v1904 = vsel %vm1840, %v1520, -1e+30
    %v1905 = vsel %vm1841, %v1521, -1e+30
    %v1906 = vsel %vm1842, %v1522, -1e+30
    %v1907 = vsel %vm1843, %v1523, -1e+30
    %v1908 = vsel %vm1844, %v1524, -1e+30
    %v1909 = vsel %vm1845, %v1525, -1e+30
    %v1910 = vsel %vm1846, %v1526, -1e+30
    %v1911 = vsel %vm1847, %v1527, -1e+30
    %v1912 = vsel %vm1848, %v1528, -1e+30
    %v1913 = vsel %vm1849, %v1529, -1e+30
    %v1914 = vsel %vm1850, %v1530, -1e+30
    %v1915 = vsel %vm1851, %v1531, -1e+30
    %v1916 = vsel %vm1852, %v1532, -1e+30
    %v1917 = vsel %vm1853, %v1533, -1e+30
    %v1918 = vsel %vm1854, %v1534, -1e+30
    %v1919 = vsel %vm1855, %v1535, -1e+30
    %v1920 = vsel %vm1856, %v1536, -1e+30
    %v1921 = vsel %vm1857, %v1537, -1e+30
    %v1922 = vsel %vm1858, %v1538, -1e+30
    %v1923 = vsel %vm1859, %v1539, -1e+30
    %v1924 = vsel %vm1860, %v1540, -1e+30
    %v1925 = vmax.f32 %v1861, %v1862
    %1926 = vmax.xlane.f32.xlu0 %v1925
    %v1927 = vpop.xlane.xlu0 %1926
    %v1928 = vmax.f32 %v1863, %v1864
    %1929 = vmax.xlane.f32.xlu0 %v1928
    %v1930 = vpop.xlane.xlu0 %1929
    %v1931 = vmax.f32 %v1865, %v1866
    %1932 = vmax.xlane.f32.xlu0 %v1931
    %v1933 = vpop.xlane.xlu0 %1932
    %v1934 = vmax.f32 %v1867, %v1868
    %1935 = vmax.xlane.f32.xlu0 %v1934
    %v1936 = vpop.xlane.xlu0 %1935
    %v1937 = vmax.f32 %v1869, %v1870
    %1938 = vmax.xlane.f32.xlu0 %v1937
    %v1939 = vpop.xlane.xlu0 %1938
    %v1940 = vmax.f32 %v1871, %v1872
    %1941 = vmax.xlane.f32.xlu0 %v1940
    %v1942 = vpop.xlane.xlu0 %1941
    %v1943 = vmax.f32 %v1873, %v1874
    %1944 = vmax.xlane.f32.xlu0 %v1943
    %v1945 = vpop.xlane.xlu0 %1944
    %v1946 = vmax.f32 %v1875, %v1876
    %1947 = vmax.xlane.f32.xlu0 %v1946
    %v1948 = vpop.xlane.xlu0 %1947
    %v1949 = vmax.f32 %v1877, %v1878
    %1950 = vmax.xlane.f32.xlu0 %v1949
    %v1951 = vpop.xlane.xlu0 %1950
    %v1952 = vmax.f32 %v1879, %v1880
    %1953 = vmax.xlane.f32.xlu0 %v1952
    %v1954 = vpop.xlane.xlu0 %1953
    %v1955 = vmax.f32 %v1881, %v1882
    %1956 = vmax.xlane.f32.xlu0 %v1955
    %v1957 = vpop.xlane.xlu0 %1956
    %v1958 = vmax.f32 %v1883, %v1884
    %1959 = vmax.xlane.f32.xlu0 %v1958
    %v1960 = vpop.xlane.xlu0 %1959
    %v1961 = vmax.f32 %v1885, %v1886
    %1962 = vmax.xlane.f32.xlu0 %v1961
    %v1963 = vpop.xlane.xlu0 %1962
    %v1964 = vmax.f32 %v1887, %v1888
    %1965 = vmax.xlane.f32.xlu0 %v1964
    %v1966 = vpop.xlane.xlu0 %1965
    %v1967 = vmax.f32 %v1889, %v1890
    %1968 = vmax.xlane.f32.xlu0 %v1967
    %v1969 = vpop.xlane.xlu0 %1968
    %v1970 = vmax.f32 %v1891, %v1892
    %1971 = vmax.xlane.f32.xlu0 %v1970
    %v1972 = vpop.xlane.xlu0 %1971
    %v1973 = vmax.f32 %v1893, %v1894
    %1974 = vmax.xlane.f32.xlu0 %v1973
    %v1975 = vpop.xlane.xlu0 %1974
    %v1976 = vmax.f32 %v1895, %v1896
    %1977 = vmax.xlane.f32.xlu0 %v1976
    %v1978 = vpop.xlane.xlu0 %1977
    %v1979 = vmax.f32 %v1897, %v1898
    %1980 = vmax.xlane.f32.xlu0 %v1979
    %v1981 = vpop.xlane.xlu0 %1980
    %v1982 = vmax.f32 %v1899, %v1900
    %1983 = vmax.xlane.f32.xlu0 %v1982
    %v1984 = vpop.xlane.xlu0 %1983
    %v1985 = vmax.f32 %v1901, %v1902
    %1986 = vmax.xlane.f32.xlu0 %v1985
    %v1987 = vpop.xlane.xlu0 %1986
    %v1988 = vmax.f32 %v1903, %v1904
    %1989 = vmax.xlane.f32.xlu0 %v1988
    %v1990 = vpop.xlane.xlu0 %1989
    %v1991 = vmax.f32 %v1905, %v1906
    %1992 = vmax.xlane.f32.xlu0 %v1991
    %v1993 = vpop.xlane.xlu0 %1992
    %v1994 = vmax.f32 %v1907, %v1908
    %1995 = vmax.xlane.f32.xlu0 %v1994
    %v1996 = vpop.xlane.xlu0 %1995
    %v1997 = vmax.f32 %v1909, %v1910
    %1998 = vmax.xlane.f32.xlu0 %v1997
    %v1999 = vpop.xlane.xlu0 %1998
    %v2000 = vmax.f32 %v1911, %v1912
    %2001 = vmax.xlane.f32.xlu0 %v2000
    %v2002 = vpop.xlane.xlu0 %2001
    %v2003 = vmax.f32 %v1913, %v1914
    %2004 = vmax.xlane.f32.xlu0 %v2003
    %v2005 = vpop.xlane.xlu0 %2004
    %v2006 = vmax.f32 %v1915, %v1916
    %2007 = vmax.xlane.f32.xlu0 %v2006
    %v2008 = vpop.xlane.xlu0 %2007
    %v2009 = vmax.f32 %v1917, %v1918
    %2010 = vmax.xlane.f32.xlu0 %v2009
    %v2011 = vpop.xlane.xlu0 %2010
    %v2012 = vmax.f32 %v1919, %v1920
    %2013 = vmax.xlane.f32.xlu0 %v2012
    %v2014 = vpop.xlane.xlu0 %2013
    %v2015 = vmax.f32 %v1921, %v1922
    %2016 = vmax.xlane.f32.xlu0 %v2015
    %v2017 = vpop.xlane.xlu0 %2016
    %v2018 = vmax.f32 %v1923, %v1924
    %2019 = vmax.xlane.f32.xlu0 %v2018
    %v2020 = vpop.xlane.xlu0 %2019
    %v2021 = vsub.f32 %v1861, %v1927
    %v2022 = vsub.f32 %v1862, %v1927
    %v2023 = vsub.f32 %v1863, %v1930
    %v2024 = vsub.f32 %v1864, %v1930
    %v2025 = vsub.f32 %v1865, %v1933
    %v2026 = vsub.f32 %v1866, %v1933
    %v2027 = vsub.f32 %v1867, %v1936
    %v2028 = vsub.f32 %v1868, %v1936
    %v2029 = vsub.f32 %v1869, %v1939
    %v2030 = vsub.f32 %v1870, %v1939
    %v2031 = vsub.f32 %v1871, %v1942
    %v2032 = vsub.f32 %v1872, %v1942
    %v2033 = vsub.f32 %v1873, %v1945
    %v2034 = vsub.f32 %v1874, %v1945
    %v2035 = vsub.f32 %v1875, %v1948
    %v2036 = vsub.f32 %v1876, %v1948
    %v2037 = vsub.f32 %v1877, %v1951
    %v2038 = vsub.f32 %v1878, %v1951
    %v2039 = vsub.f32 %v1879, %v1954
    %v2040 = vsub.f32 %v1880, %v1954
    %v2041 = vsub.f32 %v1881, %v1957
    %v2042 = vsub.f32 %v1882, %v1957
    %v2043 = vsub.f32 %v1883, %v1960
    %v2044 = vsub.f32 %v1884, %v1960
    %v2045 = vsub.f32 %v1885, %v1963
    %v2046 = vsub.f32 %v1886, %v1963
    %v2047 = vsub.f32 %v1887, %v1966
    %v2048 = vsub.f32 %v1888, %v1966
    %v2049 = vsub.f32 %v1889, %v1969
    %v2050 = vsub.f32 %v1890, %v1969
    %v2051 = vsub.f32 %v1891, %v1972
    %v2052 = vsub.f32 %v1892, %v1972
    %v2053 = vsub.f32 %v1893, %v1975
    %v2054 = vsub.f32 %v1894, %v1975
    %v2055 = vsub.f32 %v1895, %v1978
    %v2056 = vsub.f32 %v1896, %v1978
    %v2057 = vsub.f32 %v1897, %v1981
    %v2058 = vsub.f32 %v1898, %v1981
    %v2059 = vsub.f32 %v1899, %v1984
    %v2060 = vsub.f32 %v1900, %v1984
    %v2061 = vsub.f32 %v1901, %v1987
    %v2062 = vsub.f32 %v1902, %v1987
    %v2063 = vsub.f32 %v1903, %v1990
    %v2064 = vsub.f32 %v1904, %v1990
    %v2065 = vsub.f32 %v1905, %v1993
    %v2066 = vsub.f32 %v1906, %v1993
    %v2067 = vsub.f32 %v1907, %v1996
    %v2068 = vsub.f32 %v1908, %v1996
    %v2069 = vsub.f32 %v1909, %v1999
    %v2070 = vsub.f32 %v1910, %v1999
    %v2071 = vsub.f32 %v1911, %v2002
    %v2072 = vsub.f32 %v1912, %v2002
    %v2073 = vsub.f32 %v1913, %v2005
    %v2074 = vsub.f32 %v1914, %v2005
    %v2075 = vsub.f32 %v1915, %v2008
    %v2076 = vsub.f32 %v1916, %v2008
    %v2077 = vsub.f32 %v1917, %v2011
    %v2078 = vsub.f32 %v1918, %v2011
    %v2079 = vsub.f32 %v1919, %v2014
    %v2080 = vsub.f32 %v1920, %v2014
    %v2081 = vsub.f32 %v1921, %v2017
    %v2082 = vsub.f32 %v1922, %v2017
    %v2083 = vsub.f32 %v1923, %v2020
    %v2084 = vsub.f32 %v1924, %v2020
    %v2085 = vmul.f32 %v2021, 1.442695
    %v2086 = vpow.pop %v2085
    %v2087 = vmul.f32 %v2022, 1.442695
    %v2088 = vpow.pop %v2087
    %v2089 = vmul.f32 %v2023, 1.442695
    %v2090 = vpow.pop %v2089
    %v2091 = vmul.f32 %v2024, 1.442695
    %v2092 = vpow.pop %v2091
    %v2093 = vmul.f32 %v2025, 1.442695
    %v2094 = vpow.pop %v2093
    %v2095 = vmul.f32 %v2026, 1.442695
    %v2096 = vpow.pop %v2095
    %v2097 = vmul.f32 %v2027, 1.442695
    %v2098 = vpow.pop %v2097
    %v2099 = vmul.f32 %v2028, 1.442695
    %v2100 = vpow.pop %v2099
    %v2101 = vmul.f32 %v2029, 1.442695
    %v2102 = vpow.pop %v2101
    %v2103 = vmul.f32 %v2030, 1.442695
    %v2104 = vpow.pop %v2103
    %v2105 = vmul.f32 %v2031, 1.442695
    %v2106 = vpow.pop %v2105
    %v2107 = vmul.f32 %v2032, 1.442695
    %v2108 = vpow.pop %v2107
    %v2109 = vmul.f32 %v2033, 1.442695
    %v2110 = vpow.pop %v2109
    %v2111 = vmul.f32 %v2034, 1.442695
    %v2112 = vpow.pop %v2111
    %v2113 = vmul.f32 %v2035, 1.442695
    %v2114 = vpow.pop %v2113
    %v2115 = vmul.f32 %v2036, 1.442695
    %v2116 = vpow.pop %v2115
    %v2117 = vmul.f32 %v2037, 1.442695
    %v2118 = vpow.pop %v2117
    %v2119 = vmul.f32 %v2038, 1.442695
    %v2120 = vpow.pop %v2119
    %v2121 = vmul.f32 %v2039, 1.442695
    %v2122 = vpow.pop %v2121
    %v2123 = vmul.f32 %v2040, 1.442695
    %v2124 = vpow.pop %v2123
    %v2125 = vmul.f32 %v2041, 1.442695
    %v2126 = vpow.pop %v2125
    %v2127 = vmul.f32 %v2042, 1.442695
    %v2128 = vpow.pop %v2127
    %v2129 = vmul.f32 %v2043, 1.442695
    %v2130 = vpow.pop %v2129
    %v2131 = vmul.f32 %v2044, 1.442695
    %v2132 = vpow.pop %v2131
    %v2133 = vmul.f32 %v2045, 1.442695
    %v2134 = vpow.pop %v2133
    %v2135 = vmul.f32 %v2046, 1.442695
    %v2136 = vpow.pop %v2135
    %v2137 = vmul.f32 %v2047, 1.442695
    %v2138 = vpow.pop %v2137
    %v2139 = vmul.f32 %v2048, 1.442695
    %v2140 = vpow.pop %v2139
    %v2141 = vmul.f32 %v2049, 1.442695
    %v2142 = vpow.pop %v2141
    %v2143 = vmul.f32 %v2050, 1.442695
    %v2144 = vpow.pop %v2143
    %v2145 = vmul.f32 %v2051, 1.442695
    %v2146 = vpow.pop %v2145
    %v2147 = vmul.f32 %v2052, 1.442695
    %v2148 = vpow.pop %v2147
    %v2149 = vmul.f32 %v2053, 1.442695
    %v2150 = vpow.pop %v2149
    %v2151 = vmul.f32 %v2054, 1.442695
    %v2152 = vpow.pop %v2151
    %v2153 = vmul.f32 %v2055, 1.442695
    %v2154 = vpow.pop %v2153
    %v2155 = vmul.f32 %v2056, 1.442695
    %v2156 = vpow.pop %v2155
    %v2157 = vmul.f32 %v2057, 1.442695
    %v2158 = vpow.pop %v2157
    %v2159 = vmul.f32 %v2058, 1.442695
    %v2160 = vpow.pop %v2159
    %v2161 = vmul.f32 %v2059, 1.442695
    %v2162 = vpow.pop %v2161
    %v2163 = vmul.f32 %v2060, 1.442695
    %v2164 = vpow.pop %v2163
    %v2165 = vmul.f32 %v2061, 1.442695
    %v2166 = vpow.pop %v2165
    %v2167 = vmul.f32 %v2062, 1.442695
    %v2168 = vpow.pop %v2167
    %v2169 = vmul.f32 %v2063, 1.442695
    %v2170 = vpow.pop %v2169
    %v2171 = vmul.f32 %v2064, 1.442695
    %v2172 = vpow.pop %v2171
    %v2173 = vmul.f32 %v2065, 1.442695
    %v2174 = vpow.pop %v2173
    %v2175 = vmul.f32 %v2066, 1.442695
    %v2176 = vpow.pop %v2175
    %v2177 = vmul.f32 %v2067, 1.442695
    %v2178 = vpow.pop %v2177
    %v2179 = vmul.f32 %v2068, 1.442695
    %v2180 = vpow.pop %v2179
    %v2181 = vmul.f32 %v2069, 1.442695
    %v2182 = vpow.pop %v2181
    %v2183 = vmul.f32 %v2070, 1.442695
    %v2184 = vpow.pop %v2183
    %v2185 = vmul.f32 %v2071, 1.442695
    %v2186 = vpow.pop %v2185
    %v2187 = vmul.f32 %v2072, 1.442695
    %v2188 = vpow.pop %v2187
    %v2189 = vmul.f32 %v2073, 1.442695
    %v2190 = vpow.pop %v2189
    %v2191 = vmul.f32 %v2074, 1.442695
    %v2192 = vpow.pop %v2191
    %v2193 = vmul.f32 %v2075, 1.442695
    %v2194 = vpow.pop %v2193
    %v2195 = vmul.f32 %v2076, 1.442695
    %v2196 = vpow.pop %v2195
    %v2197 = vmul.f32 %v2077, 1.442695
    %v2198 = vpow.pop %v2197
    %v2199 = vmul.f32 %v2078, 1.442695
    %v2200 = vpow.pop %v2199
    %v2201 = vmul.f32 %v2079, 1.442695
    %v2202 = vpow.pop %v2201
    %v2203 = vmul.f32 %v2080, 1.442695
    %v2204 = vpow.pop %v2203
    %v2205 = vmul.f32 %v2081, 1.442695
    %v2206 = vpow.pop %v2205
    %v2207 = vmul.f32 %v2082, 1.442695
    %v2208 = vpow.pop %v2207
    %v2209 = vmul.f32 %v2083, 1.442695
    %v2210 = vpow.pop %v2209
    %v2211 = vmul.f32 %v2084, 1.442695
    %v2212 = vpow.pop %v2211
    %v2213 = vsel %vm1797, %v2086, 0.0
    %v2214 = vsel %vm1798, %v2088, 0.0
    %v2215 = vsel %vm1799, %v2090, 0.0
    %v2216 = vsel %vm1800, %v2092, 0.0
    %v2217 = vsel %vm1801, %v2094, 0.0
    %v2218 = vsel %vm1802, %v2096, 0.0
    %v2219 = vsel %vm1803, %v2098, 0.0
    %v2220 = vsel %vm1804, %v2100, 0.0
    %v2221 = vsel %vm1805, %v2102, 0.0
    %v2222 = vsel %vm1806, %v2104, 0.0
    %v2223 = vsel %vm1807, %v2106, 0.0
    %v2224 = vsel %vm1808, %v2108, 0.0
    %v2225 = vsel %vm1809, %v2110, 0.0
    %v2226 = vsel %vm1810, %v2112, 0.0
    %v2227 = vsel %vm1811, %v2114, 0.0
    %v2228 = vsel %vm1812, %v2116, 0.0
    %v2229 = vsel %vm1813, %v2118, 0.0
    %v2230 = vsel %vm1814, %v2120, 0.0
    %v2231 = vsel %vm1815, %v2122, 0.0
    %v2232 = vsel %vm1816, %v2124, 0.0
    %v2233 = vsel %vm1817, %v2126, 0.0
    %v2234 = vsel %vm1818, %v2128, 0.0
    %v2235 = vsel %vm1819, %v2130, 0.0
    %v2236 = vsel %vm1820, %v2132, 0.0
    %v2237 = vsel %vm1821, %v2134, 0.0
    %v2238 = vsel %vm1822, %v2136, 0.0
    %v2239 = vsel %vm1823, %v2138, 0.0
    %v2240 = vsel %vm1824, %v2140, 0.0
    %v2241 = vsel %vm1825, %v2142, 0.0
    %v2242 = vsel %vm1826, %v2144, 0.0
    %v2243 = vsel %vm1827, %v2146, 0.0
    %v2244 = vsel %vm1828, %v2148, 0.0
    %v2245 = vsel %vm1829, %v2150, 0.0
    %v2246 = vsel %vm1830, %v2152, 0.0
    %v2247 = vsel %vm1831, %v2154, 0.0
    %v2248 = vsel %vm1832, %v2156, 0.0
    %v2249 = vsel %vm1833, %v2158, 0.0
    %v2250 = vsel %vm1834, %v2160, 0.0
    %v2251 = vsel %vm1835, %v2162, 0.0
    %v2252 = vsel %vm1836, %v2164, 0.0
    %v2253 = vsel %vm1837, %v2166, 0.0
    %v2254 = vsel %vm1838, %v2168, 0.0
    %v2255 = vsel %vm1839, %v2170, 0.0
    %v2256 = vsel %vm1840, %v2172, 0.0
    %v2257 = vsel %vm1841, %v2174, 0.0
    %v2258 = vsel %vm1842, %v2176, 0.0
    %v2259 = vsel %vm1843, %v2178, 0.0
    %v2260 = vsel %vm1844, %v2180, 0.0
    %v2261 = vsel %vm1845, %v2182, 0.0
    %v2262 = vsel %vm1846, %v2184, 0.0
    %v2263 = vsel %vm1847, %v2186, 0.0
    %v2264 = vsel %vm1848, %v2188, 0.0
    %v2265 = vsel %vm1849, %v2190, 0.0
    %v2266 = vsel %vm1850, %v2192, 0.0
    %v2267 = vsel %vm1851, %v2194, 0.0
    %v2268 = vsel %vm1852, %v2196, 0.0
    %v2269 = vsel %vm1853, %v2198, 0.0
    %v2270 = vsel %vm1854, %v2200, 0.0
    %v2271 = vsel %vm1855, %v2202, 0.0
    %v2272 = vsel %vm1856, %v2204, 0.0
    %v2273 = vsel %vm1857, %v2206, 0.0
    %v2274 = vsel %vm1858, %v2208, 0.0
    %v2275 = vsel %vm1859, %v2210, 0.0
    %v2276 = vsel %vm1860, %v2212, 0.0
    %v2277 = vadd.f32 %v2213, %v2214
    %2278 = vadd.xlane.f32.xlu0 %v2277
    %v2279 = vpop.xlane.xlu0 %2278
    %v2280 = vadd.f32 %v2215, %v2216
    %2281 = vadd.xlane.f32.xlu0 %v2280
    %v2282 = vpop.xlane.xlu0 %2281
    %v2283 = vadd.f32 %v2217, %v2218
    %2284 = vadd.xlane.f32.xlu0 %v2283
    %v2285 = vpop.xlane.xlu0 %2284
    %v2286 = vadd.f32 %v2219, %v2220
    %2287 = vadd.xlane.f32.xlu0 %v2286
    %v2288 = vpop.xlane.xlu0 %2287
    %v2289 = vadd.f32 %v2221, %v2222
    %2290 = vadd.xlane.f32.xlu0 %v2289
    %v2291 = vpop.xlane.xlu0 %2290
    %v2292 = vadd.f32 %v2223, %v2224
    %2293 = vadd.xlane.f32.xlu0 %v2292
    %v2294 = vpop.xlane.xlu0 %2293
    %v2295 = vadd.f32 %v2225, %v2226
    %2296 = vadd.xlane.f32.xlu0 %v2295
    %v2297 = vpop.xlane.xlu0 %2296
    %v2298 = vadd.f32 %v2227, %v2228
    %2299 = vadd.xlane.f32.xlu0 %v2298
    %v2300 = vpop.xlane.xlu0 %2299
    %v2301 = vadd.f32 %v2229, %v2230
    %2302 = vadd.xlane.f32.xlu0 %v2301
    %v2303 = vpop.xlane.xlu0 %2302
    %v2304 = vadd.f32 %v2231, %v2232
    %2305 = vadd.xlane.f32.xlu0 %v2304
    %v2306 = vpop.xlane.xlu0 %2305
    %v2307 = vadd.f32 %v2233, %v2234
    %2308 = vadd.xlane.f32.xlu0 %v2307
    %v2309 = vpop.xlane.xlu0 %2308
    %v2310 = vadd.f32 %v2235, %v2236
    %2311 = vadd.xlane.f32.xlu0 %v2310
    %v2312 = vpop.xlane.xlu0 %2311
    %v2313 = vadd.f32 %v2237, %v2238
    %2314 = vadd.xlane.f32.xlu0 %v2313
    %v2315 = vpop.xlane.xlu0 %2314
    %v2316 = vadd.f32 %v2239, %v2240
    %2317 = vadd.xlane.f32.xlu0 %v2316
    %v2318 = vpop.xlane.xlu0 %2317
    %v2319 = vadd.f32 %v2241, %v2242
    %2320 = vadd.xlane.f32.xlu0 %v2319
    %v2321 = vpop.xlane.xlu0 %2320
    %v2322 = vadd.f32 %v2243, %v2244
    %2323 = vadd.xlane.f32.xlu0 %v2322
    %v2324 = vpop.xlane.xlu0 %2323
    %v2325 = vadd.f32 %v2245, %v2246
    %2326 = vadd.xlane.f32.xlu0 %v2325
    %v2327 = vpop.xlane.xlu0 %2326
    %v2328 = vadd.f32 %v2247, %v2248
    %2329 = vadd.xlane.f32.xlu0 %v2328
    %v2330 = vpop.xlane.xlu0 %2329
    %v2331 = vadd.f32 %v2249, %v2250
    %2332 = vadd.xlane.f32.xlu0 %v2331
    %v2333 = vpop.xlane.xlu0 %2332
    %v2334 = vadd.f32 %v2251, %v2252
    %2335 = vadd.xlane.f32.xlu0 %v2334
    %v2336 = vpop.xlane.xlu0 %2335
    %v2337 = vadd.f32 %v2253, %v2254
    %2338 = vadd.xlane.f32.xlu0 %v2337
    %v2339 = vpop.xlane.xlu0 %2338
    %v2340 = vadd.f32 %v2255, %v2256
    %2341 = vadd.xlane.f32.xlu0 %v2340
    %v2342 = vpop.xlane.xlu0 %2341
    %v2343 = vadd.f32 %v2257, %v2258
    %2344 = vadd.xlane.f32.xlu0 %v2343
    %v2345 = vpop.xlane.xlu0 %2344
    %v2346 = vadd.f32 %v2259, %v2260
    %2347 = vadd.xlane.f32.xlu0 %v2346
    %v2348 = vpop.xlane.xlu0 %2347
    %v2349 = vadd.f32 %v2261, %v2262
    %2350 = vadd.xlane.f32.xlu0 %v2349
    %v2351 = vpop.xlane.xlu0 %2350
    %v2352 = vadd.f32 %v2263, %v2264
    %2353 = vadd.xlane.f32.xlu0 %v2352
    %v2354 = vpop.xlane.xlu0 %2353
    %v2355 = vadd.f32 %v2265, %v2266
    %2356 = vadd.xlane.f32.xlu0 %v2355
    %v2357 = vpop.xlane.xlu0 %2356
    %v2358 = vadd.f32 %v2267, %v2268
    %2359 = vadd.xlane.f32.xlu0 %v2358
    %v2360 = vpop.xlane.xlu0 %2359
    %v2361 = vadd.f32 %v2269, %v2270
    %2362 = vadd.xlane.f32.xlu0 %v2361
    %v2363 = vpop.xlane.xlu0 %2362
    %v2364 = vadd.f32 %v2271, %v2272
    %2365 = vadd.xlane.f32.xlu0 %v2364
    %v2366 = vpop.xlane.xlu0 %2365
    %v2367 = vadd.f32 %v2273, %v2274
    %2368 = vadd.xlane.f32.xlu0 %v2367
    %v2369 = vpop.xlane.xlu0 %2368
    %v2370 = vadd.f32 %v2275, %v2276
    %2371 = vadd.xlane.f32.xlu0 %v2370
    %v2372 = vpop.xlane.xlu0 %2371
    %v2373 = vmax.f32 %v2279, 1e-20
    %v2374 = vmax.f32 %v2282, 1e-20
    %v2375 = vmax.f32 %v2285, 1e-20
    %v2376 = vmax.f32 %v2288, 1e-20
    %v2377 = vmax.f32 %v2291, 1e-20
    %v2378 = vmax.f32 %v2294, 1e-20
    %v2379 = vmax.f32 %v2297, 1e-20
    %v2380 = vmax.f32 %v2300, 1e-20
    %v2381 = vmax.f32 %v2303, 1e-20
    %v2382 = vmax.f32 %v2306, 1e-20
    %v2383 = vmax.f32 %v2309, 1e-20
    %v2384 = vmax.f32 %v2312, 1e-20
    %v2385 = vmax.f32 %v2315, 1e-20
    %v2386 = vmax.f32 %v2318, 1e-20
    %v2387 = vmax.f32 %v2321, 1e-20
    %v2388 = vmax.f32 %v2324, 1e-20
    %v2389 = vmax.f32 %v2327, 1e-20
    %v2390 = vmax.f32 %v2330, 1e-20
    %v2391 = vmax.f32 %v2333, 1e-20
    %v2392 = vmax.f32 %v2336, 1e-20
    %v2393 = vmax.f32 %v2339, 1e-20
    %v2394 = vmax.f32 %v2342, 1e-20
    %v2395 = vmax.f32 %v2345, 1e-20
    %v2396 = vmax.f32 %v2348, 1e-20
    %v2397 = vmax.f32 %v2351, 1e-20
    %v2398 = vmax.f32 %v2354, 1e-20
    %v2399 = vmax.f32 %v2357, 1e-20
    %v2400 = vmax.f32 %v2360, 1e-20
    %v2401 = vmax.f32 %v2363, 1e-20
    %v2402 = vmax.f32 %v2366, 1e-20
    %v2403 = vmax.f32 %v2369, 1e-20
    %v2404 = vmax.f32 %v2372, 1e-20
    %v2405 = vrcp.pop %v2373
    %v2406 = vmul.f32 1.0, %v2405
    %v2407 = vrcp.pop %v2374
    %v2408 = vmul.f32 1.0, %v2407
    %v2409 = vrcp.pop %v2375
    %v2410 = vmul.f32 1.0, %v2409
    %v2411 = vrcp.pop %v2376
    %v2412 = vmul.f32 1.0, %v2411
    %v2413 = vrcp.pop %v2377
    %v2414 = vmul.f32 1.0, %v2413
    %v2415 = vrcp.pop %v2378
    %v2416 = vmul.f32 1.0, %v2415
    %v2417 = vrcp.pop %v2379
    %v2418 = vmul.f32 1.0, %v2417
    %v2419 = vrcp.pop %v2380
    %v2420 = vmul.f32 1.0, %v2419
    %v2421 = vrcp.pop %v2381
    %v2422 = vmul.f32 1.0, %v2421
    %v2423 = vrcp.pop %v2382
    %v2424 = vmul.f32 1.0, %v2423
    %v2425 = vrcp.pop %v2383
    %v2426 = vmul.f32 1.0, %v2425
    %v2427 = vrcp.pop %v2384
    %v2428 = vmul.f32 1.0, %v2427
    %v2429 = vrcp.pop %v2385
    %v2430 = vmul.f32 1.0, %v2429
    %v2431 = vrcp.pop %v2386
    %v2432 = vmul.f32 1.0, %v2431
    %v2433 = vrcp.pop %v2387
    %v2434 = vmul.f32 1.0, %v2433
    %v2435 = vrcp.pop %v2388
    %v2436 = vmul.f32 1.0, %v2435
    %v2437 = vrcp.pop %v2389
    %v2438 = vmul.f32 1.0, %v2437
    %v2439 = vrcp.pop %v2390
    %v2440 = vmul.f32 1.0, %v2439
    %v2441 = vrcp.pop %v2391
    %v2442 = vmul.f32 1.0, %v2441
    %v2443 = vrcp.pop %v2392
    %v2444 = vmul.f32 1.0, %v2443
    %v2445 = vrcp.pop %v2393
    %v2446 = vmul.f32 1.0, %v2445
    %v2447 = vrcp.pop %v2394
    %v2448 = vmul.f32 1.0, %v2447
    %v2449 = vrcp.pop %v2395
    %v2450 = vmul.f32 1.0, %v2449
    %v2451 = vrcp.pop %v2396
    %v2452 = vmul.f32 1.0, %v2451
    %v2453 = vrcp.pop %v2397
    %v2454 = vmul.f32 1.0, %v2453
    %v2455 = vrcp.pop %v2398
    %v2456 = vmul.f32 1.0, %v2455
    %v2457 = vrcp.pop %v2399
    %v2458 = vmul.f32 1.0, %v2457
    %v2459 = vrcp.pop %v2400
    %v2460 = vmul.f32 1.0, %v2459
    %v2461 = vrcp.pop %v2401
    %v2462 = vmul.f32 1.0, %v2461
    %v2463 = vrcp.pop %v2402
    %v2464 = vmul.f32 1.0, %v2463
    %v2465 = vrcp.pop %v2403
    %v2466 = vmul.f32 1.0, %v2465
    %v2467 = vrcp.pop %v2404
    %v2468 = vmul.f32 1.0, %v2467
    %v2469 = vmul.f32 %v2213, %v2406
    %v2470 = vmul.f32 %v2214, %v2406
    %v2471 = vmul.f32 %v2215, %v2408
    %v2472 = vmul.f32 %v2216, %v2408
    %v2473 = vmul.f32 %v2217, %v2410
    %v2474 = vmul.f32 %v2218, %v2410
    %v2475 = vmul.f32 %v2219, %v2412
    %v2476 = vmul.f32 %v2220, %v2412
    %v2477 = vmul.f32 %v2221, %v2414
    %v2478 = vmul.f32 %v2222, %v2414
    %v2479 = vmul.f32 %v2223, %v2416
    %v2480 = vmul.f32 %v2224, %v2416
    %v2481 = vmul.f32 %v2225, %v2418
    %v2482 = vmul.f32 %v2226, %v2418
    %v2483 = vmul.f32 %v2227, %v2420
    %v2484 = vmul.f32 %v2228, %v2420
    %v2485 = vmul.f32 %v2229, %v2422
    %v2486 = vmul.f32 %v2230, %v2422
    %v2487 = vmul.f32 %v2231, %v2424
    %v2488 = vmul.f32 %v2232, %v2424
    %v2489 = vmul.f32 %v2233, %v2426
    %v2490 = vmul.f32 %v2234, %v2426
    %v2491 = vmul.f32 %v2235, %v2428
    %v2492 = vmul.f32 %v2236, %v2428
    %v2493 = vmul.f32 %v2237, %v2430
    %v2494 = vmul.f32 %v2238, %v2430
    %v2495 = vmul.f32 %v2239, %v2432
    %v2496 = vmul.f32 %v2240, %v2432
    %v2497 = vmul.f32 %v2241, %v2434
    %v2498 = vmul.f32 %v2242, %v2434
    %v2499 = vmul.f32 %v2243, %v2436
    %v2500 = vmul.f32 %v2244, %v2436
    %v2501 = vmul.f32 %v2245, %v2438
    %v2502 = vmul.f32 %v2246, %v2438
    %v2503 = vmul.f32 %v2247, %v2440
    %v2504 = vmul.f32 %v2248, %v2440
    %v2505 = vmul.f32 %v2249, %v2442
    %v2506 = vmul.f32 %v2250, %v2442
    %v2507 = vmul.f32 %v2251, %v2444
    %v2508 = vmul.f32 %v2252, %v2444
    %v2509 = vmul.f32 %v2253, %v2446
    %v2510 = vmul.f32 %v2254, %v2446
    %v2511 = vmul.f32 %v2255, %v2448
    %v2512 = vmul.f32 %v2256, %v2448
    %v2513 = vmul.f32 %v2257, %v2450
    %v2514 = vmul.f32 %v2258, %v2450
    %v2515 = vmul.f32 %v2259, %v2452
    %v2516 = vmul.f32 %v2260, %v2452
    %v2517 = vmul.f32 %v2261, %v2454
    %v2518 = vmul.f32 %v2262, %v2454
    %v2519 = vmul.f32 %v2263, %v2456
    %v2520 = vmul.f32 %v2264, %v2456
    %v2521 = vmul.f32 %v2265, %v2458
    %v2522 = vmul.f32 %v2266, %v2458
    %v2523 = vmul.f32 %v2267, %v2460
    %v2524 = vmul.f32 %v2268, %v2460
    %v2525 = vmul.f32 %v2269, %v2462
    %v2526 = vmul.f32 %v2270, %v2462
    %v2527 = vmul.f32 %v2271, %v2464
    %v2528 = vmul.f32 %v2272, %v2464
    %v2529 = vmul.f32 %v2273, %v2466
    %v2530 = vmul.f32 %v2274, %v2466
    %v2531 = vmul.f32 %v2275, %v2468
    %v2532 = vmul.f32 %v2276, %v2468
    %v2533 = vpack.c.bf16 %v2471, %v2469
    %v2534 = vpack.c.bf16 %v2472, %v2470
    %v2535 = vpack.c.bf16 %v2475, %v2473
    %v2536 = vpack.c.bf16 %v2476, %v2474
    %v2537 = vpack.c.bf16 %v2479, %v2477
    %v2538 = vpack.c.bf16 %v2480, %v2478
    %v2539 = vpack.c.bf16 %v2483, %v2481
    %v2540 = vpack.c.bf16 %v2484, %v2482
    %v2541 = vpack.c.bf16 %v2487, %v2485
    %v2542 = vpack.c.bf16 %v2488, %v2486
    %v2543 = vpack.c.bf16 %v2491, %v2489
    %v2544 = vpack.c.bf16 %v2492, %v2490
    %v2545 = vpack.c.bf16 %v2495, %v2493
    %v2546 = vpack.c.bf16 %v2496, %v2494
    %v2547 = vpack.c.bf16 %v2499, %v2497
    %v2548 = vpack.c.bf16 %v2500, %v2498
    %v2549 = vpack.c.bf16 %v2503, %v2501
    %v2550 = vpack.c.bf16 %v2504, %v2502
    %v2551 = vpack.c.bf16 %v2507, %v2505
    %v2552 = vpack.c.bf16 %v2508, %v2506
    %v2553 = vpack.c.bf16 %v2511, %v2509
    %v2554 = vpack.c.bf16 %v2512, %v2510
    %v2555 = vpack.c.bf16 %v2515, %v2513
    %v2556 = vpack.c.bf16 %v2516, %v2514
    %v2557 = vpack.c.bf16 %v2519, %v2517
    %v2558 = vpack.c.bf16 %v2520, %v2518
    %v2559 = vpack.c.bf16 %v2523, %v2521
    %v2560 = vpack.c.bf16 %v2524, %v2522
    %v2561 = vpack.c.bf16 %v2527, %v2525
    %v2562 = vpack.c.bf16 %v2528, %v2526
    %v2563 = vpack.c.bf16 %v2531, %v2529
    %v2564 = vpack.c.bf16 %v2532, %v2530
    %2565 = vset.pattern.permute.xlu0 4
    %2566 = vperm.xlu0 %2565, %v1149
    %v2567 = vpop.permute.xlu0 %2566
    %2569 = vset.pattern.permute.xlu0 4
    %2570 = vperm.xlu0 %2569, %v1150
    %v2571 = vpop.permute.xlu0 %2570
    %2573 = vset.pattern.permute.xlu0 4
    %2574 = vperm.xlu0 %2573, %v1151
    %v2575 = vpop.permute.xlu0 %2574
    %2577 = vset.pattern.permute.xlu0 4
    %2578 = vperm.xlu0 %2577, %v1152
    %v2579 = vpop.permute.xlu0 %2578
    %2581 = vset.pattern.permute.xlu0 4
    %2582 = vperm.xlu0 %2581, %v1153
    %v2583 = vpop.permute.xlu0 %2582
    %2585 = vset.pattern.permute.xlu0 4
    %2586 = vperm.xlu0 %2585, %v1154
    %v2587 = vpop.permute.xlu0 %2586
    %2589 = vset.pattern.permute.xlu0 4
    %2590 = vperm.xlu0 %2589, %v1155
    %v2591 = vpop.permute.xlu0 %2590
    %2593 = vset.pattern.permute.xlu0 4
    %2594 = vperm.xlu0 %2593, %v1156
    %v2595 = vpop.permute.xlu0 %2594
    %2597 = vset.pattern.permute.xlu0 4
    %2598 = vperm.xlu0 %2597, %v1157
    %v2599 = vpop.permute.xlu0 %2598
    %2601 = vset.pattern.permute.xlu0 4
    %2602 = vperm.xlu0 %2601, %v1158
    %v2603 = vpop.permute.xlu0 %2602
    %2605 = vset.pattern.permute.xlu0 4
    %2606 = vperm.xlu0 %2605, %v1159
    %v2607 = vpop.permute.xlu0 %2606
    %2609 = vset.pattern.permute.xlu0 4
    %2610 = vperm.xlu0 %2609, %v1160
    %v2611 = vpop.permute.xlu0 %2610
    %2613 = vset.pattern.permute.xlu0 4
    %2614 = vperm.xlu0 %2613, %v1161
    %v2615 = vpop.permute.xlu0 %2614
    %2617 = vset.pattern.permute.xlu0 4
    %2618 = vperm.xlu0 %2617, %v1162
    %v2619 = vpop.permute.xlu0 %2618
    %2621 = vset.pattern.permute.xlu0 4
    %2622 = vperm.xlu0 %2621, %v1163
    %v2623 = vpop.permute.xlu0 %2622
    %2625 = vset.pattern.permute.xlu0 4
    %2626 = vperm.xlu0 %2625, %v1164
    %v2627 = vpop.permute.xlu0 %2626
    %2629 = vset.pattern.permute.xlu0 4
    %2630 = vperm.xlu0 %2629, %v1165
    %v2631 = vpop.permute.xlu0 %2630
    %2633 = vset.pattern.permute.xlu0 4
    %2634 = vperm.xlu0 %2633, %v1166
    %v2635 = vpop.permute.xlu0 %2634
    %2637 = vset.pattern.permute.xlu0 4
    %2638 = vperm.xlu0 %2637, %v1167
    %v2639 = vpop.permute.xlu0 %2638
    %2641 = vset.pattern.permute.xlu0 4
    %2642 = vperm.xlu0 %2641, %v1168
    %v2643 = vpop.permute.xlu0 %2642
    %2645 = vset.pattern.permute.xlu0 4
    %2646 = vperm.xlu0 %2645, %v1169
    %v2647 = vpop.permute.xlu0 %2646
    %2649 = vset.pattern.permute.xlu0 4
    %2650 = vperm.xlu0 %2649, %v1170
    %v2651 = vpop.permute.xlu0 %2650
    %2653 = vset.pattern.permute.xlu0 4
    %2654 = vperm.xlu0 %2653, %v1171
    %v2655 = vpop.permute.xlu0 %2654
    %2657 = vset.pattern.permute.xlu0 4
    %2658 = vperm.xlu0 %2657, %v1172
    %v2659 = vpop.permute.xlu0 %2658
    %2661 = vset.pattern.permute.xlu0 4
    %2662 = vperm.xlu0 %2661, %v1173
    %v2663 = vpop.permute.xlu0 %2662
    %2665 = vset.pattern.permute.xlu0 4
    %2666 = vperm.xlu0 %2665, %v1174
    %v2667 = vpop.permute.xlu0 %2666
    %2669 = vset.pattern.permute.xlu0 4
    %2670 = vperm.xlu0 %2669, %v1175
    %v2671 = vpop.permute.xlu0 %2670
    %2673 = vset.pattern.permute.xlu0 4
    %2674 = vperm.xlu0 %2673, %v1176
    %v2675 = vpop.permute.xlu0 %2674
    %2677 = vset.pattern.permute.xlu0 4
    %2678 = vperm.xlu0 %2677, %v1177
    %v2679 = vpop.permute.xlu0 %2678
    %2681 = vset.pattern.permute.xlu0 4
    %2682 = vperm.xlu0 %2681, %v1178
    %v2683 = vpop.permute.xlu0 %2682
    %2685 = vset.pattern.permute.xlu0 4
    %2686 = vperm.xlu0 %2685, %v1179
    %v2687 = vpop.permute.xlu0 %2686
    %2689 = vset.pattern.permute.xlu0 4
    %2690 = vperm.xlu0 %2689, %v1180
    %v2691 = vpop.permute.xlu0 %2690
    %v2693 = vlaneseq
    %v2694 = vshrl.u32 %v2693, 7
    %v2695 = vsub.s32 1, %v2694
    %v2696 = vrot.slane %v995, %v2695
    %v2697 = vlaneseq
    %v2698 = vshrl.u32 %v2697, 7
    %v2699 = vsub.s32 1, %v2698
    %v2700 = vrot.slane %v1027, %v2699
    %v2701 = vadd.f32 %v2567, %v2696
    %v2702 = vadd.f32 %v2567, %v2700
    %v2703 = vadd.f32 %v2571, %v2696
    %v2704 = vadd.f32 %v2571, %v2700
    %v2705 = vadd.f32 %v2575, %v2696
    %v2706 = vadd.f32 %v2575, %v2700
    %v2707 = vadd.f32 %v2579, %v2696
    %v2708 = vadd.f32 %v2579, %v2700
    %v2709 = vadd.f32 %v2583, %v2696
    %v2710 = vadd.f32 %v2583, %v2700
    %v2711 = vadd.f32 %v2587, %v2696
    %v2712 = vadd.f32 %v2587, %v2700
    %v2713 = vadd.f32 %v2591, %v2696
    %v2714 = vadd.f32 %v2591, %v2700
    %v2715 = vadd.f32 %v2595, %v2696
    %v2716 = vadd.f32 %v2595, %v2700
    %v2717 = vadd.f32 %v2599, %v2696
    %v2718 = vadd.f32 %v2599, %v2700
    %v2719 = vadd.f32 %v2603, %v2696
    %v2720 = vadd.f32 %v2603, %v2700
    %v2721 = vadd.f32 %v2607, %v2696
    %v2722 = vadd.f32 %v2607, %v2700
    %v2723 = vadd.f32 %v2611, %v2696
    %v2724 = vadd.f32 %v2611, %v2700
    %v2725 = vadd.f32 %v2615, %v2696
    %v2726 = vadd.f32 %v2615, %v2700
    %v2727 = vadd.f32 %v2619, %v2696
    %v2728 = vadd.f32 %v2619, %v2700
    %v2729 = vadd.f32 %v2623, %v2696
    %v2730 = vadd.f32 %v2623, %v2700
    %v2731 = vadd.f32 %v2627, %v2696
    %v2732 = vadd.f32 %v2627, %v2700
    %v2733 = vadd.f32 %v2631, %v2696
    %v2734 = vadd.f32 %v2631, %v2700
    %v2735 = vadd.f32 %v2635, %v2696
    %v2736 = vadd.f32 %v2635, %v2700
    %v2737 = vadd.f32 %v2639, %v2696
    %v2738 = vadd.f32 %v2639, %v2700
    %v2739 = vadd.f32 %v2643, %v2696
    %v2740 = vadd.f32 %v2643, %v2700
    %v2741 = vadd.f32 %v2647, %v2696
    %v2742 = vadd.f32 %v2647, %v2700
    %v2743 = vadd.f32 %v2651, %v2696
    %v2744 = vadd.f32 %v2651, %v2700
    %v2745 = vadd.f32 %v2655, %v2696
    %v2746 = vadd.f32 %v2655, %v2700
    %v2747 = vadd.f32 %v2659, %v2696
    %v2748 = vadd.f32 %v2659, %v2700
    %v2749 = vadd.f32 %v2663, %v2696
    %v2750 = vadd.f32 %v2663, %v2700
    %v2751 = vadd.f32 %v2667, %v2696
    %v2752 = vadd.f32 %v2667, %v2700
    %v2753 = vadd.f32 %v2671, %v2696
    %v2754 = vadd.f32 %v2671, %v2700
    %v2755 = vadd.f32 %v2675, %v2696
    %v2756 = vadd.f32 %v2675, %v2700
    %v2757 = vadd.f32 %v2679, %v2696
    %v2758 = vadd.f32 %v2679, %v2700
    %v2759 = vadd.f32 %v2683, %v2696
    %v2760 = vadd.f32 %v2683, %v2700
    %v2761 = vadd.f32 %v2687, %v2696
    %v2762 = vadd.f32 %v2687, %v2700
    %v2763 = vadd.f32 %v2691, %v2696
    %v2764 = vadd.f32 %v2691, %v2700
    %v2765 = vmul.f32 %v2701, 0.2
    %v2766 = vmul.f32 %v2702, 0.2
    %v2767 = vmul.f32 %v2703, 0.2
    %v2768 = vmul.f32 %v2704, 0.2
    %v2769 = vmul.f32 %v2705, 0.2
    %v2770 = vmul.f32 %v2706, 0.2
    %v2771 = vmul.f32 %v2707, 0.2
    %v2772 = vmul.f32 %v2708, 0.2
    %v2773 = vmul.f32 %v2709, 0.2
    %v2774 = vmul.f32 %v2710, 0.2
    %v2775 = vmul.f32 %v2711, 0.2
    %v2776 = vmul.f32 %v2712, 0.2
    %v2777 = vmul.f32 %v2713, 0.2
    %v2778 = vmul.f32 %v2714, 0.2
    %v2779 = vmul.f32 %v2715, 0.2
    %v2780 = vmul.f32 %v2716, 0.2
    %v2781 = vmul.f32 %v2717, 0.2
    %v2782 = vmul.f32 %v2718, 0.2
    %v2783 = vmul.f32 %v2719, 0.2
    %v2784 = vmul.f32 %v2720, 0.2
    %v2785 = vmul.f32 %v2721, 0.2
    %v2786 = vmul.f32 %v2722, 0.2
    %v2787 = vmul.f32 %v2723, 0.2
    %v2788 = vmul.f32 %v2724, 0.2
    %v2789 = vmul.f32 %v2725, 0.2
    %v2790 = vmul.f32 %v2726, 0.2
    %v2791 = vmul.f32 %v2727, 0.2
    %v2792 = vmul.f32 %v2728, 0.2
    %v2793 = vmul.f32 %v2729, 0.2
    %v2794 = vmul.f32 %v2730, 0.2
    %v2795 = vmul.f32 %v2731, 0.2
    %v2796 = vmul.f32 %v2732, 0.2
    %v2797 = vmul.f32 %v2733, 0.2
    %v2798 = vmul.f32 %v2734, 0.2
    %v2799 = vmul.f32 %v2735, 0.2
    %v2800 = vmul.f32 %v2736, 0.2
    %v2801 = vmul.f32 %v2737, 0.2
    %v2802 = vmul.f32 %v2738, 0.2
    %v2803 = vmul.f32 %v2739, 0.2
    %v2804 = vmul.f32 %v2740, 0.2
    %v2805 = vmul.f32 %v2741, 0.2
    %v2806 = vmul.f32 %v2742, 0.2
    %v2807 = vmul.f32 %v2743, 0.2
    %v2808 = vmul.f32 %v2744, 0.2
    %v2809 = vmul.f32 %v2745, 0.2
    %v2810 = vmul.f32 %v2746, 0.2
    %v2811 = vmul.f32 %v2747, 0.2
    %v2812 = vmul.f32 %v2748, 0.2
    %v2813 = vmul.f32 %v2749, 0.2
    %v2814 = vmul.f32 %v2750, 0.2
    %v2815 = vmul.f32 %v2751, 0.2
    %v2816 = vmul.f32 %v2752, 0.2
    %v2817 = vmul.f32 %v2753, 0.2
    %v2818 = vmul.f32 %v2754, 0.2
    %v2819 = vmul.f32 %v2755, 0.2
    %v2820 = vmul.f32 %v2756, 0.2
    %v2821 = vmul.f32 %v2757, 0.2
    %v2822 = vmul.f32 %v2758, 0.2
    %v2823 = vmul.f32 %v2759, 0.2
    %v2824 = vmul.f32 %v2760, 0.2
    %v2825 = vmul.f32 %v2761, 0.2
    %v2826 = vmul.f32 %v2762, 0.2
    %v2827 = vmul.f32 %v2763, 0.2
    %v2828 = vmul.f32 %v2764, 0.2
    %v2829 = vmax.f32 %v2701, %v2765
    %v2830 = vmax.f32 %v2702, %v2766
    %v2831 = vmax.f32 %v2703, %v2767
    %v2832 = vmax.f32 %v2704, %v2768
    %v2833 = vmax.f32 %v2705, %v2769
    %v2834 = vmax.f32 %v2706, %v2770
    %v2835 = vmax.f32 %v2707, %v2771
    %v2836 = vmax.f32 %v2708, %v2772
    %v2837 = vmax.f32 %v2709, %v2773
    %v2838 = vmax.f32 %v2710, %v2774
    %v2839 = vmax.f32 %v2711, %v2775
    %v2840 = vmax.f32 %v2712, %v2776
    %v2841 = vmax.f32 %v2713, %v2777
    %v2842 = vmax.f32 %v2714, %v2778
    %v2843 = vmax.f32 %v2715, %v2779
    %v2844 = vmax.f32 %v2716, %v2780
    %v2845 = vmax.f32 %v2717, %v2781
    %v2846 = vmax.f32 %v2718, %v2782
    %v2847 = vmax.f32 %v2719, %v2783
    %v2848 = vmax.f32 %v2720, %v2784
    %v2849 = vmax.f32 %v2721, %v2785
    %v2850 = vmax.f32 %v2722, %v2786
    %v2851 = vmax.f32 %v2723, %v2787
    %v2852 = vmax.f32 %v2724, %v2788
    %v2853 = vmax.f32 %v2725, %v2789
    %v2854 = vmax.f32 %v2726, %v2790
    %v2855 = vmax.f32 %v2727, %v2791
    %v2856 = vmax.f32 %v2728, %v2792
    %v2857 = vmax.f32 %v2729, %v2793
    %v2858 = vmax.f32 %v2730, %v2794
    %v2859 = vmax.f32 %v2731, %v2795
    %v2860 = vmax.f32 %v2732, %v2796
    %v2861 = vmax.f32 %v2733, %v2797
    %v2862 = vmax.f32 %v2734, %v2798
    %v2863 = vmax.f32 %v2735, %v2799
    %v2864 = vmax.f32 %v2736, %v2800
    %v2865 = vmax.f32 %v2737, %v2801
    %v2866 = vmax.f32 %v2738, %v2802
    %v2867 = vmax.f32 %v2739, %v2803
    %v2868 = vmax.f32 %v2740, %v2804
    %v2869 = vmax.f32 %v2741, %v2805
    %v2870 = vmax.f32 %v2742, %v2806
    %v2871 = vmax.f32 %v2743, %v2807
    %v2872 = vmax.f32 %v2744, %v2808
    %v2873 = vmax.f32 %v2745, %v2809
    %v2874 = vmax.f32 %v2746, %v2810
    %v2875 = vmax.f32 %v2747, %v2811
    %v2876 = vmax.f32 %v2748, %v2812
    %v2877 = vmax.f32 %v2749, %v2813
    %v2878 = vmax.f32 %v2750, %v2814
    %v2879 = vmax.f32 %v2751, %v2815
    %v2880 = vmax.f32 %v2752, %v2816
    %v2881 = vmax.f32 %v2753, %v2817
    %v2882 = vmax.f32 %v2754, %v2818
    %v2883 = vmax.f32 %v2755, %v2819
    %v2884 = vmax.f32 %v2756, %v2820
    %v2885 = vmax.f32 %v2757, %v2821
    %v2886 = vmax.f32 %v2758, %v2822
    %v2887 = vmax.f32 %v2759, %v2823
    %v2888 = vmax.f32 %v2760, %v2824
    %v2889 = vmax.f32 %v2761, %v2825
    %v2890 = vmax.f32 %v2762, %v2826
    %v2891 = vmax.f32 %v2763, %v2827
    %v2892 = vmax.f32 %v2764, %v2828
    %v2893 = vsel %vm1797, %v2829, -1e+30
    %v2894 = vsel %vm1798, %v2830, -1e+30
    %v2895 = vsel %vm1799, %v2831, -1e+30
    %v2896 = vsel %vm1800, %v2832, -1e+30
    %v2897 = vsel %vm1801, %v2833, -1e+30
    %v2898 = vsel %vm1802, %v2834, -1e+30
    %v2899 = vsel %vm1803, %v2835, -1e+30
    %v2900 = vsel %vm1804, %v2836, -1e+30
    %v2901 = vsel %vm1805, %v2837, -1e+30
    %v2902 = vsel %vm1806, %v2838, -1e+30
    %v2903 = vsel %vm1807, %v2839, -1e+30
    %v2904 = vsel %vm1808, %v2840, -1e+30
    %v2905 = vsel %vm1809, %v2841, -1e+30
    %v2906 = vsel %vm1810, %v2842, -1e+30
    %v2907 = vsel %vm1811, %v2843, -1e+30
    %v2908 = vsel %vm1812, %v2844, -1e+30
    %v2909 = vsel %vm1813, %v2845, -1e+30
    %v2910 = vsel %vm1814, %v2846, -1e+30
    %v2911 = vsel %vm1815, %v2847, -1e+30
    %v2912 = vsel %vm1816, %v2848, -1e+30
    %v2913 = vsel %vm1817, %v2849, -1e+30
    %v2914 = vsel %vm1818, %v2850, -1e+30
    %v2915 = vsel %vm1819, %v2851, -1e+30
    %v2916 = vsel %vm1820, %v2852, -1e+30
    %v2917 = vsel %vm1821, %v2853, -1e+30
    %v2918 = vsel %vm1822, %v2854, -1e+30
    %v2919 = vsel %vm1823, %v2855, -1e+30
    %v2920 = vsel %vm1824, %v2856, -1e+30
    %v2921 = vsel %vm1825, %v2857, -1e+30
    %v2922 = vsel %vm1826, %v2858, -1e+30
    %v2923 = vsel %vm1827, %v2859, -1e+30
    %v2924 = vsel %vm1828, %v2860, -1e+30
    %v2925 = vsel %vm1829, %v2861, -1e+30
    %v2926 = vsel %vm1830, %v2862, -1e+30
    %v2927 = vsel %vm1831, %v2863, -1e+30
    %v2928 = vsel %vm1832, %v2864, -1e+30
    %v2929 = vsel %vm1833, %v2865, -1e+30
    %v2930 = vsel %vm1834, %v2866, -1e+30
    %v2931 = vsel %vm1835, %v2867, -1e+30
    %v2932 = vsel %vm1836, %v2868, -1e+30
    %v2933 = vsel %vm1837, %v2869, -1e+30
    %v2934 = vsel %vm1838, %v2870, -1e+30
    %v2935 = vsel %vm1839, %v2871, -1e+30
    %v2936 = vsel %vm1840, %v2872, -1e+30
    %v2937 = vsel %vm1841, %v2873, -1e+30
    %v2938 = vsel %vm1842, %v2874, -1e+30
    %v2939 = vsel %vm1843, %v2875, -1e+30
    %v2940 = vsel %vm1844, %v2876, -1e+30
    %v2941 = vsel %vm1845, %v2877, -1e+30
    %v2942 = vsel %vm1846, %v2878, -1e+30
    %v2943 = vsel %vm1847, %v2879, -1e+30
    %v2944 = vsel %vm1848, %v2880, -1e+30
    %v2945 = vsel %vm1849, %v2881, -1e+30
    %v2946 = vsel %vm1850, %v2882, -1e+30
    %v2947 = vsel %vm1851, %v2883, -1e+30
    %v2948 = vsel %vm1852, %v2884, -1e+30
    %v2949 = vsel %vm1853, %v2885, -1e+30
    %v2950 = vsel %vm1854, %v2886, -1e+30
    %v2951 = vsel %vm1855, %v2887, -1e+30
    %v2952 = vsel %vm1856, %v2888, -1e+30
    %v2953 = vsel %vm1857, %v2889, -1e+30
    %v2954 = vsel %vm1858, %v2890, -1e+30
    %v2955 = vsel %vm1859, %v2891, -1e+30
    %v2956 = vsel %vm1860, %v2892, -1e+30
    %v2957 = vmax.f32 %v2893, %v2894
    %2958 = vmax.xlane.f32.xlu0 %v2957
    %v2959 = vpop.xlane.xlu0 %2958
    %v2960 = vmax.f32 %v2895, %v2896
    %2961 = vmax.xlane.f32.xlu0 %v2960
    %v2962 = vpop.xlane.xlu0 %2961
    %v2963 = vmax.f32 %v2897, %v2898
    %2964 = vmax.xlane.f32.xlu0 %v2963
    %v2965 = vpop.xlane.xlu0 %2964
    %v2966 = vmax.f32 %v2899, %v2900
    %2967 = vmax.xlane.f32.xlu0 %v2966
    %v2968 = vpop.xlane.xlu0 %2967
    %v2969 = vmax.f32 %v2901, %v2902
    %2970 = vmax.xlane.f32.xlu0 %v2969
    %v2971 = vpop.xlane.xlu0 %2970
    %v2972 = vmax.f32 %v2903, %v2904
    %2973 = vmax.xlane.f32.xlu0 %v2972
    %v2974 = vpop.xlane.xlu0 %2973
    %v2975 = vmax.f32 %v2905, %v2906
    %2976 = vmax.xlane.f32.xlu0 %v2975
    %v2977 = vpop.xlane.xlu0 %2976
    %v2978 = vmax.f32 %v2907, %v2908
    %2979 = vmax.xlane.f32.xlu0 %v2978
    %v2980 = vpop.xlane.xlu0 %2979
    %v2981 = vmax.f32 %v2909, %v2910
    %2982 = vmax.xlane.f32.xlu0 %v2981
    %v2983 = vpop.xlane.xlu0 %2982
    %v2984 = vmax.f32 %v2911, %v2912
    %2985 = vmax.xlane.f32.xlu0 %v2984
    %v2986 = vpop.xlane.xlu0 %2985
    %v2987 = vmax.f32 %v2913, %v2914
    %2988 = vmax.xlane.f32.xlu0 %v2987
    %v2989 = vpop.xlane.xlu0 %2988
    %v2990 = vmax.f32 %v2915, %v2916
    %2991 = vmax.xlane.f32.xlu0 %v2990
    %v2992 = vpop.xlane.xlu0 %2991
    %v2993 = vmax.f32 %v2917, %v2918
    %2994 = vmax.xlane.f32.xlu0 %v2993
    %v2995 = vpop.xlane.xlu0 %2994
    %v2996 = vmax.f32 %v2919, %v2920
    %2997 = vmax.xlane.f32.xlu0 %v2996
    %v2998 = vpop.xlane.xlu0 %2997
    %v2999 = vmax.f32 %v2921, %v2922
    %3000 = vmax.xlane.f32.xlu0 %v2999
    %v3001 = vpop.xlane.xlu0 %3000
    %v3002 = vmax.f32 %v2923, %v2924
    %3003 = vmax.xlane.f32.xlu0 %v3002
    %v3004 = vpop.xlane.xlu0 %3003
    %v3005 = vmax.f32 %v2925, %v2926
    %3006 = vmax.xlane.f32.xlu0 %v3005
    %v3007 = vpop.xlane.xlu0 %3006
    %v3008 = vmax.f32 %v2927, %v2928
    %3009 = vmax.xlane.f32.xlu0 %v3008
    %v3010 = vpop.xlane.xlu0 %3009
    %v3011 = vmax.f32 %v2929, %v2930
    %3012 = vmax.xlane.f32.xlu0 %v3011
    %v3013 = vpop.xlane.xlu0 %3012
    %v3014 = vmax.f32 %v2931, %v2932
    %3015 = vmax.xlane.f32.xlu0 %v3014
    %v3016 = vpop.xlane.xlu0 %3015
    %v3017 = vmax.f32 %v2933, %v2934
    %3018 = vmax.xlane.f32.xlu0 %v3017
    %v3019 = vpop.xlane.xlu0 %3018
    %v3020 = vmax.f32 %v2935, %v2936
    %3021 = vmax.xlane.f32.xlu0 %v3020
    %v3022 = vpop.xlane.xlu0 %3021
    %v3023 = vmax.f32 %v2937, %v2938
    %3024 = vmax.xlane.f32.xlu0 %v3023
    %v3025 = vpop.xlane.xlu0 %3024
    %v3026 = vmax.f32 %v2939, %v2940
    %3027 = vmax.xlane.f32.xlu0 %v3026
    %v3028 = vpop.xlane.xlu0 %3027
    %v3029 = vmax.f32 %v2941, %v2942
    %3030 = vmax.xlane.f32.xlu0 %v3029
    %v3031 = vpop.xlane.xlu0 %3030
    %v3032 = vmax.f32 %v2943, %v2944
    %3033 = vmax.xlane.f32.xlu0 %v3032
    %v3034 = vpop.xlane.xlu0 %3033
    %v3035 = vmax.f32 %v2945, %v2946
    %3036 = vmax.xlane.f32.xlu0 %v3035
    %v3037 = vpop.xlane.xlu0 %3036
    %v3038 = vmax.f32 %v2947, %v2948
    %3039 = vmax.xlane.f32.xlu0 %v3038
    %v3040 = vpop.xlane.xlu0 %3039
    %v3041 = vmax.f32 %v2949, %v2950
    %3042 = vmax.xlane.f32.xlu0 %v3041
    %v3043 = vpop.xlane.xlu0 %3042
    %v3044 = vmax.f32 %v2951, %v2952
    %3045 = vmax.xlane.f32.xlu0 %v3044
    %v3046 = vpop.xlane.xlu0 %3045
    %v3047 = vmax.f32 %v2953, %v2954
    %3048 = vmax.xlane.f32.xlu0 %v3047
    %v3049 = vpop.xlane.xlu0 %3048
    %v3050 = vmax.f32 %v2955, %v2956
    %3051 = vmax.xlane.f32.xlu0 %v3050
    %v3052 = vpop.xlane.xlu0 %3051
    %v3053 = vsub.f32 %v2893, %v2959
    %v3054 = vsub.f32 %v2894, %v2959
    %v3055 = vsub.f32 %v2895, %v2962
    %v3056 = vsub.f32 %v2896, %v2962
    %v3057 = vsub.f32 %v2897, %v2965
    %v3058 = vsub.f32 %v2898, %v2965
    %v3059 = vsub.f32 %v2899, %v2968
    %v3060 = vsub.f32 %v2900, %v2968
    %v3061 = vsub.f32 %v2901, %v2971
    %v3062 = vsub.f32 %v2902, %v2971
    %v3063 = vsub.f32 %v2903, %v2974
    %v3064 = vsub.f32 %v2904, %v2974
    %v3065 = vsub.f32 %v2905, %v2977
    %v3066 = vsub.f32 %v2906, %v2977
    %v3067 = vsub.f32 %v2907, %v2980
    %v3068 = vsub.f32 %v2908, %v2980
    %v3069 = vsub.f32 %v2909, %v2983
    %v3070 = vsub.f32 %v2910, %v2983
    %v3071 = vsub.f32 %v2911, %v2986
    %v3072 = vsub.f32 %v2912, %v2986
    %v3073 = vsub.f32 %v2913, %v2989
    %v3074 = vsub.f32 %v2914, %v2989
    %v3075 = vsub.f32 %v2915, %v2992
    %v3076 = vsub.f32 %v2916, %v2992
    %v3077 = vsub.f32 %v2917, %v2995
    %v3078 = vsub.f32 %v2918, %v2995
    %v3079 = vsub.f32 %v2919, %v2998
    %v3080 = vsub.f32 %v2920, %v2998
    %v3081 = vsub.f32 %v2921, %v3001
    %v3082 = vsub.f32 %v2922, %v3001
    %v3083 = vsub.f32 %v2923, %v3004
    %v3084 = vsub.f32 %v2924, %v3004
    %v3085 = vsub.f32 %v2925, %v3007
    %v3086 = vsub.f32 %v2926, %v3007
    %v3087 = vsub.f32 %v2927, %v3010
    %v3088 = vsub.f32 %v2928, %v3010
    %v3089 = vsub.f32 %v2929, %v3013
    %v3090 = vsub.f32 %v2930, %v3013
    %v3091 = vsub.f32 %v2931, %v3016
    %v3092 = vsub.f32 %v2932, %v3016
    %v3093 = vsub.f32 %v2933, %v3019
    %v3094 = vsub.f32 %v2934, %v3019
    %v3095 = vsub.f32 %v2935, %v3022
    %v3096 = vsub.f32 %v2936, %v3022
    %v3097 = vsub.f32 %v2937, %v3025
    %v3098 = vsub.f32 %v2938, %v3025
    %v3099 = vsub.f32 %v2939, %v3028
    %v3100 = vsub.f32 %v2940, %v3028
    %v3101 = vsub.f32 %v2941, %v3031
    %v3102 = vsub.f32 %v2942, %v3031
    %v3103 = vsub.f32 %v2943, %v3034
    %v3104 = vsub.f32 %v2944, %v3034
    %v3105 = vsub.f32 %v2945, %v3037
    %v3106 = vsub.f32 %v2946, %v3037
    %v3107 = vsub.f32 %v2947, %v3040
    %v3108 = vsub.f32 %v2948, %v3040
    %v3109 = vsub.f32 %v2949, %v3043
    %v3110 = vsub.f32 %v2950, %v3043
    %v3111 = vsub.f32 %v2951, %v3046
    %v3112 = vsub.f32 %v2952, %v3046
    %v3113 = vsub.f32 %v2953, %v3049
    %v3114 = vsub.f32 %v2954, %v3049
    %v3115 = vsub.f32 %v2955, %v3052
    %v3116 = vsub.f32 %v2956, %v3052
    %v3117 = vmul.f32 %v3053, 1.442695
    %v3118 = vpow.pop %v3117
    %v3119 = vmul.f32 %v3054, 1.442695
    %v3120 = vpow.pop %v3119
    %v3121 = vmul.f32 %v3055, 1.442695
    %v3122 = vpow.pop %v3121
    %v3123 = vmul.f32 %v3056, 1.442695
    %v3124 = vpow.pop %v3123
    %v3125 = vmul.f32 %v3057, 1.442695
    %v3126 = vpow.pop %v3125
    %v3127 = vmul.f32 %v3058, 1.442695
    %v3128 = vpow.pop %v3127
    %v3129 = vmul.f32 %v3059, 1.442695
    %v3130 = vpow.pop %v3129
    %v3131 = vmul.f32 %v3060, 1.442695
    %v3132 = vpow.pop %v3131
    %v3133 = vmul.f32 %v3061, 1.442695
    %v3134 = vpow.pop %v3133
    %v3135 = vmul.f32 %v3062, 1.442695
    %v3136 = vpow.pop %v3135
    %v3137 = vmul.f32 %v3063, 1.442695
    %v3138 = vpow.pop %v3137
    %v3139 = vmul.f32 %v3064, 1.442695
    %v3140 = vpow.pop %v3139
    %v3141 = vmul.f32 %v3065, 1.442695
    %v3142 = vpow.pop %v3141
    %v3143 = vmul.f32 %v3066, 1.442695
    %v3144 = vpow.pop %v3143
    %v3145 = vmul.f32 %v3067, 1.442695
    %v3146 = vpow.pop %v3145
    %v3147 = vmul.f32 %v3068, 1.442695
    %v3148 = vpow.pop %v3147
    %v3149 = vmul.f32 %v3069, 1.442695
    %v3150 = vpow.pop %v3149
    %v3151 = vmul.f32 %v3070, 1.442695
    %v3152 = vpow.pop %v3151
    %v3153 = vmul.f32 %v3071, 1.442695
    %v3154 = vpow.pop %v3153
    %v3155 = vmul.f32 %v3072, 1.442695
    %v3156 = vpow.pop %v3155
    %v3157 = vmul.f32 %v3073, 1.442695
    %v3158 = vpow.pop %v3157
    %v3159 = vmul.f32 %v3074, 1.442695
    %v3160 = vpow.pop %v3159
    %v3161 = vmul.f32 %v3075, 1.442695
    %v3162 = vpow.pop %v3161
    %v3163 = vmul.f32 %v3076, 1.442695
    %v3164 = vpow.pop %v3163
    %v3165 = vmul.f32 %v3077, 1.442695
    %v3166 = vpow.pop %v3165
    %v3167 = vmul.f32 %v3078, 1.442695
    %v3168 = vpow.pop %v3167
    %v3169 = vmul.f32 %v3079, 1.442695
    %v3170 = vpow.pop %v3169
    %v3171 = vmul.f32 %v3080, 1.442695
    %v3172 = vpow.pop %v3171
    %v3173 = vmul.f32 %v3081, 1.442695
    %v3174 = vpow.pop %v3173
    %v3175 = vmul.f32 %v3082, 1.442695
    %v3176 = vpow.pop %v3175
    %v3177 = vmul.f32 %v3083, 1.442695
    %v3178 = vpow.pop %v3177
    %v3179 = vmul.f32 %v3084, 1.442695
    %v3180 = vpow.pop %v3179
    %v3181 = vmul.f32 %v3085, 1.442695
    %v3182 = vpow.pop %v3181
    %v3183 = vmul.f32 %v3086, 1.442695
    %v3184 = vpow.pop %v3183
    %v3185 = vmul.f32 %v3087, 1.442695
    %v3186 = vpow.pop %v3185
    %v3187 = vmul.f32 %v3088, 1.442695
    %v3188 = vpow.pop %v3187
    %v3189 = vmul.f32 %v3089, 1.442695
    %v3190 = vpow.pop %v3189
    %v3191 = vmul.f32 %v3090, 1.442695
    %v3192 = vpow.pop %v3191
    %v3193 = vmul.f32 %v3091, 1.442695
    %v3194 = vpow.pop %v3193
    %v3195 = vmul.f32 %v3092, 1.442695
    %v3196 = vpow.pop %v3195
    %v3197 = vmul.f32 %v3093, 1.442695
    %v3198 = vpow.pop %v3197
    %v3199 = vmul.f32 %v3094, 1.442695
    %v3200 = vpow.pop %v3199
    %v3201 = vmul.f32 %v3095, 1.442695
    %v3202 = vpow.pop %v3201
    %v3203 = vmul.f32 %v3096, 1.442695
    %v3204 = vpow.pop %v3203
    %v3205 = vmul.f32 %v3097, 1.442695
    %v3206 = vpow.pop %v3205
    %v3207 = vmul.f32 %v3098, 1.442695
    %v3208 = vpow.pop %v3207
    %v3209 = vmul.f32 %v3099, 1.442695
    %v3210 = vpow.pop %v3209
    %v3211 = vmul.f32 %v3100, 1.442695
    %v3212 = vpow.pop %v3211
    %v3213 = vmul.f32 %v3101, 1.442695
    %v3214 = vpow.pop %v3213
    %v3215 = vmul.f32 %v3102, 1.442695
    %v3216 = vpow.pop %v3215
    %v3217 = vmul.f32 %v3103, 1.442695
    %v3218 = vpow.pop %v3217
    %v3219 = vmul.f32 %v3104, 1.442695
    %v3220 = vpow.pop %v3219
    %v3221 = vmul.f32 %v3105, 1.442695
    %v3222 = vpow.pop %v3221
    %v3223 = vmul.f32 %v3106, 1.442695
    %v3224 = vpow.pop %v3223
    %v3225 = vmul.f32 %v3107, 1.442695
    %v3226 = vpow.pop %v3225
    %v3227 = vmul.f32 %v3108, 1.442695
    %v3228 = vpow.pop %v3227
    %v3229 = vmul.f32 %v3109, 1.442695
    %v3230 = vpow.pop %v3229
    %v3231 = vmul.f32 %v3110, 1.442695
    %v3232 = vpow.pop %v3231
    %v3233 = vmul.f32 %v3111, 1.442695
    %v3234 = vpow.pop %v3233
    %v3235 = vmul.f32 %v3112, 1.442695
    %v3236 = vpow.pop %v3235
    %v3237 = vmul.f32 %v3113, 1.442695
    %v3238 = vpow.pop %v3237
    %v3239 = vmul.f32 %v3114, 1.442695
    %v3240 = vpow.pop %v3239
    %v3241 = vmul.f32 %v3115, 1.442695
    %v3242 = vpow.pop %v3241
    %v3243 = vmul.f32 %v3116, 1.442695
    %v3244 = vpow.pop %v3243
    %v3245 = vsel %vm1797, %v3118, 0.0
    %v3246 = vsel %vm1798, %v3120, 0.0
    %v3247 = vsel %vm1799, %v3122, 0.0
    %v3248 = vsel %vm1800, %v3124, 0.0
    %v3249 = vsel %vm1801, %v3126, 0.0
    %v3250 = vsel %vm1802, %v3128, 0.0
    %v3251 = vsel %vm1803, %v3130, 0.0
    %v3252 = vsel %vm1804, %v3132, 0.0
    %v3253 = vsel %vm1805, %v3134, 0.0
    %v3254 = vsel %vm1806, %v3136, 0.0
    %v3255 = vsel %vm1807, %v3138, 0.0
    %v3256 = vsel %vm1808, %v3140, 0.0
    %v3257 = vsel %vm1809, %v3142, 0.0
    %v3258 = vsel %vm1810, %v3144, 0.0
    %v3259 = vsel %vm1811, %v3146, 0.0
    %v3260 = vsel %vm1812, %v3148, 0.0
    %v3261 = vsel %vm1813, %v3150, 0.0
    %v3262 = vsel %vm1814, %v3152, 0.0
    %v3263 = vsel %vm1815, %v3154, 0.0
    %v3264 = vsel %vm1816, %v3156, 0.0
    %v3265 = vsel %vm1817, %v3158, 0.0
    %v3266 = vsel %vm1818, %v3160, 0.0
    %v3267 = vsel %vm1819, %v3162, 0.0
    %v3268 = vsel %vm1820, %v3164, 0.0
    %v3269 = vsel %vm1821, %v3166, 0.0
    %v3270 = vsel %vm1822, %v3168, 0.0
    %v3271 = vsel %vm1823, %v3170, 0.0
    %v3272 = vsel %vm1824, %v3172, 0.0
    %v3273 = vsel %vm1825, %v3174, 0.0
    %v3274 = vsel %vm1826, %v3176, 0.0
    %v3275 = vsel %vm1827, %v3178, 0.0
    %v3276 = vsel %vm1828, %v3180, 0.0
    %v3277 = vsel %vm1829, %v3182, 0.0
    %v3278 = vsel %vm1830, %v3184, 0.0
    %v3279 = vsel %vm1831, %v3186, 0.0
    %v3280 = vsel %vm1832, %v3188, 0.0
    %v3281 = vsel %vm1833, %v3190, 0.0
    %v3282 = vsel %vm1834, %v3192, 0.0
    %v3283 = vsel %vm1835, %v3194, 0.0
    %v3284 = vsel %vm1836, %v3196, 0.0
    %v3285 = vsel %vm1837, %v3198, 0.0
    %v3286 = vsel %vm1838, %v3200, 0.0
    %v3287 = vsel %vm1839, %v3202, 0.0
    %v3288 = vsel %vm1840, %v3204, 0.0
    %v3289 = vsel %vm1841, %v3206, 0.0
    %v3290 = vsel %vm1842, %v3208, 0.0
    %v3291 = vsel %vm1843, %v3210, 0.0
    %v3292 = vsel %vm1844, %v3212, 0.0
    %v3293 = vsel %vm1845, %v3214, 0.0
    %v3294 = vsel %vm1846, %v3216, 0.0
    %v3295 = vsel %vm1847, %v3218, 0.0
    %v3296 = vsel %vm1848, %v3220, 0.0
    %v3297 = vsel %vm1849, %v3222, 0.0
    %v3298 = vsel %vm1850, %v3224, 0.0
    %v3299 = vsel %vm1851, %v3226, 0.0
    %v3300 = vsel %vm1852, %v3228, 0.0
    %v3301 = vsel %vm1853, %v3230, 0.0
    %v3302 = vsel %vm1854, %v3232, 0.0
    %v3303 = vsel %vm1855, %v3234, 0.0
    %v3304 = vsel %vm1856, %v3236, 0.0
    %v3305 = vsel %vm1857, %v3238, 0.0
    %v3306 = vsel %vm1858, %v3240, 0.0
    %v3307 = vsel %vm1859, %v3242, 0.0
    %v3308 = vsel %vm1860, %v3244, 0.0
    %v3309 = vadd.f32 %v3245, %v3246
    %3310 = vadd.xlane.f32.xlu0 %v3309
    %v3311 = vpop.xlane.xlu0 %3310
    %v3312 = vadd.f32 %v3247, %v3248
    %3313 = vadd.xlane.f32.xlu0 %v3312
    %v3314 = vpop.xlane.xlu0 %3313
    %v3315 = vadd.f32 %v3249, %v3250
    %3316 = vadd.xlane.f32.xlu0 %v3315
    %v3317 = vpop.xlane.xlu0 %3316
    %v3318 = vadd.f32 %v3251, %v3252
    %3319 = vadd.xlane.f32.xlu0 %v3318
    %v3320 = vpop.xlane.xlu0 %3319
    %v3321 = vadd.f32 %v3253, %v3254
    %3322 = vadd.xlane.f32.xlu0 %v3321
    %v3323 = vpop.xlane.xlu0 %3322
    %v3324 = vadd.f32 %v3255, %v3256
    %3325 = vadd.xlane.f32.xlu0 %v3324
    %v3326 = vpop.xlane.xlu0 %3325
    %v3327 = vadd.f32 %v3257, %v3258
    %3328 = vadd.xlane.f32.xlu0 %v3327
    %v3329 = vpop.xlane.xlu0 %3328
    %v3330 = vadd.f32 %v3259, %v3260
    %3331 = vadd.xlane.f32.xlu0 %v3330
    %v3332 = vpop.xlane.xlu0 %3331
    %v3333 = vadd.f32 %v3261, %v3262
    %3334 = vadd.xlane.f32.xlu0 %v3333
    %v3335 = vpop.xlane.xlu0 %3334
    %v3336 = vadd.f32 %v3263, %v3264
    %3337 = vadd.xlane.f32.xlu0 %v3336
    %v3338 = vpop.xlane.xlu0 %3337
    %v3339 = vadd.f32 %v3265, %v3266
    %3340 = vadd.xlane.f32.xlu0 %v3339
    %v3341 = vpop.xlane.xlu0 %3340
    %v3342 = vadd.f32 %v3267, %v3268
    %3343 = vadd.xlane.f32.xlu0 %v3342
    %v3344 = vpop.xlane.xlu0 %3343
    %v3345 = vadd.f32 %v3269, %v3270
    %3346 = vadd.xlane.f32.xlu0 %v3345
    %v3347 = vpop.xlane.xlu0 %3346
    %v3348 = vadd.f32 %v3271, %v3272
    %3349 = vadd.xlane.f32.xlu0 %v3348
    %v3350 = vpop.xlane.xlu0 %3349
    %v3351 = vadd.f32 %v3273, %v3274
    %3352 = vadd.xlane.f32.xlu0 %v3351
    %v3353 = vpop.xlane.xlu0 %3352
    %v3354 = vadd.f32 %v3275, %v3276
    %3355 = vadd.xlane.f32.xlu0 %v3354
    %v3356 = vpop.xlane.xlu0 %3355
    %v3357 = vadd.f32 %v3277, %v3278
    %3358 = vadd.xlane.f32.xlu0 %v3357
    %v3359 = vpop.xlane.xlu0 %3358
    %v3360 = vadd.f32 %v3279, %v3280
    %3361 = vadd.xlane.f32.xlu0 %v3360
    %v3362 = vpop.xlane.xlu0 %3361
    %v3363 = vadd.f32 %v3281, %v3282
    %3364 = vadd.xlane.f32.xlu0 %v3363
    %v3365 = vpop.xlane.xlu0 %3364
    %v3366 = vadd.f32 %v3283, %v3284
    %3367 = vadd.xlane.f32.xlu0 %v3366
    %v3368 = vpop.xlane.xlu0 %3367
    %v3369 = vadd.f32 %v3285, %v3286
    %3370 = vadd.xlane.f32.xlu0 %v3369
    %v3371 = vpop.xlane.xlu0 %3370
    %v3372 = vadd.f32 %v3287, %v3288
    %3373 = vadd.xlane.f32.xlu0 %v3372
    %v3374 = vpop.xlane.xlu0 %3373
    %v3375 = vadd.f32 %v3289, %v3290
    %3376 = vadd.xlane.f32.xlu0 %v3375
    %v3377 = vpop.xlane.xlu0 %3376
    %v3378 = vadd.f32 %v3291, %v3292
    %3379 = vadd.xlane.f32.xlu0 %v3378
    %v3380 = vpop.xlane.xlu0 %3379
    %v3381 = vadd.f32 %v3293, %v3294
    %3382 = vadd.xlane.f32.xlu0 %v3381
    %v3383 = vpop.xlane.xlu0 %3382
    %v3384 = vadd.f32 %v3295, %v3296
    %3385 = vadd.xlane.f32.xlu0 %v3384
    %v3386 = vpop.xlane.xlu0 %3385
    %v3387 = vadd.f32 %v3297, %v3298
    %3388 = vadd.xlane.f32.xlu0 %v3387
    %v3389 = vpop.xlane.xlu0 %3388
    %v3390 = vadd.f32 %v3299, %v3300
    %3391 = vadd.xlane.f32.xlu0 %v3390
    %v3392 = vpop.xlane.xlu0 %3391
    %v3393 = vadd.f32 %v3301, %v3302
    %3394 = vadd.xlane.f32.xlu0 %v3393
    %v3395 = vpop.xlane.xlu0 %3394
    %v3396 = vadd.f32 %v3303, %v3304
    %3397 = vadd.xlane.f32.xlu0 %v3396
    %v3398 = vpop.xlane.xlu0 %3397
    %v3399 = vadd.f32 %v3305, %v3306
    %3400 = vadd.xlane.f32.xlu0 %v3399
    %v3401 = vpop.xlane.xlu0 %3400
    %v3402 = vadd.f32 %v3307, %v3308
    %3403 = vadd.xlane.f32.xlu0 %v3402
    %v3404 = vpop.xlane.xlu0 %3403
    %v3405 = vmax.f32 %v3311, 1e-20
    %v3406 = vmax.f32 %v3314, 1e-20
    %v3407 = vmax.f32 %v3317, 1e-20
    %v3408 = vmax.f32 %v3320, 1e-20
    %v3409 = vmax.f32 %v3323, 1e-20
    %v3410 = vmax.f32 %v3326, 1e-20
    %v3411 = vmax.f32 %v3329, 1e-20
    %v3412 = vmax.f32 %v3332, 1e-20
    %v3413 = vmax.f32 %v3335, 1e-20
    %v3414 = vmax.f32 %v3338, 1e-20
    %v3415 = vmax.f32 %v3341, 1e-20
    %v3416 = vmax.f32 %v3344, 1e-20
    %v3417 = vmax.f32 %v3347, 1e-20
    %v3418 = vmax.f32 %v3350, 1e-20
    %v3419 = vmax.f32 %v3353, 1e-20
    %v3420 = vmax.f32 %v3356, 1e-20
    %v3421 = vmax.f32 %v3359, 1e-20
    %v3422 = vmax.f32 %v3362, 1e-20
    %v3423 = vmax.f32 %v3365, 1e-20
    %v3424 = vmax.f32 %v3368, 1e-20
    %v3425 = vmax.f32 %v3371, 1e-20
    %v3426 = vmax.f32 %v3374, 1e-20
    %v3427 = vmax.f32 %v3377, 1e-20
    %v3428 = vmax.f32 %v3380, 1e-20
    %v3429 = vmax.f32 %v3383, 1e-20
    %v3430 = vmax.f32 %v3386, 1e-20
    %v3431 = vmax.f32 %v3389, 1e-20
    %v3432 = vmax.f32 %v3392, 1e-20
    %v3433 = vmax.f32 %v3395, 1e-20
    %v3434 = vmax.f32 %v3398, 1e-20
    %v3435 = vmax.f32 %v3401, 1e-20
    %v3436 = vmax.f32 %v3404, 1e-20
    %v3437 = vrcp.pop %v3405
    %v3438 = vmul.f32 1.0, %v3437
    %v3439 = vrcp.pop %v3406
    %v3440 = vmul.f32 1.0, %v3439
    %v3441 = vrcp.pop %v3407
    %v3442 = vmul.f32 1.0, %v3441
    %v3443 = vrcp.pop %v3408
    %v3444 = vmul.f32 1.0, %v3443
    %v3445 = vrcp.pop %v3409
    %v3446 = vmul.f32 1.0, %v3445
    %v3447 = vrcp.pop %v3410
    %v3448 = vmul.f32 1.0, %v3447
    %v3449 = vrcp.pop %v3411
    %v3450 = vmul.f32 1.0, %v3449
    %v3451 = vrcp.pop %v3412
    %v3452 = vmul.f32 1.0, %v3451
    %v3453 = vrcp.pop %v3413
    %v3454 = vmul.f32 1.0, %v3453
    %v3455 = vrcp.pop %v3414
    %v3456 = vmul.f32 1.0, %v3455
    %v3457 = vrcp.pop %v3415
    %v3458 = vmul.f32 1.0, %v3457
    %v3459 = vrcp.pop %v3416
    %v3460 = vmul.f32 1.0, %v3459
    %v3461 = vrcp.pop %v3417
    %v3462 = vmul.f32 1.0, %v3461
    %v3463 = vrcp.pop %v3418
    %v3464 = vmul.f32 1.0, %v3463
    %v3465 = vrcp.pop %v3419
    %v3466 = vmul.f32 1.0, %v3465
    %v3467 = vrcp.pop %v3420
    %v3468 = vmul.f32 1.0, %v3467
    %v3469 = vrcp.pop %v3421
    %v3470 = vmul.f32 1.0, %v3469
    %v3471 = vrcp.pop %v3422
    %v3472 = vmul.f32 1.0, %v3471
    %v3473 = vrcp.pop %v3423
    %v3474 = vmul.f32 1.0, %v3473
    %v3475 = vrcp.pop %v3424
    %v3476 = vmul.f32 1.0, %v3475
    %v3477 = vrcp.pop %v3425
    %v3478 = vmul.f32 1.0, %v3477
    %v3479 = vrcp.pop %v3426
    %v3480 = vmul.f32 1.0, %v3479
    %v3481 = vrcp.pop %v3427
    %v3482 = vmul.f32 1.0, %v3481
    %v3483 = vrcp.pop %v3428
    %v3484 = vmul.f32 1.0, %v3483
    %v3485 = vrcp.pop %v3429
    %v3486 = vmul.f32 1.0, %v3485
    %v3487 = vrcp.pop %v3430
    %v3488 = vmul.f32 1.0, %v3487
    %v3489 = vrcp.pop %v3431
    %v3490 = vmul.f32 1.0, %v3489
    %v3491 = vrcp.pop %v3432
    %v3492 = vmul.f32 1.0, %v3491
    %v3493 = vrcp.pop %v3433
    %v3494 = vmul.f32 1.0, %v3493
    %v3495 = vrcp.pop %v3434
    %v3496 = vmul.f32 1.0, %v3495
    %v3497 = vrcp.pop %v3435
    %v3498 = vmul.f32 1.0, %v3497
    %v3499 = vrcp.pop %v3436
    %v3500 = vmul.f32 1.0, %v3499
    %v3501 = vmul.f32 %v3245, %v3438
    %v3502 = vmul.f32 %v3246, %v3438
    %v3503 = vmul.f32 %v3247, %v3440
    %v3504 = vmul.f32 %v3248, %v3440
    %v3505 = vmul.f32 %v3249, %v3442
    %v3506 = vmul.f32 %v3250, %v3442
    %v3507 = vmul.f32 %v3251, %v3444
    %v3508 = vmul.f32 %v3252, %v3444
    %v3509 = vmul.f32 %v3253, %v3446
    %v3510 = vmul.f32 %v3254, %v3446
    %v3511 = vmul.f32 %v3255, %v3448
    %v3512 = vmul.f32 %v3256, %v3448
    %v3513 = vmul.f32 %v3257, %v3450
    %v3514 = vmul.f32 %v3258, %v3450
    %v3515 = vmul.f32 %v3259, %v3452
    %v3516 = vmul.f32 %v3260, %v3452
    %v3517 = vmul.f32 %v3261, %v3454
    %v3518 = vmul.f32 %v3262, %v3454
    %v3519 = vmul.f32 %v3263, %v3456
    %v3520 = vmul.f32 %v3264, %v3456
    %v3521 = vmul.f32 %v3265, %v3458
    %v3522 = vmul.f32 %v3266, %v3458
    %v3523 = vmul.f32 %v3267, %v3460
    %v3524 = vmul.f32 %v3268, %v3460
    %v3525 = vmul.f32 %v3269, %v3462
    %v3526 = vmul.f32 %v3270, %v3462
    %v3527 = vmul.f32 %v3271, %v3464
    %v3528 = vmul.f32 %v3272, %v3464
    %v3529 = vmul.f32 %v3273, %v3466
    %v3530 = vmul.f32 %v3274, %v3466
    %v3531 = vmul.f32 %v3275, %v3468
    %v3532 = vmul.f32 %v3276, %v3468
    %v3533 = vmul.f32 %v3277, %v3470
    %v3534 = vmul.f32 %v3278, %v3470
    %v3535 = vmul.f32 %v3279, %v3472
    %v3536 = vmul.f32 %v3280, %v3472
    %v3537 = vmul.f32 %v3281, %v3474
    %v3538 = vmul.f32 %v3282, %v3474
    %v3539 = vmul.f32 %v3283, %v3476
    %v3540 = vmul.f32 %v3284, %v3476
    %v3541 = vmul.f32 %v3285, %v3478
    %v3542 = vmul.f32 %v3286, %v3478
    %v3543 = vmul.f32 %v3287, %v3480
    %v3544 = vmul.f32 %v3288, %v3480
    %v3545 = vmul.f32 %v3289, %v3482
    %v3546 = vmul.f32 %v3290, %v3482
    %v3547 = vmul.f32 %v3291, %v3484
    %v3548 = vmul.f32 %v3292, %v3484
    %v3549 = vmul.f32 %v3293, %v3486
    %v3550 = vmul.f32 %v3294, %v3486
    %v3551 = vmul.f32 %v3295, %v3488
    %v3552 = vmul.f32 %v3296, %v3488
    %v3553 = vmul.f32 %v3297, %v3490
    %v3554 = vmul.f32 %v3298, %v3490
    %v3555 = vmul.f32 %v3299, %v3492
    %v3556 = vmul.f32 %v3300, %v3492
    %v3557 = vmul.f32 %v3301, %v3494
    %v3558 = vmul.f32 %v3302, %v3494
    %v3559 = vmul.f32 %v3303, %v3496
    %v3560 = vmul.f32 %v3304, %v3496
    %v3561 = vmul.f32 %v3305, %v3498
    %v3562 = vmul.f32 %v3306, %v3498
    %v3563 = vmul.f32 %v3307, %v3500
    %v3564 = vmul.f32 %v3308, %v3500
    %v3565 = vpack.c.bf16 %v3503, %v3501
    %v3566 = vpack.c.bf16 %v3504, %v3502
    %v3567 = vpack.c.bf16 %v3507, %v3505
    %v3568 = vpack.c.bf16 %v3508, %v3506
    %v3569 = vpack.c.bf16 %v3511, %v3509
    %v3570 = vpack.c.bf16 %v3512, %v3510
    %v3571 = vpack.c.bf16 %v3515, %v3513
    %v3572 = vpack.c.bf16 %v3516, %v3514
    %v3573 = vpack.c.bf16 %v3519, %v3517
    %v3574 = vpack.c.bf16 %v3520, %v3518
    %v3575 = vpack.c.bf16 %v3523, %v3521
    %v3576 = vpack.c.bf16 %v3524, %v3522
    %v3577 = vpack.c.bf16 %v3527, %v3525
    %v3578 = vpack.c.bf16 %v3528, %v3526
    %v3579 = vpack.c.bf16 %v3531, %v3529
    %v3580 = vpack.c.bf16 %v3532, %v3530
    %v3581 = vpack.c.bf16 %v3535, %v3533
    %v3582 = vpack.c.bf16 %v3536, %v3534
    %v3583 = vpack.c.bf16 %v3539, %v3537
    %v3584 = vpack.c.bf16 %v3540, %v3538
    %v3585 = vpack.c.bf16 %v3543, %v3541
    %v3586 = vpack.c.bf16 %v3544, %v3542
    %v3587 = vpack.c.bf16 %v3547, %v3545
    %v3588 = vpack.c.bf16 %v3548, %v3546
    %v3589 = vpack.c.bf16 %v3551, %v3549
    %v3590 = vpack.c.bf16 %v3552, %v3550
    %v3591 = vpack.c.bf16 %v3555, %v3553
    %v3592 = vpack.c.bf16 %v3556, %v3554
    %v3593 = vpack.c.bf16 %v3559, %v3557
    %v3594 = vpack.c.bf16 %v3560, %v3558
    %v3595 = vpack.c.bf16 %v3563, %v3561
    %v3596 = vpack.c.bf16 %v3564, %v3562
    %3597 = vmatprep.subr.bf16.mxu0 0
    %3598 = vmatpush1.bf16.msra.mxu0 %v900
    %3599 = vmatprep.subr.bf16.mxu0 0
    %3600 = vmatpush1.bf16.msra.mxu0 %v903
    %3601 = vmatprep.subr.bf16.mxu0 0
    %3602 = vmatpush1.bf16.msra.mxu0 %v906
    %3603 = vmatprep.subr.bf16.mxu0 0
    %3604 = vmatpush1.bf16.msra.mxu0 %v909
    %3605 = vmatprep.subr.bf16.mxu0 0
    %3606 = vmatpush1.bf16.msra.mxu0 %v912
    %3607 = vmatprep.subr.bf16.mxu0 0
    %3608 = vmatpush1.bf16.msra.mxu0 %v915
    %3609 = vmatprep.subr.bf16.mxu0 0
    %3610 = vmatpush1.bf16.msra.mxu0 %v918
    %3611 = vmatprep.subr.bf16.mxu0 0
    %3612 = vmatpush1.bf16.msra.mxu0 %v921
    %3613 = vmatprep.subr.bf16.mxu0 0
    %3614 = vmatpush1.bf16.msra.mxu0 %v924
    %3615 = vmatprep.subr.bf16.mxu0 0
    %3616 = vmatpush1.bf16.msra.mxu0 %v927
    %3617 = vmatprep.subr.bf16.mxu0 0
    %3618 = vmatpush1.bf16.msra.mxu0 %v930
    %3619 = vmatprep.subr.bf16.mxu0 0
    %3620 = vmatpush1.bf16.msra.mxu0 %v933
    %3621 = vmatprep.subr.bf16.mxu0 0
    %3622 = vmatpush1.bf16.msra.mxu0 %v936
    %3623 = vmatprep.subr.bf16.mxu0 0
    %3624 = vmatpush1.bf16.msra.mxu0 %v939
    %3625 = vmatprep.subr.bf16.mxu0 0
    %3626 = vmatpush1.bf16.msra.mxu0 %v942
    %3627 = vmatprep.subr.bf16.mxu0 0
    %3628 = vmatpush1.bf16.msra.mxu0 %v945
    %3629 = vmatprep.mubr.bf16.mxu0 %v3566
    %3630 = vmatmul.mubr.bf16.gmra.mrb[0].mxu0 %v3565
    %v3631 = vpop.f32.mrb[0].mxu0
    %v3632 = vadd.f32 0.0, %v3631
    %v3633 = vpop.f32.mrb[0].mxu0
    %v3634 = vpop.f32.mrb[0].mxu0
    %v3635 = vadd.f32 0.0, %v3634
    %v3636 = vpop.f32.mrb[0].mxu0
    %3637 = vmatprep.mubr.bf16.mxu0 %v3568
    %3638 = vmatmul.mubr.bf16.gmra.mrb[0].mxu0 %v3567
    %v3639 = vpop.f32.mrb[0].mxu0
    %v3640 = vadd.f32 0.0, %v3639
    %v3641 = vpop.f32.mrb[0].mxu0
    %v3642 = vpop.f32.mrb[0].mxu0
    %v3643 = vadd.f32 0.0, %v3642
    %v3644 = vpop.f32.mrb[0].mxu0
    %3645 = vmatprep.mubr.bf16.mxu0 %v3570
    %3646 = vmatmul.mubr.bf16.gmra.mrb[0].mxu0 %v3569
    %v3647 = vpop.f32.mrb[0].mxu0
    %v3648 = vadd.f32 0.0, %v3647
    %v3649 = vpop.f32.mrb[0].mxu0
    %v3650 = vpop.f32.mrb[0].mxu0
    %v3651 = vadd.f32 0.0, %v3650
    %v3652 = vpop.f32.mrb[0].mxu0
    %3653 = vmatprep.mubr.bf16.mxu0 %v3572
    %3654 = vmatmul.mubr.bf16.gmra.mrb[0].mxu0 %v3571
    %v3655 = vpop.f32.mrb[0].mxu0
    %v3656 = vadd.f32 0.0, %v3655
    %v3657 = vpop.f32.mrb[0].mxu0
    %v3658 = vpop.f32.mrb[0].mxu0
    %v3659 = vadd.f32 0.0, %v3658
    %v3660 = vpop.f32.mrb[0].mxu0
    %3661 = vmatprep.mubr.bf16.mxu0 %v3574
    %3662 = vmatmul.mubr.bf16.gmra.mrb[0].mxu0 %v3573
    %v3663 = vpop.f32.mrb[0].mxu0
    %v3664 = vadd.f32 0.0, %v3663
    %v3665 = vpop.f32.mrb[0].mxu0
    %v3666 = vpop.f32.mrb[0].mxu0
    %v3667 = vadd.f32 0.0, %v3666
    %v3668 = vpop.f32.mrb[0].mxu0
    %3669 = vmatprep.mubr.bf16.mxu0 %v3576
    %3670 = vmatmul.mubr.bf16.gmra.mrb[0].mxu0 %v3575
    %v3671 = vpop.f32.mrb[0].mxu0
    %v3672 = vadd.f32 0.0, %v3671
    %v3673 = vpop.f32.mrb[0].mxu0
    %v3674 = vpop.f32.mrb[0].mxu0
    %v3675 = vadd.f32 0.0, %v3674
    %v3676 = vpop.f32.mrb[0].mxu0
    %3677 = vmatprep.mubr.bf16.mxu0 %v3578
    %3678 = vmatmul.mubr.bf16.gmra.mrb[0].mxu0 %v3577
    %v3679 = vpop.f32.mrb[0].mxu0
    %v3680 = vadd.f32 0.0, %v3679
    %v3681 = vpop.f32.mrb[0].mxu0
    %v3682 = vpop.f32.mrb[0].mxu0
    %v3683 = vadd.f32 0.0, %v3682
    %v3684 = vpop.f32.mrb[0].mxu0
    %3685 = vmatprep.mubr.bf16.mxu0 %v3580
    %3686 = vmatmul.mubr.bf16.gmra.mrb[0].mxu0 %v3579
    %v3687 = vpop.f32.mrb[0].mxu0
    %v3688 = vadd.f32 0.0, %v3687
    %v3689 = vpop.f32.mrb[0].mxu0
    %v3690 = vpop.f32.mrb[0].mxu0
    %v3691 = vadd.f32 0.0, %v3690
    %v3692 = vpop.f32.mrb[0].mxu0
    %3693 = vmatprep.mubr.bf16.mxu0 %v3582
    %3694 = vmatmul.mubr.bf16.gmra.mrb[0].mxu0 %v3581
    %v3695 = vpop.f32.mrb[0].mxu0
    %v3696 = vadd.f32 0.0, %v3695
    %v3697 = vpop.f32.mrb[0].mxu0
    %v3698 = vpop.f32.mrb[0].mxu0
    %v3699 = vadd.f32 0.0, %v3698
    %v3700 = vpop.f32.mrb[0].mxu0
    %3701 = vmatprep.mubr.bf16.mxu0 %v3584
    %3702 = vmatmul.mubr.bf16.gmra.mrb[0].mxu0 %v3583
    %v3703 = vpop.f32.mrb[0].mxu0
    %v3704 = vadd.f32 0.0, %v3703
    %v3705 = vpop.f32.mrb[0].mxu0
    %v3706 = vpop.f32.mrb[0].mxu0
    %v3707 = vadd.f32 0.0, %v3706
    %v3708 = vpop.f32.mrb[0].mxu0
    %3709 = vmatprep.mubr.bf16.mxu0 %v3586
    %3710 = vmatmul.mubr.bf16.gmra.mrb[0].mxu0 %v3585
    %v3711 = vpop.f32.mrb[0].mxu0
    %v3712 = vadd.f32 0.0, %v3711
    %v3713 = vpop.f32.mrb[0].mxu0
    %v3714 = vpop.f32.mrb[0].mxu0
    %v3715 = vadd.f32 0.0, %v3714
    %v3716 = vpop.f32.mrb[0].mxu0
    %3717 = vmatprep.mubr.bf16.mxu0 %v3588
    %3718 = vmatmul.mubr.bf16.gmra.mrb[0].mxu0 %v3587
    %v3719 = vpop.f32.mrb[0].mxu0
    %v3720 = vadd.f32 0.0, %v3719
    %v3721 = vpop.f32.mrb[0].mxu0
    %v3722 = vpop.f32.mrb[0].mxu0
    %v3723 = vadd.f32 0.0, %v3722
    %v3724 = vpop.f32.mrb[0].mxu0
    %3725 = vmatprep.mubr.bf16.mxu0 %v3590
    %3726 = vmatmul.mubr.bf16.gmra.mrb[0].mxu0 %v3589
    %v3727 = vpop.f32.mrb[0].mxu0
    %v3728 = vadd.f32 0.0, %v3727
    %v3729 = vpop.f32.mrb[0].mxu0
    %v3730 = vpop.f32.mrb[0].mxu0
    %v3731 = vadd.f32 0.0, %v3730
    %v3732 = vpop.f32.mrb[0].mxu0
    %3733 = vmatprep.mubr.bf16.mxu0 %v3592
    %3734 = vmatmul.mubr.bf16.gmra.mrb[0].mxu0 %v3591
    %v3735 = vpop.f32.mrb[0].mxu0
    %v3736 = vadd.f32 0.0, %v3735
    %v3737 = vpop.f32.mrb[0].mxu0
    %v3738 = vpop.f32.mrb[0].mxu0
    %v3739 = vadd.f32 0.0, %v3738
    %v3740 = vpop.f32.mrb[0].mxu0
    %3741 = vmatprep.mubr.bf16.mxu0 %v3594
    %3742 = vmatmul.mubr.bf16.gmra.mrb[0].mxu0 %v3593
    %v3743 = vpop.f32.mrb[0].mxu0
    %v3744 = vadd.f32 0.0, %v3743
    %v3745 = vpop.f32.mrb[0].mxu0
    %v3746 = vpop.f32.mrb[0].mxu0
    %v3747 = vadd.f32 0.0, %v3746
    %v3748 = vpop.f32.mrb[0].mxu0
    %3749 = vmatprep.mubr.bf16.mxu0 %v3596
    %3750 = vmatmul.mubr.bf16.gmra.mrb[0].mxu0 %v3595
    %v3751 = vpop.f32.mrb[0].mxu0
    %v3752 = vadd.f32 0.0, %v3751
    %v3753 = vpop.f32.mrb[0].mxu0
    %v3754 = vpop.f32.mrb[0].mxu0
    %v3755 = vadd.f32 0.0, %v3754
    %v3756 = vpop.f32.mrb[0].mxu0
    %3757 = vdwg.mxu0
    %3758 = vmatprep.subr.bf16.mxu0 0
    %3759 = vmatpush1.bf16.msra.mxu0 %v899
    %3760 = vmatprep.subr.bf16.mxu0 0
    %3761 = vmatpush1.bf16.msra.mxu0 %v902
    %3762 = vmatprep.subr.bf16.mxu0 0
    %3763 = vmatpush1.bf16.msra.mxu0 %v905
    %3764 = vmatprep.subr.bf16.mxu0 0
    %3765 = vmatpush1.bf16.msra.mxu0 %v908
    %3766 = vmatprep.subr.bf16.mxu0 0
    %3767 = vmatpush1.bf16.msra.mxu0 %v911
    %3768 = vmatprep.subr.bf16.mxu0 0
    %3769 = vmatpush1.bf16.msra.mxu0 %v914
    %3770 = vmatprep.subr.bf16.mxu0 0
    %3771 = vmatpush1.bf16.msra.mxu0 %v917
    %3772 = vmatprep.subr.bf16.mxu0 0
    %3773 = vmatpush1.bf16.msra.mxu0 %v920
    %3774 = vmatprep.subr.bf16.mxu0 0
    %3775 = vmatpush1.bf16.msra.mxu0 %v923
    %3776 = vmatprep.subr.bf16.mxu0 0
    %3777 = vmatpush1.bf16.msra.mxu0 %v926
    %3778 = vmatprep.subr.bf16.mxu0 0
    %3779 = vmatpush1.bf16.msra.mxu0 %v929
    %3780 = vmatprep.subr.bf16.mxu0 0
    %3781 = vmatpush1.bf16.msra.mxu0 %v932
    %3782 = vmatprep.subr.bf16.mxu0 0
    %3783 = vmatpush1.bf16.msra.mxu0 %v935
    %3784 = vmatprep.subr.bf16.mxu0 0
    %3785 = vmatpush1.bf16.msra.mxu0 %v938
    %3786 = vmatprep.subr.bf16.mxu0 0
    %3787 = vmatpush1.bf16.msra.mxu0 %v941
    %3788 = vmatprep.subr.bf16.mxu0 0
    %3789 = vmatpush1.bf16.msra.mxu0 %v944
    %3790 = vmatprep.mubr.bf16.mxu0 %v2534
    %3791 = vmatmul.mubr.bf16.gmra.mrb[0].mxu0 %v2533
    %v3792 = vpop.f32.mrb[0].mxu0
    %v3793 = vadd.f32 %v3632, %v3792
    %v3794 = vpop.f32.mrb[0].mxu0
    %v3795 = vpop.f32.mrb[0].mxu0
    %v3796 = vadd.f32 %v3635, %v3795
    %v3797 = vpop.f32.mrb[0].mxu0
    %3798 = vmatprep.mubr.bf16.mxu0 %v2536
    %3799 = vmatmul.mubr.bf16.gmra.mrb[0].mxu0 %v2535
    %v3800 = vpop.f32.mrb[0].mxu0
    %v3801 = vadd.f32 %v3640, %v3800
    %v3802 = vpop.f32.mrb[0].mxu0
    %v3803 = vpop.f32.mrb[0].mxu0
    %v3804 = vadd.f32 %v3643, %v3803
    %v3805 = vpop.f32.mrb[0].mxu0
    %3806 = vmatprep.mubr.bf16.mxu0 %v2538
    %3807 = vmatmul.mubr.bf16.gmra.mrb[0].mxu0 %v2537
    %v3808 = vpop.f32.mrb[0].mxu0
    %v3809 = vadd.f32 %v3648, %v3808
    %v3810 = vpop.f32.mrb[0].mxu0
    %v3811 = vpop.f32.mrb[0].mxu0
    %v3812 = vadd.f32 %v3651, %v3811
    %v3813 = vpop.f32.mrb[0].mxu0
    %3814 = vmatprep.mubr.bf16.mxu0 %v2540
    %3815 = vmatmul.mubr.bf16.gmra.mrb[0].mxu0 %v2539
    %v3816 = vpop.f32.mrb[0].mxu0
    %v3817 = vadd.f32 %v3656, %v3816
    %v3818 = vpop.f32.mrb[0].mxu0
    %v3819 = vpop.f32.mrb[0].mxu0
    %v3820 = vadd.f32 %v3659, %v3819
    %v3821 = vpop.f32.mrb[0].mxu0
    %3822 = vmatprep.mubr.bf16.mxu0 %v2542
    %3823 = vmatmul.mubr.bf16.gmra.mrb[0].mxu0 %v2541
    %v3824 = vpop.f32.mrb[0].mxu0
    %v3825 = vadd.f32 %v3664, %v3824
    %v3826 = vpop.f32.mrb[0].mxu0
    %v3827 = vpop.f32.mrb[0].mxu0
    %v3828 = vadd.f32 %v3667, %v3827
    %v3829 = vpop.f32.mrb[0].mxu0
    %3830 = vmatprep.mubr.bf16.mxu0 %v2544
    %3831 = vmatmul.mubr.bf16.gmra.mrb[0].mxu0 %v2543
    %v3832 = vpop.f32.mrb[0].mxu0
    %v3833 = vadd.f32 %v3672, %v3832
    %v3834 = vpop.f32.mrb[0].mxu0
    %v3835 = vpop.f32.mrb[0].mxu0
    %v3836 = vadd.f32 %v3675, %v3835
    %v3837 = vpop.f32.mrb[0].mxu0
    %3838 = vmatprep.mubr.bf16.mxu0 %v2546
    %3839 = vmatmul.mubr.bf16.gmra.mrb[0].mxu0 %v2545
    %v3840 = vpop.f32.mrb[0].mxu0
    %v3841 = vadd.f32 %v3680, %v3840
    %v3842 = vpop.f32.mrb[0].mxu0
    %v3843 = vpop.f32.mrb[0].mxu0
    %v3844 = vadd.f32 %v3683, %v3843
    %v3845 = vpop.f32.mrb[0].mxu0
    %3846 = vmatprep.mubr.bf16.mxu0 %v2548
    %3847 = vmatmul.mubr.bf16.gmra.mrb[0].mxu0 %v2547
    %v3848 = vpop.f32.mrb[0].mxu0
    %v3849 = vadd.f32 %v3688, %v3848
    %v3850 = vpop.f32.mrb[0].mxu0
    %v3851 = vpop.f32.mrb[0].mxu0
    %v3852 = vadd.f32 %v3691, %v3851
    %v3853 = vpop.f32.mrb[0].mxu0
    %3854 = vmatprep.mubr.bf16.mxu0 %v2550
    %3855 = vmatmul.mubr.bf16.gmra.mrb[0].mxu0 %v2549
    %v3856 = vpop.f32.mrb[0].mxu0
    %v3857 = vadd.f32 %v3696, %v3856
    %v3858 = vpop.f32.mrb[0].mxu0
    %v3859 = vpop.f32.mrb[0].mxu0
    %v3860 = vadd.f32 %v3699, %v3859
    %v3861 = vpop.f32.mrb[0].mxu0
    %3862 = vmatprep.mubr.bf16.mxu0 %v2552
    %3863 = vmatmul.mubr.bf16.gmra.mrb[0].mxu0 %v2551
    %v3864 = vpop.f32.mrb[0].mxu0
    %v3865 = vadd.f32 %v3704, %v3864
    %v3866 = vpop.f32.mrb[0].mxu0
    %v3867 = vpop.f32.mrb[0].mxu0
    %v3868 = vadd.f32 %v3707, %v3867
    %v3869 = vpop.f32.mrb[0].mxu0
    %3870 = vmatprep.mubr.bf16.mxu0 %v2554
    %3871 = vmatmul.mubr.bf16.gmra.mrb[0].mxu0 %v2553
    %v3872 = vpop.f32.mrb[0].mxu0
    %v3873 = vadd.f32 %v3712, %v3872
    %v3874 = vpop.f32.mrb[0].mxu0
    %v3875 = vpop.f32.mrb[0].mxu0
    %v3876 = vadd.f32 %v3715, %v3875
    %v3877 = vpop.f32.mrb[0].mxu0
    %3878 = vmatprep.mubr.bf16.mxu0 %v2556
    %3879 = vmatmul.mubr.bf16.gmra.mrb[0].mxu0 %v2555
    %v3880 = vpop.f32.mrb[0].mxu0
    %v3881 = vadd.f32 %v3720, %v3880
    %v3882 = vpop.f32.mrb[0].mxu0
    %v3883 = vpop.f32.mrb[0].mxu0
    %v3884 = vadd.f32 %v3723, %v3883
    %v3885 = vpop.f32.mrb[0].mxu0
    %3886 = vmatprep.mubr.bf16.mxu0 %v2558
    %3887 = vmatmul.mubr.bf16.gmra.mrb[0].mxu0 %v2557
    %v3888 = vpop.f32.mrb[0].mxu0
    %v3889 = vadd.f32 %v3728, %v3888
    %v3890 = vpop.f32.mrb[0].mxu0
    %v3891 = vpop.f32.mrb[0].mxu0
    %v3892 = vadd.f32 %v3731, %v3891
    %v3893 = vpop.f32.mrb[0].mxu0
    %3894 = vmatprep.mubr.bf16.mxu0 %v2560
    %3895 = vmatmul.mubr.bf16.gmra.mrb[0].mxu0 %v2559
    %v3896 = vpop.f32.mrb[0].mxu0
    %v3897 = vadd.f32 %v3736, %v3896
    %v3898 = vpop.f32.mrb[0].mxu0
    %v3899 = vpop.f32.mrb[0].mxu0
    %v3900 = vadd.f32 %v3739, %v3899
    %v3901 = vpop.f32.mrb[0].mxu0
    %3902 = vmatprep.mubr.bf16.mxu0 %v2562
    %3903 = vmatmul.mubr.bf16.gmra.mrb[0].mxu0 %v2561
    %v3904 = vpop.f32.mrb[0].mxu0
    %v3905 = vadd.f32 %v3744, %v3904
    %v3906 = vpop.f32.mrb[0].mxu0
    %v3907 = vpop.f32.mrb[0].mxu0
    %v3908 = vadd.f32 %v3747, %v3907
    %v3909 = vpop.f32.mrb[0].mxu0
    %3910 = vmatprep.mubr.bf16.mxu0 %v2564
    %3911 = vmatmul.mubr.bf16.gmra.mrb[0].mxu0 %v2563
    %v3912 = vpop.f32.mrb[0].mxu0
    %v3913 = vadd.f32 %v3752, %v3912
    %v3914 = vpop.f32.mrb[0].mxu0
    %v3915 = vpop.f32.mrb[0].mxu0
    %v3916 = vadd.f32 %v3755, %v3915
    %v3917 = vpop.f32.mrb[0].mxu0
    %3918 = vdwg.mxu0
    %3919 = vset.pattern.permute.xlu0 5
    %3920 = vperm.xlu0 %3919, %v1149
    %v3921 = vpop.permute.xlu0 %3920
    %3923 = vset.pattern.permute.xlu0 5
    %3924 = vperm.xlu0 %3923, %v1150
    %v3925 = vpop.permute.xlu0 %3924
    %3927 = vset.pattern.permute.xlu0 5
    %3928 = vperm.xlu0 %3927, %v1151
    %v3929 = vpop.permute.xlu0 %3928
    %3931 = vset.pattern.permute.xlu0 5
    %3932 = vperm.xlu0 %3931, %v1152
    %v3933 = vpop.permute.xlu0 %3932
    %3935 = vset.pattern.permute.xlu0 5
    %3936 = vperm.xlu0 %3935, %v1153
    %v3937 = vpop.permute.xlu0 %3936
    %3939 = vset.pattern.permute.xlu0 5
    %3940 = vperm.xlu0 %3939, %v1154
    %v3941 = vpop.permute.xlu0 %3940
    %3943 = vset.pattern.permute.xlu0 5
    %3944 = vperm.xlu0 %3943, %v1155
    %v3945 = vpop.permute.xlu0 %3944
    %3947 = vset.pattern.permute.xlu0 5
    %3948 = vperm.xlu0 %3947, %v1156
    %v3949 = vpop.permute.xlu0 %3948
    %3951 = vset.pattern.permute.xlu0 5
    %3952 = vperm.xlu0 %3951, %v1157
    %v3953 = vpop.permute.xlu0 %3952
    %3955 = vset.pattern.permute.xlu0 5
    %3956 = vperm.xlu0 %3955, %v1158
    %v3957 = vpop.permute.xlu0 %3956
    %3959 = vset.pattern.permute.xlu0 5
    %3960 = vperm.xlu0 %3959, %v1159
    %v3961 = vpop.permute.xlu0 %3960
    %3963 = vset.pattern.permute.xlu0 5
    %3964 = vperm.xlu0 %3963, %v1160
    %v3965 = vpop.permute.xlu0 %3964
    %3967 = vset.pattern.permute.xlu0 5
    %3968 = vperm.xlu0 %3967, %v1161
    %v3969 = vpop.permute.xlu0 %3968
    %3971 = vset.pattern.permute.xlu0 5
    %3972 = vperm.xlu0 %3971, %v1162
    %v3973 = vpop.permute.xlu0 %3972
    %3975 = vset.pattern.permute.xlu0 5
    %3976 = vperm.xlu0 %3975, %v1163
    %v3977 = vpop.permute.xlu0 %3976
    %3979 = vset.pattern.permute.xlu0 5
    %3980 = vperm.xlu0 %3979, %v1164
    %v3981 = vpop.permute.xlu0 %3980
    %3983 = vset.pattern.permute.xlu0 5
    %3984 = vperm.xlu0 %3983, %v1165
    %v3985 = vpop.permute.xlu0 %3984
    %3987 = vset.pattern.permute.xlu0 5
    %3988 = vperm.xlu0 %3987, %v1166
    %v3989 = vpop.permute.xlu0 %3988
    %3991 = vset.pattern.permute.xlu0 5
    %3992 = vperm.xlu0 %3991, %v1167
    %v3993 = vpop.permute.xlu0 %3992
    %3995 = vset.pattern.permute.xlu0 5
    %3996 = vperm.xlu0 %3995, %v1168
    %v3997 = vpop.permute.xlu0 %3996
    %3999 = vset.pattern.permute.xlu0 5
    %4000 = vperm.xlu0 %3999, %v1169
    %v4001 = vpop.permute.xlu0 %4000
    %4003 = vset.pattern.permute.xlu0 5
    %4004 = vperm.xlu0 %4003, %v1170
    %v4005 = vpop.permute.xlu0 %4004
    %4007 = vset.pattern.permute.xlu0 5
    %4008 = vperm.xlu0 %4007, %v1171
    %v4009 = vpop.permute.xlu0 %4008
    %4011 = vset.pattern.permute.xlu0 5
    %4012 = vperm.xlu0 %4011, %v1172
    %v4013 = vpop.permute.xlu0 %4012
    %4015 = vset.pattern.permute.xlu0 5
    %4016 = vperm.xlu0 %4015, %v1173
    %v4017 = vpop.permute.xlu0 %4016
    %4019 = vset.pattern.permute.xlu0 5
    %4020 = vperm.xlu0 %4019, %v1174
    %v4021 = vpop.permute.xlu0 %4020
    %4023 = vset.pattern.permute.xlu0 5
    %4024 = vperm.xlu0 %4023, %v1175
    %v4025 = vpop.permute.xlu0 %4024
    %4027 = vset.pattern.permute.xlu0 5
    %4028 = vperm.xlu0 %4027, %v1176
    %v4029 = vpop.permute.xlu0 %4028
    %4031 = vset.pattern.permute.xlu0 5
    %4032 = vperm.xlu0 %4031, %v1177
    %v4033 = vpop.permute.xlu0 %4032
    %4035 = vset.pattern.permute.xlu0 5
    %4036 = vperm.xlu0 %4035, %v1178
    %v4037 = vpop.permute.xlu0 %4036
    %4039 = vset.pattern.permute.xlu0 5
    %4040 = vperm.xlu0 %4039, %v1179
    %v4041 = vpop.permute.xlu0 %4040
    %4043 = vset.pattern.permute.xlu0 5
    %4044 = vperm.xlu0 %4043, %v1180
    %v4045 = vpop.permute.xlu0 %4044
    %v4047 = vlaneseq
    %v4048 = vshrl.u32 %v4047, 7
    %v4049 = vsub.s32 2, %v4048
    %v4050 = vrot.slane %v995, %v4049
    %v4051 = vlaneseq
    %v4052 = vshrl.u32 %v4051, 7
    %v4053 = vsub.s32 2, %v4052
    %v4054 = vrot.slane %v1027, %v4053
    %v4055 = vadd.f32 %v3921, %v4050
    %v4056 = vadd.f32 %v3921, %v4054
    %v4057 = vadd.f32 %v3925, %v4050
    %v4058 = vadd.f32 %v3925, %v4054
    %v4059 = vadd.f32 %v3929, %v4050
    %v4060 = vadd.f32 %v3929, %v4054
    %v4061 = vadd.f32 %v3933, %v4050
    %v4062 = vadd.f32 %v3933, %v4054
    %v4063 = vadd.f32 %v3937, %v4050
    %v4064 = vadd.f32 %v3937, %v4054
    %v4065 = vadd.f32 %v3941, %v4050
    %v4066 = vadd.f32 %v3941, %v4054
    %v4067 = vadd.f32 %v3945, %v4050
    %v4068 = vadd.f32 %v3945, %v4054
    %v4069 = vadd.f32 %v3949, %v4050
    %v4070 = vadd.f32 %v3949, %v4054
    %v4071 = vadd.f32 %v3953, %v4050
    %v4072 = vadd.f32 %v3953, %v4054
    %v4073 = vadd.f32 %v3957, %v4050
    %v4074 = vadd.f32 %v3957, %v4054
    %v4075 = vadd.f32 %v3961, %v4050
    %v4076 = vadd.f32 %v3961, %v4054
    %v4077 = vadd.f32 %v3965, %v4050
    %v4078 = vadd.f32 %v3965, %v4054
    %v4079 = vadd.f32 %v3969, %v4050
    %v4080 = vadd.f32 %v3969, %v4054
    %v4081 = vadd.f32 %v3973, %v4050
    %v4082 = vadd.f32 %v3973, %v4054
    %v4083 = vadd.f32 %v3977, %v4050
    %v4084 = vadd.f32 %v3977, %v4054
    %v4085 = vadd.f32 %v3981, %v4050
    %v4086 = vadd.f32 %v3981, %v4054
    %v4087 = vadd.f32 %v3985, %v4050
    %v4088 = vadd.f32 %v3985, %v4054
    %v4089 = vadd.f32 %v3989, %v4050
    %v4090 = vadd.f32 %v3989, %v4054
    %v4091 = vadd.f32 %v3993, %v4050
    %v4092 = vadd.f32 %v3993, %v4054
    %v4093 = vadd.f32 %v3997, %v4050
    %v4094 = vadd.f32 %v3997, %v4054
    %v4095 = vadd.f32 %v4001, %v4050
    %v4096 = vadd.f32 %v4001, %v4054
    %v4097 = vadd.f32 %v4005, %v4050
    %v4098 = vadd.f32 %v4005, %v4054
    %v4099 = vadd.f32 %v4009, %v4050
    %v4100 = vadd.f32 %v4009, %v4054
    %v4101 = vadd.f32 %v4013, %v4050
    %v4102 = vadd.f32 %v4013, %v4054
    %v4103 = vadd.f32 %v4017, %v4050
    %v4104 = vadd.f32 %v4017, %v4054
    %v4105 = vadd.f32 %v4021, %v4050
    %v4106 = vadd.f32 %v4021, %v4054
    %v4107 = vadd.f32 %v4025, %v4050
    %v4108 = vadd.f32 %v4025, %v4054
    %v4109 = vadd.f32 %v4029, %v4050
    %v4110 = vadd.f32 %v4029, %v4054
    %v4111 = vadd.f32 %v4033, %v4050
    %v4112 = vadd.f32 %v4033, %v4054
    %v4113 = vadd.f32 %v4037, %v4050
    %v4114 = vadd.f32 %v4037, %v4054
    %v4115 = vadd.f32 %v4041, %v4050
    %v4116 = vadd.f32 %v4041, %v4054
    %v4117 = vadd.f32 %v4045, %v4050
    %v4118 = vadd.f32 %v4045, %v4054
    %v4119 = vmul.f32 %v4055, 0.2
    %v4120 = vmul.f32 %v4056, 0.2
    %v4121 = vmul.f32 %v4057, 0.2
    %v4122 = vmul.f32 %v4058, 0.2
    %v4123 = vmul.f32 %v4059, 0.2
    %v4124 = vmul.f32 %v4060, 0.2
    %v4125 = vmul.f32 %v4061, 0.2
    %v4126 = vmul.f32 %v4062, 0.2
    %v4127 = vmul.f32 %v4063, 0.2
    %v4128 = vmul.f32 %v4064, 0.2
    %v4129 = vmul.f32 %v4065, 0.2
    %v4130 = vmul.f32 %v4066, 0.2
    %v4131 = vmul.f32 %v4067, 0.2
    %v4132 = vmul.f32 %v4068, 0.2
    %v4133 = vmul.f32 %v4069, 0.2
    %v4134 = vmul.f32 %v4070, 0.2
    %v4135 = vmul.f32 %v4071, 0.2
    %v4136 = vmul.f32 %v4072, 0.2
    %v4137 = vmul.f32 %v4073, 0.2
    %v4138 = vmul.f32 %v4074, 0.2
    %v4139 = vmul.f32 %v4075, 0.2
    %v4140 = vmul.f32 %v4076, 0.2
    %v4141 = vmul.f32 %v4077, 0.2
    %v4142 = vmul.f32 %v4078, 0.2
    %v4143 = vmul.f32 %v4079, 0.2
    %v4144 = vmul.f32 %v4080, 0.2
    %v4145 = vmul.f32 %v4081, 0.2
    %v4146 = vmul.f32 %v4082, 0.2
    %v4147 = vmul.f32 %v4083, 0.2
    %v4148 = vmul.f32 %v4084, 0.2
    %v4149 = vmul.f32 %v4085, 0.2
    %v4150 = vmul.f32 %v4086, 0.2
    %v4151 = vmul.f32 %v4087, 0.2
    %v4152 = vmul.f32 %v4088, 0.2
    %v4153 = vmul.f32 %v4089, 0.2
    %v4154 = vmul.f32 %v4090, 0.2
    %v4155 = vmul.f32 %v4091, 0.2
    %v4156 = vmul.f32 %v4092, 0.2
    %v4157 = vmul.f32 %v4093, 0.2
    %v4158 = vmul.f32 %v4094, 0.2
    %v4159 = vmul.f32 %v4095, 0.2
    %v4160 = vmul.f32 %v4096, 0.2
    %v4161 = vmul.f32 %v4097, 0.2
    %v4162 = vmul.f32 %v4098, 0.2
    %v4163 = vmul.f32 %v4099, 0.2
    %v4164 = vmul.f32 %v4100, 0.2
    %v4165 = vmul.f32 %v4101, 0.2
    %v4166 = vmul.f32 %v4102, 0.2
    %v4167 = vmul.f32 %v4103, 0.2
    %v4168 = vmul.f32 %v4104, 0.2
    %v4169 = vmul.f32 %v4105, 0.2
    %v4170 = vmul.f32 %v4106, 0.2
    %v4171 = vmul.f32 %v4107, 0.2
    %v4172 = vmul.f32 %v4108, 0.2
    %v4173 = vmul.f32 %v4109, 0.2
    %v4174 = vmul.f32 %v4110, 0.2
    %v4175 = vmul.f32 %v4111, 0.2
    %v4176 = vmul.f32 %v4112, 0.2
    %v4177 = vmul.f32 %v4113, 0.2
    %v4178 = vmul.f32 %v4114, 0.2
    %v4179 = vmul.f32 %v4115, 0.2
    %v4180 = vmul.f32 %v4116, 0.2
    %v4181 = vmul.f32 %v4117, 0.2
    %v4182 = vmul.f32 %v4118, 0.2
    %v4183 = vmax.f32 %v4055, %v4119
    %v4184 = vmax.f32 %v4056, %v4120
    %v4185 = vmax.f32 %v4057, %v4121
    %v4186 = vmax.f32 %v4058, %v4122
    %v4187 = vmax.f32 %v4059, %v4123
    %v4188 = vmax.f32 %v4060, %v4124
    %v4189 = vmax.f32 %v4061, %v4125
    %v4190 = vmax.f32 %v4062, %v4126
    %v4191 = vmax.f32 %v4063, %v4127
    %v4192 = vmax.f32 %v4064, %v4128
    %v4193 = vmax.f32 %v4065, %v4129
    %v4194 = vmax.f32 %v4066, %v4130
    %v4195 = vmax.f32 %v4067, %v4131
    %v4196 = vmax.f32 %v4068, %v4132
    %v4197 = vmax.f32 %v4069, %v4133
    %v4198 = vmax.f32 %v4070, %v4134
    %v4199 = vmax.f32 %v4071, %v4135
    %v4200 = vmax.f32 %v4072, %v4136
    %v4201 = vmax.f32 %v4073, %v4137
    %v4202 = vmax.f32 %v4074, %v4138
    %v4203 = vmax.f32 %v4075, %v4139
    %v4204 = vmax.f32 %v4076, %v4140
    %v4205 = vmax.f32 %v4077, %v4141
    %v4206 = vmax.f32 %v4078, %v4142
    %v4207 = vmax.f32 %v4079, %v4143
    %v4208 = vmax.f32 %v4080, %v4144
    %v4209 = vmax.f32 %v4081, %v4145
    %v4210 = vmax.f32 %v4082, %v4146
    %v4211 = vmax.f32 %v4083, %v4147
    %v4212 = vmax.f32 %v4084, %v4148
    %v4213 = vmax.f32 %v4085, %v4149
    %v4214 = vmax.f32 %v4086, %v4150
    %v4215 = vmax.f32 %v4087, %v4151
    %v4216 = vmax.f32 %v4088, %v4152
    %v4217 = vmax.f32 %v4089, %v4153
    %v4218 = vmax.f32 %v4090, %v4154
    %v4219 = vmax.f32 %v4091, %v4155
    %v4220 = vmax.f32 %v4092, %v4156
    %v4221 = vmax.f32 %v4093, %v4157
    %v4222 = vmax.f32 %v4094, %v4158
    %v4223 = vmax.f32 %v4095, %v4159
    %v4224 = vmax.f32 %v4096, %v4160
    %v4225 = vmax.f32 %v4097, %v4161
    %v4226 = vmax.f32 %v4098, %v4162
    %v4227 = vmax.f32 %v4099, %v4163
    %v4228 = vmax.f32 %v4100, %v4164
    %v4229 = vmax.f32 %v4101, %v4165
    %v4230 = vmax.f32 %v4102, %v4166
    %v4231 = vmax.f32 %v4103, %v4167
    %v4232 = vmax.f32 %v4104, %v4168
    %v4233 = vmax.f32 %v4105, %v4169
    %v4234 = vmax.f32 %v4106, %v4170
    %v4235 = vmax.f32 %v4107, %v4171
    %v4236 = vmax.f32 %v4108, %v4172
    %v4237 = vmax.f32 %v4109, %v4173
    %v4238 = vmax.f32 %v4110, %v4174
    %v4239 = vmax.f32 %v4111, %v4175
    %v4240 = vmax.f32 %v4112, %v4176
    %v4241 = vmax.f32 %v4113, %v4177
    %v4242 = vmax.f32 %v4114, %v4178
    %v4243 = vmax.f32 %v4115, %v4179
    %v4244 = vmax.f32 %v4116, %v4180
    %v4245 = vmax.f32 %v4117, %v4181
    %v4246 = vmax.f32 %v4118, %v4182
    %v4247 = vsel %vm1797, %v4183, -1e+30
    %v4248 = vsel %vm1798, %v4184, -1e+30
    %v4249 = vsel %vm1799, %v4185, -1e+30
    %v4250 = vsel %vm1800, %v4186, -1e+30
    %v4251 = vsel %vm1801, %v4187, -1e+30
    %v4252 = vsel %vm1802, %v4188, -1e+30
    %v4253 = vsel %vm1803, %v4189, -1e+30
    %v4254 = vsel %vm1804, %v4190, -1e+30
    %v4255 = vsel %vm1805, %v4191, -1e+30
    %v4256 = vsel %vm1806, %v4192, -1e+30
    %v4257 = vsel %vm1807, %v4193, -1e+30
    %v4258 = vsel %vm1808, %v4194, -1e+30
    %v4259 = vsel %vm1809, %v4195, -1e+30
    %v4260 = vsel %vm1810, %v4196, -1e+30
    %v4261 = vsel %vm1811, %v4197, -1e+30
    %v4262 = vsel %vm1812, %v4198, -1e+30
    %v4263 = vsel %vm1813, %v4199, -1e+30
    %v4264 = vsel %vm1814, %v4200, -1e+30
    %v4265 = vsel %vm1815, %v4201, -1e+30
    %v4266 = vsel %vm1816, %v4202, -1e+30
    %v4267 = vsel %vm1817, %v4203, -1e+30
    %v4268 = vsel %vm1818, %v4204, -1e+30
    %v4269 = vsel %vm1819, %v4205, -1e+30
    %v4270 = vsel %vm1820, %v4206, -1e+30
    %v4271 = vsel %vm1821, %v4207, -1e+30
    %v4272 = vsel %vm1822, %v4208, -1e+30
    %v4273 = vsel %vm1823, %v4209, -1e+30
    %v4274 = vsel %vm1824, %v4210, -1e+30
    %v4275 = vsel %vm1825, %v4211, -1e+30
    %v4276 = vsel %vm1826, %v4212, -1e+30
    %v4277 = vsel %vm1827, %v4213, -1e+30
    %v4278 = vsel %vm1828, %v4214, -1e+30
    %v4279 = vsel %vm1829, %v4215, -1e+30
    %v4280 = vsel %vm1830, %v4216, -1e+30
    %v4281 = vsel %vm1831, %v4217, -1e+30
    %v4282 = vsel %vm1832, %v4218, -1e+30
    %v4283 = vsel %vm1833, %v4219, -1e+30
    %v4284 = vsel %vm1834, %v4220, -1e+30
    %v4285 = vsel %vm1835, %v4221, -1e+30
    %v4286 = vsel %vm1836, %v4222, -1e+30
    %v4287 = vsel %vm1837, %v4223, -1e+30
    %v4288 = vsel %vm1838, %v4224, -1e+30
    %v4289 = vsel %vm1839, %v4225, -1e+30
    %v4290 = vsel %vm1840, %v4226, -1e+30
    %v4291 = vsel %vm1841, %v4227, -1e+30
    %v4292 = vsel %vm1842, %v4228, -1e+30
    %v4293 = vsel %vm1843, %v4229, -1e+30
    %v4294 = vsel %vm1844, %v4230, -1e+30
    %v4295 = vsel %vm1845, %v4231, -1e+30
    %v4296 = vsel %vm1846, %v4232, -1e+30
    %v4297 = vsel %vm1847, %v4233, -1e+30
    %v4298 = vsel %vm1848, %v4234, -1e+30
    %v4299 = vsel %vm1849, %v4235, -1e+30
    %v4300 = vsel %vm1850, %v4236, -1e+30
    %v4301 = vsel %vm1851, %v4237, -1e+30
    %v4302 = vsel %vm1852, %v4238, -1e+30
    %v4303 = vsel %vm1853, %v4239, -1e+30
    %v4304 = vsel %vm1854, %v4240, -1e+30
    %v4305 = vsel %vm1855, %v4241, -1e+30
    %v4306 = vsel %vm1856, %v4242, -1e+30
    %v4307 = vsel %vm1857, %v4243, -1e+30
    %v4308 = vsel %vm1858, %v4244, -1e+30
    %v4309 = vsel %vm1859, %v4245, -1e+30
    %v4310 = vsel %vm1860, %v4246, -1e+30
    %v4311 = vmax.f32 %v4247, %v4248
    %4312 = vmax.xlane.f32.xlu0 %v4311
    %v4313 = vpop.xlane.xlu0 %4312
    %v4314 = vmax.f32 %v4249, %v4250
    %4315 = vmax.xlane.f32.xlu0 %v4314
    %v4316 = vpop.xlane.xlu0 %4315
    %v4317 = vmax.f32 %v4251, %v4252
    %4318 = vmax.xlane.f32.xlu0 %v4317
    %v4319 = vpop.xlane.xlu0 %4318
    %v4320 = vmax.f32 %v4253, %v4254
    %4321 = vmax.xlane.f32.xlu0 %v4320
    %v4322 = vpop.xlane.xlu0 %4321
    %v4323 = vmax.f32 %v4255, %v4256
    %4324 = vmax.xlane.f32.xlu0 %v4323
    %v4325 = vpop.xlane.xlu0 %4324
    %v4326 = vmax.f32 %v4257, %v4258
    %4327 = vmax.xlane.f32.xlu0 %v4326
    %v4328 = vpop.xlane.xlu0 %4327
    %v4329 = vmax.f32 %v4259, %v4260
    %4330 = vmax.xlane.f32.xlu0 %v4329
    %v4331 = vpop.xlane.xlu0 %4330
    %v4332 = vmax.f32 %v4261, %v4262
    %4333 = vmax.xlane.f32.xlu0 %v4332
    %v4334 = vpop.xlane.xlu0 %4333
    %v4335 = vmax.f32 %v4263, %v4264
    %4336 = vmax.xlane.f32.xlu0 %v4335
    %v4337 = vpop.xlane.xlu0 %4336
    %v4338 = vmax.f32 %v4265, %v4266
    %4339 = vmax.xlane.f32.xlu0 %v4338
    %v4340 = vpop.xlane.xlu0 %4339
    %v4341 = vmax.f32 %v4267, %v4268
    %4342 = vmax.xlane.f32.xlu0 %v4341
    %v4343 = vpop.xlane.xlu0 %4342
    %v4344 = vmax.f32 %v4269, %v4270
    %4345 = vmax.xlane.f32.xlu0 %v4344
    %v4346 = vpop.xlane.xlu0 %4345
    %v4347 = vmax.f32 %v4271, %v4272
    %4348 = vmax.xlane.f32.xlu0 %v4347
    %v4349 = vpop.xlane.xlu0 %4348
    %v4350 = vmax.f32 %v4273, %v4274
    %4351 = vmax.xlane.f32.xlu0 %v4350
    %v4352 = vpop.xlane.xlu0 %4351
    %v4353 = vmax.f32 %v4275, %v4276
    %4354 = vmax.xlane.f32.xlu0 %v4353
    %v4355 = vpop.xlane.xlu0 %4354
    %v4356 = vmax.f32 %v4277, %v4278
    %4357 = vmax.xlane.f32.xlu0 %v4356
    %v4358 = vpop.xlane.xlu0 %4357
    %v4359 = vmax.f32 %v4279, %v4280
    %4360 = vmax.xlane.f32.xlu0 %v4359
    %v4361 = vpop.xlane.xlu0 %4360
    %v4362 = vmax.f32 %v4281, %v4282
    %4363 = vmax.xlane.f32.xlu0 %v4362
    %v4364 = vpop.xlane.xlu0 %4363
    %v4365 = vmax.f32 %v4283, %v4284
    %4366 = vmax.xlane.f32.xlu0 %v4365
    %v4367 = vpop.xlane.xlu0 %4366
    %v4368 = vmax.f32 %v4285, %v4286
    %4369 = vmax.xlane.f32.xlu0 %v4368
    %v4370 = vpop.xlane.xlu0 %4369
    %v4371 = vmax.f32 %v4287, %v4288
    %4372 = vmax.xlane.f32.xlu0 %v4371
    %v4373 = vpop.xlane.xlu0 %4372
    %v4374 = vmax.f32 %v4289, %v4290
    %4375 = vmax.xlane.f32.xlu0 %v4374
    %v4376 = vpop.xlane.xlu0 %4375
    %v4377 = vmax.f32 %v4291, %v4292
    %4378 = vmax.xlane.f32.xlu0 %v4377
    %v4379 = vpop.xlane.xlu0 %4378
    %v4380 = vmax.f32 %v4293, %v4294
    %4381 = vmax.xlane.f32.xlu0 %v4380
    %v4382 = vpop.xlane.xlu0 %4381
    %v4383 = vmax.f32 %v4295, %v4296
    %4384 = vmax.xlane.f32.xlu0 %v4383
    %v4385 = vpop.xlane.xlu0 %4384
    %v4386 = vmax.f32 %v4297, %v4298
    %4387 = vmax.xlane.f32.xlu0 %v4386
    %v4388 = vpop.xlane.xlu0 %4387
    %v4389 = vmax.f32 %v4299, %v4300
    %4390 = vmax.xlane.f32.xlu0 %v4389
    %v4391 = vpop.xlane.xlu0 %4390
    %v4392 = vmax.f32 %v4301, %v4302
    %4393 = vmax.xlane.f32.xlu0 %v4392
    %v4394 = vpop.xlane.xlu0 %4393
    %v4395 = vmax.f32 %v4303, %v4304
    %4396 = vmax.xlane.f32.xlu0 %v4395
    %v4397 = vpop.xlane.xlu0 %4396
    %v4398 = vmax.f32 %v4305, %v4306
    %4399 = vmax.xlane.f32.xlu0 %v4398
    %v4400 = vpop.xlane.xlu0 %4399
    %v4401 = vmax.f32 %v4307, %v4308
    %4402 = vmax.xlane.f32.xlu0 %v4401
    %v4403 = vpop.xlane.xlu0 %4402
    %v4404 = vmax.f32 %v4309, %v4310
    %4405 = vmax.xlane.f32.xlu0 %v4404
    %v4406 = vpop.xlane.xlu0 %4405
    %v4407 = vsub.f32 %v4247, %v4313
    %v4408 = vsub.f32 %v4248, %v4313
    %v4409 = vsub.f32 %v4249, %v4316
    %v4410 = vsub.f32 %v4250, %v4316
    %v4411 = vsub.f32 %v4251, %v4319
    %v4412 = vsub.f32 %v4252, %v4319
    %v4413 = vsub.f32 %v4253, %v4322
    %v4414 = vsub.f32 %v4254, %v4322
    %v4415 = vsub.f32 %v4255, %v4325
    %v4416 = vsub.f32 %v4256, %v4325
    %v4417 = vsub.f32 %v4257, %v4328
    %v4418 = vsub.f32 %v4258, %v4328
    %v4419 = vsub.f32 %v4259, %v4331
    %v4420 = vsub.f32 %v4260, %v4331
    %v4421 = vsub.f32 %v4261, %v4334
    %v4422 = vsub.f32 %v4262, %v4334
    %v4423 = vsub.f32 %v4263, %v4337
    %v4424 = vsub.f32 %v4264, %v4337
    %v4425 = vsub.f32 %v4265, %v4340
    %v4426 = vsub.f32 %v4266, %v4340
    %v4427 = vsub.f32 %v4267, %v4343
    %v4428 = vsub.f32 %v4268, %v4343
    %v4429 = vsub.f32 %v4269, %v4346
    %v4430 = vsub.f32 %v4270, %v4346
    %v4431 = vsub.f32 %v4271, %v4349
    %v4432 = vsub.f32 %v4272, %v4349
    %v4433 = vsub.f32 %v4273, %v4352
    %v4434 = vsub.f32 %v4274, %v4352
    %v4435 = vsub.f32 %v4275, %v4355
    %v4436 = vsub.f32 %v4276, %v4355
    %v4437 = vsub.f32 %v4277, %v4358
    %v4438 = vsub.f32 %v4278, %v4358
    %v4439 = vsub.f32 %v4279, %v4361
    %v4440 = vsub.f32 %v4280, %v4361
    %v4441 = vsub.f32 %v4281, %v4364
    %v4442 = vsub.f32 %v4282, %v4364
    %v4443 = vsub.f32 %v4283, %v4367
    %v4444 = vsub.f32 %v4284, %v4367
    %v4445 = vsub.f32 %v4285, %v4370
    %v4446 = vsub.f32 %v4286, %v4370
    %v4447 = vsub.f32 %v4287, %v4373
    %v4448 = vsub.f32 %v4288, %v4373
    %v4449 = vsub.f32 %v4289, %v4376
    %v4450 = vsub.f32 %v4290, %v4376
    %v4451 = vsub.f32 %v4291, %v4379
    %v4452 = vsub.f32 %v4292, %v4379
    %v4453 = vsub.f32 %v4293, %v4382
    %v4454 = vsub.f32 %v4294, %v4382
    %v4455 = vsub.f32 %v4295, %v4385
    %v4456 = vsub.f32 %v4296, %v4385
    %v4457 = vsub.f32 %v4297, %v4388
    %v4458 = vsub.f32 %v4298, %v4388
    %v4459 = vsub.f32 %v4299, %v4391
    %v4460 = vsub.f32 %v4300, %v4391
    %v4461 = vsub.f32 %v4301, %v4394
    %v4462 = vsub.f32 %v4302, %v4394
    %v4463 = vsub.f32 %v4303, %v4397
    %v4464 = vsub.f32 %v4304, %v4397
    %v4465 = vsub.f32 %v4305, %v4400
    %v4466 = vsub.f32 %v4306, %v4400
    %v4467 = vsub.f32 %v4307, %v4403
    %v4468 = vsub.f32 %v4308, %v4403
    %v4469 = vsub.f32 %v4309, %v4406
    %v4470 = vsub.f32 %v4310, %v4406
    %v4471 = vmul.f32 %v4407, 1.442695
    %v4472 = vpow.pop %v4471
    %v4473 = vmul.f32 %v4408, 1.442695
    %v4474 = vpow.pop %v4473
    %v4475 = vmul.f32 %v4409, 1.442695
    %v4476 = vpow.pop %v4475
    %v4477 = vmul.f32 %v4410, 1.442695
    %v4478 = vpow.pop %v4477
    %v4479 = vmul.f32 %v4411, 1.442695
    %v4480 = vpow.pop %v4479
    %v4481 = vmul.f32 %v4412, 1.442695
    %v4482 = vpow.pop %v4481
    %v4483 = vmul.f32 %v4413, 1.442695
    %v4484 = vpow.pop %v4483
    %v4485 = vmul.f32 %v4414, 1.442695
    %v4486 = vpow.pop %v4485
    %v4487 = vmul.f32 %v4415, 1.442695
    %v4488 = vpow.pop %v4487
    %v4489 = vmul.f32 %v4416, 1.442695
    %v4490 = vpow.pop %v4489
    %v4491 = vmul.f32 %v4417, 1.442695
    %v4492 = vpow.pop %v4491
    %v4493 = vmul.f32 %v4418, 1.442695
    %v4494 = vpow.pop %v4493
    %v4495 = vmul.f32 %v4419, 1.442695
    %v4496 = vpow.pop %v4495
    %v4497 = vmul.f32 %v4420, 1.442695
    %v4498 = vpow.pop %v4497
    %v4499 = vmul.f32 %v4421, 1.442695
    %v4500 = vpow.pop %v4499
    %v4501 = vmul.f32 %v4422, 1.442695
    %v4502 = vpow.pop %v4501
    %v4503 = vmul.f32 %v4423, 1.442695
    %v4504 = vpow.pop %v4503
    %v4505 = vmul.f32 %v4424, 1.442695
    %v4506 = vpow.pop %v4505
    %v4507 = vmul.f32 %v4425, 1.442695
    %v4508 = vpow.pop %v4507
    %v4509 = vmul.f32 %v4426, 1.442695
    %v4510 = vpow.pop %v4509
    %v4511 = vmul.f32 %v4427, 1.442695
    %v4512 = vpow.pop %v4511
    %v4513 = vmul.f32 %v4428, 1.442695
    %v4514 = vpow.pop %v4513
    %v4515 = vmul.f32 %v4429, 1.442695
    %v4516 = vpow.pop %v4515
    %v4517 = vmul.f32 %v4430, 1.442695
    %v4518 = vpow.pop %v4517
    %v4519 = vmul.f32 %v4431, 1.442695
    %v4520 = vpow.pop %v4519
    %v4521 = vmul.f32 %v4432, 1.442695
    %v4522 = vpow.pop %v4521
    %v4523 = vmul.f32 %v4433, 1.442695
    %v4524 = vpow.pop %v4523
    %v4525 = vmul.f32 %v4434, 1.442695
    %v4526 = vpow.pop %v4525
    %v4527 = vmul.f32 %v4435, 1.442695
    %v4528 = vpow.pop %v4527
    %v4529 = vmul.f32 %v4436, 1.442695
    %v4530 = vpow.pop %v4529
    %v4531 = vmul.f32 %v4437, 1.442695
    %v4532 = vpow.pop %v4531
    %v4533 = vmul.f32 %v4438, 1.442695
    %v4534 = vpow.pop %v4533
    %v4535 = vmul.f32 %v4439, 1.442695
    %v4536 = vpow.pop %v4535
    %v4537 = vmul.f32 %v4440, 1.442695
    %v4538 = vpow.pop %v4537
    %v4539 = vmul.f32 %v4441, 1.442695
    %v4540 = vpow.pop %v4539
    %v4541 = vmul.f32 %v4442, 1.442695
    %v4542 = vpow.pop %v4541
    %v4543 = vmul.f32 %v4443, 1.442695
    %v4544 = vpow.pop %v4543
    %v4545 = vmul.f32 %v4444, 1.442695
    %v4546 = vpow.pop %v4545
    %v4547 = vmul.f32 %v4445, 1.442695
    %v4548 = vpow.pop %v4547
    %v4549 = vmul.f32 %v4446, 1.442695
    %v4550 = vpow.pop %v4549
    %v4551 = vmul.f32 %v4447, 1.442695
    %v4552 = vpow.pop %v4551
    %v4553 = vmul.f32 %v4448, 1.442695
    %v4554 = vpow.pop %v4553
    %v4555 = vmul.f32 %v4449, 1.442695
    %v4556 = vpow.pop %v4555
    %v4557 = vmul.f32 %v4450, 1.442695
    %v4558 = vpow.pop %v4557
    %v4559 = vmul.f32 %v4451, 1.442695
    %v4560 = vpow.pop %v4559
    %v4561 = vmul.f32 %v4452, 1.442695
    %v4562 = vpow.pop %v4561
    %v4563 = vmul.f32 %v4453, 1.442695
    %v4564 = vpow.pop %v4563
    %v4565 = vmul.f32 %v4454, 1.442695
    %v4566 = vpow.pop %v4565
    %v4567 = vmul.f32 %v4455, 1.442695
    %v4568 = vpow.pop %v4567
    %v4569 = vmul.f32 %v4456, 1.442695
    %v4570 = vpow.pop %v4569
    %v4571 = vmul.f32 %v4457, 1.442695
    %v4572 = vpow.pop %v4571
    %v4573 = vmul.f32 %v4458, 1.442695
    %v4574 = vpow.pop %v4573
    %v4575 = vmul.f32 %v4459, 1.442695
    %v4576 = vpow.pop %v4575
    %v4577 = vmul.f32 %v4460, 1.442695
    %v4578 = vpow.pop %v4577
    %v4579 = vmul.f32 %v4461, 1.442695
    %v4580 = vpow.pop %v4579
    %v4581 = vmul.f32 %v4462, 1.442695
    %v4582 = vpow.pop %v4581
    %v4583 = vmul.f32 %v4463, 1.442695
    %v4584 = vpow.pop %v4583
    %v4585 = vmul.f32 %v4464, 1.442695
    %v4586 = vpow.pop %v4585
    %v4587 = vmul.f32 %v4465, 1.442695
    %v4588 = vpow.pop %v4587
    %v4589 = vmul.f32 %v4466, 1.442695
    %v4590 = vpow.pop %v4589
    %v4591 = vmul.f32 %v4467, 1.442695
    %v4592 = vpow.pop %v4591
    %v4593 = vmul.f32 %v4468, 1.442695
    %v4594 = vpow.pop %v4593
    %v4595 = vmul.f32 %v4469, 1.442695
    %v4596 = vpow.pop %v4595
    %v4597 = vmul.f32 %v4470, 1.442695
    %v4598 = vpow.pop %v4597
    %v4599 = vsel %vm1797, %v4472, 0.0
    %v4600 = vsel %vm1798, %v4474, 0.0
    %v4601 = vsel %vm1799, %v4476, 0.0
    %v4602 = vsel %vm1800, %v4478, 0.0
    %v4603 = vsel %vm1801, %v4480, 0.0
    %v4604 = vsel %vm1802, %v4482, 0.0
    %v4605 = vsel %vm1803, %v4484, 0.0
    %v4606 = vsel %vm1804, %v4486, 0.0
    %v4607 = vsel %vm1805, %v4488, 0.0
    %v4608 = vsel %vm1806, %v4490, 0.0
    %v4609 = vsel %vm1807, %v4492, 0.0
    %v4610 = vsel %vm1808, %v4494, 0.0
    %v4611 = vsel %vm1809, %v4496, 0.0
    %v4612 = vsel %vm1810, %v4498, 0.0
    %v4613 = vsel %vm1811, %v4500, 0.0
    %v4614 = vsel %vm1812, %v4502, 0.0
    %v4615 = vsel %vm1813, %v4504, 0.0
    %v4616 = vsel %vm1814, %v4506, 0.0
    %v4617 = vsel %vm1815, %v4508, 0.0
    %v4618 = vsel %vm1816, %v4510, 0.0
    %v4619 = vsel %vm1817, %v4512, 0.0
    %v4620 = vsel %vm1818, %v4514, 0.0
    %v4621 = vsel %vm1819, %v4516, 0.0
    %v4622 = vsel %vm1820, %v4518, 0.0
    %v4623 = vsel %vm1821, %v4520, 0.0
    %v4624 = vsel %vm1822, %v4522, 0.0
    %v4625 = vsel %vm1823, %v4524, 0.0
    %v4626 = vsel %vm1824, %v4526, 0.0
    %v4627 = vsel %vm1825, %v4528, 0.0
    %v4628 = vsel %vm1826, %v4530, 0.0
    %v4629 = vsel %vm1827, %v4532, 0.0
    %v4630 = vsel %vm1828, %v4534, 0.0
    %v4631 = vsel %vm1829, %v4536, 0.0
    %v4632 = vsel %vm1830, %v4538, 0.0
    %v4633 = vsel %vm1831, %v4540, 0.0
    %v4634 = vsel %vm1832, %v4542, 0.0
    %v4635 = vsel %vm1833, %v4544, 0.0
    %v4636 = vsel %vm1834, %v4546, 0.0
    %v4637 = vsel %vm1835, %v4548, 0.0
    %v4638 = vsel %vm1836, %v4550, 0.0
    %v4639 = vsel %vm1837, %v4552, 0.0
    %v4640 = vsel %vm1838, %v4554, 0.0
    %v4641 = vsel %vm1839, %v4556, 0.0
    %v4642 = vsel %vm1840, %v4558, 0.0
    %v4643 = vsel %vm1841, %v4560, 0.0
    %v4644 = vsel %vm1842, %v4562, 0.0
    %v4645 = vsel %vm1843, %v4564, 0.0
    %v4646 = vsel %vm1844, %v4566, 0.0
    %v4647 = vsel %vm1845, %v4568, 0.0
    %v4648 = vsel %vm1846, %v4570, 0.0
    %v4649 = vsel %vm1847, %v4572, 0.0
    %v4650 = vsel %vm1848, %v4574, 0.0
    %v4651 = vsel %vm1849, %v4576, 0.0
    %v4652 = vsel %vm1850, %v4578, 0.0
    %v4653 = vsel %vm1851, %v4580, 0.0
    %v4654 = vsel %vm1852, %v4582, 0.0
    %v4655 = vsel %vm1853, %v4584, 0.0
    %v4656 = vsel %vm1854, %v4586, 0.0
    %v4657 = vsel %vm1855, %v4588, 0.0
    %v4658 = vsel %vm1856, %v4590, 0.0
    %v4659 = vsel %vm1857, %v4592, 0.0
    %v4660 = vsel %vm1858, %v4594, 0.0
    %v4661 = vsel %vm1859, %v4596, 0.0
    %v4662 = vsel %vm1860, %v4598, 0.0
    %v4663 = vadd.f32 %v4599, %v4600
    %4664 = vadd.xlane.f32.xlu0 %v4663
    %v4665 = vpop.xlane.xlu0 %4664
    %v4666 = vadd.f32 %v4601, %v4602
    %4667 = vadd.xlane.f32.xlu0 %v4666
    %v4668 = vpop.xlane.xlu0 %4667
    %v4669 = vadd.f32 %v4603, %v4604
    %4670 = vadd.xlane.f32.xlu0 %v4669
    %v4671 = vpop.xlane.xlu0 %4670
    %v4672 = vadd.f32 %v4605, %v4606
    %4673 = vadd.xlane.f32.xlu0 %v4672
    %v4674 = vpop.xlane.xlu0 %4673
    %v4675 = vadd.f32 %v4607, %v4608
    %4676 = vadd.xlane.f32.xlu0 %v4675
    %v4677 = vpop.xlane.xlu0 %4676
    %v4678 = vadd.f32 %v4609, %v4610
    %4679 = vadd.xlane.f32.xlu0 %v4678
    %v4680 = vpop.xlane.xlu0 %4679
    %v4681 = vadd.f32 %v4611, %v4612
    %4682 = vadd.xlane.f32.xlu0 %v4681
    %v4683 = vpop.xlane.xlu0 %4682
    %v4684 = vadd.f32 %v4613, %v4614
    %4685 = vadd.xlane.f32.xlu0 %v4684
    %v4686 = vpop.xlane.xlu0 %4685
    %v4687 = vadd.f32 %v4615, %v4616
    %4688 = vadd.xlane.f32.xlu0 %v4687
    %v4689 = vpop.xlane.xlu0 %4688
    %v4690 = vadd.f32 %v4617, %v4618
    %4691 = vadd.xlane.f32.xlu0 %v4690
    %v4692 = vpop.xlane.xlu0 %4691
    %v4693 = vadd.f32 %v4619, %v4620
    %4694 = vadd.xlane.f32.xlu0 %v4693
    %v4695 = vpop.xlane.xlu0 %4694
    %v4696 = vadd.f32 %v4621, %v4622
    %4697 = vadd.xlane.f32.xlu0 %v4696
    %v4698 = vpop.xlane.xlu0 %4697
    %v4699 = vadd.f32 %v4623, %v4624
    %4700 = vadd.xlane.f32.xlu0 %v4699
    %v4701 = vpop.xlane.xlu0 %4700
    %v4702 = vadd.f32 %v4625, %v4626
    %4703 = vadd.xlane.f32.xlu0 %v4702
    %v4704 = vpop.xlane.xlu0 %4703
    %v4705 = vadd.f32 %v4627, %v4628
    %4706 = vadd.xlane.f32.xlu0 %v4705
    %v4707 = vpop.xlane.xlu0 %4706
    %v4708 = vadd.f32 %v4629, %v4630
    %4709 = vadd.xlane.f32.xlu0 %v4708
    %v4710 = vpop.xlane.xlu0 %4709
    %v4711 = vadd.f32 %v4631, %v4632
    %4712 = vadd.xlane.f32.xlu0 %v4711
    %v4713 = vpop.xlane.xlu0 %4712
    %v4714 = vadd.f32 %v4633, %v4634
    %4715 = vadd.xlane.f32.xlu0 %v4714
    %v4716 = vpop.xlane.xlu0 %4715
    %v4717 = vadd.f32 %v4635, %v4636
    %4718 = vadd.xlane.f32.xlu0 %v4717
    %v4719 = vpop.xlane.xlu0 %4718
    %v4720 = vadd.f32 %v4637, %v4638
    %4721 = vadd.xlane.f32.xlu0 %v4720
    %v4722 = vpop.xlane.xlu0 %4721
    %v4723 = vadd.f32 %v4639, %v4640
    %4724 = vadd.xlane.f32.xlu0 %v4723
    %v4725 = vpop.xlane.xlu0 %4724
    %v4726 = vadd.f32 %v4641, %v4642
    %4727 = vadd.xlane.f32.xlu0 %v4726
    %v4728 = vpop.xlane.xlu0 %4727
    %v4729 = vadd.f32 %v4643, %v4644
    %4730 = vadd.xlane.f32.xlu0 %v4729
    %v4731 = vpop.xlane.xlu0 %4730
    %v4732 = vadd.f32 %v4645, %v4646
    %4733 = vadd.xlane.f32.xlu0 %v4732
    %v4734 = vpop.xlane.xlu0 %4733
    %v4735 = vadd.f32 %v4647, %v4648
    %4736 = vadd.xlane.f32.xlu0 %v4735
    %v4737 = vpop.xlane.xlu0 %4736
    %v4738 = vadd.f32 %v4649, %v4650
    %4739 = vadd.xlane.f32.xlu0 %v4738
    %v4740 = vpop.xlane.xlu0 %4739
    %v4741 = vadd.f32 %v4651, %v4652
    %4742 = vadd.xlane.f32.xlu0 %v4741
    %v4743 = vpop.xlane.xlu0 %4742
    %v4744 = vadd.f32 %v4653, %v4654
    %4745 = vadd.xlane.f32.xlu0 %v4744
    %v4746 = vpop.xlane.xlu0 %4745
    %v4747 = vadd.f32 %v4655, %v4656
    %4748 = vadd.xlane.f32.xlu0 %v4747
    %v4749 = vpop.xlane.xlu0 %4748
    %v4750 = vadd.f32 %v4657, %v4658
    %4751 = vadd.xlane.f32.xlu0 %v4750
    %v4752 = vpop.xlane.xlu0 %4751
    %v4753 = vadd.f32 %v4659, %v4660
    %4754 = vadd.xlane.f32.xlu0 %v4753
    %v4755 = vpop.xlane.xlu0 %4754
    %v4756 = vadd.f32 %v4661, %v4662
    %4757 = vadd.xlane.f32.xlu0 %v4756
    %v4758 = vpop.xlane.xlu0 %4757
    %v4759 = vmax.f32 %v4665, 1e-20
    %v4760 = vmax.f32 %v4668, 1e-20
    %v4761 = vmax.f32 %v4671, 1e-20
    %v4762 = vmax.f32 %v4674, 1e-20
    %v4763 = vmax.f32 %v4677, 1e-20
    %v4764 = vmax.f32 %v4680, 1e-20
    %v4765 = vmax.f32 %v4683, 1e-20
    %v4766 = vmax.f32 %v4686, 1e-20
    %v4767 = vmax.f32 %v4689, 1e-20
    %v4768 = vmax.f32 %v4692, 1e-20
    %v4769 = vmax.f32 %v4695, 1e-20
    %v4770 = vmax.f32 %v4698, 1e-20
    %v4771 = vmax.f32 %v4701, 1e-20
    %v4772 = vmax.f32 %v4704, 1e-20
    %v4773 = vmax.f32 %v4707, 1e-20
    %v4774 = vmax.f32 %v4710, 1e-20
    %v4775 = vmax.f32 %v4713, 1e-20
    %v4776 = vmax.f32 %v4716, 1e-20
    %v4777 = vmax.f32 %v4719, 1e-20
    %v4778 = vmax.f32 %v4722, 1e-20
    %v4779 = vmax.f32 %v4725, 1e-20
    %v4780 = vmax.f32 %v4728, 1e-20
    %v4781 = vmax.f32 %v4731, 1e-20
    %v4782 = vmax.f32 %v4734, 1e-20
    %v4783 = vmax.f32 %v4737, 1e-20
    %v4784 = vmax.f32 %v4740, 1e-20
    %v4785 = vmax.f32 %v4743, 1e-20
    %v4786 = vmax.f32 %v4746, 1e-20
    %v4787 = vmax.f32 %v4749, 1e-20
    %v4788 = vmax.f32 %v4752, 1e-20
    %v4789 = vmax.f32 %v4755, 1e-20
    %v4790 = vmax.f32 %v4758, 1e-20
    %v4791 = vrcp.pop %v4759
    %v4792 = vmul.f32 1.0, %v4791
    %v4793 = vrcp.pop %v4760
    %v4794 = vmul.f32 1.0, %v4793
    %v4795 = vrcp.pop %v4761
    %v4796 = vmul.f32 1.0, %v4795
    %v4797 = vrcp.pop %v4762
    %v4798 = vmul.f32 1.0, %v4797
    %v4799 = vrcp.pop %v4763
    %v4800 = vmul.f32 1.0, %v4799
    %v4801 = vrcp.pop %v4764
    %v4802 = vmul.f32 1.0, %v4801
    %v4803 = vrcp.pop %v4765
    %v4804 = vmul.f32 1.0, %v4803
    %v4805 = vrcp.pop %v4766
    %v4806 = vmul.f32 1.0, %v4805
    %v4807 = vrcp.pop %v4767
    %v4808 = vmul.f32 1.0, %v4807
    %v4809 = vrcp.pop %v4768
    %v4810 = vmul.f32 1.0, %v4809
    %v4811 = vrcp.pop %v4769
    %v4812 = vmul.f32 1.0, %v4811
    %v4813 = vrcp.pop %v4770
    %v4814 = vmul.f32 1.0, %v4813
    %v4815 = vrcp.pop %v4771
    %v4816 = vmul.f32 1.0, %v4815
    %v4817 = vrcp.pop %v4772
    %v4818 = vmul.f32 1.0, %v4817
    %v4819 = vrcp.pop %v4773
    %v4820 = vmul.f32 1.0, %v4819
    %v4821 = vrcp.pop %v4774
    %v4822 = vmul.f32 1.0, %v4821
    %v4823 = vrcp.pop %v4775
    %v4824 = vmul.f32 1.0, %v4823
    %v4825 = vrcp.pop %v4776
    %v4826 = vmul.f32 1.0, %v4825
    %v4827 = vrcp.pop %v4777
    %v4828 = vmul.f32 1.0, %v4827
    %v4829 = vrcp.pop %v4778
    %v4830 = vmul.f32 1.0, %v4829
    %v4831 = vrcp.pop %v4779
    %v4832 = vmul.f32 1.0, %v4831
    %v4833 = vrcp.pop %v4780
    %v4834 = vmul.f32 1.0, %v4833
    %v4835 = vrcp.pop %v4781
    %v4836 = vmul.f32 1.0, %v4835
    %v4837 = vrcp.pop %v4782
    %v4838 = vmul.f32 1.0, %v4837
    %v4839 = vrcp.pop %v4783
    %v4840 = vmul.f32 1.0, %v4839
    %v4841 = vrcp.pop %v4784
    %v4842 = vmul.f32 1.0, %v4841
    %v4843 = vrcp.pop %v4785
    %v4844 = vmul.f32 1.0, %v4843
    %v4845 = vrcp.pop %v4786
    %v4846 = vmul.f32 1.0, %v4845
    %v4847 = vrcp.pop %v4787
    %v4848 = vmul.f32 1.0, %v4847
    %v4849 = vrcp.pop %v4788
    %v4850 = vmul.f32 1.0, %v4849
    %v4851 = vrcp.pop %v4789
    %v4852 = vmul.f32 1.0, %v4851
    %v4853 = vrcp.pop %v4790
    %v4854 = vmul.f32 1.0, %v4853
    %v4855 = vmul.f32 %v4599, %v4792
    %v4856 = vmul.f32 %v4600, %v4792
    %v4857 = vmul.f32 %v4601, %v4794
    %v4858 = vmul.f32 %v4602, %v4794
    %v4859 = vmul.f32 %v4603, %v4796
    %v4860 = vmul.f32 %v4604, %v4796
    %v4861 = vmul.f32 %v4605, %v4798
    %v4862 = vmul.f32 %v4606, %v4798
    %v4863 = vmul.f32 %v4607, %v4800
    %v4864 = vmul.f32 %v4608, %v4800
    %v4865 = vmul.f32 %v4609, %v4802
    %v4866 = vmul.f32 %v4610, %v4802
    %v4867 = vmul.f32 %v4611, %v4804
    %v4868 = vmul.f32 %v4612, %v4804
    %v4869 = vmul.f32 %v4613, %v4806
    %v4870 = vmul.f32 %v4614, %v4806
    %v4871 = vmul.f32 %v4615, %v4808
    %v4872 = vmul.f32 %v4616, %v4808
    %v4873 = vmul.f32 %v4617, %v4810
    %v4874 = vmul.f32 %v4618, %v4810
    %v4875 = vmul.f32 %v4619, %v4812
    %v4876 = vmul.f32 %v4620, %v4812
    %v4877 = vmul.f32 %v4621, %v4814
    %v4878 = vmul.f32 %v4622, %v4814
    %v4879 = vmul.f32 %v4623, %v4816
    %v4880 = vmul.f32 %v4624, %v4816
    %v4881 = vmul.f32 %v4625, %v4818
    %v4882 = vmul.f32 %v4626, %v4818
    %v4883 = vmul.f32 %v4627, %v4820
    %v4884 = vmul.f32 %v4628, %v4820
    %v4885 = vmul.f32 %v4629, %v4822
    %v4886 = vmul.f32 %v4630, %v4822
    %v4887 = vmul.f32 %v4631, %v4824
    %v4888 = vmul.f32 %v4632, %v4824
    %v4889 = vmul.f32 %v4633, %v4826
    %v4890 = vmul.f32 %v4634, %v4826
    %v4891 = vmul.f32 %v4635, %v4828
    %v4892 = vmul.f32 %v4636, %v4828
    %v4893 = vmul.f32 %v4637, %v4830
    %v4894 = vmul.f32 %v4638, %v4830
    %v4895 = vmul.f32 %v4639, %v4832
    %v4896 = vmul.f32 %v4640, %v4832
    %v4897 = vmul.f32 %v4641, %v4834
    %v4898 = vmul.f32 %v4642, %v4834
    %v4899 = vmul.f32 %v4643, %v4836
    %v4900 = vmul.f32 %v4644, %v4836
    %v4901 = vmul.f32 %v4645, %v4838
    %v4902 = vmul.f32 %v4646, %v4838
    %v4903 = vmul.f32 %v4647, %v4840
    %v4904 = vmul.f32 %v4648, %v4840
    %v4905 = vmul.f32 %v4649, %v4842
    %v4906 = vmul.f32 %v4650, %v4842
    %v4907 = vmul.f32 %v4651, %v4844
    %v4908 = vmul.f32 %v4652, %v4844
    %v4909 = vmul.f32 %v4653, %v4846
    %v4910 = vmul.f32 %v4654, %v4846
    %v4911 = vmul.f32 %v4655, %v4848
    %v4912 = vmul.f32 %v4656, %v4848
    %v4913 = vmul.f32 %v4657, %v4850
    %v4914 = vmul.f32 %v4658, %v4850
    %v4915 = vmul.f32 %v4659, %v4852
    %v4916 = vmul.f32 %v4660, %v4852
    %v4917 = vmul.f32 %v4661, %v4854
    %v4918 = vmul.f32 %v4662, %v4854
    %v4919 = vpack.c.bf16 %v4857, %v4855
    %v4920 = vpack.c.bf16 %v4858, %v4856
    %v4921 = vpack.c.bf16 %v4861, %v4859
    %v4922 = vpack.c.bf16 %v4862, %v4860
    %v4923 = vpack.c.bf16 %v4865, %v4863
    %v4924 = vpack.c.bf16 %v4866, %v4864
    %v4925 = vpack.c.bf16 %v4869, %v4867
    %v4926 = vpack.c.bf16 %v4870, %v4868
    %v4927 = vpack.c.bf16 %v4873, %v4871
    %v4928 = vpack.c.bf16 %v4874, %v4872
    %v4929 = vpack.c.bf16 %v4877, %v4875
    %v4930 = vpack.c.bf16 %v4878, %v4876
    %v4931 = vpack.c.bf16 %v4881, %v4879
    %v4932 = vpack.c.bf16 %v4882, %v4880
    %v4933 = vpack.c.bf16 %v4885, %v4883
    %v4934 = vpack.c.bf16 %v4886, %v4884
    %v4935 = vpack.c.bf16 %v4889, %v4887
    %v4936 = vpack.c.bf16 %v4890, %v4888
    %v4937 = vpack.c.bf16 %v4893, %v4891
    %v4938 = vpack.c.bf16 %v4894, %v4892
    %v4939 = vpack.c.bf16 %v4897, %v4895
    %v4940 = vpack.c.bf16 %v4898, %v4896
    %v4941 = vpack.c.bf16 %v4901, %v4899
    %v4942 = vpack.c.bf16 %v4902, %v4900
    %v4943 = vpack.c.bf16 %v4905, %v4903
    %v4944 = vpack.c.bf16 %v4906, %v4904
    %v4945 = vpack.c.bf16 %v4909, %v4907
    %v4946 = vpack.c.bf16 %v4910, %v4908
    %v4947 = vpack.c.bf16 %v4913, %v4911
    %v4948 = vpack.c.bf16 %v4914, %v4912
    %v4949 = vpack.c.bf16 %v4917, %v4915
    %v4950 = vpack.c.bf16 %v4918, %v4916
    %4951 = vmatprep.subr.bf16.mxu0 0
    %4952 = vmatpush1.bf16.msra.mxu0 %v901
    %4953 = vmatprep.subr.bf16.mxu0 0
    %4954 = vmatpush1.bf16.msra.mxu0 %v904
    %4955 = vmatprep.subr.bf16.mxu0 0
    %4956 = vmatpush1.bf16.msra.mxu0 %v907
    %4957 = vmatprep.subr.bf16.mxu0 0
    %4958 = vmatpush1.bf16.msra.mxu0 %v910
    %4959 = vmatprep.subr.bf16.mxu0 0
    %4960 = vmatpush1.bf16.msra.mxu0 %v913
    %4961 = vmatprep.subr.bf16.mxu0 0
    %4962 = vmatpush1.bf16.msra.mxu0 %v916
    %4963 = vmatprep.subr.bf16.mxu0 0
    %4964 = vmatpush1.bf16.msra.mxu0 %v919
    %4965 = vmatprep.subr.bf16.mxu0 0
    %4966 = vmatpush1.bf16.msra.mxu0 %v922
    %4967 = vmatprep.subr.bf16.mxu0 0
    %4968 = vmatpush1.bf16.msra.mxu0 %v925
    %4969 = vmatprep.subr.bf16.mxu0 0
    %4970 = vmatpush1.bf16.msra.mxu0 %v928
    %4971 = vmatprep.subr.bf16.mxu0 0
    %4972 = vmatpush1.bf16.msra.mxu0 %v931
    %4973 = vmatprep.subr.bf16.mxu0 0
    %4974 = vmatpush1.bf16.msra.mxu0 %v934
    %4975 = vmatprep.subr.bf16.mxu0 0
    %4976 = vmatpush1.bf16.msra.mxu0 %v937
    %4977 = vmatprep.subr.bf16.mxu0 0
    %4978 = vmatpush1.bf16.msra.mxu0 %v940
    %4979 = vmatprep.subr.bf16.mxu0 0
    %4980 = vmatpush1.bf16.msra.mxu0 %v943
    %4981 = vmatprep.subr.bf16.mxu0 0
    %4982 = vmatpush1.bf16.msra.mxu0 %v946
    %4983 = vmatprep.mubr.bf16.mxu0 %v4920
    %4984 = vmatmul.mubr.bf16.gmra.mrb[0].mxu0 %v4919
    %v4985 = vpop.f32.mrb[0].mxu0
    %v4986 = vadd.f32 0.0, %v4985
    %v4987 = vpop.f32.mrb[0].mxu0
    %v4988 = vpop.f32.mrb[0].mxu0
    %v4989 = vadd.f32 0.0, %v4988
    %v4990 = vpop.f32.mrb[0].mxu0
    %4991 = vmatprep.mubr.bf16.mxu0 %v4922
    %4992 = vmatmul.mubr.bf16.gmra.mrb[0].mxu0 %v4921
    %v4993 = vpop.f32.mrb[0].mxu0
    %v4994 = vadd.f32 0.0, %v4993
    %v4995 = vpop.f32.mrb[0].mxu0
    %v4996 = vpop.f32.mrb[0].mxu0
    %v4997 = vadd.f32 0.0, %v4996
    %v4998 = vpop.f32.mrb[0].mxu0
    %4999 = vmatprep.mubr.bf16.mxu0 %v4924
    %5000 = vmatmul.mubr.bf16.gmra.mrb[0].mxu0 %v4923
    %v5001 = vpop.f32.mrb[0].mxu0
    %v5002 = vadd.f32 0.0, %v5001
    %v5003 = vpop.f32.mrb[0].mxu0
    %v5004 = vpop.f32.mrb[0].mxu0
    %v5005 = vadd.f32 0.0, %v5004
    %v5006 = vpop.f32.mrb[0].mxu0
    %5007 = vmatprep.mubr.bf16.mxu0 %v4926
    %5008 = vmatmul.mubr.bf16.gmra.mrb[0].mxu0 %v4925
    %v5009 = vpop.f32.mrb[0].mxu0
    %v5010 = vadd.f32 0.0, %v5009
    %v5011 = vpop.f32.mrb[0].mxu0
    %v5012 = vpop.f32.mrb[0].mxu0
    %v5013 = vadd.f32 0.0, %v5012
    %v5014 = vpop.f32.mrb[0].mxu0
    %5015 = vmatprep.mubr.bf16.mxu0 %v4928
    %5016 = vmatmul.mubr.bf16.gmra.mrb[0].mxu0 %v4927
    %v5017 = vpop.f32.mrb[0].mxu0
    %v5018 = vadd.f32 0.0, %v5017
    %v5019 = vpop.f32.mrb[0].mxu0
    %v5020 = vpop.f32.mrb[0].mxu0
    %v5021 = vadd.f32 0.0, %v5020
    %v5022 = vpop.f32.mrb[0].mxu0
    %5023 = vmatprep.mubr.bf16.mxu0 %v4930
    %5024 = vmatmul.mubr.bf16.gmra.mrb[0].mxu0 %v4929
    %v5025 = vpop.f32.mrb[0].mxu0
    %v5026 = vadd.f32 0.0, %v5025
    %v5027 = vpop.f32.mrb[0].mxu0
    %v5028 = vpop.f32.mrb[0].mxu0
    %v5029 = vadd.f32 0.0, %v5028
    %v5030 = vpop.f32.mrb[0].mxu0
    %5031 = vmatprep.mubr.bf16.mxu0 %v4932
    %5032 = vmatmul.mubr.bf16.gmra.mrb[0].mxu0 %v4931
    %v5033 = vpop.f32.mrb[0].mxu0
    %v5034 = vadd.f32 0.0, %v5033
    %v5035 = vpop.f32.mrb[0].mxu0
    %v5036 = vpop.f32.mrb[0].mxu0
    %v5037 = vadd.f32 0.0, %v5036
    %v5038 = vpop.f32.mrb[0].mxu0
    %5039 = vmatprep.mubr.bf16.mxu0 %v4934
    %5040 = vmatmul.mubr.bf16.gmra.mrb[0].mxu0 %v4933
    %v5041 = vpop.f32.mrb[0].mxu0
    %v5042 = vadd.f32 0.0, %v5041
    %v5043 = vpop.f32.mrb[0].mxu0
    %v5044 = vpop.f32.mrb[0].mxu0
    %v5045 = vadd.f32 0.0, %v5044
    %v5046 = vpop.f32.mrb[0].mxu0
    %5047 = vmatprep.mubr.bf16.mxu0 %v4936
    %5048 = vmatmul.mubr.bf16.gmra.mrb[0].mxu0 %v4935
    %v5049 = vpop.f32.mrb[0].mxu0
    %v5050 = vadd.f32 0.0, %v5049
    %v5051 = vpop.f32.mrb[0].mxu0
    %v5052 = vpop.f32.mrb[0].mxu0
    %v5053 = vadd.f32 0.0, %v5052
    %v5054 = vpop.f32.mrb[0].mxu0
    %5055 = vmatprep.mubr.bf16.mxu0 %v4938
    %5056 = vmatmul.mubr.bf16.gmra.mrb[0].mxu0 %v4937
    %v5057 = vpop.f32.mrb[0].mxu0
    %v5058 = vadd.f32 0.0, %v5057
    %v5059 = vpop.f32.mrb[0].mxu0
    %v5060 = vpop.f32.mrb[0].mxu0
    %v5061 = vadd.f32 0.0, %v5060
    %v5062 = vpop.f32.mrb[0].mxu0
    %5063 = vmatprep.mubr.bf16.mxu0 %v4940
    %5064 = vmatmul.mubr.bf16.gmra.mrb[0].mxu0 %v4939
    %v5065 = vpop.f32.mrb[0].mxu0
    %v5066 = vadd.f32 0.0, %v5065
    %v5067 = vpop.f32.mrb[0].mxu0
    %v5068 = vpop.f32.mrb[0].mxu0
    %v5069 = vadd.f32 0.0, %v5068
    %v5070 = vpop.f32.mrb[0].mxu0
    %5071 = vmatprep.mubr.bf16.mxu0 %v4942
    %5072 = vmatmul.mubr.bf16.gmra.mrb[0].mxu0 %v4941
    %v5073 = vpop.f32.mrb[0].mxu0
    %v5074 = vadd.f32 0.0, %v5073
    %v5075 = vpop.f32.mrb[0].mxu0
    %v5076 = vpop.f32.mrb[0].mxu0
    %v5077 = vadd.f32 0.0, %v5076
    %v5078 = vpop.f32.mrb[0].mxu0
    %5079 = vmatprep.mubr.bf16.mxu0 %v4944
    %5080 = vmatmul.mubr.bf16.gmra.mrb[0].mxu0 %v4943
    %v5081 = vpop.f32.mrb[0].mxu0
    %v5082 = vadd.f32 0.0, %v5081
    %v5083 = vpop.f32.mrb[0].mxu0
    %v5084 = vpop.f32.mrb[0].mxu0
    %v5085 = vadd.f32 0.0, %v5084
    %v5086 = vpop.f32.mrb[0].mxu0
    %5087 = vmatprep.mubr.bf16.mxu0 %v4946
    %5088 = vmatmul.mubr.bf16.gmra.mrb[0].mxu0 %v4945
    %v5089 = vpop.f32.mrb[0].mxu0
    %v5090 = vadd.f32 0.0, %v5089
    %v5091 = vpop.f32.mrb[0].mxu0
    %v5092 = vpop.f32.mrb[0].mxu0
    %v5093 = vadd.f32 0.0, %v5092
    %v5094 = vpop.f32.mrb[0].mxu0
    %5095 = vmatprep.mubr.bf16.mxu0 %v4948
    %5096 = vmatmul.mubr.bf16.gmra.mrb[0].mxu0 %v4947
    %v5097 = vpop.f32.mrb[0].mxu0
    %v5098 = vadd.f32 0.0, %v5097
    %v5099 = vpop.f32.mrb[0].mxu0
    %v5100 = vpop.f32.mrb[0].mxu0
    %v5101 = vadd.f32 0.0, %v5100
    %v5102 = vpop.f32.mrb[0].mxu0
    %5103 = vmatprep.mubr.bf16.mxu0 %v4950
    %5104 = vmatmul.mubr.bf16.gmra.mrb[0].mxu0 %v4949
    %v5105 = vpop.f32.mrb[0].mxu0
    %v5106 = vadd.f32 0.0, %v5105
    %v5107 = vpop.f32.mrb[0].mxu0
    %v5108 = vpop.f32.mrb[0].mxu0
    %v5109 = vadd.f32 0.0, %v5108
    %v5110 = vpop.f32.mrb[0].mxu0
    %5111 = vdwg.mxu0
    %v5112 = vadd.f32 %v3793, %v4986
    %v5113 = vadd.f32 %v3796, %v4989
    %v5114 = vadd.f32 %v3801, %v4994
    %v5115 = vadd.f32 %v3804, %v4997
    %v5116 = vadd.f32 %v3809, %v5002
    %v5117 = vadd.f32 %v3812, %v5005
    %v5118 = vadd.f32 %v3817, %v5010
    %v5119 = vadd.f32 %v3820, %v5013
    %v5120 = vadd.f32 %v3825, %v5018
    %v5121 = vadd.f32 %v3828, %v5021
    %v5122 = vadd.f32 %v3833, %v5026
    %v5123 = vadd.f32 %v3836, %v5029
    %v5124 = vadd.f32 %v3841, %v5034
    %v5125 = vadd.f32 %v3844, %v5037
    %v5126 = vadd.f32 %v3849, %v5042
    %v5127 = vadd.f32 %v3852, %v5045
    %v5128 = vadd.f32 %v3857, %v5050
    %v5129 = vadd.f32 %v3860, %v5053
    %v5130 = vadd.f32 %v3865, %v5058
    %v5131 = vadd.f32 %v3868, %v5061
    %v5132 = vadd.f32 %v3873, %v5066
    %v5133 = vadd.f32 %v3876, %v5069
    %v5134 = vadd.f32 %v3881, %v5074
    %v5135 = vadd.f32 %v3884, %v5077
    %v5136 = vadd.f32 %v3889, %v5082
    %v5137 = vadd.f32 %v3892, %v5085
    %v5138 = vadd.f32 %v3897, %v5090
    %v5139 = vadd.f32 %v3900, %v5093
    %v5140 = vadd.f32 %v3905, %v5098
    %v5141 = vadd.f32 %v3908, %v5101
    %v5142 = vadd.f32 %v3913, %v5106
    %v5143 = vadd.f32 %v3916, %v5109
    %5144 = vst [vmem:[#allocation5] sm:$0xff] %v5112
    %5145 = vst [vmem:[#allocation5 + $0x8] sm:$0xff] %v5113
    %5146 = vst [vmem:[#allocation5 + $0x10] sm:$0xff] %v5114
    %5147 = vst [vmem:[#allocation5 + $0x18] sm:$0xff] %v5115
    %5148 = vst [vmem:[#allocation5 + $0x20] sm:$0xff] %v5116
    %5149 = vst [vmem:[#allocation5 + $0x28] sm:$0xff] %v5117
    %5150 = vst [vmem:[#allocation5 + $0x30] sm:$0xff] %v5118
    %5151 = vst [vmem:[#allocation5 + $0x38] sm:$0xff] %v5119
    %5152 = vst [vmem:[#allocation5 + $0x40] sm:$0xff] %v5120
    %5153 = vst [vmem:[#allocation5 + $0x48] sm:$0xff] %v5121
    %5154 = vst [vmem:[#allocation5 + $0x50] sm:$0xff] %v5122
    %5155 = vst [vmem:[#allocation5 + $0x58] sm:$0xff] %v5123
    %5156 = vst [vmem:[#allocation5 + $0x60] sm:$0xff] %v5124
    %5157 = vst [vmem:[#allocation5 + $0x68] sm:$0xff] %v5125
    %5158 = vst [vmem:[#allocation5 + $0x70] sm:$0xff] %v5126
    %5159 = vst [vmem:[#allocation5 + $0x78] sm:$0xff] %v5127
    %5160 = vst [vmem:[#allocation5 + $0x80] sm:$0xff] %v5128
    %5161 = vst [vmem:[#allocation5 + $0x88] sm:$0xff] %v5129
    %5162 = vst [vmem:[#allocation5 + $0x90] sm:$0xff] %v5130
    %5163 = vst [vmem:[#allocation5 + $0x98] sm:$0xff] %v5131
    %5164 = vst [vmem:[#allocation5 + $0xa0] sm:$0xff] %v5132
    %5165 = vst [vmem:[#allocation5 + $0xa8] sm:$0xff] %v5133
    %5166 = vst [vmem:[#allocation5 + $0xb0] sm:$0xff] %v5134
    %5167 = vst [vmem:[#allocation5 + $0xb8] sm:$0xff] %v5135
    %5168 = vst [vmem:[#allocation5 + $0xc0] sm:$0xff] %v5136
    %5169 = vst [vmem:[#allocation5 + $0xc8] sm:$0xff] %v5137
    %5170 = vst [vmem:[#allocation5 + $0xd0] sm:$0xff] %v5138
    %5171 = vst [vmem:[#allocation5 + $0xd8] sm:$0xff] %v5139
    %5172 = vst [vmem:[#allocation5 + $0xe0] sm:$0xff] %v5140
    %5173 = vst [vmem:[#allocation5 + $0xe8] sm:$0xff] %v5141
    %5174 = vst [vmem:[#allocation5 + $0xf0] sm:$0xff] %v5142
    %5175 = vst [vmem:[#allocation5 + $0xf8] sm:$0xff] %v5143
    %v5176 = vld [vmem:[#allocation5] sm:$0xff]
    %v5177 = vld [vmem:[#allocation5 + $0x8] sm:$0xff]
    %v5178 = vld [vmem:[#allocation5 + $0x10] sm:$0xff]
    %v5179 = vld [vmem:[#allocation5 + $0x18] sm:$0xff]
    %v5180 = vld [vmem:[#allocation5 + $0x20] sm:$0xff]
    %v5181 = vld [vmem:[#allocation5 + $0x28] sm:$0xff]
    %v5182 = vld [vmem:[#allocation5 + $0x30] sm:$0xff]
    %v5183 = vld [vmem:[#allocation5 + $0x38] sm:$0xff]
    %v5184 = vld [vmem:[#allocation5 + $0x40] sm:$0xff]
    %v5185 = vld [vmem:[#allocation5 + $0x48] sm:$0xff]
    %v5186 = vld [vmem:[#allocation5 + $0x50] sm:$0xff]
    %v5187 = vld [vmem:[#allocation5 + $0x58] sm:$0xff]
    %v5188 = vld [vmem:[#allocation5 + $0x60] sm:$0xff]
    %v5189 = vld [vmem:[#allocation5 + $0x68] sm:$0xff]
    %v5190 = vld [vmem:[#allocation5 + $0x70] sm:$0xff]
    %v5191 = vld [vmem:[#allocation5 + $0x78] sm:$0xff]
    %v5192 = vld [vmem:[#allocation5 + $0x80] sm:$0xff]
    %v5193 = vld [vmem:[#allocation5 + $0x88] sm:$0xff]
    %v5194 = vld [vmem:[#allocation5 + $0x90] sm:$0xff]
    %v5195 = vld [vmem:[#allocation5 + $0x98] sm:$0xff]
    %v5196 = vld [vmem:[#allocation5 + $0xa0] sm:$0xff]
    %v5197 = vld [vmem:[#allocation5 + $0xa8] sm:$0xff]
    %v5198 = vld [vmem:[#allocation5 + $0xb0] sm:$0xff]
    %v5199 = vld [vmem:[#allocation5 + $0xb8] sm:$0xff]
    %v5200 = vld [vmem:[#allocation5 + $0xc0] sm:$0xff]
    %v5201 = vld [vmem:[#allocation5 + $0xc8] sm:$0xff]
    %v5202 = vld [vmem:[#allocation5 + $0xd0] sm:$0xff]
    %v5203 = vld [vmem:[#allocation5 + $0xd8] sm:$0xff]
    %v5204 = vld [vmem:[#allocation5 + $0xe0] sm:$0xff]
    %v5205 = vld [vmem:[#allocation5 + $0xe8] sm:$0xff]
    %v5206 = vld [vmem:[#allocation5 + $0xf0] sm:$0xff]
    %v5207 = vld [vmem:[#allocation5 + $0xf8] sm:$0xff]
    %v5208 = vadd.f32 %v5176, %v5177
    %v5209 = vadd.f32 %v5208, %v5178
    %v5210 = vadd.f32 %v5209, %v5179
    %v5211 = vadd.f32 %v5210, %v5180
    %v5212 = vadd.f32 %v5211, %v5181
    %v5213 = vadd.f32 %v5212, %v5182
    %v5214 = vadd.f32 %v5213, %v5183
    %v5215 = vadd.f32 %v5214, %v5184
    %v5216 = vadd.f32 %v5215, %v5185
    %v5217 = vadd.f32 %v5216, %v5186
    %v5218 = vadd.f32 %v5217, %v5187
    %v5219 = vadd.f32 %v5218, %v5188
    %v5220 = vadd.f32 %v5219, %v5189
    %v5221 = vadd.f32 %v5220, %v5190
    %v5222 = vadd.f32 %v5221, %v5191
    %v5223 = vadd.f32 %v5222, %v5192
    %v5224 = vadd.f32 %v5223, %v5193
    %v5225 = vadd.f32 %v5224, %v5194
    %v5226 = vadd.f32 %v5225, %v5195
    %v5227 = vadd.f32 %v5226, %v5196
    %v5228 = vadd.f32 %v5227, %v5197
    %v5229 = vadd.f32 %v5228, %v5198
    %v5230 = vadd.f32 %v5229, %v5199
    %v5231 = vadd.f32 %v5230, %v5200
    %v5232 = vadd.f32 %v5231, %v5201
    %v5233 = vadd.f32 %v5232, %v5202
    %v5234 = vadd.f32 %v5233, %v5203
    %v5235 = vadd.f32 %v5234, %v5204
    %v5236 = vadd.f32 %v5235, %v5205
    %v5237 = vadd.f32 %v5236, %v5206
    %v5238 = vadd.f32 %v5237, %v5207
    %v5239 = vrot.slane %v5238, 4
    %v5240 = vadd.f32 %v5238, %v5239
    %v5241 = vrot.slane %v5240, 2
    %v5242 = vadd.f32 %v5240, %v5241
    %v5243 = vrot.slane %v5242, 1
    %v5244 = vadd.f32 %v5242, %v5243
    %v5245 = vmul.f32 %v5244, 0.0625
    %v5246 = vmul.f32 %v5176, %v5176
    %v5247 = vmul.f32 %v5177, %v5177
    %v5248 = vmul.f32 %v5178, %v5178
    %v5249 = vmul.f32 %v5179, %v5179
    %v5250 = vmul.f32 %v5180, %v5180
    %v5251 = vmul.f32 %v5181, %v5181
    %v5252 = vmul.f32 %v5182, %v5182
    %v5253 = vmul.f32 %v5183, %v5183
    %v5254 = vmul.f32 %v5184, %v5184
    %v5255 = vmul.f32 %v5185, %v5185
    %v5256 = vmul.f32 %v5186, %v5186
    %v5257 = vmul.f32 %v5187, %v5187
    %v5258 = vmul.f32 %v5188, %v5188
    %v5259 = vmul.f32 %v5189, %v5189
    %v5260 = vmul.f32 %v5190, %v5190
    %v5261 = vmul.f32 %v5191, %v5191
    %v5262 = vmul.f32 %v5192, %v5192
    %v5263 = vmul.f32 %v5193, %v5193
    %v5264 = vmul.f32 %v5194, %v5194
    %v5265 = vmul.f32 %v5195, %v5195
    %v5266 = vmul.f32 %v5196, %v5196
    %v5267 = vmul.f32 %v5197, %v5197
    %v5268 = vmul.f32 %v5198, %v5198
    %v5269 = vmul.f32 %v5199, %v5199
    %v5270 = vmul.f32 %v5200, %v5200
    %v5271 = vmul.f32 %v5201, %v5201
    %v5272 = vmul.f32 %v5202, %v5202
    %v5273 = vmul.f32 %v5203, %v5203
    %v5274 = vmul.f32 %v5204, %v5204
    %v5275 = vmul.f32 %v5205, %v5205
    %v5276 = vmul.f32 %v5206, %v5206
    %v5277 = vmul.f32 %v5207, %v5207
    %v5278 = vadd.f32 %v5246, %v5247
    %v5279 = vadd.f32 %v5278, %v5248
    %v5280 = vadd.f32 %v5279, %v5249
    %v5281 = vadd.f32 %v5280, %v5250
    %v5282 = vadd.f32 %v5281, %v5251
    %v5283 = vadd.f32 %v5282, %v5252
    %v5284 = vadd.f32 %v5283, %v5253
    %v5285 = vadd.f32 %v5284, %v5254
    %v5286 = vadd.f32 %v5285, %v5255
    %v5287 = vadd.f32 %v5286, %v5256
    %v5288 = vadd.f32 %v5287, %v5257
    %v5289 = vadd.f32 %v5288, %v5258
    %v5290 = vadd.f32 %v5289, %v5259
    %v5291 = vadd.f32 %v5290, %v5260
    %v5292 = vadd.f32 %v5291, %v5261
    %v5293 = vadd.f32 %v5292, %v5262
    %v5294 = vadd.f32 %v5293, %v5263
    %v5295 = vadd.f32 %v5294, %v5264
    %v5296 = vadd.f32 %v5295, %v5265
    %v5297 = vadd.f32 %v5296, %v5266
    %v5298 = vadd.f32 %v5297, %v5267
    %v5299 = vadd.f32 %v5298, %v5268
    %v5300 = vadd.f32 %v5299, %v5269
    %v5301 = vadd.f32 %v5300, %v5270
    %v5302 = vadd.f32 %v5301, %v5271
    %v5303 = vadd.f32 %v5302, %v5272
    %v5304 = vadd.f32 %v5303, %v5273
    %v5305 = vadd.f32 %v5304, %v5274
    %v5306 = vadd.f32 %v5305, %v5275
    %v5307 = vadd.f32 %v5306, %v5276
    %v5308 = vadd.f32 %v5307, %v5277
    %v5309 = vrot.slane %v5308, 4
    %v5310 = vadd.f32 %v5308, %v5309
    %v5311 = vrot.slane %v5310, 2
    %v5312 = vadd.f32 %v5310, %v5311
    %v5313 = vrot.slane %v5312, 1
    %v5314 = vadd.f32 %v5312, %v5313
    %v5315 = vmul.f32 %v5314, 0.0625
    %v5316 = vmul.f32 %v5245, %v5245
    %v5317 = vsub.f32 %v5315, %v5316
    %v5318 = vmax.f32 %v5317, 0.0
    %v5319 = vsub.f32 %v5176, %v5245
    %v5320 = vsub.f32 %v5177, %v5245
    %v5321 = vsub.f32 %v5178, %v5245
    %v5322 = vsub.f32 %v5179, %v5245
    %v5323 = vsub.f32 %v5180, %v5245
    %v5324 = vsub.f32 %v5181, %v5245
    %v5325 = vsub.f32 %v5182, %v5245
    %v5326 = vsub.f32 %v5183, %v5245
    %v5327 = vsub.f32 %v5184, %v5245
    %v5328 = vsub.f32 %v5185, %v5245
    %v5329 = vsub.f32 %v5186, %v5245
    %v5330 = vsub.f32 %v5187, %v5245
    %v5331 = vsub.f32 %v5188, %v5245
    %v5332 = vsub.f32 %v5189, %v5245
    %v5333 = vsub.f32 %v5190, %v5245
    %v5334 = vsub.f32 %v5191, %v5245
    %v5335 = vsub.f32 %v5192, %v5245
    %v5336 = vsub.f32 %v5193, %v5245
    %v5337 = vsub.f32 %v5194, %v5245
    %v5338 = vsub.f32 %v5195, %v5245
    %v5339 = vsub.f32 %v5196, %v5245
    %v5340 = vsub.f32 %v5197, %v5245
    %v5341 = vsub.f32 %v5198, %v5245
    %v5342 = vsub.f32 %v5199, %v5245
    %v5343 = vsub.f32 %v5200, %v5245
    %v5344 = vsub.f32 %v5201, %v5245
    %v5345 = vsub.f32 %v5202, %v5245
    %v5346 = vsub.f32 %v5203, %v5245
    %v5347 = vsub.f32 %v5204, %v5245
    %v5348 = vsub.f32 %v5205, %v5245
    %v5349 = vsub.f32 %v5206, %v5245
    %v5350 = vsub.f32 %v5207, %v5245
    %v5351 = vadd.f32 %v5318, 1e-05
    %v5352 = vrsqrt.pop %v5351
    %v5353 = vmul.f32 %v5319, %v5352
    %v5354 = vmul.f32 %v5320, %v5352
    %v5355 = vmul.f32 %v5321, %v5352
    %v5356 = vmul.f32 %v5322, %v5352
    %v5357 = vmul.f32 %v5323, %v5352
    %v5358 = vmul.f32 %v5324, %v5352
    %v5359 = vmul.f32 %v5325, %v5352
    %v5360 = vmul.f32 %v5326, %v5352
    %v5361 = vmul.f32 %v5327, %v5352
    %v5362 = vmul.f32 %v5328, %v5352
    %v5363 = vmul.f32 %v5329, %v5352
    %v5364 = vmul.f32 %v5330, %v5352
    %v5365 = vmul.f32 %v5331, %v5352
    %v5366 = vmul.f32 %v5332, %v5352
    %v5367 = vmul.f32 %v5333, %v5352
    %v5368 = vmul.f32 %v5334, %v5352
    %v5369 = vmul.f32 %v5335, %v5352
    %v5370 = vmul.f32 %v5336, %v5352
    %v5371 = vmul.f32 %v5337, %v5352
    %v5372 = vmul.f32 %v5338, %v5352
    %v5373 = vmul.f32 %v5339, %v5352
    %v5374 = vmul.f32 %v5340, %v5352
    %v5375 = vmul.f32 %v5341, %v5352
    %v5376 = vmul.f32 %v5342, %v5352
    %v5377 = vmul.f32 %v5343, %v5352
    %v5378 = vmul.f32 %v5344, %v5352
    %v5379 = vmul.f32 %v5345, %v5352
    %v5380 = vmul.f32 %v5346, %v5352
    %v5381 = vmul.f32 %v5347, %v5352
    %v5382 = vmul.f32 %v5348, %v5352
    %v5383 = vmul.f32 %v5349, %v5352
    %v5384 = vmul.f32 %v5350, %v5352
    %v5385 = vld [vmem:[#allocation15] sm:$0x1]
    %v5387 = vlaneseq
    %v5388 = vshrl.u32 %v5387, 7
    %v5389 = vsub.s32 0, %v5388
    %v5390 = vrot.slane %v5385, %v5389
    %v5392 = vmul.f32 %v5353, %v5390
    %v5393 = vmul.f32 %v5354, %v5390
    %v5394 = vmul.f32 %v5355, %v5390
    %v5395 = vmul.f32 %v5356, %v5390
    %v5396 = vmul.f32 %v5357, %v5390
    %v5397 = vmul.f32 %v5358, %v5390
    %v5398 = vmul.f32 %v5359, %v5390
    %v5399 = vmul.f32 %v5360, %v5390
    %v5400 = vmul.f32 %v5361, %v5390
    %v5401 = vmul.f32 %v5362, %v5390
    %v5402 = vmul.f32 %v5363, %v5390
    %v5403 = vmul.f32 %v5364, %v5390
    %v5404 = vmul.f32 %v5365, %v5390
    %v5405 = vmul.f32 %v5366, %v5390
    %v5406 = vmul.f32 %v5367, %v5390
    %v5407 = vmul.f32 %v5368, %v5390
    %v5408 = vmul.f32 %v5369, %v5390
    %v5409 = vmul.f32 %v5370, %v5390
    %v5410 = vmul.f32 %v5371, %v5390
    %v5411 = vmul.f32 %v5372, %v5390
    %v5412 = vmul.f32 %v5373, %v5390
    %v5413 = vmul.f32 %v5374, %v5390
    %v5414 = vmul.f32 %v5375, %v5390
    %v5415 = vmul.f32 %v5376, %v5390
    %v5416 = vmul.f32 %v5377, %v5390
    %v5417 = vmul.f32 %v5378, %v5390
    %v5418 = vmul.f32 %v5379, %v5390
    %v5419 = vmul.f32 %v5380, %v5390
    %v5420 = vmul.f32 %v5381, %v5390
    %v5421 = vmul.f32 %v5382, %v5390
    %v5422 = vmul.f32 %v5383, %v5390
    %v5423 = vmul.f32 %v5384, %v5390
    %v5424 = vld [vmem:[#allocation16] sm:$0x1]
    %v5426 = vlaneseq
    %v5427 = vshrl.u32 %v5426, 7
    %v5428 = vsub.s32 0, %v5427
    %v5429 = vrot.slane %v5424, %v5428
    %v5431 = vadd.f32 %v5392, %v5429
    %v5432 = vadd.f32 %v5393, %v5429
    %v5433 = vadd.f32 %v5394, %v5429
    %v5434 = vadd.f32 %v5395, %v5429
    %v5435 = vadd.f32 %v5396, %v5429
    %v5436 = vadd.f32 %v5397, %v5429
    %v5437 = vadd.f32 %v5398, %v5429
    %v5438 = vadd.f32 %v5399, %v5429
    %v5439 = vadd.f32 %v5400, %v5429
    %v5440 = vadd.f32 %v5401, %v5429
    %v5441 = vadd.f32 %v5402, %v5429
    %v5442 = vadd.f32 %v5403, %v5429
    %v5443 = vadd.f32 %v5404, %v5429
    %v5444 = vadd.f32 %v5405, %v5429
    %v5445 = vadd.f32 %v5406, %v5429
    %v5446 = vadd.f32 %v5407, %v5429
    %v5447 = vadd.f32 %v5408, %v5429
    %v5448 = vadd.f32 %v5409, %v5429
    %v5449 = vadd.f32 %v5410, %v5429
    %v5450 = vadd.f32 %v5411, %v5429
    %v5451 = vadd.f32 %v5412, %v5429
    %v5452 = vadd.f32 %v5413, %v5429
    %v5453 = vadd.f32 %v5414, %v5429
    %v5454 = vadd.f32 %v5415, %v5429
    %v5455 = vadd.f32 %v5416, %v5429
    %v5456 = vadd.f32 %v5417, %v5429
    %v5457 = vadd.f32 %v5418, %v5429
    %v5458 = vadd.f32 %v5419, %v5429
    %v5459 = vadd.f32 %v5420, %v5429
    %v5460 = vadd.f32 %v5421, %v5429
    %v5461 = vadd.f32 %v5422, %v5429
    %v5462 = vadd.f32 %v5423, %v5429
    %v5463 = vtanh.pop %v5431
    %v5464 = vtanh.pop %v5432
    %v5465 = vtanh.pop %v5433
    %v5466 = vtanh.pop %v5434
    %v5467 = vtanh.pop %v5435
    %v5468 = vtanh.pop %v5436
    %v5469 = vtanh.pop %v5437
    %v5470 = vtanh.pop %v5438
    %v5471 = vtanh.pop %v5439
    %v5472 = vtanh.pop %v5440
    %v5473 = vtanh.pop %v5441
    %v5474 = vtanh.pop %v5442
    %v5475 = vtanh.pop %v5443
    %v5476 = vtanh.pop %v5444
    %v5477 = vtanh.pop %v5445
    %v5478 = vtanh.pop %v5446
    %v5479 = vtanh.pop %v5447
    %v5480 = vtanh.pop %v5448
    %v5481 = vtanh.pop %v5449
    %v5482 = vtanh.pop %v5450
    %v5483 = vtanh.pop %v5451
    %v5484 = vtanh.pop %v5452
    %v5485 = vtanh.pop %v5453
    %v5486 = vtanh.pop %v5454
    %v5487 = vtanh.pop %v5455
    %v5488 = vtanh.pop %v5456
    %v5489 = vtanh.pop %v5457
    %v5490 = vtanh.pop %v5458
    %v5491 = vtanh.pop %v5459
    %v5492 = vtanh.pop %v5460
    %v5493 = vtanh.pop %v5461
    %v5494 = vtanh.pop %v5462
    %v5495 = vpack.c.bf16 %v5464, %v5463
    %v5496 = vpack.c.bf16 %v5466, %v5465
    %v5497 = vpack.c.bf16 %v5468, %v5467
    %v5498 = vpack.c.bf16 %v5470, %v5469
    %v5499 = vpack.c.bf16 %v5472, %v5471
    %v5500 = vpack.c.bf16 %v5474, %v5473
    %v5501 = vpack.c.bf16 %v5476, %v5475
    %v5502 = vpack.c.bf16 %v5478, %v5477
    %v5503 = vpack.c.bf16 %v5480, %v5479
    %v5504 = vpack.c.bf16 %v5482, %v5481
    %v5505 = vpack.c.bf16 %v5484, %v5483
    %v5506 = vpack.c.bf16 %v5486, %v5485
    %v5507 = vpack.c.bf16 %v5488, %v5487
    %v5508 = vpack.c.bf16 %v5490, %v5489
    %v5509 = vpack.c.bf16 %v5492, %v5491
    %v5510 = vpack.c.bf16 %v5494, %v5493
    %v5511 = vld [vmem:[#allocation18] sm:$0xff]
    %v5512 = vld [vmem:[#allocation18 + $0x8] sm:$0xff]
    %v5513 = vld [vmem:[#allocation18 + $0x10] sm:$0xff]
    %v5514 = vld [vmem:[#allocation18 + $0x18] sm:$0xff]
    %v5515 = vld [vmem:[#allocation18 + $0x20] sm:$0xff]
    %v5516 = vld [vmem:[#allocation18 + $0x28] sm:$0xff]
    %v5517 = vld [vmem:[#allocation18 + $0x30] sm:$0xff]
    %v5518 = vld [vmem:[#allocation18 + $0x38] sm:$0xff]
    %v5519 = vld [vmem:[#allocation18 + $0x40] sm:$0xff]
    %v5520 = vld [vmem:[#allocation18 + $0x48] sm:$0xff]
    %v5521 = vld [vmem:[#allocation18 + $0x50] sm:$0xff]
    %v5522 = vld [vmem:[#allocation18 + $0x58] sm:$0xff]
    %v5523 = vld [vmem:[#allocation18 + $0x60] sm:$0xff]
    %v5524 = vld [vmem:[#allocation18 + $0x68] sm:$0xff]
    %v5525 = vld [vmem:[#allocation18 + $0x70] sm:$0xff]
    %v5526 = vld [vmem:[#allocation18 + $0x78] sm:$0xff]
    %v5527 = vld [vmem:[#allocation18 + $0x80] sm:$0xff]
    %v5528 = vld [vmem:[#allocation18 + $0x88] sm:$0xff]
    %v5529 = vld [vmem:[#allocation18 + $0x90] sm:$0xff]
    %v5530 = vld [vmem:[#allocation18 + $0x98] sm:$0xff]
    %v5531 = vld [vmem:[#allocation18 + $0xa0] sm:$0xff]
    %v5532 = vld [vmem:[#allocation18 + $0xa8] sm:$0xff]
    %v5533 = vld [vmem:[#allocation18 + $0xb0] sm:$0xff]
    %v5534 = vld [vmem:[#allocation18 + $0xb8] sm:$0xff]
    %v5535 = vld [vmem:[#allocation18 + $0xc0] sm:$0xff]
    %v5536 = vld [vmem:[#allocation18 + $0xc8] sm:$0xff]
    %v5537 = vld [vmem:[#allocation18 + $0xd0] sm:$0xff]
    %v5538 = vld [vmem:[#allocation18 + $0xd8] sm:$0xff]
    %v5539 = vld [vmem:[#allocation18 + $0xe0] sm:$0xff]
    %v5540 = vld [vmem:[#allocation18 + $0xe8] sm:$0xff]
    %v5541 = vld [vmem:[#allocation18 + $0xf0] sm:$0xff]
    %v5542 = vld [vmem:[#allocation18 + $0xf8] sm:$0xff]
    %v5575 = vunpack.c.l.b16 %v5511
    %v5576 = vunpack.c.h.b16 %v5511
    %v5577 = vunpack.c.l.b16 %v5512
    %v5578 = vunpack.c.h.b16 %v5512
    %v5579 = vunpack.c.l.b16 %v5513
    %v5580 = vunpack.c.h.b16 %v5513
    %v5581 = vunpack.c.l.b16 %v5514
    %v5582 = vunpack.c.h.b16 %v5514
    %v5583 = vunpack.c.l.b16 %v5515
    %v5584 = vunpack.c.h.b16 %v5515
    %v5585 = vunpack.c.l.b16 %v5516
    %v5586 = vunpack.c.h.b16 %v5516
    %v5587 = vunpack.c.l.b16 %v5517
    %v5588 = vunpack.c.h.b16 %v5517
    %v5589 = vunpack.c.l.b16 %v5518
    %v5590 = vunpack.c.h.b16 %v5518
    %v5591 = vunpack.c.l.b16 %v5519
    %v5592 = vunpack.c.h.b16 %v5519
    %v5593 = vunpack.c.l.b16 %v5520
    %v5594 = vunpack.c.h.b16 %v5520
    %v5595 = vunpack.c.l.b16 %v5521
    %v5596 = vunpack.c.h.b16 %v5521
    %v5597 = vunpack.c.l.b16 %v5522
    %v5598 = vunpack.c.h.b16 %v5522
    %v5599 = vunpack.c.l.b16 %v5523
    %v5600 = vunpack.c.h.b16 %v5523
    %v5601 = vunpack.c.l.b16 %v5524
    %v5602 = vunpack.c.h.b16 %v5524
    %v5603 = vunpack.c.l.b16 %v5525
    %v5604 = vunpack.c.h.b16 %v5525
    %v5605 = vunpack.c.l.b16 %v5526
    %v5606 = vunpack.c.h.b16 %v5526
    %v5607 = vunpack.c.l.b16 %v5527
    %v5608 = vunpack.c.h.b16 %v5527
    %v5609 = vunpack.c.l.b16 %v5528
    %v5610 = vunpack.c.h.b16 %v5528
    %v5611 = vunpack.c.l.b16 %v5529
    %v5612 = vunpack.c.h.b16 %v5529
    %v5613 = vunpack.c.l.b16 %v5530
    %v5614 = vunpack.c.h.b16 %v5530
    %v5615 = vunpack.c.l.b16 %v5531
    %v5616 = vunpack.c.h.b16 %v5531
    %v5617 = vunpack.c.l.b16 %v5532
    %v5618 = vunpack.c.h.b16 %v5532
    %v5619 = vunpack.c.l.b16 %v5533
    %v5620 = vunpack.c.h.b16 %v5533
    %v5621 = vunpack.c.l.b16 %v5534
    %v5622 = vunpack.c.h.b16 %v5534
    %v5623 = vunpack.c.l.b16 %v5535
    %v5624 = vunpack.c.h.b16 %v5535
    %v5625 = vunpack.c.l.b16 %v5536
    %v5626 = vunpack.c.h.b16 %v5536
    %v5627 = vunpack.c.l.b16 %v5537
    %v5628 = vunpack.c.h.b16 %v5537
    %v5629 = vunpack.c.l.b16 %v5538
    %v5630 = vunpack.c.h.b16 %v5538
    %v5631 = vunpack.c.l.b16 %v5539
    %v5632 = vunpack.c.h.b16 %v5539
    %v5633 = vunpack.c.l.b16 %v5540
    %v5634 = vunpack.c.h.b16 %v5540
    %v5635 = vunpack.c.l.b16 %v5541
    %v5636 = vunpack.c.h.b16 %v5541
    %v5637 = vunpack.c.l.b16 %v5542
    %v5638 = vunpack.c.h.b16 %v5542
    %v5639 = vpack.c.b16 %v5579, %v5575
    %v5640 = vpack.c.b16 %v5580, %v5576
    %v5641 = vpack.c.b16 %v5581, %v5577
    %v5642 = vpack.c.b16 %v5582, %v5578
    %v5643 = vpack.c.b16 %v5587, %v5583
    %v5644 = vpack.c.b16 %v5588, %v5584
    %v5645 = vpack.c.b16 %v5589, %v5585
    %v5646 = vpack.c.b16 %v5590, %v5586
    %v5647 = vpack.c.b16 %v5595, %v5591
    %v5648 = vpack.c.b16 %v5596, %v5592
    %v5649 = vpack.c.b16 %v5597, %v5593
    %v5650 = vpack.c.b16 %v5598, %v5594
    %v5651 = vpack.c.b16 %v5603, %v5599
    %v5652 = vpack.c.b16 %v5604, %v5600
    %v5653 = vpack.c.b16 %v5605, %v5601
    %v5654 = vpack.c.b16 %v5606, %v5602
    %v5655 = vpack.c.b16 %v5611, %v5607
    %v5656 = vpack.c.b16 %v5612, %v5608
    %v5657 = vpack.c.b16 %v5613, %v5609
    %v5658 = vpack.c.b16 %v5614, %v5610
    %v5659 = vpack.c.b16 %v5619, %v5615
    %v5660 = vpack.c.b16 %v5620, %v5616
    %v5661 = vpack.c.b16 %v5621, %v5617
    %v5662 = vpack.c.b16 %v5622, %v5618
    %v5663 = vpack.c.b16 %v5627, %v5623
    %v5664 = vpack.c.b16 %v5628, %v5624
    %v5665 = vpack.c.b16 %v5629, %v5625
    %v5666 = vpack.c.b16 %v5630, %v5626
    %v5667 = vpack.c.b16 %v5635, %v5631
    %v5668 = vpack.c.b16 %v5636, %v5632
    %v5669 = vpack.c.b16 %v5637, %v5633
    %v5670 = vpack.c.b16 %v5638, %v5634
    %5703 = vmatprep.subr.bf16.mxu0 %v5640
    %5704 = vmatpush1.bf16.msra.mxu0 %v5639
    %5705 = vmatprep.subr.bf16.mxu0 %v5644
    %5706 = vmatpush1.bf16.msra.mxu0 %v5643
    %5707 = vmatprep.subr.bf16.mxu0 %v5648
    %5708 = vmatpush1.bf16.msra.mxu0 %v5647
    %5709 = vmatprep.subr.bf16.mxu0 %v5652
    %5710 = vmatpush1.bf16.msra.mxu0 %v5651
    %5711 = vmatprep.subr.bf16.mxu0 %v5656
    %5712 = vmatpush1.bf16.msra.mxu0 %v5655
    %5713 = vmatprep.subr.bf16.mxu0 %v5660
    %5714 = vmatpush1.bf16.msra.mxu0 %v5659
    %5715 = vmatprep.subr.bf16.mxu0 %v5664
    %5716 = vmatpush1.bf16.msra.mxu0 %v5663
    %5717 = vmatprep.subr.bf16.mxu0 %v5668
    %5718 = vmatpush1.bf16.msra.mxu0 %v5667
    %5719 = vmatprep.subr.bf16.mxu0 0
    %5720 = vmatpush1.bf16.msra.mxu0 0
    %5721 = vmatprep.subr.bf16.mxu0 0
    %5722 = vmatpush1.bf16.msra.mxu0 0
    %5723 = vmatprep.subr.bf16.mxu0 0
    %5724 = vmatpush1.bf16.msra.mxu0 0
    %5725 = vmatprep.subr.bf16.mxu0 0
    %5726 = vmatpush1.bf16.msra.mxu0 0
    %5727 = vmatprep.subr.bf16.mxu0 0
    %5728 = vmatpush1.bf16.msra.mxu0 0
    %5729 = vmatprep.subr.bf16.mxu0 0
    %5730 = vmatpush1.bf16.msra.mxu0 0
    %5731 = vmatprep.subr.bf16.mxu0 0
    %5732 = vmatpush1.bf16.msra.mxu0 0
    %5733 = vmatprep.subr.bf16.mxu0 0
    %5734 = vmatpush1.bf16.msra.mxu0 0
    %5735 = vmatprep.mubr.bf16.mxu0 0
    %5736 = vmatmul.mubr.bf16.gmra.mrb[0].mxu0 %v5495
    %v5737 = vpop.f32.mrb[0].mxu0
    %v5738 = vadd.f32 0.0, %v5737
    %v5739 = vpop.f32.mrb[0].mxu0
    %v5740 = vadd.f32 0.0, %v5739
    %v5741 = vpop.f32.mrb[0].mxu0
    %v5742 = vadd.f32 0.0, %v5741
    %v5743 = vpop.f32.mrb[0].mxu0
    %v5744 = vadd.f32 0.0, %v5743
    %5745 = vmatprep.mubr.bf16.mxu0 0
    %5746 = vmatmul.mubr.bf16.gmra.mrb[0].mxu0 %v5496
    %v5747 = vpop.f32.mrb[0].mxu0
    %v5748 = vadd.f32 0.0, %v5747
    %v5749 = vpop.f32.mrb[0].mxu0
    %v5750 = vadd.f32 0.0, %v5749
    %v5751 = vpop.f32.mrb[0].mxu0
    %v5752 = vadd.f32 0.0, %v5751
    %v5753 = vpop.f32.mrb[0].mxu0
    %v5754 = vadd.f32 0.0, %v5753
    %5755 = vmatprep.mubr.bf16.mxu0 0
    %5756 = vmatmul.mubr.bf16.gmra.mrb[0].mxu0 %v5497
    %v5757 = vpop.f32.mrb[0].mxu0
    %v5758 = vadd.f32 0.0, %v5757
    %v5759 = vpop.f32.mrb[0].mxu0
    %v5760 = vadd.f32 0.0, %v5759
    %v5761 = vpop.f32.mrb[0].mxu0
    %v5762 = vadd.f32 0.0, %v5761
    %v5763 = vpop.f32.mrb[0].mxu0
    %v5764 = vadd.f32 0.0, %v5763
    %5765 = vmatprep.mubr.bf16.mxu0 0
    %5766 = vmatmul.mubr.bf16.gmra.mrb[0].mxu0 %v5498
    %v5767 = vpop.f32.mrb[0].mxu0
    %v5768 = vadd.f32 0.0, %v5767
    %v5769 = vpop.f32.mrb[0].mxu0
    %v5770 = vadd.f32 0.0, %v5769
    %v5771 = vpop.f32.mrb[0].mxu0
    %v5772 = vadd.f32 0.0, %v5771
    %v5773 = vpop.f32.mrb[0].mxu0
    %v5774 = vadd.f32 0.0, %v5773
    %5775 = vmatprep.mubr.bf16.mxu0 0
    %5776 = vmatmul.mubr.bf16.gmra.mrb[0].mxu0 %v5499
    %v5777 = vpop.f32.mrb[0].mxu0
    %v5778 = vadd.f32 0.0, %v5777
    %v5779 = vpop.f32.mrb[0].mxu0
    %v5780 = vadd.f32 0.0, %v5779
    %v5781 = vpop.f32.mrb[0].mxu0
    %v5782 = vadd.f32 0.0, %v5781
    %v5783 = vpop.f32.mrb[0].mxu0
    %v5784 = vadd.f32 0.0, %v5783
    %5785 = vmatprep.mubr.bf16.mxu0 0
    %5786 = vmatmul.mubr.bf16.gmra.mrb[0].mxu0 %v5500
    %v5787 = vpop.f32.mrb[0].mxu0
    %v5788 = vadd.f32 0.0, %v5787
    %v5789 = vpop.f32.mrb[0].mxu0
    %v5790 = vadd.f32 0.0, %v5789
    %v5791 = vpop.f32.mrb[0].mxu0
    %v5792 = vadd.f32 0.0, %v5791
    %v5793 = vpop.f32.mrb[0].mxu0
    %v5794 = vadd.f32 0.0, %v5793
    %5795 = vmatprep.mubr.bf16.mxu0 0
    %5796 = vmatmul.mubr.bf16.gmra.mrb[0].mxu0 %v5501
    %v5797 = vpop.f32.mrb[0].mxu0
    %v5798 = vadd.f32 0.0, %v5797
    %v5799 = vpop.f32.mrb[0].mxu0
    %v5800 = vadd.f32 0.0, %v5799
    %v5801 = vpop.f32.mrb[0].mxu0
    %v5802 = vadd.f32 0.0, %v5801
    %v5803 = vpop.f32.mrb[0].mxu0
    %v5804 = vadd.f32 0.0, %v5803
    %5805 = vmatprep.mubr.bf16.mxu0 0
    %5806 = vmatmul.mubr.bf16.gmra.mrb[0].mxu0 %v5502
    %v5807 = vpop.f32.mrb[0].mxu0
    %v5808 = vadd.f32 0.0, %v5807
    %v5809 = vpop.f32.mrb[0].mxu0
    %v5810 = vadd.f32 0.0, %v5809
    %v5811 = vpop.f32.mrb[0].mxu0
    %v5812 = vadd.f32 0.0, %v5811
    %v5813 = vpop.f32.mrb[0].mxu0
    %v5814 = vadd.f32 0.0, %v5813
    %5815 = vmatprep.mubr.bf16.mxu0 0
    %5816 = vmatmul.mubr.bf16.gmra.mrb[0].mxu0 %v5503
    %v5817 = vpop.f32.mrb[0].mxu0
    %v5818 = vadd.f32 0.0, %v5817
    %v5819 = vpop.f32.mrb[0].mxu0
    %v5820 = vadd.f32 0.0, %v5819
    %v5821 = vpop.f32.mrb[0].mxu0
    %v5822 = vadd.f32 0.0, %v5821
    %v5823 = vpop.f32.mrb[0].mxu0
    %v5824 = vadd.f32 0.0, %v5823
    %5825 = vmatprep.mubr.bf16.mxu0 0
    %5826 = vmatmul.mubr.bf16.gmra.mrb[0].mxu0 %v5504
    %v5827 = vpop.f32.mrb[0].mxu0
    %v5828 = vadd.f32 0.0, %v5827
    %v5829 = vpop.f32.mrb[0].mxu0
    %v5830 = vadd.f32 0.0, %v5829
    %v5831 = vpop.f32.mrb[0].mxu0
    %v5832 = vadd.f32 0.0, %v5831
    %v5833 = vpop.f32.mrb[0].mxu0
    %v5834 = vadd.f32 0.0, %v5833
    %5835 = vmatprep.mubr.bf16.mxu0 0
    %5836 = vmatmul.mubr.bf16.gmra.mrb[0].mxu0 %v5505
    %v5837 = vpop.f32.mrb[0].mxu0
    %v5838 = vadd.f32 0.0, %v5837
    %v5839 = vpop.f32.mrb[0].mxu0
    %v5840 = vadd.f32 0.0, %v5839
    %v5841 = vpop.f32.mrb[0].mxu0
    %v5842 = vadd.f32 0.0, %v5841
    %v5843 = vpop.f32.mrb[0].mxu0
    %v5844 = vadd.f32 0.0, %v5843
    %5845 = vmatprep.mubr.bf16.mxu0 0
    %5846 = vmatmul.mubr.bf16.gmra.mrb[0].mxu0 %v5506
    %v5847 = vpop.f32.mrb[0].mxu0
    %v5848 = vadd.f32 0.0, %v5847
    %v5849 = vpop.f32.mrb[0].mxu0
    %v5850 = vadd.f32 0.0, %v5849
    %v5851 = vpop.f32.mrb[0].mxu0
    %v5852 = vadd.f32 0.0, %v5851
    %v5853 = vpop.f32.mrb[0].mxu0
    %v5854 = vadd.f32 0.0, %v5853
    %5855 = vmatprep.mubr.bf16.mxu0 0
    %5856 = vmatmul.mubr.bf16.gmra.mrb[0].mxu0 %v5507
    %v5857 = vpop.f32.mrb[0].mxu0
    %v5858 = vadd.f32 0.0, %v5857
    %v5859 = vpop.f32.mrb[0].mxu0
    %v5860 = vadd.f32 0.0, %v5859
    %v5861 = vpop.f32.mrb[0].mxu0
    %v5862 = vadd.f32 0.0, %v5861
    %v5863 = vpop.f32.mrb[0].mxu0
    %v5864 = vadd.f32 0.0, %v5863
    %5865 = vmatprep.mubr.bf16.mxu0 0
    %5866 = vmatmul.mubr.bf16.gmra.mrb[0].mxu0 %v5508
    %v5867 = vpop.f32.mrb[0].mxu0
    %v5868 = vadd.f32 0.0, %v5867
    %v5869 = vpop.f32.mrb[0].mxu0
    %v5870 = vadd.f32 0.0, %v5869
    %v5871 = vpop.f32.mrb[0].mxu0
    %v5872 = vadd.f32 0.0, %v5871
    %v5873 = vpop.f32.mrb[0].mxu0
    %v5874 = vadd.f32 0.0, %v5873
    %5875 = vmatprep.mubr.bf16.mxu0 0
    %5876 = vmatmul.mubr.bf16.gmra.mrb[0].mxu0 %v5509
    %v5877 = vpop.f32.mrb[0].mxu0
    %v5878 = vadd.f32 0.0, %v5877
    %v5879 = vpop.f32.mrb[0].mxu0
    %v5880 = vadd.f32 0.0, %v5879
    %v5881 = vpop.f32.mrb[0].mxu0
    %v5882 = vadd.f32 0.0, %v5881
    %v5883 = vpop.f32.mrb[0].mxu0
    %v5884 = vadd.f32 0.0, %v5883
    %5885 = vmatprep.mubr.bf16.mxu0 0
    %5886 = vmatmul.mubr.bf16.gmra.mrb[0].mxu0 %v5510
    %v5887 = vpop.f32.mrb[0].mxu0
    %v5888 = vadd.f32 0.0, %v5887
    %v5889 = vpop.f32.mrb[0].mxu0
    %v5890 = vadd.f32 0.0, %v5889
    %v5891 = vpop.f32.mrb[0].mxu0
    %v5892 = vadd.f32 0.0, %v5891
    %v5893 = vpop.f32.mrb[0].mxu0
    %v5894 = vadd.f32 0.0, %v5893
    %5895 = vdwg.mxu0
    %5896 = vmatprep.subr.bf16.mxu0 %v5642
    %5897 = vmatpush1.bf16.msra.mxu0 %v5641
    %5898 = vmatprep.subr.bf16.mxu0 %v5646
    %5899 = vmatpush1.bf16.msra.mxu0 %v5645
    %5900 = vmatprep.subr.bf16.mxu0 %v5650
    %5901 = vmatpush1.bf16.msra.mxu0 %v5649
    %5902 = vmatprep.subr.bf16.mxu0 %v5654
    %5903 = vmatpush1.bf16.msra.mxu0 %v5653
    %5904 = vmatprep.subr.bf16.mxu0 %v5658
    %5905 = vmatpush1.bf16.msra.mxu0 %v5657
    %5906 = vmatprep.subr.bf16.mxu0 %v5662
    %5907 = vmatpush1.bf16.msra.mxu0 %v5661
    %5908 = vmatprep.subr.bf16.mxu0 %v5666
    %5909 = vmatpush1.bf16.msra.mxu0 %v5665
    %5910 = vmatprep.subr.bf16.mxu0 %v5670
    %5911 = vmatpush1.bf16.msra.mxu0 %v5669
    %5912 = vmatprep.subr.bf16.mxu0 0
    %5913 = vmatpush1.bf16.msra.mxu0 0
    %5914 = vmatprep.subr.bf16.mxu0 0
    %5915 = vmatpush1.bf16.msra.mxu0 0
    %5916 = vmatprep.subr.bf16.mxu0 0
    %5917 = vmatpush1.bf16.msra.mxu0 0
    %5918 = vmatprep.subr.bf16.mxu0 0
    %5919 = vmatpush1.bf16.msra.mxu0 0
    %5920 = vmatprep.subr.bf16.mxu0 0
    %5921 = vmatpush1.bf16.msra.mxu0 0
    %5922 = vmatprep.subr.bf16.mxu0 0
    %5923 = vmatpush1.bf16.msra.mxu0 0
    %5924 = vmatprep.subr.bf16.mxu0 0
    %5925 = vmatpush1.bf16.msra.mxu0 0
    %5926 = vmatprep.subr.bf16.mxu0 0
    %5927 = vmatpush1.bf16.msra.mxu0 0
    %5928 = vmatprep.mubr.bf16.mxu0 0
    %5929 = vmatmul.mubr.bf16.gmra.mrb[0].mxu0 %v5495
    %v5930 = vpop.f32.mrb[0].mxu0
    %v5931 = vadd.f32 0.0, %v5930
    %v5932 = vpop.f32.mrb[0].mxu0
    %v5933 = vadd.f32 0.0, %v5932
    %v5934 = vpop.f32.mrb[0].mxu0
    %v5935 = vadd.f32 0.0, %v5934
    %v5936 = vpop.f32.mrb[0].mxu0
    %v5937 = vadd.f32 0.0, %v5936
    %5938 = vmatprep.mubr.bf16.mxu0 0
    %5939 = vmatmul.mubr.bf16.gmra.mrb[0].mxu0 %v5496
    %v5940 = vpop.f32.mrb[0].mxu0
    %v5941 = vadd.f32 0.0, %v5940
    %v5942 = vpop.f32.mrb[0].mxu0
    %v5943 = vadd.f32 0.0, %v5942
    %v5944 = vpop.f32.mrb[0].mxu0
    %v5945 = vadd.f32 0.0, %v5944
    %v5946 = vpop.f32.mrb[0].mxu0
    %v5947 = vadd.f32 0.0, %v5946
    %5948 = vmatprep.mubr.bf16.mxu0 0
    %5949 = vmatmul.mubr.bf16.gmra.mrb[0].mxu0 %v5497
    %v5950 = vpop.f32.mrb[0].mxu0
    %v5951 = vadd.f32 0.0, %v5950
    %v5952 = vpop.f32.mrb[0].mxu0
    %v5953 = vadd.f32 0.0, %v5952
    %v5954 = vpop.f32.mrb[0].mxu0
    %v5955 = vadd.f32 0.0, %v5954
    %v5956 = vpop.f32.mrb[0].mxu0
    %v5957 = vadd.f32 0.0, %v5956
    %5958 = vmatprep.mubr.bf16.mxu0 0
    %5959 = vmatmul.mubr.bf16.gmra.mrb[0].mxu0 %v5498
    %v5960 = vpop.f32.mrb[0].mxu0
    %v5961 = vadd.f32 0.0, %v5960
    %v5962 = vpop.f32.mrb[0].mxu0
    %v5963 = vadd.f32 0.0, %v5962
    %v5964 = vpop.f32.mrb[0].mxu0
    %v5965 = vadd.f32 0.0, %v5964
    %v5966 = vpop.f32.mrb[0].mxu0
    %v5967 = vadd.f32 0.0, %v5966
    %5968 = vmatprep.mubr.bf16.mxu0 0
    %5969 = vmatmul.mubr.bf16.gmra.mrb[0].mxu0 %v5499
    %v5970 = vpop.f32.mrb[0].mxu0
    %v5971 = vadd.f32 0.0, %v5970
    %v5972 = vpop.f32.mrb[0].mxu0
    %v5973 = vadd.f32 0.0, %v5972
    %v5974 = vpop.f32.mrb[0].mxu0
    %v5975 = vadd.f32 0.0, %v5974
    %v5976 = vpop.f32.mrb[0].mxu0
    %v5977 = vadd.f32 0.0, %v5976
    %5978 = vmatprep.mubr.bf16.mxu0 0
    %5979 = vmatmul.mubr.bf16.gmra.mrb[0].mxu0 %v5500
    %v5980 = vpop.f32.mrb[0].mxu0
    %v5981 = vadd.f32 0.0, %v5980
    %v5982 = vpop.f32.mrb[0].mxu0
    %v5983 = vadd.f32 0.0, %v5982
    %v5984 = vpop.f32.mrb[0].mxu0
    %v5985 = vadd.f32 0.0, %v5984
    %v5986 = vpop.f32.mrb[0].mxu0
    %v5987 = vadd.f32 0.0, %v5986
    %5988 = vmatprep.mubr.bf16.mxu0 0
    %5989 = vmatmul.mubr.bf16.gmra.mrb[0].mxu0 %v5501
    %v5990 = vpop.f32.mrb[0].mxu0
    %v5991 = vadd.f32 0.0, %v5990
    %v5992 = vpop.f32.mrb[0].mxu0
    %v5993 = vadd.f32 0.0, %v5992
    %v5994 = vpop.f32.mrb[0].mxu0
    %v5995 = vadd.f32 0.0, %v5994
    %v5996 = vpop.f32.mrb[0].mxu0
    %v5997 = vadd.f32 0.0, %v5996
    %5998 = vmatprep.mubr.bf16.mxu0 0
    %5999 = vmatmul.mubr.bf16.gmra.mrb[0].mxu0 %v5502
    %v6000 = vpop.f32.mrb[0].mxu0
    %v6001 = vadd.f32 0.0, %v6000
    %v6002 = vpop.f32.mrb[0].mxu0
    %v6003 = vadd.f32 0.0, %v6002
    %v6004 = vpop.f32.mrb[0].mxu0
    %v6005 = vadd.f32 0.0, %v6004
    %v6006 = vpop.f32.mrb[0].mxu0
    %v6007 = vadd.f32 0.0, %v6006
    %6008 = vmatprep.mubr.bf16.mxu0 0
    %6009 = vmatmul.mubr.bf16.gmra.mrb[0].mxu0 %v5503
    %v6010 = vpop.f32.mrb[0].mxu0
    %v6011 = vadd.f32 0.0, %v6010
    %v6012 = vpop.f32.mrb[0].mxu0
    %v6013 = vadd.f32 0.0, %v6012
    %v6014 = vpop.f32.mrb[0].mxu0
    %v6015 = vadd.f32 0.0, %v6014
    %v6016 = vpop.f32.mrb[0].mxu0
    %v6017 = vadd.f32 0.0, %v6016
    %6018 = vmatprep.mubr.bf16.mxu0 0
    %6019 = vmatmul.mubr.bf16.gmra.mrb[0].mxu0 %v5504
    %v6020 = vpop.f32.mrb[0].mxu0
    %v6021 = vadd.f32 0.0, %v6020
    %v6022 = vpop.f32.mrb[0].mxu0
    %v6023 = vadd.f32 0.0, %v6022
    %v6024 = vpop.f32.mrb[0].mxu0
    %v6025 = vadd.f32 0.0, %v6024
    %v6026 = vpop.f32.mrb[0].mxu0
    %v6027 = vadd.f32 0.0, %v6026
    %6028 = vmatprep.mubr.bf16.mxu0 0
    %6029 = vmatmul.mubr.bf16.gmra.mrb[0].mxu0 %v5505
    %v6030 = vpop.f32.mrb[0].mxu0
    %v6031 = vadd.f32 0.0, %v6030
    %v6032 = vpop.f32.mrb[0].mxu0
    %v6033 = vadd.f32 0.0, %v6032
    %v6034 = vpop.f32.mrb[0].mxu0
    %v6035 = vadd.f32 0.0, %v6034
    %v6036 = vpop.f32.mrb[0].mxu0
    %v6037 = vadd.f32 0.0, %v6036
    %6038 = vmatprep.mubr.bf16.mxu0 0
    %6039 = vmatmul.mubr.bf16.gmra.mrb[0].mxu0 %v5506
    %v6040 = vpop.f32.mrb[0].mxu0
    %v6041 = vadd.f32 0.0, %v6040
    %v6042 = vpop.f32.mrb[0].mxu0
    %v6043 = vadd.f32 0.0, %v6042
    %v6044 = vpop.f32.mrb[0].mxu0
    %v6045 = vadd.f32 0.0, %v6044
    %v6046 = vpop.f32.mrb[0].mxu0
    %v6047 = vadd.f32 0.0, %v6046
    %6048 = vmatprep.mubr.bf16.mxu0 0
    %6049 = vmatmul.mubr.bf16.gmra.mrb[0].mxu0 %v5507
    %v6050 = vpop.f32.mrb[0].mxu0
    %v6051 = vadd.f32 0.0, %v6050
    %v6052 = vpop.f32.mrb[0].mxu0
    %v6053 = vadd.f32 0.0, %v6052
    %v6054 = vpop.f32.mrb[0].mxu0
    %v6055 = vadd.f32 0.0, %v6054
    %v6056 = vpop.f32.mrb[0].mxu0
    %v6057 = vadd.f32 0.0, %v6056
    %6058 = vmatprep.mubr.bf16.mxu0 0
    %6059 = vmatmul.mubr.bf16.gmra.mrb[0].mxu0 %v5508
    %v6060 = vpop.f32.mrb[0].mxu0
    %v6061 = vadd.f32 0.0, %v6060
    %v6062 = vpop.f32.mrb[0].mxu0
    %v6063 = vadd.f32 0.0, %v6062
    %v6064 = vpop.f32.mrb[0].mxu0
    %v6065 = vadd.f32 0.0, %v6064
    %v6066 = vpop.f32.mrb[0].mxu0
    %v6067 = vadd.f32 0.0, %v6066
    %6068 = vmatprep.mubr.bf16.mxu0 0
    %6069 = vmatmul.mubr.bf16.gmra.mrb[0].mxu0 %v5509
    %v6070 = vpop.f32.mrb[0].mxu0
    %v6071 = vadd.f32 0.0, %v6070
    %v6072 = vpop.f32.mrb[0].mxu0
    %v6073 = vadd.f32 0.0, %v6072
    %v6074 = vpop.f32.mrb[0].mxu0
    %v6075 = vadd.f32 0.0, %v6074
    %v6076 = vpop.f32.mrb[0].mxu0
    %v6077 = vadd.f32 0.0, %v6076
    %6078 = vmatprep.mubr.bf16.mxu0 0
    %6079 = vmatmul.mubr.bf16.gmra.mrb[0].mxu0 %v5510
    %v6080 = vpop.f32.mrb[0].mxu0
    %v6081 = vadd.f32 0.0, %v6080
    %v6082 = vpop.f32.mrb[0].mxu0
    %v6083 = vadd.f32 0.0, %v6082
    %v6084 = vpop.f32.mrb[0].mxu0
    %v6085 = vadd.f32 0.0, %v6084
    %v6086 = vpop.f32.mrb[0].mxu0
    %v6087 = vadd.f32 0.0, %v6086
    %6088 = vdwg.mxu0
    %v6089 = vpack.c.bf16 %v5742, %v5738
    %v6090 = vpack.c.bf16 %v5744, %v5740
    %v6091 = vpack.c.bf16 %v5935, %v5931
    %v6092 = vpack.c.bf16 %v5752, %v5748
    %v6093 = vpack.c.bf16 %v5754, %v5750
    %v6094 = vpack.c.bf16 %v5945, %v5941
    %v6095 = vpack.c.bf16 %v5762, %v5758
    %v6096 = vpack.c.bf16 %v5764, %v5760
    %v6097 = vpack.c.bf16 %v5955, %v5951
    %v6098 = vpack.c.bf16 %v5772, %v5768
    %v6099 = vpack.c.bf16 %v5774, %v5770
    %v6100 = vpack.c.bf16 %v5965, %v5961
    %v6101 = vpack.c.bf16 %v5782, %v5778
    %v6102 = vpack.c.bf16 %v5784, %v5780
    %v6103 = vpack.c.bf16 %v5975, %v5971
    %v6104 = vpack.c.bf16 %v5792, %v5788
    %v6105 = vpack.c.bf16 %v5794, %v5790
    %v6106 = vpack.c.bf16 %v5985, %v5981
    %v6107 = vpack.c.bf16 %v5802, %v5798
    %v6108 = vpack.c.bf16 %v5804, %v5800
    %v6109 = vpack.c.bf16 %v5995, %v5991
    %v6110 = vpack.c.bf16 %v5812, %v5808
    %v6111 = vpack.c.bf16 %v5814, %v5810
    %v6112 = vpack.c.bf16 %v6005, %v6001
    %v6113 = vpack.c.bf16 %v5822, %v5818
    %v6114 = vpack.c.bf16 %v5824, %v5820
    %v6115 = vpack.c.bf16 %v6015, %v6011
    %v6116 = vpack.c.bf16 %v5832, %v5828
    %v6117 = vpack.c.bf16 %v5834, %v5830
    %v6118 = vpack.c.bf16 %v6025, %v6021
    %v6119 = vpack.c.bf16 %v5842, %v5838
    %v6120 = vpack.c.bf16 %v5844, %v5840
    %v6121 = vpack.c.bf16 %v6035, %v6031
    %v6122 = vpack.c.bf16 %v5852, %v5848
    %v6123 = vpack.c.bf16 %v5854, %v5850
    %v6124 = vpack.c.bf16 %v6045, %v6041
    %v6125 = vpack.c.bf16 %v5862, %v5858
    %v6126 = vpack.c.bf16 %v5864, %v5860
    %v6127 = vpack.c.bf16 %v6055, %v6051
    %v6128 = vpack.c.bf16 %v5872, %v5868
    %v6129 = vpack.c.bf16 %v5874, %v5870
    %v6130 = vpack.c.bf16 %v6065, %v6061
    %v6131 = vpack.c.bf16 %v5882, %v5878
    %v6132 = vpack.c.bf16 %v5884, %v5880
    %v6133 = vpack.c.bf16 %v6075, %v6071
    %v6134 = vpack.c.bf16 %v5892, %v5888
    %v6135 = vpack.c.bf16 %v5894, %v5890
    %v6136 = vpack.c.bf16 %v6085, %v6081
    %6137 = vst [vmem:[#allocation4] sm:$0xff] %v5933
    %6138 = vst [vmem:[#allocation4 + $0x8] sm:$0xff] %v5937
    %6139 = vst [vmem:[#allocation4 + $0x10] sm:$0xff] %v5943
    %6140 = vst [vmem:[#allocation4 + $0x18] sm:$0xff] %v5947
    %6141 = vst [vmem:[#allocation4 + $0x20] sm:$0xff] %v5953
    %6142 = vst [vmem:[#allocation4 + $0x28] sm:$0xff] %v5957
    %6143 = vst [vmem:[#allocation4 + $0x30] sm:$0xff] %v5963
    %6144 = vst [vmem:[#allocation4 + $0x38] sm:$0xff] %v5967
    %6145 = vst [vmem:[#allocation4 + $0x40] sm:$0xff] %v5973
    %6146 = vst [vmem:[#allocation4 + $0x48] sm:$0xff] %v5977
    %6147 = vst [vmem:[#allocation4 + $0x50] sm:$0xff] %v5983
    %6148 = vst [vmem:[#allocation4 + $0x58] sm:$0xff] %v5987
    %6149 = vst [vmem:[#allocation4 + $0x60] sm:$0xff] %v5993
    %6150 = vst [vmem:[#allocation4 + $0x68] sm:$0xff] %v5997
    %6151 = vst [vmem:[#allocation4 + $0x70] sm:$0xff] %v6003
    %6152 = vst [vmem:[#allocation4 + $0x78] sm:$0xff] %v6007
    %6153 = vst [vmem:[#allocation4 + $0x80] sm:$0xff] %v6013
    %6154 = vst [vmem:[#allocation4 + $0x88] sm:$0xff] %v6017
    %6155 = vst [vmem:[#allocation4 + $0x90] sm:$0xff] %v6023
    %6156 = vst [vmem:[#allocation4 + $0x98] sm:$0xff] %v6027
    %6157 = vst [vmem:[#allocation4 + $0xa0] sm:$0xff] %v6033
    %6158 = vst [vmem:[#allocation4 + $0xa8] sm:$0xff] %v6037
    %6159 = vst [vmem:[#allocation4 + $0xb0] sm:$0xff] %v6043
    %6160 = vst [vmem:[#allocation4 + $0xb8] sm:$0xff] %v6047
    %6161 = vst [vmem:[#allocation4 + $0xc0] sm:$0xff] %v6053
    %6162 = vst [vmem:[#allocation4 + $0xc8] sm:$0xff] %v6057
    %6163 = vst [vmem:[#allocation4 + $0xd0] sm:$0xff] %v6063
    %6164 = vst [vmem:[#allocation4 + $0xd8] sm:$0xff] %v6067
    %6165 = vst [vmem:[#allocation4 + $0xe0] sm:$0xff] %v6073
    %6166 = vst [vmem:[#allocation4 + $0xe8] sm:$0xff] %v6077
    %6167 = vst [vmem:[#allocation4 + $0xf0] sm:$0xff] %v6083
    %6168 = vst [vmem:[#allocation4 + $0xf8] sm:$0xff] %v6087
    %6169 = vxpose.xlu0.b32.start [1/16] %v5933, 128
    %6170 = vxpose.xlu0.b32.cont [2/16] %v5937, 128
    %6171 = vxpose.xlu0.b32.cont [3/16] %v5943, 128
    %6172 = vxpose.xlu0.b32.cont [4/16] %v5947, 128
    %6173 = vxpose.xlu0.b32.cont [5/16] %v5953, 128
    %6174 = vxpose.xlu0.b32.cont [6/16] %v5957, 128
    %6175 = vxpose.xlu0.b32.cont [7/16] %v5963, 128
    %6176 = vxpose.xlu0.b32.cont [8/16] %v5967, 128
    %6177 = vxpose.xlu0.b32.cont [9/16] %v5973, 128
    %6178 = vxpose.xlu0.b32.cont [10/16] %v5977, 128
    %6179 = vxpose.xlu0.b32.cont [11/16] %v5983, 128
    %6180 = vxpose.xlu0.b32.cont [12/16] %v5987, 128
    %6181 = vxpose.xlu0.b32.cont [13/16] %v5993, 128
    %6182 = vxpose.xlu0.b32.cont [14/16] %v5997, 128
    %6183 = vxpose.xlu0.b32.cont [15/16] %v6003, 128
    %6184 = vxpose.xlu0.b32.end [16/16] %v6007, 128
    %v6185 = vpop.trf.xlu0
    %v6186 = vpop.trf.xlu0
    %v6187 = vpop.trf.xlu0
    %v6188 = vpop.trf.xlu0
    %v6189 = vpop.trf.xlu0
    %v6190 = vpop.trf.xlu0
    %v6191 = vpop.trf.xlu0
    %v6192 = vpop.trf.xlu0
    %v6193 = vpop.trf.xlu0
    %v6194 = vpop.trf.xlu0
    %v6195 = vpop.trf.xlu0
    %v6196 = vpop.trf.xlu0
    %v6197 = vpop.trf.xlu0
    %v6198 = vpop.trf.xlu0
    %v6199 = vpop.trf.xlu0
    %v6200 = vpop.trf.xlu0
    %6201 = vxpose.xlu0.b32.start [1/16] %v6013, 128
    %6202 = vxpose.xlu0.b32.cont [2/16] %v6017, 128
    %6203 = vxpose.xlu0.b32.cont [3/16] %v6023, 128
    %6204 = vxpose.xlu0.b32.cont [4/16] %v6027, 128
    %6205 = vxpose.xlu0.b32.cont [5/16] %v6033, 128
    %6206 = vxpose.xlu0.b32.cont [6/16] %v6037, 128
    %6207 = vxpose.xlu0.b32.cont [7/16] %v6043, 128
    %6208 = vxpose.xlu0.b32.cont [8/16] %v6047, 128
    %6209 = vxpose.xlu0.b32.cont [9/16] %v6053, 128
    %6210 = vxpose.xlu0.b32.cont [10/16] %v6057, 128
    %6211 = vxpose.xlu0.b32.cont [11/16] %v6063, 128
    %6212 = vxpose.xlu0.b32.cont [12/16] %v6067, 128
    %6213 = vxpose.xlu0.b32.cont [13/16] %v6073, 128
    %6214 = vxpose.xlu0.b32.cont [14/16] %v6077, 128
    %6215 = vxpose.xlu0.b32.cont [15/16] %v6083, 128
    %6216 = vxpose.xlu0.b32.end [16/16] %v6087, 128
    %v6217 = vpop.trf.xlu0
    %v6218 = vpop.trf.xlu0
    %v6219 = vpop.trf.xlu0
    %v6220 = vpop.trf.xlu0
    %v6221 = vpop.trf.xlu0
    %v6222 = vpop.trf.xlu0
    %v6223 = vpop.trf.xlu0
    %v6224 = vpop.trf.xlu0
    %v6225 = vpop.trf.xlu0
    %v6226 = vpop.trf.xlu0
    %v6227 = vpop.trf.xlu0
    %v6228 = vpop.trf.xlu0
    %v6229 = vpop.trf.xlu0
    %v6230 = vpop.trf.xlu0
    %v6231 = vpop.trf.xlu0
    %v6232 = vpop.trf.xlu0
    %s6234 = sshll.u32 1, 14
    %s6235 = sxor.u32 4294967295, %s6234
    %s6237 = sadd.s32 2, %s1050
    %s6239 = sshll.u32 7, 26
    %s6240 = sxor.u32 4294967295, %s6239
    %s6241 = sand.u32 0, %s6240
    %s6242 = sshll.u32 %s6237, 26
    %s6243 = sor.u32 %s6241, %s6242
    %s6244 = sshll.u32 [#allocation2], 4
    %s6245 = int_to_ptr.vmem [resolvable:$true] %s6244
    %6248 = sst [smem:[#allocation31]] 256
    %s6249 = scalar_lea.smem [#allocation31], 1
    %6250 = sst [smem:[%s6249]] 256
    %s6251 = scalar_lea.smem [#allocation31], 2
    %6252 = sst [smem:[%s6251]] 2
    %s6253 = scalar_lea.smem [#allocation31], 3
    %6254 = sst [smem:[%s6253]] 64
    %s6255 = scalar_lea.smem [#allocation31], 4
    %6256 = sst [smem:[%s6255]] 128
    %s6257 = scalar_lea.smem [#allocation31], 5
    %6258 = sst [smem:[%s6257]] 2
    %s6259 = scalar_lea.smem [#allocation31], 6
    %6260 = sst [smem:[%s6259]] 128
    %s6261 = scalar_lea.smem [#allocation31], 7
    %6262 = sst [smem:[%s6261]] 64
    %s6263 = scalar_lea.smem [#allocation31], 8
    %6264 = sst [smem:[%s6263]] 4
    %6266 = dma.general %s1045, 4096, %s6245, [#allocation3], [#allocation30], [#allocation31], %s6243, 0
    %s6267 = sshll.u32 %s1082, 4
    %6268 = dma.done [#allocation3], %s6267
    %v6269 = vld [vmem:[#allocation2] sm:$0xff]
    %v6270 = vld [vmem:[#allocation2 + $0x8] sm:$0xff]
    %v6271 = vld [vmem:[#allocation2 + $0x10] sm:$0xff]
    %v6272 = vld [vmem:[#allocation2 + $0x18] sm:$0xff]
    %v6273 = vld [vmem:[#allocation2 + $0x20] sm:$0xff]
    %v6274 = vld [vmem:[#allocation2 + $0x28] sm:$0xff]
    %v6275 = vld [vmem:[#allocation2 + $0x30] sm:$0xff]
    %v6276 = vld [vmem:[#allocation2 + $0x38] sm:$0xff]
    %v6277 = vld [vmem:[#allocation2 + $0x40] sm:$0xff]
    %v6278 = vld [vmem:[#allocation2 + $0x48] sm:$0xff]
    %v6279 = vld [vmem:[#allocation2 + $0x50] sm:$0xff]
    %v6280 = vld [vmem:[#allocation2 + $0x58] sm:$0xff]
    %v6281 = vld [vmem:[#allocation2 + $0x60] sm:$0xff]
    %v6282 = vld [vmem:[#allocation2 + $0x68] sm:$0xff]
    %v6283 = vld [vmem:[#allocation2 + $0x70] sm:$0xff]
    %v6284 = vld [vmem:[#allocation2 + $0x78] sm:$0xff]
    %v6285 = vld [vmem:[#allocation2 + $0x80] sm:$0xff]
    %v6286 = vld [vmem:[#allocation2 + $0x88] sm:$0xff]
    %v6287 = vld [vmem:[#allocation2 + $0x90] sm:$0xff]
    %v6288 = vld [vmem:[#allocation2 + $0x98] sm:$0xff]
    %v6289 = vld [vmem:[#allocation2 + $0xa0] sm:$0xff]
    %v6290 = vld [vmem:[#allocation2 + $0xa8] sm:$0xff]
    %v6291 = vld [vmem:[#allocation2 + $0xb0] sm:$0xff]
    %v6292 = vld [vmem:[#allocation2 + $0xb8] sm:$0xff]
    %v6293 = vld [vmem:[#allocation2 + $0xc0] sm:$0xff]
    %v6294 = vld [vmem:[#allocation2 + $0xc8] sm:$0xff]
    %v6295 = vld [vmem:[#allocation2 + $0xd0] sm:$0xff]
    %v6296 = vld [vmem:[#allocation2 + $0xd8] sm:$0xff]
    %v6297 = vld [vmem:[#allocation2 + $0xe0] sm:$0xff]
    %v6298 = vld [vmem:[#allocation2 + $0xe8] sm:$0xff]
    %v6299 = vld [vmem:[#allocation2 + $0xf0] sm:$0xff]
    %v6300 = vld [vmem:[#allocation2 + $0xf8] sm:$0xff]
    %vm6301 = vcmp.gt.bf16.partialorder %v6269, 0
    %vm6302 = vcmp.gt.bf16.partialorder %v6270, 0
    %vm6303 = vcmp.gt.bf16.partialorder %v6271, 0
    %vm6304 = vcmp.gt.bf16.partialorder %v6272, 0
    %vm6305 = vcmp.gt.bf16.partialorder %v6273, 0
    %vm6306 = vcmp.gt.bf16.partialorder %v6274, 0
    %vm6307 = vcmp.gt.bf16.partialorder %v6275, 0
    %vm6308 = vcmp.gt.bf16.partialorder %v6276, 0
    %vm6309 = vcmp.gt.bf16.partialorder %v6277, 0
    %vm6310 = vcmp.gt.bf16.partialorder %v6278, 0
    %vm6311 = vcmp.gt.bf16.partialorder %v6279, 0
    %vm6312 = vcmp.gt.bf16.partialorder %v6280, 0
    %vm6313 = vcmp.gt.bf16.partialorder %v6281, 0
    %vm6314 = vcmp.gt.bf16.partialorder %v6282, 0
    %vm6315 = vcmp.gt.bf16.partialorder %v6283, 0
    %vm6316 = vcmp.gt.bf16.partialorder %v6284, 0
    %vm6317 = vcmp.gt.bf16.partialorder %v6285, 0
    %vm6318 = vcmp.gt.bf16.partialorder %v6286, 0
    %vm6319 = vcmp.gt.bf16.partialorder %v6287, 0
    %vm6320 = vcmp.gt.bf16.partialorder %v6288, 0
    %vm6321 = vcmp.gt.bf16.partialorder %v6289, 0
    %vm6322 = vcmp.gt.bf16.partialorder %v6290, 0
    %vm6323 = vcmp.gt.bf16.partialorder %v6291, 0
    %vm6324 = vcmp.gt.bf16.partialorder %v6292, 0
    %vm6325 = vcmp.gt.bf16.partialorder %v6293, 0
    %vm6326 = vcmp.gt.bf16.partialorder %v6294, 0
    %vm6327 = vcmp.gt.bf16.partialorder %v6295, 0
    %vm6328 = vcmp.gt.bf16.partialorder %v6296, 0
    %vm6329 = vcmp.gt.bf16.partialorder %v6297, 0
    %vm6330 = vcmp.gt.bf16.partialorder %v6298, 0
    %vm6331 = vcmp.gt.bf16.partialorder %v6299, 0
    %vm6332 = vcmp.gt.bf16.partialorder %v6300, 0
    %v6333 = vld [vmem:[#allocation4] sm:$0xff]
    %v6334 = vld [vmem:[#allocation4 + $0x8] sm:$0xff]
    %v6335 = vld [vmem:[#allocation4 + $0x10] sm:$0xff]
    %v6336 = vld [vmem:[#allocation4 + $0x18] sm:$0xff]
    %v6337 = vld [vmem:[#allocation4 + $0x20] sm:$0xff]
    %v6338 = vld [vmem:[#allocation4 + $0x28] sm:$0xff]
    %v6339 = vld [vmem:[#allocation4 + $0x30] sm:$0xff]
    %v6340 = vld [vmem:[#allocation4 + $0x38] sm:$0xff]
    %v6341 = vld [vmem:[#allocation4 + $0x40] sm:$0xff]
    %v6342 = vld [vmem:[#allocation4 + $0x48] sm:$0xff]
    %v6343 = vld [vmem:[#allocation4 + $0x50] sm:$0xff]
    %v6344 = vld [vmem:[#allocation4 + $0x58] sm:$0xff]
    %v6345 = vld [vmem:[#allocation4 + $0x60] sm:$0xff]
    %v6346 = vld [vmem:[#allocation4 + $0x68] sm:$0xff]
    %v6347 = vld [vmem:[#allocation4 + $0x70] sm:$0xff]
    %v6348 = vld [vmem:[#allocation4 + $0x78] sm:$0xff]
    %v6349 = vld [vmem:[#allocation4 + $0x80] sm:$0xff]
    %v6350 = vld [vmem:[#allocation4 + $0x88] sm:$0xff]
    %v6351 = vld [vmem:[#allocation4 + $0x90] sm:$0xff]
    %v6352 = vld [vmem:[#allocation4 + $0x98] sm:$0xff]
    %v6353 = vld [vmem:[#allocation4 + $0xa0] sm:$0xff]
    %v6354 = vld [vmem:[#allocation4 + $0xa8] sm:$0xff]
    %v6355 = vld [vmem:[#allocation4 + $0xb0] sm:$0xff]
    %v6356 = vld [vmem:[#allocation4 + $0xb8] sm:$0xff]
    %v6357 = vld [vmem:[#allocation4 + $0xc0] sm:$0xff]
    %v6358 = vld [vmem:[#allocation4 + $0xc8] sm:$0xff]
    %v6359 = vld [vmem:[#allocation4 + $0xd0] sm:$0xff]
    %v6360 = vld [vmem:[#allocation4 + $0xd8] sm:$0xff]
    %v6361 = vld [vmem:[#allocation4 + $0xe0] sm:$0xff]
    %v6362 = vld [vmem:[#allocation4 + $0xe8] sm:$0xff]
    %v6363 = vld [vmem:[#allocation4 + $0xf0] sm:$0xff]
    %v6364 = vld [vmem:[#allocation4 + $0xf8] sm:$0xff]
    %6366 = vset.pattern.permute.xlu0 3
    %6367 = vperm.xlu0 %6366, %v6333
    %v6368 = vpop.permute.xlu0 %6367
    %6371 = vset.pattern.permute.xlu0 3
    %6372 = vperm.xlu0 %6371, %v6334
    %v6373 = vpop.permute.xlu0 %6372
    %6376 = vset.pattern.permute.xlu0 3
    %6377 = vperm.xlu0 %6376, %v6335
    %v6378 = vpop.permute.xlu0 %6377
    %6381 = vset.pattern.permute.xlu0 3
    %6382 = vperm.xlu0 %6381, %v6336
    %v6383 = vpop.permute.xlu0 %6382
    %6386 = vset.pattern.permute.xlu0 3
    %6387 = vperm.xlu0 %6386, %v6337
    %v6388 = vpop.permute.xlu0 %6387
    %6391 = vset.pattern.permute.xlu0 3
    %6392 = vperm.xlu0 %6391, %v6338
    %v6393 = vpop.permute.xlu0 %6392
    %6396 = vset.pattern.permute.xlu0 3
    %6397 = vperm.xlu0 %6396, %v6339
    %v6398 = vpop.permute.xlu0 %6397
    %6401 = vset.pattern.permute.xlu0 3
    %6402 = vperm.xlu0 %6401, %v6340
    %v6403 = vpop.permute.xlu0 %6402
    %6406 = vset.pattern.permute.xlu0 3
    %6407 = vperm.xlu0 %6406, %v6341
    %v6408 = vpop.permute.xlu0 %6407
    %6411 = vset.pattern.permute.xlu0 3
    %6412 = vperm.xlu0 %6411, %v6342
    %v6413 = vpop.permute.xlu0 %6412
    %6416 = vset.pattern.permute.xlu0 3
    %6417 = vperm.xlu0 %6416, %v6343
    %v6418 = vpop.permute.xlu0 %6417
    %6421 = vset.pattern.permute.xlu0 3
    %6422 = vperm.xlu0 %6421, %v6344
    %v6423 = vpop.permute.xlu0 %6422
    %6426 = vset.pattern.permute.xlu0 3
    %6427 = vperm.xlu0 %6426, %v6345
    %v6428 = vpop.permute.xlu0 %6427
    %6431 = vset.pattern.permute.xlu0 3
    %6432 = vperm.xlu0 %6431, %v6346
    %v6433 = vpop.permute.xlu0 %6432
    %6436 = vset.pattern.permute.xlu0 3
    %6437 = vperm.xlu0 %6436, %v6347
    %v6438 = vpop.permute.xlu0 %6437
    %6441 = vset.pattern.permute.xlu0 3
    %6442 = vperm.xlu0 %6441, %v6348
    %v6443 = vpop.permute.xlu0 %6442
    %6446 = vset.pattern.permute.xlu0 3
    %6447 = vperm.xlu0 %6446, %v6349
    %v6448 = vpop.permute.xlu0 %6447
    %6451 = vset.pattern.permute.xlu0 3
    %6452 = vperm.xlu0 %6451, %v6350
    %v6453 = vpop.permute.xlu0 %6452
    %6456 = vset.pattern.permute.xlu0 3
    %6457 = vperm.xlu0 %6456, %v6351
    %v6458 = vpop.permute.xlu0 %6457
    %6461 = vset.pattern.permute.xlu0 3
    %6462 = vperm.xlu0 %6461, %v6352
    %v6463 = vpop.permute.xlu0 %6462
    %6466 = vset.pattern.permute.xlu0 3
    %6467 = vperm.xlu0 %6466, %v6353
    %v6468 = vpop.permute.xlu0 %6467
    %6471 = vset.pattern.permute.xlu0 3
    %6472 = vperm.xlu0 %6471, %v6354
    %v6473 = vpop.permute.xlu0 %6472
    %6476 = vset.pattern.permute.xlu0 3
    %6477 = vperm.xlu0 %6476, %v6355
    %v6478 = vpop.permute.xlu0 %6477
    %6481 = vset.pattern.permute.xlu0 3
    %6482 = vperm.xlu0 %6481, %v6356
    %v6483 = vpop.permute.xlu0 %6482
    %6486 = vset.pattern.permute.xlu0 3
    %6487 = vperm.xlu0 %6486, %v6357
    %v6488 = vpop.permute.xlu0 %6487
    %6491 = vset.pattern.permute.xlu0 3
    %6492 = vperm.xlu0 %6491, %v6358
    %v6493 = vpop.permute.xlu0 %6492
    %6496 = vset.pattern.permute.xlu0 3
    %6497 = vperm.xlu0 %6496, %v6359
    %v6498 = vpop.permute.xlu0 %6497
    %6501 = vset.pattern.permute.xlu0 3
    %6502 = vperm.xlu0 %6501, %v6360
    %v6503 = vpop.permute.xlu0 %6502
    %6506 = vset.pattern.permute.xlu0 3
    %6507 = vperm.xlu0 %6506, %v6361
    %v6508 = vpop.permute.xlu0 %6507
    %6511 = vset.pattern.permute.xlu0 3
    %6512 = vperm.xlu0 %6511, %v6362
    %v6513 = vpop.permute.xlu0 %6512
    %6516 = vset.pattern.permute.xlu0 3
    %6517 = vperm.xlu0 %6516, %v6363
    %v6518 = vpop.permute.xlu0 %6517
    %6521 = vset.pattern.permute.xlu0 3
    %6522 = vperm.xlu0 %6521, %v6364
    %v6523 = vpop.permute.xlu0 %6522
    %v6525 = vlaneseq
    %v6526 = vshrl.u32 %v6525, 7
    %v6527 = vsub.s32 0, %v6526
    %v6528 = vrot.slane %v6185, %v6527
    %v6529 = vlaneseq
    %v6530 = vshrl.u32 %v6529, 7
    %v6531 = vsub.s32 0, %v6530
    %v6532 = vrot.slane %v6217, %v6531
    %v6533 = vadd.f32 %v6368, %v6528
    %v6534 = vadd.f32 %v6368, %v6532
    %v6535 = vadd.f32 %v6373, %v6528
    %v6536 = vadd.f32 %v6373, %v6532
    %v6537 = vadd.f32 %v6378, %v6528
    %v6538 = vadd.f32 %v6378, %v6532
    %v6539 = vadd.f32 %v6383, %v6528
    %v6540 = vadd.f32 %v6383, %v6532
    %v6541 = vadd.f32 %v6388, %v6528
    %v6542 = vadd.f32 %v6388, %v6532
    %v6543 = vadd.f32 %v6393, %v6528
    %v6544 = vadd.f32 %v6393, %v6532
    %v6545 = vadd.f32 %v6398, %v6528
    %v6546 = vadd.f32 %v6398, %v6532
    %v6547 = vadd.f32 %v6403, %v6528
    %v6548 = vadd.f32 %v6403, %v6532
    %v6549 = vadd.f32 %v6408, %v6528
    %v6550 = vadd.f32 %v6408, %v6532
    %v6551 = vadd.f32 %v6413, %v6528
    %v6552 = vadd.f32 %v6413, %v6532
    %v6553 = vadd.f32 %v6418, %v6528
    %v6554 = vadd.f32 %v6418, %v6532
    %v6555 = vadd.f32 %v6423, %v6528
    %v6556 = vadd.f32 %v6423, %v6532
    %v6557 = vadd.f32 %v6428, %v6528
    %v6558 = vadd.f32 %v6428, %v6532
    %v6559 = vadd.f32 %v6433, %v6528
    %v6560 = vadd.f32 %v6433, %v6532
    %v6561 = vadd.f32 %v6438, %v6528
    %v6562 = vadd.f32 %v6438, %v6532
    %v6563 = vadd.f32 %v6443, %v6528
    %v6564 = vadd.f32 %v6443, %v6532
    %v6565 = vadd.f32 %v6448, %v6528
    %v6566 = vadd.f32 %v6448, %v6532
    %v6567 = vadd.f32 %v6453, %v6528
    %v6568 = vadd.f32 %v6453, %v6532
    %v6569 = vadd.f32 %v6458, %v6528
    %v6570 = vadd.f32 %v6458, %v6532
    %v6571 = vadd.f32 %v6463, %v6528
    %v6572 = vadd.f32 %v6463, %v6532
    %v6573 = vadd.f32 %v6468, %v6528
    %v6574 = vadd.f32 %v6468, %v6532
    %v6575 = vadd.f32 %v6473, %v6528
    %v6576 = vadd.f32 %v6473, %v6532
    %v6577 = vadd.f32 %v6478, %v6528
    %v6578 = vadd.f32 %v6478, %v6532
    %v6579 = vadd.f32 %v6483, %v6528
    %v6580 = vadd.f32 %v6483, %v6532
    %v6581 = vadd.f32 %v6488, %v6528
    %v6582 = vadd.f32 %v6488, %v6532
    %v6583 = vadd.f32 %v6493, %v6528
    %v6584 = vadd.f32 %v6493, %v6532
    %v6585 = vadd.f32 %v6498, %v6528
    %v6586 = vadd.f32 %v6498, %v6532
    %v6587 = vadd.f32 %v6503, %v6528
    %v6588 = vadd.f32 %v6503, %v6532
    %v6589 = vadd.f32 %v6508, %v6528
    %v6590 = vadd.f32 %v6508, %v6532
    %v6591 = vadd.f32 %v6513, %v6528
    %v6592 = vadd.f32 %v6513, %v6532
    %v6593 = vadd.f32 %v6518, %v6528
    %v6594 = vadd.f32 %v6518, %v6532
    %v6595 = vadd.f32 %v6523, %v6528
    %v6596 = vadd.f32 %v6523, %v6532
    %v6597 = vmul.f32 %v6533, 0.2
    %v6598 = vmul.f32 %v6534, 0.2
    %v6599 = vmul.f32 %v6535, 0.2
    %v6600 = vmul.f32 %v6536, 0.2
    %v6601 = vmul.f32 %v6537, 0.2
    %v6602 = vmul.f32 %v6538, 0.2
    %v6603 = vmul.f32 %v6539, 0.2
    %v6604 = vmul.f32 %v6540, 0.2
    %v6605 = vmul.f32 %v6541, 0.2
    %v6606 = vmul.f32 %v6542, 0.2
    %v6607 = vmul.f32 %v6543, 0.2
    %v6608 = vmul.f32 %v6544, 0.2
    %v6609 = vmul.f32 %v6545, 0.2
    %v6610 = vmul.f32 %v6546, 0.2
    %v6611 = vmul.f32 %v6547, 0.2
    %v6612 = vmul.f32 %v6548, 0.2
    %v6613 = vmul.f32 %v6549, 0.2
    %v6614 = vmul.f32 %v6550, 0.2
    %v6615 = vmul.f32 %v6551, 0.2
    %v6616 = vmul.f32 %v6552, 0.2
    %v6617 = vmul.f32 %v6553, 0.2
    %v6618 = vmul.f32 %v6554, 0.2
    %v6619 = vmul.f32 %v6555, 0.2
    %v6620 = vmul.f32 %v6556, 0.2
    %v6621 = vmul.f32 %v6557, 0.2
    %v6622 = vmul.f32 %v6558, 0.2
    %v6623 = vmul.f32 %v6559, 0.2
    %v6624 = vmul.f32 %v6560, 0.2
    %v6625 = vmul.f32 %v6561, 0.2
    %v6626 = vmul.f32 %v6562, 0.2
    %v6627 = vmul.f32 %v6563, 0.2
    %v6628 = vmul.f32 %v6564, 0.2
    %v6629 = vmul.f32 %v6565, 0.2
    %v6630 = vmul.f32 %v6566, 0.2
    %v6631 = vmul.f32 %v6567, 0.2
    %v6632 = vmul.f32 %v6568, 0.2
    %v6633 = vmul.f32 %v6569, 0.2
    %v6634 = vmul.f32 %v6570, 0.2
    %v6635 = vmul.f32 %v6571, 0.2
    %v6636 = vmul.f32 %v6572, 0.2
    %v6637 = vmul.f32 %v6573, 0.2
    %v6638 = vmul.f32 %v6574, 0.2
    %v6639 = vmul.f32 %v6575, 0.2
    %v6640 = vmul.f32 %v6576, 0.2
    %v6641 = vmul.f32 %v6577, 0.2
    %v6642 = vmul.f32 %v6578, 0.2
    %v6643 = vmul.f32 %v6579, 0.2
    %v6644 = vmul.f32 %v6580, 0.2
    %v6645 = vmul.f32 %v6581, 0.2
    %v6646 = vmul.f32 %v6582, 0.2
    %v6647 = vmul.f32 %v6583, 0.2
    %v6648 = vmul.f32 %v6584, 0.2
    %v6649 = vmul.f32 %v6585, 0.2
    %v6650 = vmul.f32 %v6586, 0.2
    %v6651 = vmul.f32 %v6587, 0.2
    %v6652 = vmul.f32 %v6588, 0.2
    %v6653 = vmul.f32 %v6589, 0.2
    %v6654 = vmul.f32 %v6590, 0.2
    %v6655 = vmul.f32 %v6591, 0.2
    %v6656 = vmul.f32 %v6592, 0.2
    %v6657 = vmul.f32 %v6593, 0.2
    %v6658 = vmul.f32 %v6594, 0.2
    %v6659 = vmul.f32 %v6595, 0.2
    %v6660 = vmul.f32 %v6596, 0.2
    %v6661 = vmax.f32 %v6533, %v6597
    %v6662 = vmax.f32 %v6534, %v6598
    %v6663 = vmax.f32 %v6535, %v6599
    %v6664 = vmax.f32 %v6536, %v6600
    %v6665 = vmax.f32 %v6537, %v6601
    %v6666 = vmax.f32 %v6538, %v6602
    %v6667 = vmax.f32 %v6539, %v6603
    %v6668 = vmax.f32 %v6540, %v6604
    %v6669 = vmax.f32 %v6541, %v6605
    %v6670 = vmax.f32 %v6542, %v6606
    %v6671 = vmax.f32 %v6543, %v6607
    %v6672 = vmax.f32 %v6544, %v6608
    %v6673 = vmax.f32 %v6545, %v6609
    %v6674 = vmax.f32 %v6546, %v6610
    %v6675 = vmax.f32 %v6547, %v6611
    %v6676 = vmax.f32 %v6548, %v6612
    %v6677 = vmax.f32 %v6549, %v6613
    %v6678 = vmax.f32 %v6550, %v6614
    %v6679 = vmax.f32 %v6551, %v6615
    %v6680 = vmax.f32 %v6552, %v6616
    %v6681 = vmax.f32 %v6553, %v6617
    %v6682 = vmax.f32 %v6554, %v6618
    %v6683 = vmax.f32 %v6555, %v6619
    %v6684 = vmax.f32 %v6556, %v6620
    %v6685 = vmax.f32 %v6557, %v6621
    %v6686 = vmax.f32 %v6558, %v6622
    %v6687 = vmax.f32 %v6559, %v6623
    %v6688 = vmax.f32 %v6560, %v6624
    %v6689 = vmax.f32 %v6561, %v6625
    %v6690 = vmax.f32 %v6562, %v6626
    %v6691 = vmax.f32 %v6563, %v6627
    %v6692 = vmax.f32 %v6564, %v6628
    %v6693 = vmax.f32 %v6565, %v6629
    %v6694 = vmax.f32 %v6566, %v6630
    %v6695 = vmax.f32 %v6567, %v6631
    %v6696 = vmax.f32 %v6568, %v6632
    %v6697 = vmax.f32 %v6569, %v6633
    %v6698 = vmax.f32 %v6570, %v6634
    %v6699 = vmax.f32 %v6571, %v6635
    %v6700 = vmax.f32 %v6572, %v6636
    %v6701 = vmax.f32 %v6573, %v6637
    %v6702 = vmax.f32 %v6574, %v6638
    %v6703 = vmax.f32 %v6575, %v6639
    %v6704 = vmax.f32 %v6576, %v6640
    %v6705 = vmax.f32 %v6577, %v6641
    %v6706 = vmax.f32 %v6578, %v6642
    %v6707 = vmax.f32 %v6579, %v6643
    %v6708 = vmax.f32 %v6580, %v6644
    %v6709 = vmax.f32 %v6581, %v6645
    %v6710 = vmax.f32 %v6582, %v6646
    %v6711 = vmax.f32 %v6583, %v6647
    %v6712 = vmax.f32 %v6584, %v6648
    %v6713 = vmax.f32 %v6585, %v6649
    %v6714 = vmax.f32 %v6586, %v6650
    %v6715 = vmax.f32 %v6587, %v6651
    %v6716 = vmax.f32 %v6588, %v6652
    %v6717 = vmax.f32 %v6589, %v6653
    %v6718 = vmax.f32 %v6590, %v6654
    %v6719 = vmax.f32 %v6591, %v6655
    %v6720 = vmax.f32 %v6592, %v6656
    %v6721 = vmax.f32 %v6593, %v6657
    %v6722 = vmax.f32 %v6594, %v6658
    %v6723 = vmax.f32 %v6595, %v6659
    %v6724 = vmax.f32 %v6596, %v6660
    %v6725 = vsel %vm6301, 65537, 0
    %v6726 = vsel %vm6302, 65537, 0
    %v6727 = vsel %vm6303, 65537, 0
    %v6728 = vsel %vm6304, 65537, 0
    %v6729 = vsel %vm6305, 65537, 0
    %v6730 = vsel %vm6306, 65537, 0
    %v6731 = vsel %vm6307, 65537, 0
    %v6732 = vsel %vm6308, 65537, 0
    %v6733 = vsel %vm6309, 65537, 0
    %v6734 = vsel %vm6310, 65537, 0
    %v6735 = vsel %vm6311, 65537, 0
    %v6736 = vsel %vm6312, 65537, 0
    %v6737 = vsel %vm6313, 65537, 0
    %v6738 = vsel %vm6314, 65537, 0
    %v6739 = vsel %vm6315, 65537, 0
    %v6740 = vsel %vm6316, 65537, 0
    %v6741 = vsel %vm6317, 65537, 0
    %v6742 = vsel %vm6318, 65537, 0
    %v6743 = vsel %vm6319, 65537, 0
    %v6744 = vsel %vm6320, 65537, 0
    %v6745 = vsel %vm6321, 65537, 0
    %v6746 = vsel %vm6322, 65537, 0
    %v6747 = vsel %vm6323, 65537, 0
    %v6748 = vsel %vm6324, 65537, 0
    %v6749 = vsel %vm6325, 65537, 0
    %v6750 = vsel %vm6326, 65537, 0
    %v6751 = vsel %vm6327, 65537, 0
    %v6752 = vsel %vm6328, 65537, 0
    %v6753 = vsel %vm6329, 65537, 0
    %v6754 = vsel %vm6330, 65537, 0
    %v6755 = vsel %vm6331, 65537, 0
    %v6756 = vsel %vm6332, 65537, 0
    %v6757 = vunpack.c.l.b16 %v6725
    %v6758 = vunpack.c.l.b16 %v6726
    %v6759 = vunpack.c.h.b16 %v6725
    %v6760 = vunpack.c.h.b16 %v6726
    %v6761 = vunpack.c.l.b16 %v6727
    %v6762 = vunpack.c.l.b16 %v6728
    %v6763 = vunpack.c.h.b16 %v6727
    %v6764 = vunpack.c.h.b16 %v6728
    %v6765 = vunpack.c.l.b16 %v6729
    %v6766 = vunpack.c.l.b16 %v6730
    %v6767 = vunpack.c.h.b16 %v6729
    %v6768 = vunpack.c.h.b16 %v6730
    %v6769 = vunpack.c.l.b16 %v6731
    %v6770 = vunpack.c.l.b16 %v6732
    %v6771 = vunpack.c.h.b16 %v6731
    %v6772 = vunpack.c.h.b16 %v6732
    %v6773 = vunpack.c.l.b16 %v6733
    %v6774 = vunpack.c.l.b16 %v6734
    %v6775 = vunpack.c.h.b16 %v6733
    %v6776 = vunpack.c.h.b16 %v6734
    %v6777 = vunpack.c.l.b16 %v6735
    %v6778 = vunpack.c.l.b16 %v6736
    %v6779 = vunpack.c.h.b16 %v6735
    %v6780 = vunpack.c.h.b16 %v6736
    %v6781 = vunpack.c.l.b16 %v6737
    %v6782 = vunpack.c.l.b16 %v6738
    %v6783 = vunpack.c.h.b16 %v6737
    %v6784 = vunpack.c.h.b16 %v6738
    %v6785 = vunpack.c.l.b16 %v6739
    %v6786 = vunpack.c.l.b16 %v6740
    %v6787 = vunpack.c.h.b16 %v6739
    %v6788 = vunpack.c.h.b16 %v6740
    %v6789 = vunpack.c.l.b16 %v6741
    %v6790 = vunpack.c.l.b16 %v6742
    %v6791 = vunpack.c.h.b16 %v6741
    %v6792 = vunpack.c.h.b16 %v6742
    %v6793 = vunpack.c.l.b16 %v6743
    %v6794 = vunpack.c.l.b16 %v6744
    %v6795 = vunpack.c.h.b16 %v6743
    %v6796 = vunpack.c.h.b16 %v6744
    %v6797 = vunpack.c.l.b16 %v6745
    %v6798 = vunpack.c.l.b16 %v6746
    %v6799 = vunpack.c.h.b16 %v6745
    %v6800 = vunpack.c.h.b16 %v6746
    %v6801 = vunpack.c.l.b16 %v6747
    %v6802 = vunpack.c.l.b16 %v6748
    %v6803 = vunpack.c.h.b16 %v6747
    %v6804 = vunpack.c.h.b16 %v6748
    %v6805 = vunpack.c.l.b16 %v6749
    %v6806 = vunpack.c.l.b16 %v6750
    %v6807 = vunpack.c.h.b16 %v6749
    %v6808 = vunpack.c.h.b16 %v6750
    %v6809 = vunpack.c.l.b16 %v6751
    %v6810 = vunpack.c.l.b16 %v6752
    %v6811 = vunpack.c.h.b16 %v6751
    %v6812 = vunpack.c.h.b16 %v6752
    %v6813 = vunpack.c.l.b16 %v6753
    %v6814 = vunpack.c.l.b16 %v6754
    %v6815 = vunpack.c.h.b16 %v6753
    %v6816 = vunpack.c.h.b16 %v6754
    %v6817 = vunpack.c.l.b16 %v6755
    %v6818 = vunpack.c.l.b16 %v6756
    %v6819 = vunpack.c.h.b16 %v6755
    %v6820 = vunpack.c.h.b16 %v6756
    %v6821 = vpack.c.b16 %v6758, %v6757
    %v6822 = vpack.c.b16 %v6760, %v6759
    %v6823 = vpack.c.b16 %v6762, %v6761
    %v6824 = vpack.c.b16 %v6764, %v6763
    %v6825 = vpack.c.b16 %v6766, %v6765
    %v6826 = vpack.c.b16 %v6768, %v6767
    %v6827 = vpack.c.b16 %v6770, %v6769
    %v6828 = vpack.c.b16 %v6772, %v6771
    %v6829 = vpack.c.b16 %v6774, %v6773
    %v6830 = vpack.c.b16 %v6776, %v6775
    %v6831 = vpack.c.b16 %v6778, %v6777
    %v6832 = vpack.c.b16 %v6780, %v6779
    %v6833 = vpack.c.b16 %v6782, %v6781
    %v6834 = vpack.c.b16 %v6784, %v6783
    %v6835 = vpack.c.b16 %v6786, %v6785
    %v6836 = vpack.c.b16 %v6788, %v6787
    %v6837 = vpack.c.b16 %v6790, %v6789
    %v6838 = vpack.c.b16 %v6792, %v6791
    %v6839 = vpack.c.b16 %v6794, %v6793
    %v6840 = vpack.c.b16 %v6796, %v6795
    %v6841 = vpack.c.b16 %v6798, %v6797
    %v6842 = vpack.c.b16 %v6800, %v6799
    %v6843 = vpack.c.b16 %v6802, %v6801
    %v6844 = vpack.c.b16 %v6804, %v6803
    %v6845 = vpack.c.b16 %v6806, %v6805
    %v6846 = vpack.c.b16 %v6808, %v6807
    %v6847 = vpack.c.b16 %v6810, %v6809
    %v6848 = vpack.c.b16 %v6812, %v6811
    %v6849 = vpack.c.b16 %v6814, %v6813
    %v6850 = vpack.c.b16 %v6816, %v6815
    %v6851 = vpack.c.b16 %v6818, %v6817
    %v6852 = vpack.c.b16 %v6820, %v6819
    %vm6853 = vcmp.ne.s16.totalorder %v6821, 0
    %vm6854 = vcmp.ne.s16.totalorder %v6822, 0
    %vm6855 = vcmp.ne.s16.totalorder %v6823, 0
    %vm6856 = vcmp.ne.s16.totalorder %v6824, 0
    %vm6857 = vcmp.ne.s16.totalorder %v6825, 0
    %vm6858 = vcmp.ne.s16.totalorder %v6826, 0
    %vm6859 = vcmp.ne.s16.totalorder %v6827, 0
    %vm6860 = vcmp.ne.s16.totalorder %v6828, 0
    %vm6861 = vcmp.ne.s16.totalorder %v6829, 0
    %vm6862 = vcmp.ne.s16.totalorder %v6830, 0
    %vm6863 = vcmp.ne.s16.totalorder %v6831, 0
    %vm6864 = vcmp.ne.s16.totalorder %v6832, 0
    %vm6865 = vcmp.ne.s16.totalorder %v6833, 0
    %vm6866 = vcmp.ne.s16.totalorder %v6834, 0
    %vm6867 = vcmp.ne.s16.totalorder %v6835, 0
    %vm6868 = vcmp.ne.s16.totalorder %v6836, 0
    %vm6869 = vcmp.ne.s16.totalorder %v6837, 0
    %vm6870 = vcmp.ne.s16.totalorder %v6838, 0
    %vm6871 = vcmp.ne.s16.totalorder %v6839, 0
    %vm6872 = vcmp.ne.s16.totalorder %v6840, 0
    %vm6873 = vcmp.ne.s16.totalorder %v6841, 0
    %vm6874 = vcmp.ne.s16.totalorder %v6842, 0
    %vm6875 = vcmp.ne.s16.totalorder %v6843, 0
    %vm6876 = vcmp.ne.s16.totalorder %v6844, 0
    %vm6877 = vcmp.ne.s16.totalorder %v6845, 0
    %vm6878 = vcmp.ne.s16.totalorder %v6846, 0
    %vm6879 = vcmp.ne.s16.totalorder %v6847, 0
    %vm6880 = vcmp.ne.s16.totalorder %v6848, 0
    %vm6881 = vcmp.ne.s16.totalorder %v6849, 0
    %vm6882 = vcmp.ne.s16.totalorder %v6850, 0
    %vm6883 = vcmp.ne.s16.totalorder %v6851, 0
    %vm6884 = vcmp.ne.s16.totalorder %v6852, 0
    %v6885 = vsel %vm6853, 65537, 0
    %v6886 = vsel %vm6854, 65537, 0
    %v6887 = vsel %vm6855, 65537, 0
    %v6888 = vsel %vm6856, 65537, 0
    %v6889 = vsel %vm6857, 65537, 0
    %v6890 = vsel %vm6858, 65537, 0
    %v6891 = vsel %vm6859, 65537, 0
    %v6892 = vsel %vm6860, 65537, 0
    %v6893 = vsel %vm6861, 65537, 0
    %v6894 = vsel %vm6862, 65537, 0
    %v6895 = vsel %vm6863, 65537, 0
    %v6896 = vsel %vm6864, 65537, 0
    %v6897 = vsel %vm6865, 65537, 0
    %v6898 = vsel %vm6866, 65537, 0
    %v6899 = vsel %vm6867, 65537, 0
    %v6900 = vsel %vm6868, 65537, 0
    %v6901 = vsel %vm6869, 65537, 0
    %v6902 = vsel %vm6870, 65537, 0
    %v6903 = vsel %vm6871, 65537, 0
    %v6904 = vsel %vm6872, 65537, 0
    %v6905 = vsel %vm6873, 65537, 0
    %v6906 = vsel %vm6874, 65537, 0
    %v6907 = vsel %vm6875, 65537, 0
    %v6908 = vsel %vm6876, 65537, 0
    %v6909 = vsel %vm6877, 65537, 0
    %v6910 = vsel %vm6878, 65537, 0
    %v6911 = vsel %vm6879, 65537, 0
    %v6912 = vsel %vm6880, 65537, 0
    %v6913 = vsel %vm6881, 65537, 0
    %v6914 = vsel %vm6882, 65537, 0
    %v6915 = vsel %vm6883, 65537, 0
    %v6916 = vsel %vm6884, 65537, 0
    %v6917 = vunpack.c.l.b16 %v6885
    %v6918 = vunpack.c.h.b16 %v6885
    %v6919 = vunpack.c.l.b16 %v6886
    %v6920 = vunpack.c.h.b16 %v6886
    %v6921 = vunpack.c.l.b16 %v6887
    %v6922 = vunpack.c.h.b16 %v6887
    %v6923 = vunpack.c.l.b16 %v6888
    %v6924 = vunpack.c.h.b16 %v6888
    %v6925 = vunpack.c.l.b16 %v6889
    %v6926 = vunpack.c.h.b16 %v6889
    %v6927 = vunpack.c.l.b16 %v6890
    %v6928 = vunpack.c.h.b16 %v6890
    %v6929 = vunpack.c.l.b16 %v6891
    %v6930 = vunpack.c.h.b16 %v6891
    %v6931 = vunpack.c.l.b16 %v6892
    %v6932 = vunpack.c.h.b16 %v6892
    %v6933 = vunpack.c.l.b16 %v6893
    %v6934 = vunpack.c.h.b16 %v6893
    %v6935 = vunpack.c.l.b16 %v6894
    %v6936 = vunpack.c.h.b16 %v6894
    %v6937 = vunpack.c.l.b16 %v6895
    %v6938 = vunpack.c.h.b16 %v6895
    %v6939 = vunpack.c.l.b16 %v6896
    %v6940 = vunpack.c.h.b16 %v6896
    %v6941 = vunpack.c.l.b16 %v6897
    %v6942 = vunpack.c.h.b16 %v6897
    %v6943 = vunpack.c.l.b16 %v6898
    %v6944 = vunpack.c.h.b16 %v6898
    %v6945 = vunpack.c.l.b16 %v6899
    %v6946 = vunpack.c.h.b16 %v6899
    %v6947 = vunpack.c.l.b16 %v6900
    %v6948 = vunpack.c.h.b16 %v6900
    %v6949 = vunpack.c.l.b16 %v6901
    %v6950 = vunpack.c.h.b16 %v6901
    %v6951 = vunpack.c.l.b16 %v6902
    %v6952 = vunpack.c.h.b16 %v6902
    %v6953 = vunpack.c.l.b16 %v6903
    %v6954 = vunpack.c.h.b16 %v6903
    %v6955 = vunpack.c.l.b16 %v6904
    %v6956 = vunpack.c.h.b16 %v6904
    %v6957 = vunpack.c.l.b16 %v6905
    %v6958 = vunpack.c.h.b16 %v6905
    %v6959 = vunpack.c.l.b16 %v6906
    %v6960 = vunpack.c.h.b16 %v6906
    %v6961 = vunpack.c.l.b16 %v6907
    %v6962 = vunpack.c.h.b16 %v6907
    %v6963 = vunpack.c.l.b16 %v6908
    %v6964 = vunpack.c.h.b16 %v6908
    %v6965 = vunpack.c.l.b16 %v6909
    %v6966 = vunpack.c.h.b16 %v6909
    %v6967 = vunpack.c.l.b16 %v6910
    %v6968 = vunpack.c.h.b16 %v6910
    %v6969 = vunpack.c.l.b16 %v6911
    %v6970 = vunpack.c.h.b16 %v6911
    %v6971 = vunpack.c.l.b16 %v6912
    %v6972 = vunpack.c.h.b16 %v6912
    %v6973 = vunpack.c.l.b16 %v6913
    %v6974 = vunpack.c.h.b16 %v6913
    %v6975 = vunpack.c.l.b16 %v6914
    %v6976 = vunpack.c.h.b16 %v6914
    %v6977 = vunpack.c.l.b16 %v6915
    %v6978 = vunpack.c.h.b16 %v6915
    %v6979 = vunpack.c.l.b16 %v6916
    %v6980 = vunpack.c.h.b16 %v6916
    %vm6981 = vcmp.ne.s32.totalorder %v6917, 0
    %vm6982 = vcmp.ne.s32.totalorder %v6918, 0
    %vm6983 = vcmp.ne.s32.totalorder %v6919, 0
    %vm6984 = vcmp.ne.s32.totalorder %v6920, 0
    %vm6985 = vcmp.ne.s32.totalorder %v6921, 0
    %vm6986 = vcmp.ne.s32.totalorder %v6922, 0
    %vm6987 = vcmp.ne.s32.totalorder %v6923, 0
    %vm6988 = vcmp.ne.s32.totalorder %v6924, 0
    %vm6989 = vcmp.ne.s32.totalorder %v6925, 0
    %vm6990 = vcmp.ne.s32.totalorder %v6926, 0
    %vm6991 = vcmp.ne.s32.totalorder %v6927, 0
    %vm6992 = vcmp.ne.s32.totalorder %v6928, 0
    %vm6993 = vcmp.ne.s32.totalorder %v6929, 0
    %vm6994 = vcmp.ne.s32.totalorder %v6930, 0
    %vm6995 = vcmp.ne.s32.totalorder %v6931, 0
    %vm6996 = vcmp.ne.s32.totalorder %v6932, 0
    %vm6997 = vcmp.ne.s32.totalorder %v6933, 0
    %vm6998 = vcmp.ne.s32.totalorder %v6934, 0
    %vm6999 = vcmp.ne.s32.totalorder %v6935, 0
    %vm7000 = vcmp.ne.s32.totalorder %v6936, 0
    %vm7001 = vcmp.ne.s32.totalorder %v6937, 0
    %vm7002 = vcmp.ne.s32.totalorder %v6938, 0
    %vm7003 = vcmp.ne.s32.totalorder %v6939, 0
    %vm7004 = vcmp.ne.s32.totalorder %v6940, 0
    %vm7005 = vcmp.ne.s32.totalorder %v6941, 0
    %vm7006 = vcmp.ne.s32.totalorder %v6942, 0
    %vm7007 = vcmp.ne.s32.totalorder %v6943, 0
    %vm7008 = vcmp.ne.s32.totalorder %v6944, 0
    %vm7009 = vcmp.ne.s32.totalorder %v6945, 0
    %vm7010 = vcmp.ne.s32.totalorder %v6946, 0
    %vm7011 = vcmp.ne.s32.totalorder %v6947, 0
    %vm7012 = vcmp.ne.s32.totalorder %v6948, 0
    %vm7013 = vcmp.ne.s32.totalorder %v6949, 0
    %vm7014 = vcmp.ne.s32.totalorder %v6950, 0
    %vm7015 = vcmp.ne.s32.totalorder %v6951, 0
    %vm7016 = vcmp.ne.s32.totalorder %v6952, 0
    %vm7017 = vcmp.ne.s32.totalorder %v6953, 0
    %vm7018 = vcmp.ne.s32.totalorder %v6954, 0
    %vm7019 = vcmp.ne.s32.totalorder %v6955, 0
    %vm7020 = vcmp.ne.s32.totalorder %v6956, 0
    %vm7021 = vcmp.ne.s32.totalorder %v6957, 0
    %vm7022 = vcmp.ne.s32.totalorder %v6958, 0
    %vm7023 = vcmp.ne.s32.totalorder %v6959, 0
    %vm7024 = vcmp.ne.s32.totalorder %v6960, 0
    %vm7025 = vcmp.ne.s32.totalorder %v6961, 0
    %vm7026 = vcmp.ne.s32.totalorder %v6962, 0
    %vm7027 = vcmp.ne.s32.totalorder %v6963, 0
    %vm7028 = vcmp.ne.s32.totalorder %v6964, 0
    %vm7029 = vcmp.ne.s32.totalorder %v6965, 0
    %vm7030 = vcmp.ne.s32.totalorder %v6966, 0
    %vm7031 = vcmp.ne.s32.totalorder %v6967, 0
    %vm7032 = vcmp.ne.s32.totalorder %v6968, 0
    %vm7033 = vcmp.ne.s32.totalorder %v6969, 0
    %vm7034 = vcmp.ne.s32.totalorder %v6970, 0
    %vm7035 = vcmp.ne.s32.totalorder %v6971, 0
    %vm7036 = vcmp.ne.s32.totalorder %v6972, 0
    %vm7037 = vcmp.ne.s32.totalorder %v6973, 0
    %vm7038 = vcmp.ne.s32.totalorder %v6974, 0
    %vm7039 = vcmp.ne.s32.totalorder %v6975, 0
    %vm7040 = vcmp.ne.s32.totalorder %v6976, 0
    %vm7041 = vcmp.ne.s32.totalorder %v6977, 0
    %vm7042 = vcmp.ne.s32.totalorder %v6978, 0
    %vm7043 = vcmp.ne.s32.totalorder %v6979, 0
    %vm7044 = vcmp.ne.s32.totalorder %v6980, 0
    %v7045 = vsel %vm6981, %v6661, -1e+30
    %v7046 = vsel %vm6982, %v6662, -1e+30
    %v7047 = vsel %vm6983, %v6663, -1e+30
    %v7048 = vsel %vm6984, %v6664, -1e+30
    %v7049 = vsel %vm6985, %v6665, -1e+30
    %v7050 = vsel %vm6986, %v6666, -1e+30
    %v7051 = vsel %vm6987, %v6667, -1e+30
    %v7052 = vsel %vm6988, %v6668, -1e+30
    %v7053 = vsel %vm6989, %v6669, -1e+30
    %v7054 = vsel %vm6990, %v6670, -1e+30
    %v7055 = vsel %vm6991, %v6671, -1e+30
    %v7056 = vsel %vm6992, %v6672, -1e+30
    %v7057 = vsel %vm6993, %v6673, -1e+30
    %v7058 = vsel %vm6994, %v6674, -1e+30
    %v7059 = vsel %vm6995, %v6675, -1e+30
    %v7060 = vsel %vm6996, %v6676, -1e+30
    %v7061 = vsel %vm6997, %v6677, -1e+30
    %v7062 = vsel %vm6998, %v6678, -1e+30
    %v7063 = vsel %vm6999, %v6679, -1e+30
    %v7064 = vsel %vm7000, %v6680, -1e+30
    %v7065 = vsel %vm7001, %v6681, -1e+30
    %v7066 = vsel %vm7002, %v6682, -1e+30
    %v7067 = vsel %vm7003, %v6683, -1e+30
    %v7068 = vsel %vm7004, %v6684, -1e+30
    %v7069 = vsel %vm7005, %v6685, -1e+30
    %v7070 = vsel %vm7006, %v6686, -1e+30
    %v7071 = vsel %vm7007, %v6687, -1e+30
    %v7072 = vsel %vm7008, %v6688, -1e+30
    %v7073 = vsel %vm7009, %v6689, -1e+30
    %v7074 = vsel %vm7010, %v6690, -1e+30
    %v7075 = vsel %vm7011, %v6691, -1e+30
    %v7076 = vsel %vm7012, %v6692, -1e+30
    %v7077 = vsel %vm7013, %v6693, -1e+30
    %v7078 = vsel %vm7014, %v6694, -1e+30
    %v7079 = vsel %vm7015, %v6695, -1e+30
    %v7080 = vsel %vm7016, %v6696, -1e+30
    %v7081 = vsel %vm7017, %v6697, -1e+30
    %v7082 = vsel %vm7018, %v6698, -1e+30
    %v7083 = vsel %vm7019, %v6699, -1e+30
    %v7084 = vsel %vm7020, %v6700, -1e+30
    %v7085 = vsel %vm7021, %v6701, -1e+30
    %v7086 = vsel %vm7022, %v6702, -1e+30
    %v7087 = vsel %vm7023, %v6703, -1e+30
    %v7088 = vsel %vm7024, %v6704, -1e+30
    %v7089 = vsel %vm7025, %v6705, -1e+30
    %v7090 = vsel %vm7026, %v6706, -1e+30
    %v7091 = vsel %vm7027, %v6707, -1e+30
    %v7092 = vsel %vm7028, %v6708, -1e+30
    %v7093 = vsel %vm7029, %v6709, -1e+30
    %v7094 = vsel %vm7030, %v6710, -1e+30
    %v7095 = vsel %vm7031, %v6711, -1e+30
    %v7096 = vsel %vm7032, %v6712, -1e+30
    %v7097 = vsel %vm7033, %v6713, -1e+30
    %v7098 = vsel %vm7034, %v6714, -1e+30
    %v7099 = vsel %vm7035, %v6715, -1e+30
    %v7100 = vsel %vm7036, %v6716, -1e+30
    %v7101 = vsel %vm7037, %v6717, -1e+30
    %v7102 = vsel %vm7038, %v6718, -1e+30
    %v7103 = vsel %vm7039, %v6719, -1e+30
    %v7104 = vsel %vm7040, %v6720, -1e+30
    %v7105 = vsel %vm7041, %v6721, -1e+30
    %v7106 = vsel %vm7042, %v6722, -1e+30
    %v7107 = vsel %vm7043, %v6723, -1e+30
    %v7108 = vsel %vm7044, %v6724, -1e+30
    %v7109 = vmax.f32 %v7045, %v7046
    %7110 = vmax.xlane.f32.xlu0 %v7109
    %v7111 = vpop.xlane.xlu0 %7110
    %v7112 = vmax.f32 %v7047, %v7048
    %7113 = vmax.xlane.f32.xlu0 %v7112
    %v7114 = vpop.xlane.xlu0 %7113
    %v7115 = vmax.f32 %v7049, %v7050
    %7116 = vmax.xlane.f32.xlu0 %v7115
    %v7117 = vpop.xlane.xlu0 %7116
    %v7118 = vmax.f32 %v7051, %v7052
    %7119 = vmax.xlane.f32.xlu0 %v7118
    %v7120 = vpop.xlane.xlu0 %7119
    %v7121 = vmax.f32 %v7053, %v7054
    %7122 = vmax.xlane.f32.xlu0 %v7121
    %v7123 = vpop.xlane.xlu0 %7122
    %v7124 = vmax.f32 %v7055, %v7056
    %7125 = vmax.xlane.f32.xlu0 %v7124
    %v7126 = vpop.xlane.xlu0 %7125
    %v7127 = vmax.f32 %v7057, %v7058
    %7128 = vmax.xlane.f32.xlu0 %v7127
    %v7129 = vpop.xlane.xlu0 %7128
    %v7130 = vmax.f32 %v7059, %v7060
    %7131 = vmax.xlane.f32.xlu0 %v7130
    %v7132 = vpop.xlane.xlu0 %7131
    %v7133 = vmax.f32 %v7061, %v7062
    %7134 = vmax.xlane.f32.xlu0 %v7133
    %v7135 = vpop.xlane.xlu0 %7134
    %v7136 = vmax.f32 %v7063, %v7064
    %7137 = vmax.xlane.f32.xlu0 %v7136
    %v7138 = vpop.xlane.xlu0 %7137
    %v7139 = vmax.f32 %v7065, %v7066
    %7140 = vmax.xlane.f32.xlu0 %v7139
    %v7141 = vpop.xlane.xlu0 %7140
    %v7142 = vmax.f32 %v7067, %v7068
    %7143 = vmax.xlane.f32.xlu0 %v7142
    %v7144 = vpop.xlane.xlu0 %7143
    %v7145 = vmax.f32 %v7069, %v7070
    %7146 = vmax.xlane.f32.xlu0 %v7145
    %v7147 = vpop.xlane.xlu0 %7146
    %v7148 = vmax.f32 %v7071, %v7072
    %7149 = vmax.xlane.f32.xlu0 %v7148
    %v7150 = vpop.xlane.xlu0 %7149
    %v7151 = vmax.f32 %v7073, %v7074
    %7152 = vmax.xlane.f32.xlu0 %v7151
    %v7153 = vpop.xlane.xlu0 %7152
    %v7154 = vmax.f32 %v7075, %v7076
    %7155 = vmax.xlane.f32.xlu0 %v7154
    %v7156 = vpop.xlane.xlu0 %7155
    %v7157 = vmax.f32 %v7077, %v7078
    %7158 = vmax.xlane.f32.xlu0 %v7157
    %v7159 = vpop.xlane.xlu0 %7158
    %v7160 = vmax.f32 %v7079, %v7080
    %7161 = vmax.xlane.f32.xlu0 %v7160
    %v7162 = vpop.xlane.xlu0 %7161
    %v7163 = vmax.f32 %v7081, %v7082
    %7164 = vmax.xlane.f32.xlu0 %v7163
    %v7165 = vpop.xlane.xlu0 %7164
    %v7166 = vmax.f32 %v7083, %v7084
    %7167 = vmax.xlane.f32.xlu0 %v7166
    %v7168 = vpop.xlane.xlu0 %7167
    %v7169 = vmax.f32 %v7085, %v7086
    %7170 = vmax.xlane.f32.xlu0 %v7169
    %v7171 = vpop.xlane.xlu0 %7170
    %v7172 = vmax.f32 %v7087, %v7088
    %7173 = vmax.xlane.f32.xlu0 %v7172
    %v7174 = vpop.xlane.xlu0 %7173
    %v7175 = vmax.f32 %v7089, %v7090
    %7176 = vmax.xlane.f32.xlu0 %v7175
    %v7177 = vpop.xlane.xlu0 %7176
    %v7178 = vmax.f32 %v7091, %v7092
    %7179 = vmax.xlane.f32.xlu0 %v7178
    %v7180 = vpop.xlane.xlu0 %7179
    %v7181 = vmax.f32 %v7093, %v7094
    %7182 = vmax.xlane.f32.xlu0 %v7181
    %v7183 = vpop.xlane.xlu0 %7182
    %v7184 = vmax.f32 %v7095, %v7096
    %7185 = vmax.xlane.f32.xlu0 %v7184
    %v7186 = vpop.xlane.xlu0 %7185
    %v7187 = vmax.f32 %v7097, %v7098
    %7188 = vmax.xlane.f32.xlu0 %v7187
    %v7189 = vpop.xlane.xlu0 %7188
    %v7190 = vmax.f32 %v7099, %v7100
    %7191 = vmax.xlane.f32.xlu0 %v7190
    %v7192 = vpop.xlane.xlu0 %7191
    %v7193 = vmax.f32 %v7101, %v7102
    %7194 = vmax.xlane.f32.xlu0 %v7193
    %v7195 = vpop.xlane.xlu0 %7194
    %v7196 = vmax.f32 %v7103, %v7104
    %7197 = vmax.xlane.f32.xlu0 %v7196
    %v7198 = vpop.xlane.xlu0 %7197
    %v7199 = vmax.f32 %v7105, %v7106
    %7200 = vmax.xlane.f32.xlu0 %v7199
    %v7201 = vpop.xlane.xlu0 %7200
    %v7202 = vmax.f32 %v7107, %v7108
    %7203 = vmax.xlane.f32.xlu0 %v7202
    %v7204 = vpop.xlane.xlu0 %7203
    %v7205 = vsub.f32 %v7045, %v7111
    %v7206 = vsub.f32 %v7046, %v7111
    %v7207 = vsub.f32 %v7047, %v7114
    %v7208 = vsub.f32 %v7048, %v7114
    %v7209 = vsub.f32 %v7049, %v7117
    %v7210 = vsub.f32 %v7050, %v7117
    %v7211 = vsub.f32 %v7051, %v7120
    %v7212 = vsub.f32 %v7052, %v7120
    %v7213 = vsub.f32 %v7053, %v7123
    %v7214 = vsub.f32 %v7054, %v7123
    %v7215 = vsub.f32 %v7055, %v7126
    %v7216 = vsub.f32 %v7056, %v7126
    %v7217 = vsub.f32 %v7057, %v7129
    %v7218 = vsub.f32 %v7058, %v7129
    %v7219 = vsub.f32 %v7059, %v7132
    %v7220 = vsub.f32 %v7060, %v7132
    %v7221 = vsub.f32 %v7061, %v7135
    %v7222 = vsub.f32 %v7062, %v7135
    %v7223 = vsub.f32 %v7063, %v7138
    %v7224 = vsub.f32 %v7064, %v7138
    %v7225 = vsub.f32 %v7065, %v7141
    %v7226 = vsub.f32 %v7066, %v7141
    %v7227 = vsub.f32 %v7067, %v7144
    %v7228 = vsub.f32 %v7068, %v7144
    %v7229 = vsub.f32 %v7069, %v7147
    %v7230 = vsub.f32 %v7070, %v7147
    %v7231 = vsub.f32 %v7071, %v7150
    %v7232 = vsub.f32 %v7072, %v7150
    %v7233 = vsub.f32 %v7073, %v7153
    %v7234 = vsub.f32 %v7074, %v7153
    %v7235 = vsub.f32 %v7075, %v7156
    %v7236 = vsub.f32 %v7076, %v7156
    %v7237 = vsub.f32 %v7077, %v7159
    %v7238 = vsub.f32 %v7078, %v7159
    %v7239 = vsub.f32 %v7079, %v7162
    %v7240 = vsub.f32 %v7080, %v7162
    %v7241 = vsub.f32 %v7081, %v7165
    %v7242 = vsub.f32 %v7082, %v7165
    %v7243 = vsub.f32 %v7083, %v7168
    %v7244 = vsub.f32 %v7084, %v7168
    %v7245 = vsub.f32 %v7085, %v7171
    %v7246 = vsub.f32 %v7086, %v7171
    %v7247 = vsub.f32 %v7087, %v7174
    %v7248 = vsub.f32 %v7088, %v7174
    %v7249 = vsub.f32 %v7089, %v7177
    %v7250 = vsub.f32 %v7090, %v7177
    %v7251 = vsub.f32 %v7091, %v7180
    %v7252 = vsub.f32 %v7092, %v7180
    %v7253 = vsub.f32 %v7093, %v7183
    %v7254 = vsub.f32 %v7094, %v7183
    %v7255 = vsub.f32 %v7095, %v7186
    %v7256 = vsub.f32 %v7096, %v7186
    %v7257 = vsub.f32 %v7097, %v7189
    %v7258 = vsub.f32 %v7098, %v7189
    %v7259 = vsub.f32 %v7099, %v7192
    %v7260 = vsub.f32 %v7100, %v7192
    %v7261 = vsub.f32 %v7101, %v7195
    %v7262 = vsub.f32 %v7102, %v7195
    %v7263 = vsub.f32 %v7103, %v7198
    %v7264 = vsub.f32 %v7104, %v7198
    %v7265 = vsub.f32 %v7105, %v7201
    %v7266 = vsub.f32 %v7106, %v7201
    %v7267 = vsub.f32 %v7107, %v7204
    %v7268 = vsub.f32 %v7108, %v7204
    %v7269 = vmul.f32 %v7205, 1.442695
    %v7270 = vpow.pop %v7269
    %v7271 = vmul.f32 %v7206, 1.442695
    %v7272 = vpow.pop %v7271
    %v7273 = vmul.f32 %v7207, 1.442695
    %v7274 = vpow.pop %v7273
    %v7275 = vmul.f32 %v7208, 1.442695
    %v7276 = vpow.pop %v7275
    %v7277 = vmul.f32 %v7209, 1.442695
    %v7278 = vpow.pop %v7277
    %v7279 = vmul.f32 %v7210, 1.442695
    %v7280 = vpow.pop %v7279
    %v7281 = vmul.f32 %v7211, 1.442695
    %v7282 = vpow.pop %v7281
    %v7283 = vmul.f32 %v7212, 1.442695
    %v7284 = vpow.pop %v7283
    %v7285 = vmul.f32 %v7213, 1.442695
    %v7286 = vpow.pop %v7285
    %v7287 = vmul.f32 %v7214, 1.442695
    %v7288 = vpow.pop %v7287
    %v7289 = vmul.f32 %v7215, 1.442695
    %v7290 = vpow.pop %v7289
    %v7291 = vmul.f32 %v7216, 1.442695
    %v7292 = vpow.pop %v7291
    %v7293 = vmul.f32 %v7217, 1.442695
    %v7294 = vpow.pop %v7293
    %v7295 = vmul.f32 %v7218, 1.442695
    %v7296 = vpow.pop %v7295
    %v7297 = vmul.f32 %v7219, 1.442695
    %v7298 = vpow.pop %v7297
    %v7299 = vmul.f32 %v7220, 1.442695
    %v7300 = vpow.pop %v7299
    %v7301 = vmul.f32 %v7221, 1.442695
    %v7302 = vpow.pop %v7301
    %v7303 = vmul.f32 %v7222, 1.442695
    %v7304 = vpow.pop %v7303
    %v7305 = vmul.f32 %v7223, 1.442695
    %v7306 = vpow.pop %v7305
    %v7307 = vmul.f32 %v7224, 1.442695
    %v7308 = vpow.pop %v7307
    %v7309 = vmul.f32 %v7225, 1.442695
    %v7310 = vpow.pop %v7309
    %v7311 = vmul.f32 %v7226, 1.442695
    %v7312 = vpow.pop %v7311
    %v7313 = vmul.f32 %v7227, 1.442695
    %v7314 = vpow.pop %v7313
    %v7315 = vmul.f32 %v7228, 1.442695
    %v7316 = vpow.pop %v7315
    %v7317 = vmul.f32 %v7229, 1.442695
    %v7318 = vpow.pop %v7317
    %v7319 = vmul.f32 %v7230, 1.442695
    %v7320 = vpow.pop %v7319
    %v7321 = vmul.f32 %v7231, 1.442695
    %v7322 = vpow.pop %v7321
    %v7323 = vmul.f32 %v7232, 1.442695
    %v7324 = vpow.pop %v7323
    %v7325 = vmul.f32 %v7233, 1.442695
    %v7326 = vpow.pop %v7325
    %v7327 = vmul.f32 %v7234, 1.442695
    %v7328 = vpow.pop %v7327
    %v7329 = vmul.f32 %v7235, 1.442695
    %v7330 = vpow.pop %v7329
    %v7331 = vmul.f32 %v7236, 1.442695
    %v7332 = vpow.pop %v7331
    %v7333 = vmul.f32 %v7237, 1.442695
    %v7334 = vpow.pop %v7333
    %v7335 = vmul.f32 %v7238, 1.442695
    %v7336 = vpow.pop %v7335
    %v7337 = vmul.f32 %v7239, 1.442695
    %v7338 = vpow.pop %v7337
    %v7339 = vmul.f32 %v7240, 1.442695
    %v7340 = vpow.pop %v7339
    %v7341 = vmul.f32 %v7241, 1.442695
    %v7342 = vpow.pop %v7341
    %v7343 = vmul.f32 %v7242, 1.442695
    %v7344 = vpow.pop %v7343
    %v7345 = vmul.f32 %v7243, 1.442695
    %v7346 = vpow.pop %v7345
    %v7347 = vmul.f32 %v7244, 1.442695
    %v7348 = vpow.pop %v7347
    %v7349 = vmul.f32 %v7245, 1.442695
    %v7350 = vpow.pop %v7349
    %v7351 = vmul.f32 %v7246, 1.442695
    %v7352 = vpow.pop %v7351
    %v7353 = vmul.f32 %v7247, 1.442695
    %v7354 = vpow.pop %v7353
    %v7355 = vmul.f32 %v7248, 1.442695
    %v7356 = vpow.pop %v7355
    %v7357 = vmul.f32 %v7249, 1.442695
    %v7358 = vpow.pop %v7357
    %v7359 = vmul.f32 %v7250, 1.442695
    %v7360 = vpow.pop %v7359
    %v7361 = vmul.f32 %v7251, 1.442695
    %v7362 = vpow.pop %v7361
    %v7363 = vmul.f32 %v7252, 1.442695
    %v7364 = vpow.pop %v7363
    %v7365 = vmul.f32 %v7253, 1.442695
    %v7366 = vpow.pop %v7365
    %v7367 = vmul.f32 %v7254, 1.442695
    %v7368 = vpow.pop %v7367
    %v7369 = vmul.f32 %v7255, 1.442695
    %v7370 = vpow.pop %v7369
    %v7371 = vmul.f32 %v7256, 1.442695
    %v7372 = vpow.pop %v7371
    %v7373 = vmul.f32 %v7257, 1.442695
    %v7374 = vpow.pop %v7373
    %v7375 = vmul.f32 %v7258, 1.442695
    %v7376 = vpow.pop %v7375
    %v7377 = vmul.f32 %v7259, 1.442695
    %v7378 = vpow.pop %v7377
    %v7379 = vmul.f32 %v7260, 1.442695
    %v7380 = vpow.pop %v7379
    %v7381 = vmul.f32 %v7261, 1.442695
    %v7382 = vpow.pop %v7381
    %v7383 = vmul.f32 %v7262, 1.442695
    %v7384 = vpow.pop %v7383
    %v7385 = vmul.f32 %v7263, 1.442695
    %v7386 = vpow.pop %v7385
    %v7387 = vmul.f32 %v7264, 1.442695
    %v7388 = vpow.pop %v7387
    %v7389 = vmul.f32 %v7265, 1.442695
    %v7390 = vpow.pop %v7389
    %v7391 = vmul.f32 %v7266, 1.442695
    %v7392 = vpow.pop %v7391
    %v7393 = vmul.f32 %v7267, 1.442695
    %v7394 = vpow.pop %v7393
    %v7395 = vmul.f32 %v7268, 1.442695
    %v7396 = vpow.pop %v7395
    %v7397 = vsel %vm6981, %v7270, 0.0
    %v7398 = vsel %vm6982, %v7272, 0.0
    %v7399 = vsel %vm6983, %v7274, 0.0
    %v7400 = vsel %vm6984, %v7276, 0.0
    %v7401 = vsel %vm6985, %v7278, 0.0
    %v7402 = vsel %vm6986, %v7280, 0.0
    %v7403 = vsel %vm6987, %v7282, 0.0
    %v7404 = vsel %vm6988, %v7284, 0.0
    %v7405 = vsel %vm6989, %v7286, 0.0
    %v7406 = vsel %vm6990, %v7288, 0.0
    %v7407 = vsel %vm6991, %v7290, 0.0
    %v7408 = vsel %vm6992, %v7292, 0.0
    %v7409 = vsel %vm6993, %v7294, 0.0
    %v7410 = vsel %vm6994, %v7296, 0.0
    %v7411 = vsel %vm6995, %v7298, 0.0
    %v7412 = vsel %vm6996, %v7300, 0.0
    %v7413 = vsel %vm6997, %v7302, 0.0
    %v7414 = vsel %vm6998, %v7304, 0.0
    %v7415 = vsel %vm6999, %v7306, 0.0
    %v7416 = vsel %vm7000, %v7308, 0.0
    %v7417 = vsel %vm7001, %v7310, 0.0
    %v7418 = vsel %vm7002, %v7312, 0.0
    %v7419 = vsel %vm7003, %v7314, 0.0
    %v7420 = vsel %vm7004, %v7316, 0.0
    %v7421 = vsel %vm7005, %v7318, 0.0
    %v7422 = vsel %vm7006, %v7320, 0.0
    %v7423 = vsel %vm7007, %v7322, 0.0
    %v7424 = vsel %vm7008, %v7324, 0.0
    %v7425 = vsel %vm7009, %v7326, 0.0
    %v7426 = vsel %vm7010, %v7328, 0.0
    %v7427 = vsel %vm7011, %v7330, 0.0
    %v7428 = vsel %vm7012, %v7332, 0.0
    %v7429 = vsel %vm7013, %v7334, 0.0
    %v7430 = vsel %vm7014, %v7336, 0.0
    %v7431 = vsel %vm7015, %v7338, 0.0
    %v7432 = vsel %vm7016, %v7340, 0.0
    %v7433 = vsel %vm7017, %v7342, 0.0
    %v7434 = vsel %vm7018, %v7344, 0.0
    %v7435 = vsel %vm7019, %v7346, 0.0
    %v7436 = vsel %vm7020, %v7348, 0.0
    %v7437 = vsel %vm7021, %v7350, 0.0
    %v7438 = vsel %vm7022, %v7352, 0.0
    %v7439 = vsel %vm7023, %v7354, 0.0
    %v7440 = vsel %vm7024, %v7356, 0.0
    %v7441 = vsel %vm7025, %v7358, 0.0
    %v7442 = vsel %vm7026, %v7360, 0.0
    %v7443 = vsel %vm7027, %v7362, 0.0
    %v7444 = vsel %vm7028, %v7364, 0.0
    %v7445 = vsel %vm7029, %v7366, 0.0
    %v7446 = vsel %vm7030, %v7368, 0.0
    %v7447 = vsel %vm7031, %v7370, 0.0
    %v7448 = vsel %vm7032, %v7372, 0.0
    %v7449 = vsel %vm7033, %v7374, 0.0
    %v7450 = vsel %vm7034, %v7376, 0.0
    %v7451 = vsel %vm7035, %v7378, 0.0
    %v7452 = vsel %vm7036, %v7380, 0.0
    %v7453 = vsel %vm7037, %v7382, 0.0
    %v7454 = vsel %vm7038, %v7384, 0.0
    %v7455 = vsel %vm7039, %v7386, 0.0
    %v7456 = vsel %vm7040, %v7388, 0.0
    %v7457 = vsel %vm7041, %v7390, 0.0
    %v7458 = vsel %vm7042, %v7392, 0.0
    %v7459 = vsel %vm7043, %v7394, 0.0
    %v7460 = vsel %vm7044, %v7396, 0.0
    %v7461 = vadd.f32 %v7397, %v7398
    %7462 = vadd.xlane.f32.xlu0 %v7461
    %v7463 = vpop.xlane.xlu0 %7462
    %v7464 = vadd.f32 %v7399, %v7400
    %7465 = vadd.xlane.f32.xlu0 %v7464
    %v7466 = vpop.xlane.xlu0 %7465
    %v7467 = vadd.f32 %v7401, %v7402
    %7468 = vadd.xlane.f32.xlu0 %v7467
    %v7469 = vpop.xlane.xlu0 %7468
    %v7470 = vadd.f32 %v7403, %v7404
    %7471 = vadd.xlane.f32.xlu0 %v7470
    %v7472 = vpop.xlane.xlu0 %7471
    %v7473 = vadd.f32 %v7405, %v7406
    %7474 = vadd.xlane.f32.xlu0 %v7473
    %v7475 = vpop.xlane.xlu0 %7474
    %v7476 = vadd.f32 %v7407, %v7408
    %7477 = vadd.xlane.f32.xlu0 %v7476
    %v7478 = vpop.xlane.xlu0 %7477
    %v7479 = vadd.f32 %v7409, %v7410
    %7480 = vadd.xlane.f32.xlu0 %v7479
    %v7481 = vpop.xlane.xlu0 %7480
    %v7482 = vadd.f32 %v7411, %v7412
    %7483 = vadd.xlane.f32.xlu0 %v7482
    %v7484 = vpop.xlane.xlu0 %7483
    %v7485 = vadd.f32 %v7413, %v7414
    %7486 = vadd.xlane.f32.xlu0 %v7485
    %v7487 = vpop.xlane.xlu0 %7486
    %v7488 = vadd.f32 %v7415, %v7416
    %7489 = vadd.xlane.f32.xlu0 %v7488
    %v7490 = vpop.xlane.xlu0 %7489
    %v7491 = vadd.f32 %v7417, %v7418
    %7492 = vadd.xlane.f32.xlu0 %v7491
    %v7493 = vpop.xlane.xlu0 %7492
    %v7494 = vadd.f32 %v7419, %v7420
    %7495 = vadd.xlane.f32.xlu0 %v7494
    %v7496 = vpop.xlane.xlu0 %7495
    %v7497 = vadd.f32 %v7421, %v7422
    %7498 = vadd.xlane.f32.xlu0 %v7497
    %v7499 = vpop.xlane.xlu0 %7498
    %v7500 = vadd.f32 %v7423, %v7424
    %7501 = vadd.xlane.f32.xlu0 %v7500
    %v7502 = vpop.xlane.xlu0 %7501
    %v7503 = vadd.f32 %v7425, %v7426
    %7504 = vadd.xlane.f32.xlu0 %v7503
    %v7505 = vpop.xlane.xlu0 %7504
    %v7506 = vadd.f32 %v7427, %v7428
    %7507 = vadd.xlane.f32.xlu0 %v7506
    %v7508 = vpop.xlane.xlu0 %7507
    %v7509 = vadd.f32 %v7429, %v7430
    %7510 = vadd.xlane.f32.xlu0 %v7509
    %v7511 = vpop.xlane.xlu0 %7510
    %v7512 = vadd.f32 %v7431, %v7432
    %7513 = vadd.xlane.f32.xlu0 %v7512
    %v7514 = vpop.xlane.xlu0 %7513
    %v7515 = vadd.f32 %v7433, %v7434
    %7516 = vadd.xlane.f32.xlu0 %v7515
    %v7517 = vpop.xlane.xlu0 %7516
    %v7518 = vadd.f32 %v7435, %v7436
    %7519 = vadd.xlane.f32.xlu0 %v7518
    %v7520 = vpop.xlane.xlu0 %7519
    %v7521 = vadd.f32 %v7437, %v7438
    %7522 = vadd.xlane.f32.xlu0 %v7521
    %v7523 = vpop.xlane.xlu0 %7522
    %v7524 = vadd.f32 %v7439, %v7440
    %7525 = vadd.xlane.f32.xlu0 %v7524
    %v7526 = vpop.xlane.xlu0 %7525
    %v7527 = vadd.f32 %v7441, %v7442
    %7528 = vadd.xlane.f32.xlu0 %v7527
    %v7529 = vpop.xlane.xlu0 %7528
    %v7530 = vadd.f32 %v7443, %v7444
    %7531 = vadd.xlane.f32.xlu0 %v7530
    %v7532 = vpop.xlane.xlu0 %7531
    %v7533 = vadd.f32 %v7445, %v7446
    %7534 = vadd.xlane.f32.xlu0 %v7533
    %v7535 = vpop.xlane.xlu0 %7534
    %v7536 = vadd.f32 %v7447, %v7448
    %7537 = vadd.xlane.f32.xlu0 %v7536
    %v7538 = vpop.xlane.xlu0 %7537
    %v7539 = vadd.f32 %v7449, %v7450
    %7540 = vadd.xlane.f32.xlu0 %v7539
    %v7541 = vpop.xlane.xlu0 %7540
    %v7542 = vadd.f32 %v7451, %v7452
    %7543 = vadd.xlane.f32.xlu0 %v7542
    %v7544 = vpop.xlane.xlu0 %7543
    %v7545 = vadd.f32 %v7453, %v7454
    %7546 = vadd.xlane.f32.xlu0 %v7545
    %v7547 = vpop.xlane.xlu0 %7546
    %v7548 = vadd.f32 %v7455, %v7456
    %7549 = vadd.xlane.f32.xlu0 %v7548
    %v7550 = vpop.xlane.xlu0 %7549
    %v7551 = vadd.f32 %v7457, %v7458
    %7552 = vadd.xlane.f32.xlu0 %v7551
    %v7553 = vpop.xlane.xlu0 %7552
    %v7554 = vadd.f32 %v7459, %v7460
    %7555 = vadd.xlane.f32.xlu0 %v7554
    %v7556 = vpop.xlane.xlu0 %7555
    %v7557 = vmax.f32 %v7463, 1e-20
    %v7558 = vmax.f32 %v7466, 1e-20
    %v7559 = vmax.f32 %v7469, 1e-20
    %v7560 = vmax.f32 %v7472, 1e-20
    %v7561 = vmax.f32 %v7475, 1e-20
    %v7562 = vmax.f32 %v7478, 1e-20
    %v7563 = vmax.f32 %v7481, 1e-20
    %v7564 = vmax.f32 %v7484, 1e-20
    %v7565 = vmax.f32 %v7487, 1e-20
    %v7566 = vmax.f32 %v7490, 1e-20
    %v7567 = vmax.f32 %v7493, 1e-20
    %v7568 = vmax.f32 %v7496, 1e-20
    %v7569 = vmax.f32 %v7499, 1e-20
    %v7570 = vmax.f32 %v7502, 1e-20
    %v7571 = vmax.f32 %v7505, 1e-20
    %v7572 = vmax.f32 %v7508, 1e-20
    %v7573 = vmax.f32 %v7511, 1e-20
    %v7574 = vmax.f32 %v7514, 1e-20
    %v7575 = vmax.f32 %v7517, 1e-20
    %v7576 = vmax.f32 %v7520, 1e-20
    %v7577 = vmax.f32 %v7523, 1e-20
    %v7578 = vmax.f32 %v7526, 1e-20
    %v7579 = vmax.f32 %v7529, 1e-20
    %v7580 = vmax.f32 %v7532, 1e-20
    %v7581 = vmax.f32 %v7535, 1e-20
    %v7582 = vmax.f32 %v7538, 1e-20
    %v7583 = vmax.f32 %v7541, 1e-20
    %v7584 = vmax.f32 %v7544, 1e-20
    %v7585 = vmax.f32 %v7547, 1e-20
    %v7586 = vmax.f32 %v7550, 1e-20
    %v7587 = vmax.f32 %v7553, 1e-20
    %v7588 = vmax.f32 %v7556, 1e-20
    %v7589 = vrcp.pop %v7557
    %v7590 = vmul.f32 1.0, %v7589
    %v7591 = vrcp.pop %v7558
    %v7592 = vmul.f32 1.0, %v7591
    %v7593 = vrcp.pop %v7559
    %v7594 = vmul.f32 1.0, %v7593
    %v7595 = vrcp.pop %v7560
    %v7596 = vmul.f32 1.0, %v7595
    %v7597 = vrcp.pop %v7561
    %v7598 = vmul.f32 1.0, %v7597
    %v7599 = vrcp.pop %v7562
    %v7600 = vmul.f32 1.0, %v7599
    %v7601 = vrcp.pop %v7563
    %v7602 = vmul.f32 1.0, %v7601
    %v7603 = vrcp.pop %v7564
    %v7604 = vmul.f32 1.0, %v7603
    %v7605 = vrcp.pop %v7565
    %v7606 = vmul.f32 1.0, %v7605
    %v7607 = vrcp.pop %v7566
    %v7608 = vmul.f32 1.0, %v7607
    %v7609 = vrcp.pop %v7567
    %v7610 = vmul.f32 1.0, %v7609
    %v7611 = vrcp.pop %v7568
    %v7612 = vmul.f32 1.0, %v7611
    %v7613 = vrcp.pop %v7569
    %v7614 = vmul.f32 1.0, %v7613
    %v7615 = vrcp.pop %v7570
    %v7616 = vmul.f32 1.0, %v7615
    %v7617 = vrcp.pop %v7571
    %v7618 = vmul.f32 1.0, %v7617
    %v7619 = vrcp.pop %v7572
    %v7620 = vmul.f32 1.0, %v7619
    %v7621 = vrcp.pop %v7573
    %v7622 = vmul.f32 1.0, %v7621
    %v7623 = vrcp.pop %v7574
    %v7624 = vmul.f32 1.0, %v7623
    %v7625 = vrcp.pop %v7575
    %v7626 = vmul.f32 1.0, %v7625
    %v7627 = vrcp.pop %v7576
    %v7628 = vmul.f32 1.0, %v7627
    %v7629 = vrcp.pop %v7577
    %v7630 = vmul.f32 1.0, %v7629
    %v7631 = vrcp.pop %v7578
    %v7632 = vmul.f32 1.0, %v7631
    %v7633 = vrcp.pop %v7579
    %v7634 = vmul.f32 1.0, %v7633
    %v7635 = vrcp.pop %v7580
    %v7636 = vmul.f32 1.0, %v7635
    %v7637 = vrcp.pop %v7581
    %v7638 = vmul.f32 1.0, %v7637
    %v7639 = vrcp.pop %v7582
    %v7640 = vmul.f32 1.0, %v7639
    %v7641 = vrcp.pop %v7583
    %v7642 = vmul.f32 1.0, %v7641
    %v7643 = vrcp.pop %v7584
    %v7644 = vmul.f32 1.0, %v7643
    %v7645 = vrcp.pop %v7585
    %v7646 = vmul.f32 1.0, %v7645
    %v7647 = vrcp.pop %v7586
    %v7648 = vmul.f32 1.0, %v7647
    %v7649 = vrcp.pop %v7587
    %v7650 = vmul.f32 1.0, %v7649
    %v7651 = vrcp.pop %v7588
    %v7652 = vmul.f32 1.0, %v7651
    %v7653 = vmul.f32 %v7397, %v7590
    %v7654 = vmul.f32 %v7398, %v7590
    %v7655 = vmul.f32 %v7399, %v7592
    %v7656 = vmul.f32 %v7400, %v7592
    %v7657 = vmul.f32 %v7401, %v7594
    %v7658 = vmul.f32 %v7402, %v7594
    %v7659 = vmul.f32 %v7403, %v7596
    %v7660 = vmul.f32 %v7404, %v7596
    %v7661 = vmul.f32 %v7405, %v7598
    %v7662 = vmul.f32 %v7406, %v7598
    %v7663 = vmul.f32 %v7407, %v7600
    %v7664 = vmul.f32 %v7408, %v7600
    %v7665 = vmul.f32 %v7409, %v7602
    %v7666 = vmul.f32 %v7410, %v7602
    %v7667 = vmul.f32 %v7411, %v7604
    %v7668 = vmul.f32 %v7412, %v7604
    %v7669 = vmul.f32 %v7413, %v7606
    %v7670 = vmul.f32 %v7414, %v7606
    %v7671 = vmul.f32 %v7415, %v7608
    %v7672 = vmul.f32 %v7416, %v7608
    %v7673 = vmul.f32 %v7417, %v7610
    %v7674 = vmul.f32 %v7418, %v7610
    %v7675 = vmul.f32 %v7419, %v7612
    %v7676 = vmul.f32 %v7420, %v7612
    %v7677 = vmul.f32 %v7421, %v7614
    %v7678 = vmul.f32 %v7422, %v7614
    %v7679 = vmul.f32 %v7423, %v7616
    %v7680 = vmul.f32 %v7424, %v7616
    %v7681 = vmul.f32 %v7425, %v7618
    %v7682 = vmul.f32 %v7426, %v7618
    %v7683 = vmul.f32 %v7427, %v7620
    %v7684 = vmul.f32 %v7428, %v7620
    %v7685 = vmul.f32 %v7429, %v7622
    %v7686 = vmul.f32 %v7430, %v7622
    %v7687 = vmul.f32 %v7431, %v7624
    %v7688 = vmul.f32 %v7432, %v7624
    %v7689 = vmul.f32 %v7433, %v7626
    %v7690 = vmul.f32 %v7434, %v7626
    %v7691 = vmul.f32 %v7435, %v7628
    %v7692 = vmul.f32 %v7436, %v7628
    %v7693 = vmul.f32 %v7437, %v7630
    %v7694 = vmul.f32 %v7438, %v7630
    %v7695 = vmul.f32 %v7439, %v7632
    %v7696 = vmul.f32 %v7440, %v7632
    %v7697 = vmul.f32 %v7441, %v7634
    %v7698 = vmul.f32 %v7442, %v7634
    %v7699 = vmul.f32 %v7443, %v7636
    %v7700 = vmul.f32 %v7444, %v7636
    %v7701 = vmul.f32 %v7445, %v7638
    %v7702 = vmul.f32 %v7446, %v7638
    %v7703 = vmul.f32 %v7447, %v7640
    %v7704 = vmul.f32 %v7448, %v7640
    %v7705 = vmul.f32 %v7449, %v7642
    %v7706 = vmul.f32 %v7450, %v7642
    %v7707 = vmul.f32 %v7451, %v7644
    %v7708 = vmul.f32 %v7452, %v7644
    %v7709 = vmul.f32 %v7453, %v7646
    %v7710 = vmul.f32 %v7454, %v7646
    %v7711 = vmul.f32 %v7455, %v7648
    %v7712 = vmul.f32 %v7456, %v7648
    %v7713 = vmul.f32 %v7457, %v7650
    %v7714 = vmul.f32 %v7458, %v7650
    %v7715 = vmul.f32 %v7459, %v7652
    %v7716 = vmul.f32 %v7460, %v7652
    %v7717 = vpack.c.bf16 %v7655, %v7653
    %v7718 = vpack.c.bf16 %v7656, %v7654
    %v7719 = vpack.c.bf16 %v7659, %v7657
    %v7720 = vpack.c.bf16 %v7660, %v7658
    %v7721 = vpack.c.bf16 %v7663, %v7661
    %v7722 = vpack.c.bf16 %v7664, %v7662
    %v7723 = vpack.c.bf16 %v7667, %v7665
    %v7724 = vpack.c.bf16 %v7668, %v7666
    %v7725 = vpack.c.bf16 %v7671, %v7669
    %v7726 = vpack.c.bf16 %v7672, %v7670
    %v7727 = vpack.c.bf16 %v7675, %v7673
    %v7728 = vpack.c.bf16 %v7676, %v7674
    %v7729 = vpack.c.bf16 %v7679, %v7677
    %v7730 = vpack.c.bf16 %v7680, %v7678
    %v7731 = vpack.c.bf16 %v7683, %v7681
    %v7732 = vpack.c.bf16 %v7684, %v7682
    %v7733 = vpack.c.bf16 %v7687, %v7685
    %v7734 = vpack.c.bf16 %v7688, %v7686
    %v7735 = vpack.c.bf16 %v7691, %v7689
    %v7736 = vpack.c.bf16 %v7692, %v7690
    %v7737 = vpack.c.bf16 %v7695, %v7693
    %v7738 = vpack.c.bf16 %v7696, %v7694
    %v7739 = vpack.c.bf16 %v7699, %v7697
    %v7740 = vpack.c.bf16 %v7700, %v7698
    %v7741 = vpack.c.bf16 %v7703, %v7701
    %v7742 = vpack.c.bf16 %v7704, %v7702
    %v7743 = vpack.c.bf16 %v7707, %v7705
    %v7744 = vpack.c.bf16 %v7708, %v7706
    %v7745 = vpack.c.bf16 %v7711, %v7709
    %v7746 = vpack.c.bf16 %v7712, %v7710
    %v7747 = vpack.c.bf16 %v7715, %v7713
    %v7748 = vpack.c.bf16 %v7716, %v7714
    %7749 = vset.pattern.permute.xlu0 4
    %7750 = vperm.xlu0 %7749, %v6333
    %v7751 = vpop.permute.xlu0 %7750
    %7753 = vset.pattern.permute.xlu0 4
    %7754 = vperm.xlu0 %7753, %v6334
    %v7755 = vpop.permute.xlu0 %7754
    %7757 = vset.pattern.permute.xlu0 4
    %7758 = vperm.xlu0 %7757, %v6335
    %v7759 = vpop.permute.xlu0 %7758
    %7761 = vset.pattern.permute.xlu0 4
    %7762 = vperm.xlu0 %7761, %v6336
    %v7763 = vpop.permute.xlu0 %7762
    %7765 = vset.pattern.permute.xlu0 4
    %7766 = vperm.xlu0 %7765, %v6337
    %v7767 = vpop.permute.xlu0 %7766
    %7769 = vset.pattern.permute.xlu0 4
    %7770 = vperm.xlu0 %7769, %v6338
    %v7771 = vpop.permute.xlu0 %7770
    %7773 = vset.pattern.permute.xlu0 4
    %7774 = vperm.xlu0 %7773, %v6339
    %v7775 = vpop.permute.xlu0 %7774
    %7777 = vset.pattern.permute.xlu0 4
    %7778 = vperm.xlu0 %7777, %v6340
    %v7779 = vpop.permute.xlu0 %7778
    %7781 = vset.pattern.permute.xlu0 4
    %7782 = vperm.xlu0 %7781, %v6341
    %v7783 = vpop.permute.xlu0 %7782
    %7785 = vset.pattern.permute.xlu0 4
    %7786 = vperm.xlu0 %7785, %v6342
    %v7787 = vpop.permute.xlu0 %7786
    %7789 = vset.pattern.permute.xlu0 4
    %7790 = vperm.xlu0 %7789, %v6343
    %v7791 = vpop.permute.xlu0 %7790
    %7793 = vset.pattern.permute.xlu0 4
    %7794 = vperm.xlu0 %7793, %v6344
    %v7795 = vpop.permute.xlu0 %7794
    %7797 = vset.pattern.permute.xlu0 4
    %7798 = vperm.xlu0 %7797, %v6345
    %v7799 = vpop.permute.xlu0 %7798
    %7801 = vset.pattern.permute.xlu0 4
    %7802 = vperm.xlu0 %7801, %v6346
    %v7803 = vpop.permute.xlu0 %7802
    %7805 = vset.pattern.permute.xlu0 4
    %7806 = vperm.xlu0 %7805, %v6347
    %v7807 = vpop.permute.xlu0 %7806
    %7809 = vset.pattern.permute.xlu0 4
    %7810 = vperm.xlu0 %7809, %v6348
    %v7811 = vpop.permute.xlu0 %7810
    %7813 = vset.pattern.permute.xlu0 4
    %7814 = vperm.xlu0 %7813, %v6349
    %v7815 = vpop.permute.xlu0 %7814
    %7817 = vset.pattern.permute.xlu0 4
    %7818 = vperm.xlu0 %7817, %v6350
    %v7819 = vpop.permute.xlu0 %7818
    %7821 = vset.pattern.permute.xlu0 4
    %7822 = vperm.xlu0 %7821, %v6351
    %v7823 = vpop.permute.xlu0 %7822
    %7825 = vset.pattern.permute.xlu0 4
    %7826 = vperm.xlu0 %7825, %v6352
    %v7827 = vpop.permute.xlu0 %7826
    %7829 = vset.pattern.permute.xlu0 4
    %7830 = vperm.xlu0 %7829, %v6353
    %v7831 = vpop.permute.xlu0 %7830
    %7833 = vset.pattern.permute.xlu0 4
    %7834 = vperm.xlu0 %7833, %v6354
    %v7835 = vpop.permute.xlu0 %7834
    %7837 = vset.pattern.permute.xlu0 4
    %7838 = vperm.xlu0 %7837, %v6355
    %v7839 = vpop.permute.xlu0 %7838
    %7841 = vset.pattern.permute.xlu0 4
    %7842 = vperm.xlu0 %7841, %v6356
    %v7843 = vpop.permute.xlu0 %7842
    %7845 = vset.pattern.permute.xlu0 4
    %7846 = vperm.xlu0 %7845, %v6357
    %v7847 = vpop.permute.xlu0 %7846
    %7849 = vset.pattern.permute.xlu0 4
    %7850 = vperm.xlu0 %7849, %v6358
    %v7851 = vpop.permute.xlu0 %7850
    %7853 = vset.pattern.permute.xlu0 4
    %7854 = vperm.xlu0 %7853, %v6359
    %v7855 = vpop.permute.xlu0 %7854
    %7857 = vset.pattern.permute.xlu0 4
    %7858 = vperm.xlu0 %7857, %v6360
    %v7859 = vpop.permute.xlu0 %7858
    %7861 = vset.pattern.permute.xlu0 4
    %7862 = vperm.xlu0 %7861, %v6361
    %v7863 = vpop.permute.xlu0 %7862
    %7865 = vset.pattern.permute.xlu0 4
    %7866 = vperm.xlu0 %7865, %v6362
    %v7867 = vpop.permute.xlu0 %7866
    %7869 = vset.pattern.permute.xlu0 4
    %7870 = vperm.xlu0 %7869, %v6363
    %v7871 = vpop.permute.xlu0 %7870
    %7873 = vset.pattern.permute.xlu0 4
    %7874 = vperm.xlu0 %7873, %v6364
    %v7875 = vpop.permute.xlu0 %7874
    %v7877 = vlaneseq
    %v7878 = vshrl.u32 %v7877, 7
    %v7879 = vsub.s32 1, %v7878
    %v7880 = vrot.slane %v6185, %v7879
    %v7881 = vlaneseq
    %v7882 = vshrl.u32 %v7881, 7
    %v7883 = vsub.s32 1, %v7882
    %v7884 = vrot.slane %v6217, %v7883
    %v7885 = vadd.f32 %v7751, %v7880
    %v7886 = vadd.f32 %v7751, %v7884
    %v7887 = vadd.f32 %v7755, %v7880
    %v7888 = vadd.f32 %v7755, %v7884
    %v7889 = vadd.f32 %v7759, %v7880
    %v7890 = vadd.f32 %v7759, %v7884
    %v7891 = vadd.f32 %v7763, %v7880
    %v7892 = vadd.f32 %v7763, %v7884
    %v7893 = vadd.f32 %v7767, %v7880
    %v7894 = vadd.f32 %v7767, %v7884
    %v7895 = vadd.f32 %v7771, %v7880
    %v7896 = vadd.f32 %v7771, %v7884
    %v7897 = vadd.f32 %v7775, %v7880
    %v7898 = vadd.f32 %v7775, %v7884
    %v7899 = vadd.f32 %v7779, %v7880
    %v7900 = vadd.f32 %v7779, %v7884
    %v7901 = vadd.f32 %v7783, %v7880
    %v7902 = vadd.f32 %v7783, %v7884
    %v7903 = vadd.f32 %v7787, %v7880
    %v7904 = vadd.f32 %v7787, %v7884
    %v7905 = vadd.f32 %v7791, %v7880
    %v7906 = vadd.f32 %v7791, %v7884
    %v7907 = vadd.f32 %v7795, %v7880
    %v7908 = vadd.f32 %v7795, %v7884
    %v7909 = vadd.f32 %v7799, %v7880
    %v7910 = vadd.f32 %v7799, %v7884
    %v7911 = vadd.f32 %v7803, %v7880
    %v7912 = vadd.f32 %v7803, %v7884
    %v7913 = vadd.f32 %v7807, %v7880
    %v7914 = vadd.f32 %v7807, %v7884
    %v7915 = vadd.f32 %v7811, %v7880
    %v7916 = vadd.f32 %v7811, %v7884
    %v7917 = vadd.f32 %v7815, %v7880
    %v7918 = vadd.f32 %v7815, %v7884
    %v7919 = vadd.f32 %v7819, %v7880
    %v7920 = vadd.f32 %v7819, %v7884
    %v7921 = vadd.f32 %v7823, %v7880
    %v7922 = vadd.f32 %v7823, %v7884
    %v7923 = vadd.f32 %v7827, %v7880
    %v7924 = vadd.f32 %v7827, %v7884
    %v7925 = vadd.f32 %v7831, %v7880
    %v7926 = vadd.f32 %v7831, %v7884
    %v7927 = vadd.f32 %v7835, %v7880
    %v7928 = vadd.f32 %v7835, %v7884
    %v7929 = vadd.f32 %v7839, %v7880
    %v7930 = vadd.f32 %v7839, %v7884
    %v7931 = vadd.f32 %v7843, %v7880
    %v7932 = vadd.f32 %v7843, %v7884
    %v7933 = vadd.f32 %v7847, %v7880
    %v7934 = vadd.f32 %v7847, %v7884
    %v7935 = vadd.f32 %v7851, %v7880
    %v7936 = vadd.f32 %v7851, %v7884
    %v7937 = vadd.f32 %v7855, %v7880
    %v7938 = vadd.f32 %v7855, %v7884
    %v7939 = vadd.f32 %v7859, %v7880
    %v7940 = vadd.f32 %v7859, %v7884
    %v7941 = vadd.f32 %v7863, %v7880
    %v7942 = vadd.f32 %v7863, %v7884
    %v7943 = vadd.f32 %v7867, %v7880
    %v7944 = vadd.f32 %v7867, %v7884
    %v7945 = vadd.f32 %v7871, %v7880
    %v7946 = vadd.f32 %v7871, %v7884
    %v7947 = vadd.f32 %v7875, %v7880
    %v7948 = vadd.f32 %v7875, %v7884
    %v7949 = vmul.f32 %v7885, 0.2
    %v7950 = vmul.f32 %v7886, 0.2
    %v7951 = vmul.f32 %v7887, 0.2
    %v7952 = vmul.f32 %v7888, 0.2
    %v7953 = vmul.f32 %v7889, 0.2
    %v7954 = vmul.f32 %v7890, 0.2
    %v7955 = vmul.f32 %v7891, 0.2
    %v7956 = vmul.f32 %v7892, 0.2
    %v7957 = vmul.f32 %v7893, 0.2
    %v7958 = vmul.f32 %v7894, 0.2
    %v7959 = vmul.f32 %v7895, 0.2
    %v7960 = vmul.f32 %v7896, 0.2
    %v7961 = vmul.f32 %v7897, 0.2
    %v7962 = vmul.f32 %v7898, 0.2
    %v7963 = vmul.f32 %v7899, 0.2
    %v7964 = vmul.f32 %v7900, 0.2
    %v7965 = vmul.f32 %v7901, 0.2
    %v7966 = vmul.f32 %v7902, 0.2
    %v7967 = vmul.f32 %v7903, 0.2
    %v7968 = vmul.f32 %v7904, 0.2
    %v7969 = vmul.f32 %v7905, 0.2
    %v7970 = vmul.f32 %v7906, 0.2
    %v7971 = vmul.f32 %v7907, 0.2
    %v7972 = vmul.f32 %v7908, 0.2
    %v7973 = vmul.f32 %v7909, 0.2
    %v7974 = vmul.f32 %v7910, 0.2
    %v7975 = vmul.f32 %v7911, 0.2
    %v7976 = vmul.f32 %v7912, 0.2
    %v7977 = vmul.f32 %v7913, 0.2
    %v7978 = vmul.f32 %v7914, 0.2
    %v7979 = vmul.f32 %v7915, 0.2
    %v7980 = vmul.f32 %v7916, 0.2
    %v7981 = vmul.f32 %v7917, 0.2
    %v7982 = vmul.f32 %v7918, 0.2
    %v7983 = vmul.f32 %v7919, 0.2
    %v7984 = vmul.f32 %v7920, 0.2
    %v7985 = vmul.f32 %v7921, 0.2
    %v7986 = vmul.f32 %v7922, 0.2
    %v7987 = vmul.f32 %v7923, 0.2
    %v7988 = vmul.f32 %v7924, 0.2
    %v7989 = vmul.f32 %v7925, 0.2
    %v7990 = vmul.f32 %v7926, 0.2
    %v7991 = vmul.f32 %v7927, 0.2
    %v7992 = vmul.f32 %v7928, 0.2
    %v7993 = vmul.f32 %v7929, 0.2
    %v7994 = vmul.f32 %v7930, 0.2
    %v7995 = vmul.f32 %v7931, 0.2
    %v7996 = vmul.f32 %v7932, 0.2
    %v7997 = vmul.f32 %v7933, 0.2
    %v7998 = vmul.f32 %v7934, 0.2
    %v7999 = vmul.f32 %v7935, 0.2
    %v8000 = vmul.f32 %v7936, 0.2
    %v8001 = vmul.f32 %v7937, 0.2
    %v8002 = vmul.f32 %v7938, 0.2
    %v8003 = vmul.f32 %v7939, 0.2
    %v8004 = vmul.f32 %v7940, 0.2
    %v8005 = vmul.f32 %v7941, 0.2
    %v8006 = vmul.f32 %v7942, 0.2
    %v8007 = vmul.f32 %v7943, 0.2
    %v8008 = vmul.f32 %v7944, 0.2
    %v8009 = vmul.f32 %v7945, 0.2
    %v8010 = vmul.f32 %v7946, 0.2
    %v8011 = vmul.f32 %v7947, 0.2
    %v8012 = vmul.f32 %v7948, 0.2
    %v8013 = vmax.f32 %v7885, %v7949
    %v8014 = vmax.f32 %v7886, %v7950
    %v8015 = vmax.f32 %v7887, %v7951
    %v8016 = vmax.f32 %v7888, %v7952
    %v8017 = vmax.f32 %v7889, %v7953
    %v8018 = vmax.f32 %v7890, %v7954
    %v8019 = vmax.f32 %v7891, %v7955
    %v8020 = vmax.f32 %v7892, %v7956
    %v8021 = vmax.f32 %v7893, %v7957
    %v8022 = vmax.f32 %v7894, %v7958
    %v8023 = vmax.f32 %v7895, %v7959
    %v8024 = vmax.f32 %v7896, %v7960
    %v8025 = vmax.f32 %v7897, %v7961
    %v8026 = vmax.f32 %v7898, %v7962
    %v8027 = vmax.f32 %v7899, %v7963
    %v8028 = vmax.f32 %v7900, %v7964
    %v8029 = vmax.f32 %v7901, %v7965
    %v8030 = vmax.f32 %v7902, %v7966
    %v8031 = vmax.f32 %v7903, %v7967
    %v8032 = vmax.f32 %v7904, %v7968
    %v8033 = vmax.f32 %v7905, %v7969
    %v8034 = vmax.f32 %v7906, %v7970
    %v8035 = vmax.f32 %v7907, %v7971
    %v8036 = vmax.f32 %v7908, %v7972
    %v8037 = vmax.f32 %v7909, %v7973
    %v8038 = vmax.f32 %v7910, %v7974
    %v8039 = vmax.f32 %v7911, %v7975
    %v8040 = vmax.f32 %v7912, %v7976
    %v8041 = vmax.f32 %v7913, %v7977
    %v8042 = vmax.f32 %v7914, %v7978
    %v8043 = vmax.f32 %v7915, %v7979
    %v8044 = vmax.f32 %v7916, %v7980
    %v8045 = vmax.f32 %v7917, %v7981
    %v8046 = vmax.f32 %v7918, %v7982
    %v8047 = vmax.f32 %v7919, %v7983
    %v8048 = vmax.f32 %v7920, %v7984
    %v8049 = vmax.f32 %v7921, %v7985
    %v8050 = vmax.f32 %v7922, %v7986
    %v8051 = vmax.f32 %v7923, %v7987
    %v8052 = vmax.f32 %v7924, %v7988
    %v8053 = vmax.f32 %v7925, %v7989
    %v8054 = vmax.f32 %v7926, %v7990
    %v8055 = vmax.f32 %v7927, %v7991
    %v8056 = vmax.f32 %v7928, %v7992
    %v8057 = vmax.f32 %v7929, %v7993
    %v8058 = vmax.f32 %v7930, %v7994
    %v8059 = vmax.f32 %v7931, %v7995
    %v8060 = vmax.f32 %v7932, %v7996
    %v8061 = vmax.f32 %v7933, %v7997
    %v8062 = vmax.f32 %v7934, %v7998
    %v8063 = vmax.f32 %v7935, %v7999
    %v8064 = vmax.f32 %v7936, %v8000
    %v8065 = vmax.f32 %v7937, %v8001
    %v8066 = vmax.f32 %v7938, %v8002
    %v8067 = vmax.f32 %v7939, %v8003
    %v8068 = vmax.f32 %v7940, %v8004
    %v8069 = vmax.f32 %v7941, %v8005
    %v8070 = vmax.f32 %v7942, %v8006
    %v8071 = vmax.f32 %v7943, %v8007
    %v8072 = vmax.f32 %v7944, %v8008
    %v8073 = vmax.f32 %v7945, %v8009
    %v8074 = vmax.f32 %v7946, %v8010
    %v8075 = vmax.f32 %v7947, %v8011
    %v8076 = vmax.f32 %v7948, %v8012
    %v8077 = vsel %vm6981, %v8013, -1e+30
    %v8078 = vsel %vm6982, %v8014, -1e+30
    %v8079 = vsel %vm6983, %v8015, -1e+30
    %v8080 = vsel %vm6984, %v8016, -1e+30
    %v8081 = vsel %vm6985, %v8017, -1e+30
    %v8082 = vsel %vm6986, %v8018, -1e+30
    %v8083 = vsel %vm6987, %v8019, -1e+30
    %v8084 = vsel %vm6988, %v8020, -1e+30
    %v8085 = vsel %vm6989, %v8021, -1e+30
    %v8086 = vsel %vm6990, %v8022, -1e+30
    %v8087 = vsel %vm6991, %v8023, -1e+30
    %v8088 = vsel %vm6992, %v8024, -1e+30
    %v8089 = vsel %vm6993, %v8025, -1e+30
    %v8090 = vsel %vm6994, %v8026, -1e+30
    %v8091 = vsel %vm6995, %v8027, -1e+30
    %v8092 = vsel %vm6996, %v8028, -1e+30
    %v8093 = vsel %vm6997, %v8029, -1e+30
    %v8094 = vsel %vm6998, %v8030, -1e+30
    %v8095 = vsel %vm6999, %v8031, -1e+30
    %v8096 = vsel %vm7000, %v8032, -1e+30
    %v8097 = vsel %vm7001, %v8033, -1e+30
    %v8098 = vsel %vm7002, %v8034, -1e+30
    %v8099 = vsel %vm7003, %v8035, -1e+30
    %v8100 = vsel %vm7004, %v8036, -1e+30
    %v8101 = vsel %vm7005, %v8037, -1e+30
    %v8102 = vsel %vm7006, %v8038, -1e+30
    %v8103 = vsel %vm7007, %v8039, -1e+30
    %v8104 = vsel %vm7008, %v8040, -1e+30
    %v8105 = vsel %vm7009, %v8041, -1e+30
    %v8106 = vsel %vm7010, %v8042, -1e+30
    %v8107 = vsel %vm7011, %v8043, -1e+30
    %v8108 = vsel %vm7012, %v8044, -1e+30
    %v8109 = vsel %vm7013, %v8045, -1e+30
    %v8110 = vsel %vm7014, %v8046, -1e+30
    %v8111 = vsel %vm7015, %v8047, -1e+30
    %v8112 = vsel %vm7016, %v8048, -1e+30
    %v8113 = vsel %vm7017, %v8049, -1e+30
    %v8114 = vsel %vm7018, %v8050, -1e+30
    %v8115 = vsel %vm7019, %v8051, -1e+30
    %v8116 = vsel %vm7020, %v8052, -1e+30
    %v8117 = vsel %vm7021, %v8053, -1e+30
    %v8118 = vsel %vm7022, %v8054, -1e+30
    %v8119 = vsel %vm7023, %v8055, -1e+30
    %v8120 = vsel %vm7024, %v8056, -1e+30
    %v8121 = vsel %vm7025, %v8057, -1e+30
    %v8122 = vsel %vm7026, %v8058, -1e+30
    %v8123 = vsel %vm7027, %v8059, -1e+30
    %v8124 = vsel %vm7028, %v8060, -1e+30
    %v8125 = vsel %vm7029, %v8061, -1e+30
    %v8126 = vsel %vm7030, %v8062, -1e+30
    %v8127 = vsel %vm7031, %v8063, -1e+30
    %v8128 = vsel %vm7032, %v8064, -1e+30
    %v8129 = vsel %vm7033, %v8065, -1e+30
    %v8130 = vsel %vm7034, %v8066, -1e+30
    %v8131 = vsel %vm7035, %v8067, -1e+30
    %v8132 = vsel %vm7036, %v8068, -1e+30
    %v8133 = vsel %vm7037, %v8069, -1e+30
    %v8134 = vsel %vm7038, %v8070, -1e+30
    %v8135 = vsel %vm7039, %v8071, -1e+30
    %v8136 = vsel %vm7040, %v8072, -1e+30
    %v8137 = vsel %vm7041, %v8073, -1e+30
    %v8138 = vsel %vm7042, %v8074, -1e+30
    %v8139 = vsel %vm7043, %v8075, -1e+30
    %v8140 = vsel %vm7044, %v8076, -1e+30
    %v8141 = vmax.f32 %v8077, %v8078
    %8142 = vmax.xlane.f32.xlu0 %v8141
    %v8143 = vpop.xlane.xlu0 %8142
    %v8144 = vmax.f32 %v8079, %v8080
    %8145 = vmax.xlane.f32.xlu0 %v8144
    %v8146 = vpop.xlane.xlu0 %8145
    %v8147 = vmax.f32 %v8081, %v8082
    %8148 = vmax.xlane.f32.xlu0 %v8147
    %v8149 = vpop.xlane.xlu0 %8148
    %v8150 = vmax.f32 %v8083, %v8084
    %8151 = vmax.xlane.f32.xlu0 %v8150
    %v8152 = vpop.xlane.xlu0 %8151
    %v8153 = vmax.f32 %v8085, %v8086
    %8154 = vmax.xlane.f32.xlu0 %v8153
    %v8155 = vpop.xlane.xlu0 %8154
    %v8156 = vmax.f32 %v8087, %v8088
    %8157 = vmax.xlane.f32.xlu0 %v8156
    %v8158 = vpop.xlane.xlu0 %8157
    %v8159 = vmax.f32 %v8089, %v8090
    %8160 = vmax.xlane.f32.xlu0 %v8159
    %v8161 = vpop.xlane.xlu0 %8160
    %v8162 = vmax.f32 %v8091, %v8092
    %8163 = vmax.xlane.f32.xlu0 %v8162
    %v8164 = vpop.xlane.xlu0 %8163
    %v8165 = vmax.f32 %v8093, %v8094
    %8166 = vmax.xlane.f32.xlu0 %v8165
    %v8167 = vpop.xlane.xlu0 %8166
    %v8168 = vmax.f32 %v8095, %v8096
    %8169 = vmax.xlane.f32.xlu0 %v8168
    %v8170 = vpop.xlane.xlu0 %8169
    %v8171 = vmax.f32 %v8097, %v8098
    %8172 = vmax.xlane.f32.xlu0 %v8171
    %v8173 = vpop.xlane.xlu0 %8172
    %v8174 = vmax.f32 %v8099, %v8100
    %8175 = vmax.xlane.f32.xlu0 %v8174
    %v8176 = vpop.xlane.xlu0 %8175
    %v8177 = vmax.f32 %v8101, %v8102
    %8178 = vmax.xlane.f32.xlu0 %v8177
    %v8179 = vpop.xlane.xlu0 %8178
    %v8180 = vmax.f32 %v8103, %v8104
    %8181 = vmax.xlane.f32.xlu0 %v8180
    %v8182 = vpop.xlane.xlu0 %8181
    %v8183 = vmax.f32 %v8105, %v8106
    %8184 = vmax.xlane.f32.xlu0 %v8183
    %v8185 = vpop.xlane.xlu0 %8184
    %v8186 = vmax.f32 %v8107, %v8108
    %8187 = vmax.xlane.f32.xlu0 %v8186
    %v8188 = vpop.xlane.xlu0 %8187
    %v8189 = vmax.f32 %v8109, %v8110
    %8190 = vmax.xlane.f32.xlu0 %v8189
    %v8191 = vpop.xlane.xlu0 %8190
    %v8192 = vmax.f32 %v8111, %v8112
    %8193 = vmax.xlane.f32.xlu0 %v8192
    %v8194 = vpop.xlane.xlu0 %8193
    %v8195 = vmax.f32 %v8113, %v8114
    %8196 = vmax.xlane.f32.xlu0 %v8195
    %v8197 = vpop.xlane.xlu0 %8196
    %v8198 = vmax.f32 %v8115, %v8116
    %8199 = vmax.xlane.f32.xlu0 %v8198
    %v8200 = vpop.xlane.xlu0 %8199
    %v8201 = vmax.f32 %v8117, %v8118
    %8202 = vmax.xlane.f32.xlu0 %v8201
    %v8203 = vpop.xlane.xlu0 %8202
    %v8204 = vmax.f32 %v8119, %v8120
    %8205 = vmax.xlane.f32.xlu0 %v8204
    %v8206 = vpop.xlane.xlu0 %8205
    %v8207 = vmax.f32 %v8121, %v8122
    %8208 = vmax.xlane.f32.xlu0 %v8207
    %v8209 = vpop.xlane.xlu0 %8208
    %v8210 = vmax.f32 %v8123, %v8124
    %8211 = vmax.xlane.f32.xlu0 %v8210
    %v8212 = vpop.xlane.xlu0 %8211
    %v8213 = vmax.f32 %v8125, %v8126
    %8214 = vmax.xlane.f32.xlu0 %v8213
    %v8215 = vpop.xlane.xlu0 %8214
    %v8216 = vmax.f32 %v8127, %v8128
    %8217 = vmax.xlane.f32.xlu0 %v8216
    %v8218 = vpop.xlane.xlu0 %8217
    %v8219 = vmax.f32 %v8129, %v8130
    %8220 = vmax.xlane.f32.xlu0 %v8219
    %v8221 = vpop.xlane.xlu0 %8220
    %v8222 = vmax.f32 %v8131, %v8132
    %8223 = vmax.xlane.f32.xlu0 %v8222
    %v8224 = vpop.xlane.xlu0 %8223
    %v8225 = vmax.f32 %v8133, %v8134
    %8226 = vmax.xlane.f32.xlu0 %v8225
    %v8227 = vpop.xlane.xlu0 %8226
    %v8228 = vmax.f32 %v8135, %v8136
    %8229 = vmax.xlane.f32.xlu0 %v8228
    %v8230 = vpop.xlane.xlu0 %8229
    %v8231 = vmax.f32 %v8137, %v8138
    %8232 = vmax.xlane.f32.xlu0 %v8231
    %v8233 = vpop.xlane.xlu0 %8232
    %v8234 = vmax.f32 %v8139, %v8140
    %8235 = vmax.xlane.f32.xlu0 %v8234
    %v8236 = vpop.xlane.xlu0 %8235
    %v8237 = vsub.f32 %v8077, %v8143
    %v8238 = vsub.f32 %v8078, %v8143
    %v8239 = vsub.f32 %v8079, %v8146
    %v8240 = vsub.f32 %v8080, %v8146
    %v8241 = vsub.f32 %v8081, %v8149
    %v8242 = vsub.f32 %v8082, %v8149
    %v8243 = vsub.f32 %v8083, %v8152
    %v8244 = vsub.f32 %v8084, %v8152
    %v8245 = vsub.f32 %v8085, %v8155
    %v8246 = vsub.f32 %v8086, %v8155
    %v8247 = vsub.f32 %v8087, %v8158
    %v8248 = vsub.f32 %v8088, %v8158
    %v8249 = vsub.f32 %v8089, %v8161
    %v8250 = vsub.f32 %v8090, %v8161
    %v8251 = vsub.f32 %v8091, %v8164
    %v8252 = vsub.f32 %v8092, %v8164
    %v8253 = vsub.f32 %v8093, %v8167
    %v8254 = vsub.f32 %v8094, %v8167
    %v8255 = vsub.f32 %v8095, %v8170
    %v8256 = vsub.f32 %v8096, %v8170
    %v8257 = vsub.f32 %v8097, %v8173
    %v8258 = vsub.f32 %v8098, %v8173
    %v8259 = vsub.f32 %v8099, %v8176
    %v8260 = vsub.f32 %v8100, %v8176
    %v8261 = vsub.f32 %v8101, %v8179
    %v8262 = vsub.f32 %v8102, %v8179
    %v8263 = vsub.f32 %v8103, %v8182
    %v8264 = vsub.f32 %v8104, %v8182
    %v8265 = vsub.f32 %v8105, %v8185
    %v8266 = vsub.f32 %v8106, %v8185
    %v8267 = vsub.f32 %v8107, %v8188
    %v8268 = vsub.f32 %v8108, %v8188
    %v8269 = vsub.f32 %v8109, %v8191
    %v8270 = vsub.f32 %v8110, %v8191
    %v8271 = vsub.f32 %v8111, %v8194
    %v8272 = vsub.f32 %v8112, %v8194
    %v8273 = vsub.f32 %v8113, %v8197
    %v8274 = vsub.f32 %v8114, %v8197
    %v8275 = vsub.f32 %v8115, %v8200
    %v8276 = vsub.f32 %v8116, %v8200
    %v8277 = vsub.f32 %v8117, %v8203
    %v8278 = vsub.f32 %v8118, %v8203
    %v8279 = vsub.f32 %v8119, %v8206
    %v8280 = vsub.f32 %v8120, %v8206
    %v8281 = vsub.f32 %v8121, %v8209
    %v8282 = vsub.f32 %v8122, %v8209
    %v8283 = vsub.f32 %v8123, %v8212
    %v8284 = vsub.f32 %v8124, %v8212
    %v8285 = vsub.f32 %v8125, %v8215
    %v8286 = vsub.f32 %v8126, %v8215
    %v8287 = vsub.f32 %v8127, %v8218
    %v8288 = vsub.f32 %v8128, %v8218
    %v8289 = vsub.f32 %v8129, %v8221
    %v8290 = vsub.f32 %v8130, %v8221
    %v8291 = vsub.f32 %v8131, %v8224
    %v8292 = vsub.f32 %v8132, %v8224
    %v8293 = vsub.f32 %v8133, %v8227
    %v8294 = vsub.f32 %v8134, %v8227
    %v8295 = vsub.f32 %v8135, %v8230
    %v8296 = vsub.f32 %v8136, %v8230
    %v8297 = vsub.f32 %v8137, %v8233
    %v8298 = vsub.f32 %v8138, %v8233
    %v8299 = vsub.f32 %v8139, %v8236
    %v8300 = vsub.f32 %v8140, %v8236
    %v8301 = vmul.f32 %v8237, 1.442695
    %v8302 = vpow.pop %v8301
    %v8303 = vmul.f32 %v8238, 1.442695
    %v8304 = vpow.pop %v8303
    %v8305 = vmul.f32 %v8239, 1.442695
    %v8306 = vpow.pop %v8305
    %v8307 = vmul.f32 %v8240, 1.442695
    %v8308 = vpow.pop %v8307
    %v8309 = vmul.f32 %v8241, 1.442695
    %v8310 = vpow.pop %v8309
    %v8311 = vmul.f32 %v8242, 1.442695
    %v8312 = vpow.pop %v8311
    %v8313 = vmul.f32 %v8243, 1.442695
    %v8314 = vpow.pop %v8313
    %v8315 = vmul.f32 %v8244, 1.442695
    %v8316 = vpow.pop %v8315
    %v8317 = vmul.f32 %v8245, 1.442695
    %v8318 = vpow.pop %v8317
    %v8319 = vmul.f32 %v8246, 1.442695
    %v8320 = vpow.pop %v8319
    %v8321 = vmul.f32 %v8247, 1.442695
    %v8322 = vpow.pop %v8321
    %v8323 = vmul.f32 %v8248, 1.442695
    %v8324 = vpow.pop %v8323
    %v8325 = vmul.f32 %v8249, 1.442695
    %v8326 = vpow.pop %v8325
    %v8327 = vmul.f32 %v8250, 1.442695
    %v8328 = vpow.pop %v8327
    %v8329 = vmul.f32 %v8251, 1.442695
    %v8330 = vpow.pop %v8329
    %v8331 = vmul.f32 %v8252, 1.442695
    %v8332 = vpow.pop %v8331
    %v8333 = vmul.f32 %v8253, 1.442695
    %v8334 = vpow.pop %v8333
    %v8335 = vmul.f32 %v8254, 1.442695
    %v8336 = vpow.pop %v8335
    %v8337 = vmul.f32 %v8255, 1.442695
    %v8338 = vpow.pop %v8337
    %v8339 = vmul.f32 %v8256, 1.442695
    %v8340 = vpow.pop %v8339
    %v8341 = vmul.f32 %v8257, 1.442695
    %v8342 = vpow.pop %v8341
    %v8343 = vmul.f32 %v8258, 1.442695
    %v8344 = vpow.pop %v8343
    %v8345 = vmul.f32 %v8259, 1.442695
    %v8346 = vpow.pop %v8345
    %v8347 = vmul.f32 %v8260, 1.442695
    %v8348 = vpow.pop %v8347
    %v8349 = vmul.f32 %v8261, 1.442695
    %v8350 = vpow.pop %v8349
    %v8351 = vmul.f32 %v8262, 1.442695
    %v8352 = vpow.pop %v8351
    %v8353 = vmul.f32 %v8263, 1.442695
    %v8354 = vpow.pop %v8353
    %v8355 = vmul.f32 %v8264, 1.442695
    %v8356 = vpow.pop %v8355
    %v8357 = vmul.f32 %v8265, 1.442695
    %v8358 = vpow.pop %v8357
    %v8359 = vmul.f32 %v8266, 1.442695
    %v8360 = vpow.pop %v8359
    %v8361 = vmul.f32 %v8267, 1.442695
    %v8362 = vpow.pop %v8361
    %v8363 = vmul.f32 %v8268, 1.442695
    %v8364 = vpow.pop %v8363
    %v8365 = vmul.f32 %v8269, 1.442695
    %v8366 = vpow.pop %v8365
    %v8367 = vmul.f32 %v8270, 1.442695
    %v8368 = vpow.pop %v8367
    %v8369 = vmul.f32 %v8271, 1.442695
    %v8370 = vpow.pop %v8369
    %v8371 = vmul.f32 %v8272, 1.442695
    %v8372 = vpow.pop %v8371
    %v8373 = vmul.f32 %v8273, 1.442695
    %v8374 = vpow.pop %v8373
    %v8375 = vmul.f32 %v8274, 1.442695
    %v8376 = vpow.pop %v8375
    %v8377 = vmul.f32 %v8275, 1.442695
    %v8378 = vpow.pop %v8377
    %v8379 = vmul.f32 %v8276, 1.442695
    %v8380 = vpow.pop %v8379
    %v8381 = vmul.f32 %v8277, 1.442695
    %v8382 = vpow.pop %v8381
    %v8383 = vmul.f32 %v8278, 1.442695
    %v8384 = vpow.pop %v8383
    %v8385 = vmul.f32 %v8279, 1.442695
    %v8386 = vpow.pop %v8385
    %v8387 = vmul.f32 %v8280, 1.442695
    %v8388 = vpow.pop %v8387
    %v8389 = vmul.f32 %v8281, 1.442695
    %v8390 = vpow.pop %v8389
    %v8391 = vmul.f32 %v8282, 1.442695
    %v8392 = vpow.pop %v8391
    %v8393 = vmul.f32 %v8283, 1.442695
    %v8394 = vpow.pop %v8393
    %v8395 = vmul.f32 %v8284, 1.442695
    %v8396 = vpow.pop %v8395
    %v8397 = vmul.f32 %v8285, 1.442695
    %v8398 = vpow.pop %v8397
    %v8399 = vmul.f32 %v8286, 1.442695
    %v8400 = vpow.pop %v8399
    %v8401 = vmul.f32 %v8287, 1.442695
    %v8402 = vpow.pop %v8401
    %v8403 = vmul.f32 %v8288, 1.442695
    %v8404 = vpow.pop %v8403
    %v8405 = vmul.f32 %v8289, 1.442695
    %v8406 = vpow.pop %v8405
    %v8407 = vmul.f32 %v8290, 1.442695
    %v8408 = vpow.pop %v8407
    %v8409 = vmul.f32 %v8291, 1.442695
    %v8410 = vpow.pop %v8409
    %v8411 = vmul.f32 %v8292, 1.442695
    %v8412 = vpow.pop %v8411
    %v8413 = vmul.f32 %v8293, 1.442695
    %v8414 = vpow.pop %v8413
    %v8415 = vmul.f32 %v8294, 1.442695
    %v8416 = vpow.pop %v8415
    %v8417 = vmul.f32 %v8295, 1.442695
    %v8418 = vpow.pop %v8417
    %v8419 = vmul.f32 %v8296, 1.442695
    %v8420 = vpow.pop %v8419
    %v8421 = vmul.f32 %v8297, 1.442695
    %v8422 = vpow.pop %v8421
    %v8423 = vmul.f32 %v8298, 1.442695
    %v8424 = vpow.pop %v8423
    %v8425 = vmul.f32 %v8299, 1.442695
    %v8426 = vpow.pop %v8425
    %v8427 = vmul.f32 %v8300, 1.442695
    %v8428 = vpow.pop %v8427
    %v8429 = vsel %vm6981, %v8302, 0.0
    %v8430 = vsel %vm6982, %v8304, 0.0
    %v8431 = vsel %vm6983, %v8306, 0.0
    %v8432 = vsel %vm6984, %v8308, 0.0
    %v8433 = vsel %vm6985, %v8310, 0.0
    %v8434 = vsel %vm6986, %v8312, 0.0
    %v8435 = vsel %vm6987, %v8314, 0.0
    %v8436 = vsel %vm6988, %v8316, 0.0
    %v8437 = vsel %vm6989, %v8318, 0.0
    %v8438 = vsel %vm6990, %v8320, 0.0
    %v8439 = vsel %vm6991, %v8322, 0.0
    %v8440 = vsel %vm6992, %v8324, 0.0
    %v8441 = vsel %vm6993, %v8326, 0.0
    %v8442 = vsel %vm6994, %v8328, 0.0
    %v8443 = vsel %vm6995, %v8330, 0.0
    %v8444 = vsel %vm6996, %v8332, 0.0
    %v8445 = vsel %vm6997, %v8334, 0.0
    %v8446 = vsel %vm6998, %v8336, 0.0
    %v8447 = vsel %vm6999, %v8338, 0.0
    %v8448 = vsel %vm7000, %v8340, 0.0
    %v8449 = vsel %vm7001, %v8342, 0.0
    %v8450 = vsel %vm7002, %v8344, 0.0
    %v8451 = vsel %vm7003, %v8346, 0.0
    %v8452 = vsel %vm7004, %v8348, 0.0
    %v8453 = vsel %vm7005, %v8350, 0.0
    %v8454 = vsel %vm7006, %v8352, 0.0
    %v8455 = vsel %vm7007, %v8354, 0.0
    %v8456 = vsel %vm7008, %v8356, 0.0
    %v8457 = vsel %vm7009, %v8358, 0.0
    %v8458 = vsel %vm7010, %v8360, 0.0
    %v8459 = vsel %vm7011, %v8362, 0.0
    %v8460 = vsel %vm7012, %v8364, 0.0
    %v8461 = vsel %vm7013, %v8366, 0.0
    %v8462 = vsel %vm7014, %v8368, 0.0
    %v8463 = vsel %vm7015, %v8370, 0.0
    %v8464 = vsel %vm7016, %v8372, 0.0
    %v8465 = vsel %vm7017, %v8374, 0.0
    %v8466 = vsel %vm7018, %v8376, 0.0
    %v8467 = vsel %vm7019, %v8378, 0.0
    %v8468 = vsel %vm7020, %v8380, 0.0
    %v8469 = vsel %vm7021, %v8382, 0.0
    %v8470 = vsel %vm7022, %v8384, 0.0
    %v8471 = vsel %vm7023, %v8386, 0.0
    %v8472 = vsel %vm7024, %v8388, 0.0
    %v8473 = vsel %vm7025, %v8390, 0.0
    %v8474 = vsel %vm7026, %v8392, 0.0
    %v8475 = vsel %vm7027, %v8394, 0.0
    %v8476 = vsel %vm7028, %v8396, 0.0
    %v8477 = vsel %vm7029, %v8398, 0.0
    %v8478 = vsel %vm7030, %v8400, 0.0
    %v8479 = vsel %vm7031, %v8402, 0.0
    %v8480 = vsel %vm7032, %v8404, 0.0
    %v8481 = vsel %vm7033, %v8406, 0.0
    %v8482 = vsel %vm7034, %v8408, 0.0
    %v8483 = vsel %vm7035, %v8410, 0.0
    %v8484 = vsel %vm7036, %v8412, 0.0
    %v8485 = vsel %vm7037, %v8414, 0.0
    %v8486 = vsel %vm7038, %v8416, 0.0
    %v8487 = vsel %vm7039, %v8418, 0.0
    %v8488 = vsel %vm7040, %v8420, 0.0
    %v8489 = vsel %vm7041, %v8422, 0.0
    %v8490 = vsel %vm7042, %v8424, 0.0
    %v8491 = vsel %vm7043, %v8426, 0.0
    %v8492 = vsel %vm7044, %v8428, 0.0
    %v8493 = vadd.f32 %v8429, %v8430
    %8494 = vadd.xlane.f32.xlu0 %v8493
    %v8495 = vpop.xlane.xlu0 %8494
    %v8496 = vadd.f32 %v8431, %v8432
    %8497 = vadd.xlane.f32.xlu0 %v8496
    %v8498 = vpop.xlane.xlu0 %8497
    %v8499 = vadd.f32 %v8433, %v8434
    %8500 = vadd.xlane.f32.xlu0 %v8499
    %v8501 = vpop.xlane.xlu0 %8500
    %v8502 = vadd.f32 %v8435, %v8436
    %8503 = vadd.xlane.f32.xlu0 %v8502
    %v8504 = vpop.xlane.xlu0 %8503
    %v8505 = vadd.f32 %v8437, %v8438
    %8506 = vadd.xlane.f32.xlu0 %v8505
    %v8507 = vpop.xlane.xlu0 %8506
    %v8508 = vadd.f32 %v8439, %v8440
    %8509 = vadd.xlane.f32.xlu0 %v8508
    %v8510 = vpop.xlane.xlu0 %8509
    %v8511 = vadd.f32 %v8441, %v8442
    %8512 = vadd.xlane.f32.xlu0 %v8511
    %v8513 = vpop.xlane.xlu0 %8512
    %v8514 = vadd.f32 %v8443, %v8444
    %8515 = vadd.xlane.f32.xlu0 %v8514
    %v8516 = vpop.xlane.xlu0 %8515
    %v8517 = vadd.f32 %v8445, %v8446
    %8518 = vadd.xlane.f32.xlu0 %v8517
    %v8519 = vpop.xlane.xlu0 %8518
    %v8520 = vadd.f32 %v8447, %v8448
    %8521 = vadd.xlane.f32.xlu0 %v8520
    %v8522 = vpop.xlane.xlu0 %8521
    %v8523 = vadd.f32 %v8449, %v8450
    %8524 = vadd.xlane.f32.xlu0 %v8523
    %v8525 = vpop.xlane.xlu0 %8524
    %v8526 = vadd.f32 %v8451, %v8452
    %8527 = vadd.xlane.f32.xlu0 %v8526
    %v8528 = vpop.xlane.xlu0 %8527
    %v8529 = vadd.f32 %v8453, %v8454
    %8530 = vadd.xlane.f32.xlu0 %v8529
    %v8531 = vpop.xlane.xlu0 %8530
    %v8532 = vadd.f32 %v8455, %v8456
    %8533 = vadd.xlane.f32.xlu0 %v8532
    %v8534 = vpop.xlane.xlu0 %8533
    %v8535 = vadd.f32 %v8457, %v8458
    %8536 = vadd.xlane.f32.xlu0 %v8535
    %v8537 = vpop.xlane.xlu0 %8536
    %v8538 = vadd.f32 %v8459, %v8460
    %8539 = vadd.xlane.f32.xlu0 %v8538
    %v8540 = vpop.xlane.xlu0 %8539
    %v8541 = vadd.f32 %v8461, %v8462
    %8542 = vadd.xlane.f32.xlu0 %v8541
    %v8543 = vpop.xlane.xlu0 %8542
    %v8544 = vadd.f32 %v8463, %v8464
    %8545 = vadd.xlane.f32.xlu0 %v8544
    %v8546 = vpop.xlane.xlu0 %8545
    %v8547 = vadd.f32 %v8465, %v8466
    %8548 = vadd.xlane.f32.xlu0 %v8547
    %v8549 = vpop.xlane.xlu0 %8548
    %v8550 = vadd.f32 %v8467, %v8468
    %8551 = vadd.xlane.f32.xlu0 %v8550
    %v8552 = vpop.xlane.xlu0 %8551
    %v8553 = vadd.f32 %v8469, %v8470
    %8554 = vadd.xlane.f32.xlu0 %v8553
    %v8555 = vpop.xlane.xlu0 %8554
    %v8556 = vadd.f32 %v8471, %v8472
    %8557 = vadd.xlane.f32.xlu0 %v8556
    %v8558 = vpop.xlane.xlu0 %8557
    %v8559 = vadd.f32 %v8473, %v8474
    %8560 = vadd.xlane.f32.xlu0 %v8559
    %v8561 = vpop.xlane.xlu0 %8560
    %v8562 = vadd.f32 %v8475, %v8476
    %8563 = vadd.xlane.f32.xlu0 %v8562
    %v8564 = vpop.xlane.xlu0 %8563
    %v8565 = vadd.f32 %v8477, %v8478
    %8566 = vadd.xlane.f32.xlu0 %v8565
    %v8567 = vpop.xlane.xlu0 %8566
    %v8568 = vadd.f32 %v8479, %v8480
    %8569 = vadd.xlane.f32.xlu0 %v8568
    %v8570 = vpop.xlane.xlu0 %8569
    %v8571 = vadd.f32 %v8481, %v8482
    %8572 = vadd.xlane.f32.xlu0 %v8571
    %v8573 = vpop.xlane.xlu0 %8572
    %v8574 = vadd.f32 %v8483, %v8484
    %8575 = vadd.xlane.f32.xlu0 %v8574
    %v8576 = vpop.xlane.xlu0 %8575
    %v8577 = vadd.f32 %v8485, %v8486
    %8578 = vadd.xlane.f32.xlu0 %v8577
    %v8579 = vpop.xlane.xlu0 %8578
    %v8580 = vadd.f32 %v8487, %v8488
    %8581 = vadd.xlane.f32.xlu0 %v8580
    %v8582 = vpop.xlane.xlu0 %8581
    %v8583 = vadd.f32 %v8489, %v8490
    %8584 = vadd.xlane.f32.xlu0 %v8583
    %v8585 = vpop.xlane.xlu0 %8584
    %v8586 = vadd.f32 %v8491, %v8492
    %8587 = vadd.xlane.f32.xlu0 %v8586
    %v8588 = vpop.xlane.xlu0 %8587
    %v8589 = vmax.f32 %v8495, 1e-20
    %v8590 = vmax.f32 %v8498, 1e-20
    %v8591 = vmax.f32 %v8501, 1e-20
    %v8592 = vmax.f32 %v8504, 1e-20
    %v8593 = vmax.f32 %v8507, 1e-20
    %v8594 = vmax.f32 %v8510, 1e-20
    %v8595 = vmax.f32 %v8513, 1e-20
    %v8596 = vmax.f32 %v8516, 1e-20
    %v8597 = vmax.f32 %v8519, 1e-20
    %v8598 = vmax.f32 %v8522, 1e-20
    %v8599 = vmax.f32 %v8525, 1e-20
    %v8600 = vmax.f32 %v8528, 1e-20
    %v8601 = vmax.f32 %v8531, 1e-20
    %v8602 = vmax.f32 %v8534, 1e-20
    %v8603 = vmax.f32 %v8537, 1e-20
    %v8604 = vmax.f32 %v8540, 1e-20
    %v8605 = vmax.f32 %v8543, 1e-20
    %v8606 = vmax.f32 %v8546, 1e-20
    %v8607 = vmax.f32 %v8549, 1e-20
    %v8608 = vmax.f32 %v8552, 1e-20
    %v8609 = vmax.f32 %v8555, 1e-20
    %v8610 = vmax.f32 %v8558, 1e-20
    %v8611 = vmax.f32 %v8561, 1e-20
    %v8612 = vmax.f32 %v8564, 1e-20
    %v8613 = vmax.f32 %v8567, 1e-20
    %v8614 = vmax.f32 %v8570, 1e-20
    %v8615 = vmax.f32 %v8573, 1e-20
    %v8616 = vmax.f32 %v8576, 1e-20
    %v8617 = vmax.f32 %v8579, 1e-20
    %v8618 = vmax.f32 %v8582, 1e-20
    %v8619 = vmax.f32 %v8585, 1e-20
    %v8620 = vmax.f32 %v8588, 1e-20
    %v8621 = vrcp.pop %v8589
    %v8622 = vmul.f32 1.0, %v8621
    %v8623 = vrcp.pop %v8590
    %v8624 = vmul.f32 1.0, %v8623
    %v8625 = vrcp.pop %v8591
    %v8626 = vmul.f32 1.0, %v8625
    %v8627 = vrcp.pop %v8592
    %v8628 = vmul.f32 1.0, %v8627
    %v8629 = vrcp.pop %v8593
    %v8630 = vmul.f32 1.0, %v8629
    %v8631 = vrcp.pop %v8594
    %v8632 = vmul.f32 1.0, %v8631
    %v8633 = vrcp.pop %v8595
    %v8634 = vmul.f32 1.0, %v8633
    %v8635 = vrcp.pop %v8596
    %v8636 = vmul.f32 1.0, %v8635
    %v8637 = vrcp.pop %v8597
    %v8638 = vmul.f32 1.0, %v8637
    %v8639 = vrcp.pop %v8598
    %v8640 = vmul.f32 1.0, %v8639
    %v8641 = vrcp.pop %v8599
    %v8642 = vmul.f32 1.0, %v8641
    %v8643 = vrcp.pop %v8600
    %v8644 = vmul.f32 1.0, %v8643
    %v8645 = vrcp.pop %v8601
    %v8646 = vmul.f32 1.0, %v8645
    %v8647 = vrcp.pop %v8602
    %v8648 = vmul.f32 1.0, %v8647
    %v8649 = vrcp.pop %v8603
    %v8650 = vmul.f32 1.0, %v8649
    %v8651 = vrcp.pop %v8604
    %v8652 = vmul.f32 1.0, %v8651
    %v8653 = vrcp.pop %v8605
    %v8654 = vmul.f32 1.0, %v8653
    %v8655 = vrcp.pop %v8606
    %v8656 = vmul.f32 1.0, %v8655
    %v8657 = vrcp.pop %v8607
    %v8658 = vmul.f32 1.0, %v8657
    %v8659 = vrcp.pop %v8608
    %v8660 = vmul.f32 1.0, %v8659
    %v8661 = vrcp.pop %v8609
    %v8662 = vmul.f32 1.0, %v8661
    %v8663 = vrcp.pop %v8610
    %v8664 = vmul.f32 1.0, %v8663
    %v8665 = vrcp.pop %v8611
    %v8666 = vmul.f32 1.0, %v8665
    %v8667 = vrcp.pop %v8612
    %v8668 = vmul.f32 1.0, %v8667
    %v8669 = vrcp.pop %v8613
    %v8670 = vmul.f32 1.0, %v8669
    %v8671 = vrcp.pop %v8614
    %v8672 = vmul.f32 1.0, %v8671
    %v8673 = vrcp.pop %v8615
    %v8674 = vmul.f32 1.0, %v8673
    %v8675 = vrcp.pop %v8616
    %v8676 = vmul.f32 1.0, %v8675
    %v8677 = vrcp.pop %v8617
    %v8678 = vmul.f32 1.0, %v8677
    %v8679 = vrcp.pop %v8618
    %v8680 = vmul.f32 1.0, %v8679
    %v8681 = vrcp.pop %v8619
    %v8682 = vmul.f32 1.0, %v8681
    %v8683 = vrcp.pop %v8620
    %v8684 = vmul.f32 1.0, %v8683
    %v8685 = vmul.f32 %v8429, %v8622
    %v8686 = vmul.f32 %v8430, %v8622
    %v8687 = vmul.f32 %v8431, %v8624
    %v8688 = vmul.f32 %v8432, %v8624
    %v8689 = vmul.f32 %v8433, %v8626
    %v8690 = vmul.f32 %v8434, %v8626
    %v8691 = vmul.f32 %v8435, %v8628
    %v8692 = vmul.f32 %v8436, %v8628
    %v8693 = vmul.f32 %v8437, %v8630
    %v8694 = vmul.f32 %v8438, %v8630
    %v8695 = vmul.f32 %v8439, %v8632
    %v8696 = vmul.f32 %v8440, %v8632
    %v8697 = vmul.f32 %v8441, %v8634
    %v8698 = vmul.f32 %v8442, %v8634
    %v8699 = vmul.f32 %v8443, %v8636
    %v8700 = vmul.f32 %v8444, %v8636
    %v8701 = vmul.f32 %v8445, %v8638
    %v8702 = vmul.f32 %v8446, %v8638
    %v8703 = vmul.f32 %v8447, %v8640
    %v8704 = vmul.f32 %v8448, %v8640
    %v8705 = vmul.f32 %v8449, %v8642
    %v8706 = vmul.f32 %v8450, %v8642
    %v8707 = vmul.f32 %v8451, %v8644
    %v8708 = vmul.f32 %v8452, %v8644
    %v8709 = vmul.f32 %v8453, %v8646
    %v8710 = vmul.f32 %v8454, %v8646
    %v8711 = vmul.f32 %v8455, %v8648
    %v8712 = vmul.f32 %v8456, %v8648
    %v8713 = vmul.f32 %v8457, %v8650
    %v8714 = vmul.f32 %v8458, %v8650
    %v8715 = vmul.f32 %v8459, %v8652
    %v8716 = vmul.f32 %v8460, %v8652
    %v8717 = vmul.f32 %v8461, %v8654
    %v8718 = vmul.f32 %v8462, %v8654
    %v8719 = vmul.f32 %v8463, %v8656
    %v8720 = vmul.f32 %v8464, %v8656
    %v8721 = vmul.f32 %v8465, %v8658
    %v8722 = vmul.f32 %v8466, %v8658
    %v8723 = vmul.f32 %v8467, %v8660
    %v8724 = vmul.f32 %v8468, %v8660
    %v8725 = vmul.f32 %v8469, %v8662
    %v8726 = vmul.f32 %v8470, %v8662
    %v8727 = vmul.f32 %v8471, %v8664
    %v8728 = vmul.f32 %v8472, %v8664
    %v8729 = vmul.f32 %v8473, %v8666
    %v8730 = vmul.f32 %v8474, %v8666
    %v8731 = vmul.f32 %v8475, %v8668
    %v8732 = vmul.f32 %v8476, %v8668
    %v8733 = vmul.f32 %v8477, %v8670
    %v8734 = vmul.f32 %v8478, %v8670
    %v8735 = vmul.f32 %v8479, %v8672
    %v8736 = vmul.f32 %v8480, %v8672
    %v8737 = vmul.f32 %v8481, %v8674
    %v8738 = vmul.f32 %v8482, %v8674
    %v8739 = vmul.f32 %v8483, %v8676
    %v8740 = vmul.f32 %v8484, %v8676
    %v8741 = vmul.f32 %v8485, %v8678
    %v8742 = vmul.f32 %v8486, %v8678
    %v8743 = vmul.f32 %v8487, %v8680
    %v8744 = vmul.f32 %v8488, %v8680
    %v8745 = vmul.f32 %v8489, %v8682
    %v8746 = vmul.f32 %v8490, %v8682
    %v8747 = vmul.f32 %v8491, %v8684
    %v8748 = vmul.f32 %v8492, %v8684
    %v8749 = vpack.c.bf16 %v8687, %v8685
    %v8750 = vpack.c.bf16 %v8688, %v8686
    %v8751 = vpack.c.bf16 %v8691, %v8689
    %v8752 = vpack.c.bf16 %v8692, %v8690
    %v8753 = vpack.c.bf16 %v8695, %v8693
    %v8754 = vpack.c.bf16 %v8696, %v8694
    %v8755 = vpack.c.bf16 %v8699, %v8697
    %v8756 = vpack.c.bf16 %v8700, %v8698
    %v8757 = vpack.c.bf16 %v8703, %v8701
    %v8758 = vpack.c.bf16 %v8704, %v8702
    %v8759 = vpack.c.bf16 %v8707, %v8705
    %v8760 = vpack.c.bf16 %v8708, %v8706
    %v8761 = vpack.c.bf16 %v8711, %v8709
    %v8762 = vpack.c.bf16 %v8712, %v8710
    %v8763 = vpack.c.bf16 %v8715, %v8713
    %v8764 = vpack.c.bf16 %v8716, %v8714
    %v8765 = vpack.c.bf16 %v8719, %v8717
    %v8766 = vpack.c.bf16 %v8720, %v8718
    %v8767 = vpack.c.bf16 %v8723, %v8721
    %v8768 = vpack.c.bf16 %v8724, %v8722
    %v8769 = vpack.c.bf16 %v8727, %v8725
    %v8770 = vpack.c.bf16 %v8728, %v8726
    %v8771 = vpack.c.bf16 %v8731, %v8729
    %v8772 = vpack.c.bf16 %v8732, %v8730
    %v8773 = vpack.c.bf16 %v8735, %v8733
    %v8774 = vpack.c.bf16 %v8736, %v8734
    %v8775 = vpack.c.bf16 %v8739, %v8737
    %v8776 = vpack.c.bf16 %v8740, %v8738
    %v8777 = vpack.c.bf16 %v8743, %v8741
    %v8778 = vpack.c.bf16 %v8744, %v8742
    %v8779 = vpack.c.bf16 %v8747, %v8745
    %v8780 = vpack.c.bf16 %v8748, %v8746
    %8781 = vmatprep.subr.bf16.mxu0 0
    %8782 = vmatpush1.bf16.msra.mxu0 %v6090
    %8783 = vmatprep.subr.bf16.mxu0 0
    %8784 = vmatpush1.bf16.msra.mxu0 %v6093
    %8785 = vmatprep.subr.bf16.mxu0 0
    %8786 = vmatpush1.bf16.msra.mxu0 %v6096
    %8787 = vmatprep.subr.bf16.mxu0 0
    %8788 = vmatpush1.bf16.msra.mxu0 %v6099
    %8789 = vmatprep.subr.bf16.mxu0 0
    %8790 = vmatpush1.bf16.msra.mxu0 %v6102
    %8791 = vmatprep.subr.bf16.mxu0 0
    %8792 = vmatpush1.bf16.msra.mxu0 %v6105
    %8793 = vmatprep.subr.bf16.mxu0 0
    %8794 = vmatpush1.bf16.msra.mxu0 %v6108
    %8795 = vmatprep.subr.bf16.mxu0 0
    %8796 = vmatpush1.bf16.msra.mxu0 %v6111
    %8797 = vmatprep.subr.bf16.mxu0 0
    %8798 = vmatpush1.bf16.msra.mxu0 %v6114
    %8799 = vmatprep.subr.bf16.mxu0 0
    %8800 = vmatpush1.bf16.msra.mxu0 %v6117
    %8801 = vmatprep.subr.bf16.mxu0 0
    %8802 = vmatpush1.bf16.msra.mxu0 %v6120
    %8803 = vmatprep.subr.bf16.mxu0 0
    %8804 = vmatpush1.bf16.msra.mxu0 %v6123
    %8805 = vmatprep.subr.bf16.mxu0 0
    %8806 = vmatpush1.bf16.msra.mxu0 %v6126
    %8807 = vmatprep.subr.bf16.mxu0 0
    %8808 = vmatpush1.bf16.msra.mxu0 %v6129
    %8809 = vmatprep.subr.bf16.mxu0 0
    %8810 = vmatpush1.bf16.msra.mxu0 %v6132
    %8811 = vmatprep.subr.bf16.mxu0 0
    %8812 = vmatpush1.bf16.msra.mxu0 %v6135
    %8813 = vmatprep.mubr.bf16.mxu0 %v8750
    %8814 = vmatmul.mubr.bf16.gmra.mrb[0].mxu0 %v8749
    %v8815 = vpop.f32.mrb[0].mxu0
    %v8816 = vadd.f32 0.0, %v8815
    %v8817 = vpop.f32.mrb[0].mxu0
    %v8818 = vpop.f32.mrb[0].mxu0
    %v8819 = vadd.f32 0.0, %v8818
    %v8820 = vpop.f32.mrb[0].mxu0
    %8821 = vmatprep.mubr.bf16.mxu0 %v8752
    %8822 = vmatmul.mubr.bf16.gmra.mrb[0].mxu0 %v8751
    %v8823 = vpop.f32.mrb[0].mxu0
    %v8824 = vadd.f32 0.0, %v8823
    %v8825 = vpop.f32.mrb[0].mxu0
    %v8826 = vpop.f32.mrb[0].mxu0
    %v8827 = vadd.f32 0.0, %v8826
    %v8828 = vpop.f32.mrb[0].mxu0
    %8829 = vmatprep.mubr.bf16.mxu0 %v8754
    %8830 = vmatmul.mubr.bf16.gmra.mrb[0].mxu0 %v8753
    %v8831 = vpop.f32.mrb[0].mxu0
    %v8832 = vadd.f32 0.0, %v8831
    %v8833 = vpop.f32.mrb[0].mxu0
    %v8834 = vpop.f32.mrb[0].mxu0
    %v8835 = vadd.f32 0.0, %v8834
    %v8836 = vpop.f32.mrb[0].mxu0
    %8837 = vmatprep.mubr.bf16.mxu0 %v8756
    %8838 = vmatmul.mubr.bf16.gmra.mrb[0].mxu0 %v8755
    %v8839 = vpop.f32.mrb[0].mxu0
    %v8840 = vadd.f32 0.0, %v8839
    %v8841 = vpop.f32.mrb[0].mxu0
    %v8842 = vpop.f32.mrb[0].mxu0
    %v8843 = vadd.f32 0.0, %v8842
    %v8844 = vpop.f32.mrb[0].mxu0
    %8845 = vmatprep.mubr.bf16.mxu0 %v8758
    %8846 = vmatmul.mubr.bf16.gmra.mrb[0].mxu0 %v8757
    %v8847 = vpop.f32.mrb[0].mxu0
    %v8848 = vadd.f32 0.0, %v8847
    %v8849 = vpop.f32.mrb[0].mxu0
    %v8850 = vpop.f32.mrb[0].mxu0
    %v8851 = vadd.f32 0.0, %v8850
    %v8852 = vpop.f32.mrb[0].mxu0
    %8853 = vmatprep.mubr.bf16.mxu0 %v8760
    %8854 = vmatmul.mubr.bf16.gmra.mrb[0].mxu0 %v8759
    %v8855 = vpop.f32.mrb[0].mxu0
    %v8856 = vadd.f32 0.0, %v8855
    %v8857 = vpop.f32.mrb[0].mxu0
    %v8858 = vpop.f32.mrb[0].mxu0
    %v8859 = vadd.f32 0.0, %v8858
    %v8860 = vpop.f32.mrb[0].mxu0
    %8861 = vmatprep.mubr.bf16.mxu0 %v8762
    %8862 = vmatmul.mubr.bf16.gmra.mrb[0].mxu0 %v8761
    %v8863 = vpop.f32.mrb[0].mxu0
    %v8864 = vadd.f32 0.0, %v8863
    %v8865 = vpop.f32.mrb[0].mxu0
    %v8866 = vpop.f32.mrb[0].mxu0
    %v8867 = vadd.f32 0.0, %v8866
    %v8868 = vpop.f32.mrb[0].mxu0
    %8869 = vmatprep.mubr.bf16.mxu0 %v8764
    %8870 = vmatmul.mubr.bf16.gmra.mrb[0].mxu0 %v8763
    %v8871 = vpop.f32.mrb[0].mxu0
    %v8872 = vadd.f32 0.0, %v8871
    %v8873 = vpop.f32.mrb[0].mxu0
    %v8874 = vpop.f32.mrb[0].mxu0
    %v8875 = vadd.f32 0.0, %v8874
    %v8876 = vpop.f32.mrb[0].mxu0
    %8877 = vmatprep.mubr.bf16.mxu0 %v8766
    %8878 = vmatmul.mubr.bf16.gmra.mrb[0].mxu0 %v8765
    %v8879 = vpop.f32.mrb[0].mxu0
    %v8880 = vadd.f32 0.0, %v8879
    %v8881 = vpop.f32.mrb[0].mxu0
    %v8882 = vpop.f32.mrb[0].mxu0
    %v8883 = vadd.f32 0.0, %v8882
    %v8884 = vpop.f32.mrb[0].mxu0
    %8885 = vmatprep.mubr.bf16.mxu0 %v8768
    %8886 = vmatmul.mubr.bf16.gmra.mrb[0].mxu0 %v8767
    %v8887 = vpop.f32.mrb[0].mxu0
    %v8888 = vadd.f32 0.0, %v8887
    %v8889 = vpop.f32.mrb[0].mxu0
    %v8890 = vpop.f32.mrb[0].mxu0
    %v8891 = vadd.f32 0.0, %v8890
    %v8892 = vpop.f32.mrb[0].mxu0
    %8893 = vmatprep.mubr.bf16.mxu0 %v8770
    %8894 = vmatmul.mubr.bf16.gmra.mrb[0].mxu0 %v8769
    %v8895 = vpop.f32.mrb[0].mxu0
    %v8896 = vadd.f32 0.0, %v8895
    %v8897 = vpop.f32.mrb[0].mxu0
    %v8898 = vpop.f32.mrb[0].mxu0
    %v8899 = vadd.f32 0.0, %v8898
    %v8900 = vpop.f32.mrb[0].mxu0
    %8901 = vmatprep.mubr.bf16.mxu0 %v8772
    %8902 = vmatmul.mubr.bf16.gmra.mrb[0].mxu0 %v8771
    %v8903 = vpop.f32.mrb[0].mxu0
    %v8904 = vadd.f32 0.0, %v8903
    %v8905 = vpop.f32.mrb[0].mxu0
    %v8906 = vpop.f32.mrb[0].mxu0
    %v8907 = vadd.f32 0.0, %v8906
    %v8908 = vpop.f32.mrb[0].mxu0
    %8909 = vmatprep.mubr.bf16.mxu0 %v8774
    %8910 = vmatmul.mubr.bf16.gmra.mrb[0].mxu0 %v8773
    %v8911 = vpop.f32.mrb[0].mxu0
    %v8912 = vadd.f32 0.0, %v8911
    %v8913 = vpop.f32.mrb[0].mxu0
    %v8914 = vpop.f32.mrb[0].mxu0
    %v8915 = vadd.f32 0.0, %v8914
    %v8916 = vpop.f32.mrb[0].mxu0
    %8917 = vmatprep.mubr.bf16.mxu0 %v8776
    %8918 = vmatmul.mubr.bf16.gmra.mrb[0].mxu0 %v8775
    %v8919 = vpop.f32.mrb[0].mxu0
    %v8920 = vadd.f32 0.0, %v8919
    %v8921 = vpop.f32.mrb[0].mxu0
    %v8922 = vpop.f32.mrb[0].mxu0
    %v8923 = vadd.f32 0.0, %v8922
    %v8924 = vpop.f32.mrb[0].mxu0
    %8925 = vmatprep.mubr.bf16.mxu0 %v8778
    %8926 = vmatmul.mubr.bf16.gmra.mrb[0].mxu0 %v8777
    %v8927 = vpop.f32.mrb[0].mxu0
    %v8928 = vadd.f32 0.0, %v8927
    %v8929 = vpop.f32.mrb[0].mxu0
    %v8930 = vpop.f32.mrb[0].mxu0
    %v8931 = vadd.f32 0.0, %v8930
    %v8932 = vpop.f32.mrb[0].mxu0
    %8933 = vmatprep.mubr.bf16.mxu0 %v8780
    %8934 = vmatmul.mubr.bf16.gmra.mrb[0].mxu0 %v8779
    %v8935 = vpop.f32.mrb[0].mxu0
    %v8936 = vadd.f32 0.0, %v8935
    %v8937 = vpop.f32.mrb[0].mxu0
    %v8938 = vpop.f32.mrb[0].mxu0
    %v8939 = vadd.f32 0.0, %v8938
    %v8940 = vpop.f32.mrb[0].mxu0
    %8941 = vdwg.mxu0
    %8942 = vmatprep.subr.bf16.mxu0 0
    %8943 = vmatpush1.bf16.msra.mxu0 %v6089
    %8944 = vmatprep.subr.bf16.mxu0 0
    %8945 = vmatpush1.bf16.msra.mxu0 %v6092
    %8946 = vmatprep.subr.bf16.mxu0 0
    %8947 = vmatpush1.bf16.msra.mxu0 %v6095
    %8948 = vmatprep.subr.bf16.mxu0 0
    %8949 = vmatpush1.bf16.msra.mxu0 %v6098
    %8950 = vmatprep.subr.bf16.mxu0 0
    %8951 = vmatpush1.bf16.msra.mxu0 %v6101
    %8952 = vmatprep.subr.bf16.mxu0 0
    %8953 = vmatpush1.bf16.msra.mxu0 %v6104
    %8954 = vmatprep.subr.bf16.mxu0 0
    %8955 = vmatpush1.bf16.msra.mxu0 %v6107
    %8956 = vmatprep.subr.bf16.mxu0 0
    %8957 = vmatpush1.bf16.msra.mxu0 %v6110
    %8958 = vmatprep.subr.bf16.mxu0 0
    %8959 = vmatpush1.bf16.msra.mxu0 %v6113
    %8960 = vmatprep.subr.bf16.mxu0 0
    %8961 = vmatpush1.bf16.msra.mxu0 %v6116
    %8962 = vmatprep.subr.bf16.mxu0 0
    %8963 = vmatpush1.bf16.msra.mxu0 %v6119
    %8964 = vmatprep.subr.bf16.mxu0 0
    %8965 = vmatpush1.bf16.msra.mxu0 %v6122
    %8966 = vmatprep.subr.bf16.mxu0 0
    %8967 = vmatpush1.bf16.msra.mxu0 %v6125
    %8968 = vmatprep.subr.bf16.mxu0 0
    %8969 = vmatpush1.bf16.msra.mxu0 %v6128
    %8970 = vmatprep.subr.bf16.mxu0 0
    %8971 = vmatpush1.bf16.msra.mxu0 %v6131
    %8972 = vmatprep.subr.bf16.mxu0 0
    %8973 = vmatpush1.bf16.msra.mxu0 %v6134
    %8974 = vmatprep.mubr.bf16.mxu0 %v7718
    %8975 = vmatmul.mubr.bf16.gmra.mrb[0].mxu0 %v7717
    %v8976 = vpop.f32.mrb[0].mxu0
    %v8977 = vadd.f32 %v8816, %v8976
    %v8978 = vpop.f32.mrb[0].mxu0
    %v8979 = vpop.f32.mrb[0].mxu0
    %v8980 = vadd.f32 %v8819, %v8979
    %v8981 = vpop.f32.mrb[0].mxu0
    %8982 = vmatprep.mubr.bf16.mxu0 %v7720
    %8983 = vmatmul.mubr.bf16.gmra.mrb[0].mxu0 %v7719
    %v8984 = vpop.f32.mrb[0].mxu0
    %v8985 = vadd.f32 %v8824, %v8984
    %v8986 = vpop.f32.mrb[0].mxu0
    %v8987 = vpop.f32.mrb[0].mxu0
    %v8988 = vadd.f32 %v8827, %v8987
    %v8989 = vpop.f32.mrb[0].mxu0
    %8990 = vmatprep.mubr.bf16.mxu0 %v7722
    %8991 = vmatmul.mubr.bf16.gmra.mrb[0].mxu0 %v7721
    %v8992 = vpop.f32.mrb[0].mxu0
    %v8993 = vadd.f32 %v8832, %v8992
    %v8994 = vpop.f32.mrb[0].mxu0
    %v8995 = vpop.f32.mrb[0].mxu0
    %v8996 = vadd.f32 %v8835, %v8995
    %v8997 = vpop.f32.mrb[0].mxu0
    %8998 = vmatprep.mubr.bf16.mxu0 %v7724
    %8999 = vmatmul.mubr.bf16.gmra.mrb[0].mxu0 %v7723
    %v9000 = vpop.f32.mrb[0].mxu0
    %v9001 = vadd.f32 %v8840, %v9000
    %v9002 = vpop.f32.mrb[0].mxu0
    %v9003 = vpop.f32.mrb[0].mxu0
    %v9004 = vadd.f32 %v8843, %v9003
    %v9005 = vpop.f32.mrb[0].mxu0
    %9006 = vmatprep.mubr.bf16.mxu0 %v7726
    %9007 = vmatmul.mubr.bf16.gmra.mrb[0].mxu0 %v7725
    %v9008 = vpop.f32.mrb[0].mxu0
    %v9009 = vadd.f32 %v8848, %v9008
    %v9010 = vpop.f32.mrb[0].mxu0
    %v9011 = vpop.f32.mrb[0].mxu0
    %v9012 = vadd.f32 %v8851, %v9011
    %v9013 = vpop.f32.mrb[0].mxu0
    %9014 = vmatprep.mubr.bf16.mxu0 %v7728
    %9015 = vmatmul.mubr.bf16.gmra.mrb[0].mxu0 %v7727
    %v9016 = vpop.f32.mrb[0].mxu0
    %v9017 = vadd.f32 %v8856, %v9016
    %v9018 = vpop.f32.mrb[0].mxu0
    %v9019 = vpop.f32.mrb[0].mxu0
    %v9020 = vadd.f32 %v8859, %v9019
    %v9021 = vpop.f32.mrb[0].mxu0
    %9022 = vmatprep.mubr.bf16.mxu0 %v7730
    %9023 = vmatmul.mubr.bf16.gmra.mrb[0].mxu0 %v7729
    %v9024 = vpop.f32.mrb[0].mxu0
    %v9025 = vadd.f32 %v8864, %v9024
    %v9026 = vpop.f32.mrb[0].mxu0
    %v9027 = vpop.f32.mrb[0].mxu0
    %v9028 = vadd.f32 %v8867, %v9027
    %v9029 = vpop.f32.mrb[0].mxu0
    %9030 = vmatprep.mubr.bf16.mxu0 %v7732
    %9031 = vmatmul.mubr.bf16.gmra.mrb[0].mxu0 %v7731
    %v9032 = vpop.f32.mrb[0].mxu0
    %v9033 = vadd.f32 %v8872, %v9032
    %v9034 = vpop.f32.mrb[0].mxu0
    %v9035 = vpop.f32.mrb[0].mxu0
    %v9036 = vadd.f32 %v8875, %v9035
    %v9037 = vpop.f32.mrb[0].mxu0
    %9038 = vmatprep.mubr.bf16.mxu0 %v7734
    %9039 = vmatmul.mubr.bf16.gmra.mrb[0].mxu0 %v7733
    %v9040 = vpop.f32.mrb[0].mxu0
    %v9041 = vadd.f32 %v8880, %v9040
    %v9042 = vpop.f32.mrb[0].mxu0
    %v9043 = vpop.f32.mrb[0].mxu0
    %v9044 = vadd.f32 %v8883, %v9043
    %v9045 = vpop.f32.mrb[0].mxu0
    %9046 = vmatprep.mubr.bf16.mxu0 %v7736
    %9047 = vmatmul.mubr.bf16.gmra.mrb[0].mxu0 %v7735
    %v9048 = vpop.f32.mrb[0].mxu0
    %v9049 = vadd.f32 %v8888, %v9048
    %v9050 = vpop.f32.mrb[0].mxu0
    %v9051 = vpop.f32.mrb[0].mxu0
    %v9052 = vadd.f32 %v8891, %v9051
    %v9053 = vpop.f32.mrb[0].mxu0
    %9054 = vmatprep.mubr.bf16.mxu0 %v7738
    %9055 = vmatmul.mubr.bf16.gmra.mrb[0].mxu0 %v7737
    %v9056 = vpop.f32.mrb[0].mxu0
    %v9057 = vadd.f32 %v8896, %v9056
    %v9058 = vpop.f32.mrb[0].mxu0
    %v9059 = vpop.f32.mrb[0].mxu0
    %v9060 = vadd.f32 %v8899, %v9059
    %v9061 = vpop.f32.mrb[0].mxu0
    %9062 = vmatprep.mubr.bf16.mxu0 %v7740
    %9063 = vmatmul.mubr.bf16.gmra.mrb[0].mxu0 %v7739
    %v9064 = vpop.f32.mrb[0].mxu0
    %v9065 = vadd.f32 %v8904, %v9064
    %v9066 = vpop.f32.mrb[0].mxu0
    %v9067 = vpop.f32.mrb[0].mxu0
    %v9068 = vadd.f32 %v8907, %v9067
    %v9069 = vpop.f32.mrb[0].mxu0
    %9070 = vmatprep.mubr.bf16.mxu0 %v7742
    %9071 = vmatmul.mubr.bf16.gmra.mrb[0].mxu0 %v7741
    %v9072 = vpop.f32.mrb[0].mxu0
    %v9073 = vadd.f32 %v8912, %v9072
    %v9074 = vpop.f32.mrb[0].mxu0
    %v9075 = vpop.f32.mrb[0].mxu0
    %v9076 = vadd.f32 %v8915, %v9075
    %v9077 = vpop.f32.mrb[0].mxu0
    %9078 = vmatprep.mubr.bf16.mxu0 %v7744
    %9079 = vmatmul.mubr.bf16.gmra.mrb[0].mxu0 %v7743
    %v9080 = vpop.f32.mrb[0].mxu0
    %v9081 = vadd.f32 %v8920, %v9080
    %v9082 = vpop.f32.mrb[0].mxu0
    %v9083 = vpop.f32.mrb[0].mxu0
    %v9084 = vadd.f32 %v8923, %v9083
    %v9085 = vpop.f32.mrb[0].mxu0
    %9086 = vmatprep.mubr.bf16.mxu0 %v7746
    %9087 = vmatmul.mubr.bf16.gmra.mrb[0].mxu0 %v7745
    %v9088 = vpop.f32.mrb[0].mxu0
    %v9089 = vadd.f32 %v8928, %v9088
    %v9090 = vpop.f32.mrb[0].mxu0
    %v9091 = vpop.f32.mrb[0].mxu0
    %v9092 = vadd.f32 %v8931, %v9091
    %v9093 = vpop.f32.mrb[0].mxu0
    %9094 = vmatprep.mubr.bf16.mxu0 %v7748
    %9095 = vmatmul.mubr.bf16.gmra.mrb[0].mxu0 %v7747
    %v9096 = vpop.f32.mrb[0].mxu0
    %v9097 = vadd.f32 %v8936, %v9096
    %v9098 = vpop.f32.mrb[0].mxu0
    %v9099 = vpop.f32.mrb[0].mxu0
    %v9100 = vadd.f32 %v8939, %v9099
    %v9101 = vpop.f32.mrb[0].mxu0
    %9102 = vdwg.mxu0
    %9103 = vset.pattern.permute.xlu0 5
    %9104 = vperm.xlu0 %9103, %v6333
    %v9105 = vpop.permute.xlu0 %9104
    %9107 = vset.pattern.permute.xlu0 5
    %9108 = vperm.xlu0 %9107, %v6334
    %v9109 = vpop.permute.xlu0 %9108
    %9111 = vset.pattern.permute.xlu0 5
    %9112 = vperm.xlu0 %9111, %v6335
    %v9113 = vpop.permute.xlu0 %9112
    %9115 = vset.pattern.permute.xlu0 5
    %9116 = vperm.xlu0 %9115, %v6336
    %v9117 = vpop.permute.xlu0 %9116
    %9119 = vset.pattern.permute.xlu0 5
    %9120 = vperm.xlu0 %9119, %v6337
    %v9121 = vpop.permute.xlu0 %9120
    %9123 = vset.pattern.permute.xlu0 5
    %9124 = vperm.xlu0 %9123, %v6338
    %v9125 = vpop.permute.xlu0 %9124
    %9127 = vset.pattern.permute.xlu0 5
    %9128 = vperm.xlu0 %9127, %v6339
    %v9129 = vpop.permute.xlu0 %9128
    %9131 = vset.pattern.permute.xlu0 5
    %9132 = vperm.xlu0 %9131, %v6340
    %v9133 = vpop.permute.xlu0 %9132
    %9135 = vset.pattern.permute.xlu0 5
    %9136 = vperm.xlu0 %9135, %v6341
    %v9137 = vpop.permute.xlu0 %9136
    %9139 = vset.pattern.permute.xlu0 5
    %9140 = vperm.xlu0 %9139, %v6342
    %v9141 = vpop.permute.xlu0 %9140
    %9143 = vset.pattern.permute.xlu0 5
    %9144 = vperm.xlu0 %9143, %v6343
    %v9145 = vpop.permute.xlu0 %9144
    %9147 = vset.pattern.permute.xlu0 5
    %9148 = vperm.xlu0 %9147, %v6344
    %v9149 = vpop.permute.xlu0 %9148
    %9151 = vset.pattern.permute.xlu0 5
    %9152 = vperm.xlu0 %9151, %v6345
    %v9153 = vpop.permute.xlu0 %9152
    %9155 = vset.pattern.permute.xlu0 5
    %9156 = vperm.xlu0 %9155, %v6346
    %v9157 = vpop.permute.xlu0 %9156
    %9159 = vset.pattern.permute.xlu0 5
    %9160 = vperm.xlu0 %9159, %v6347
    %v9161 = vpop.permute.xlu0 %9160
    %9163 = vset.pattern.permute.xlu0 5
    %9164 = vperm.xlu0 %9163, %v6348
    %v9165 = vpop.permute.xlu0 %9164
    %9167 = vset.pattern.permute.xlu0 5
    %9168 = vperm.xlu0 %9167, %v6349
    %v9169 = vpop.permute.xlu0 %9168
    %9171 = vset.pattern.permute.xlu0 5
    %9172 = vperm.xlu0 %9171, %v6350
    %v9173 = vpop.permute.xlu0 %9172
    %9175 = vset.pattern.permute.xlu0 5
    %9176 = vperm.xlu0 %9175, %v6351
    %v9177 = vpop.permute.xlu0 %9176
    %9179 = vset.pattern.permute.xlu0 5
    %9180 = vperm.xlu0 %9179, %v6352
    %v9181 = vpop.permute.xlu0 %9180
    %9183 = vset.pattern.permute.xlu0 5
    %9184 = vperm.xlu0 %9183, %v6353
    %v9185 = vpop.permute.xlu0 %9184
    %9187 = vset.pattern.permute.xlu0 5
    %9188 = vperm.xlu0 %9187, %v6354
    %v9189 = vpop.permute.xlu0 %9188
    %9191 = vset.pattern.permute.xlu0 5
    %9192 = vperm.xlu0 %9191, %v6355
    %v9193 = vpop.permute.xlu0 %9192
    %9195 = vset.pattern.permute.xlu0 5
    %9196 = vperm.xlu0 %9195, %v6356
    %v9197 = vpop.permute.xlu0 %9196
    %9199 = vset.pattern.permute.xlu0 5
    %9200 = vperm.xlu0 %9199, %v6357
    %v9201 = vpop.permute.xlu0 %9200
    %9203 = vset.pattern.permute.xlu0 5
    %9204 = vperm.xlu0 %9203, %v6358
    %v9205 = vpop.permute.xlu0 %9204
    %9207 = vset.pattern.permute.xlu0 5
    %9208 = vperm.xlu0 %9207, %v6359
    %v9209 = vpop.permute.xlu0 %9208
    %9211 = vset.pattern.permute.xlu0 5
    %9212 = vperm.xlu0 %9211, %v6360
    %v9213 = vpop.permute.xlu0 %9212
    %9215 = vset.pattern.permute.xlu0 5
    %9216 = vperm.xlu0 %9215, %v6361
    %v9217 = vpop.permute.xlu0 %9216
    %9219 = vset.pattern.permute.xlu0 5
    %9220 = vperm.xlu0 %9219, %v6362
    %v9221 = vpop.permute.xlu0 %9220
    %9223 = vset.pattern.permute.xlu0 5
    %9224 = vperm.xlu0 %9223, %v6363
    %v9225 = vpop.permute.xlu0 %9224
    %9227 = vset.pattern.permute.xlu0 5
    %9228 = vperm.xlu0 %9227, %v6364
    %v9229 = vpop.permute.xlu0 %9228
    %v9231 = vlaneseq
    %v9232 = vshrl.u32 %v9231, 7
    %v9233 = vsub.s32 2, %v9232
    %v9234 = vrot.slane %v6185, %v9233
    %v9235 = vlaneseq
    %v9236 = vshrl.u32 %v9235, 7
    %v9237 = vsub.s32 2, %v9236
    %v9238 = vrot.slane %v6217, %v9237
    %v9239 = vadd.f32 %v9105, %v9234
    %v9240 = vadd.f32 %v9105, %v9238
    %v9241 = vadd.f32 %v9109, %v9234
    %v9242 = vadd.f32 %v9109, %v9238
    %v9243 = vadd.f32 %v9113, %v9234
    %v9244 = vadd.f32 %v9113, %v9238
    %v9245 = vadd.f32 %v9117, %v9234
    %v9246 = vadd.f32 %v9117, %v9238
    %v9247 = vadd.f32 %v9121, %v9234
    %v9248 = vadd.f32 %v9121, %v9238
    %v9249 = vadd.f32 %v9125, %v9234
    %v9250 = vadd.f32 %v9125, %v9238
    %v9251 = vadd.f32 %v9129, %v9234
    %v9252 = vadd.f32 %v9129, %v9238
    %v9253 = vadd.f32 %v9133, %v9234
    %v9254 = vadd.f32 %v9133, %v9238
    %v9255 = vadd.f32 %v9137, %v9234
    %v9256 = vadd.f32 %v9137, %v9238
    %v9257 = vadd.f32 %v9141, %v9234
    %v9258 = vadd.f32 %v9141, %v9238
    %v9259 = vadd.f32 %v9145, %v9234
    %v9260 = vadd.f32 %v9145, %v9238
    %v9261 = vadd.f32 %v9149, %v9234
    %v9262 = vadd.f32 %v9149, %v9238
    %v9263 = vadd.f32 %v9153, %v9234
    %v9264 = vadd.f32 %v9153, %v9238
    %v9265 = vadd.f32 %v9157, %v9234
    %v9266 = vadd.f32 %v9157, %v9238
    %v9267 = vadd.f32 %v9161, %v9234
    %v9268 = vadd.f32 %v9161, %v9238
    %v9269 = vadd.f32 %v9165, %v9234
    %v9270 = vadd.f32 %v9165, %v9238
    %v9271 = vadd.f32 %v9169, %v9234
    %v9272 = vadd.f32 %v9169, %v9238
    %v9273 = vadd.f32 %v9173, %v9234
    %v9274 = vadd.f32 %v9173, %v9238
    %v9275 = vadd.f32 %v9177, %v9234
    %v9276 = vadd.f32 %v9177, %v9238
    %v9277 = vadd.f32 %v9181, %v9234
    %v9278 = vadd.f32 %v9181, %v9238
    %v9279 = vadd.f32 %v9185, %v9234
    %v9280 = vadd.f32 %v9185, %v9238
    %v9281 = vadd.f32 %v9189, %v9234
    %v9282 = vadd.f32 %v9189, %v9238
    %v9283 = vadd.f32 %v9193, %v9234
    %v9284 = vadd.f32 %v9193, %v9238
    %v9285 = vadd.f32 %v9197, %v9234
    %v9286 = vadd.f32 %v9197, %v9238
    %v9287 = vadd.f32 %v9201, %v9234
    %v9288 = vadd.f32 %v9201, %v9238
    %v9289 = vadd.f32 %v9205, %v9234
    %v9290 = vadd.f32 %v9205, %v9238
    %v9291 = vadd.f32 %v9209, %v9234
    %v9292 = vadd.f32 %v9209, %v9238
    %v9293 = vadd.f32 %v9213, %v9234
    %v9294 = vadd.f32 %v9213, %v9238
    %v9295 = vadd.f32 %v9217, %v9234
    %v9296 = vadd.f32 %v9217, %v9238
    %v9297 = vadd.f32 %v9221, %v9234
    %v9298 = vadd.f32 %v9221, %v9238
    %v9299 = vadd.f32 %v9225, %v9234
    %v9300 = vadd.f32 %v9225, %v9238
    %v9301 = vadd.f32 %v9229, %v9234
    %v9302 = vadd.f32 %v9229, %v9238
    %v9303 = vmul.f32 %v9239, 0.2
    %v9304 = vmul.f32 %v9240, 0.2
    %v9305 = vmul.f32 %v9241, 0.2
    %v9306 = vmul.f32 %v9242, 0.2
    %v9307 = vmul.f32 %v9243, 0.2
    %v9308 = vmul.f32 %v9244, 0.2
    %v9309 = vmul.f32 %v9245, 0.2
    %v9310 = vmul.f32 %v9246, 0.2
    %v9311 = vmul.f32 %v9247, 0.2
    %v9312 = vmul.f32 %v9248, 0.2
    %v9313 = vmul.f32 %v9249, 0.2
    %v9314 = vmul.f32 %v9250, 0.2
    %v9315 = vmul.f32 %v9251, 0.2
    %v9316 = vmul.f32 %v9252, 0.2
    %v9317 = vmul.f32 %v9253, 0.2
    %v9318 = vmul.f32 %v9254, 0.2
    %v9319 = vmul.f32 %v9255, 0.2
    %v9320 = vmul.f32 %v9256, 0.2
    %v9321 = vmul.f32 %v9257, 0.2
    %v9322 = vmul.f32 %v9258, 0.2
    %v9323 = vmul.f32 %v9259, 0.2
    %v9324 = vmul.f32 %v9260, 0.2
    %v9325 = vmul.f32 %v9261, 0.2
    %v9326 = vmul.f32 %v9262, 0.2
    %v9327 = vmul.f32 %v9263, 0.2
    %v9328 = vmul.f32 %v9264, 0.2
    %v9329 = vmul.f32 %v9265, 0.2
    %v9330 = vmul.f32 %v9266, 0.2
    %v9331 = vmul.f32 %v9267, 0.2
    %v9332 = vmul.f32 %v9268, 0.2
    %v9333 = vmul.f32 %v9269, 0.2
    %v9334 = vmul.f32 %v9270, 0.2
    %v9335 = vmul.f32 %v9271, 0.2
    %v9336 = vmul.f32 %v9272, 0.2
    %v9337 = vmul.f32 %v9273, 0.2
    %v9338 = vmul.f32 %v9274, 0.2
    %v9339 = vmul.f32 %v9275, 0.2
    %v9340 = vmul.f32 %v9276, 0.2
    %v9341 = vmul.f32 %v9277, 0.2
    %v9342 = vmul.f32 %v9278, 0.2
    %v9343 = vmul.f32 %v9279, 0.2
    %v9344 = vmul.f32 %v9280, 0.2
    %v9345 = vmul.f32 %v9281, 0.2
    %v9346 = vmul.f32 %v9282, 0.2
    %v9347 = vmul.f32 %v9283, 0.2
    %v9348 = vmul.f32 %v9284, 0.2
    %v9349 = vmul.f32 %v9285, 0.2
    %v9350 = vmul.f32 %v9286, 0.2
    %v9351 = vmul.f32 %v9287, 0.2
    %v9352 = vmul.f32 %v9288, 0.2
    %v9353 = vmul.f32 %v9289, 0.2
    %v9354 = vmul.f32 %v9290, 0.2
    %v9355 = vmul.f32 %v9291, 0.2
    %v9356 = vmul.f32 %v9292, 0.2
    %v9357 = vmul.f32 %v9293, 0.2
    %v9358 = vmul.f32 %v9294, 0.2
    %v9359 = vmul.f32 %v9295, 0.2
    %v9360 = vmul.f32 %v9296, 0.2
    %v9361 = vmul.f32 %v9297, 0.2
    %v9362 = vmul.f32 %v9298, 0.2
    %v9363 = vmul.f32 %v9299, 0.2
    %v9364 = vmul.f32 %v9300, 0.2
    %v9365 = vmul.f32 %v9301, 0.2
    %v9366 = vmul.f32 %v9302, 0.2
    %v9367 = vmax.f32 %v9239, %v9303
    %v9368 = vmax.f32 %v9240, %v9304
    %v9369 = vmax.f32 %v9241, %v9305
    %v9370 = vmax.f32 %v9242, %v9306
    %v9371 = vmax.f32 %v9243, %v9307
    %v9372 = vmax.f32 %v9244, %v9308
    %v9373 = vmax.f32 %v9245, %v9309
    %v9374 = vmax.f32 %v9246, %v9310
    %v9375 = vmax.f32 %v9247, %v9311
    %v9376 = vmax.f32 %v9248, %v9312
    %v9377 = vmax.f32 %v9249, %v9313
    %v9378 = vmax.f32 %v9250, %v9314
    %v9379 = vmax.f32 %v9251, %v9315
    %v9380 = vmax.f32 %v9252, %v9316
    %v9381 = vmax.f32 %v9253, %v9317
    %v9382 = vmax.f32 %v9254, %v9318
    %v9383 = vmax.f32 %v9255, %v9319
    %v9384 = vmax.f32 %v9256, %v9320
    %v9385 = vmax.f32 %v9257, %v9321
    %v9386 = vmax.f32 %v9258, %v9322
    %v9387 = vmax.f32 %v9259, %v9323
    %v9388 = vmax.f32 %v9260, %v9324
    %v9389 = vmax.f32 %v9261, %v9325
    %v9390 = vmax.f32 %v9262, %v9326
    %v9391 = vmax.f32 %v9263, %v9327
    %v9392 = vmax.f32 %v9264, %v9328
    %v9393 = vmax.f32 %v9265, %v9329
    %v9394 = vmax.f32 %v9266, %v9330
    %v9395 = vmax.f32 %v9267, %v9331
    %v9396 = vmax.f32 %v9268, %v9332
    %v9397 = vmax.f32 %v9269, %v9333
    %v9398 = vmax.f32 %v9270, %v9334
    %v9399 = vmax.f32 %v9271, %v9335
    %v9400 = vmax.f32 %v9272, %v9336
    %v9401 = vmax.f32 %v9273, %v9337
    %v9402 = vmax.f32 %v9274, %v9338
    %v9403 = vmax.f32 %v9275, %v9339
    %v9404 = vmax.f32 %v9276, %v9340
    %v9405 = vmax.f32 %v9277, %v9341
    %v9406 = vmax.f32 %v9278, %v9342
    %v9407 = vmax.f32 %v9279, %v9343
    %v9408 = vmax.f32 %v9280, %v9344
    %v9409 = vmax.f32 %v9281, %v9345
    %v9410 = vmax.f32 %v9282, %v9346
    %v9411 = vmax.f32 %v9283, %v9347
    %v9412 = vmax.f32 %v9284, %v9348
    %v9413 = vmax.f32 %v9285, %v9349
    %v9414 = vmax.f32 %v9286, %v9350
    %v9415 = vmax.f32 %v9287, %v9351
    %v9416 = vmax.f32 %v9288, %v9352
    %v9417 = vmax.f32 %v9289, %v9353
    %v9418 = vmax.f32 %v9290, %v9354
    %v9419 = vmax.f32 %v9291, %v9355
    %v9420 = vmax.f32 %v9292, %v9356
    %v9421 = vmax.f32 %v9293, %v9357
    %v9422 = vmax.f32 %v9294, %v9358
    %v9423 = vmax.f32 %v9295, %v9359
    %v9424 = vmax.f32 %v9296, %v9360
    %v9425 = vmax.f32 %v9297, %v9361
    %v9426 = vmax.f32 %v9298, %v9362
    %v9427 = vmax.f32 %v9299, %v9363
    %v9428 = vmax.f32 %v9300, %v9364
    %v9429 = vmax.f32 %v9301, %v9365
    %v9430 = vmax.f32 %v9302, %v9366
    %v9431 = vsel %vm6981, %v9367, -1e+30
    %v9432 = vsel %vm6982, %v9368, -1e+30
    %v9433 = vsel %vm6983, %v9369, -1e+30
    %v9434 = vsel %vm6984, %v9370, -1e+30
    %v9435 = vsel %vm6985, %v9371, -1e+30
    %v9436 = vsel %vm6986, %v9372, -1e+30
    %v9437 = vsel %vm6987, %v9373, -1e+30
    %v9438 = vsel %vm6988, %v9374, -1e+30
    %v9439 = vsel %vm6989, %v9375, -1e+30
    %v9440 = vsel %vm6990, %v9376, -1e+30
    %v9441 = vsel %vm6991, %v9377, -1e+30
    %v9442 = vsel %vm6992, %v9378, -1e+30
    %v9443 = vsel %vm6993, %v9379, -1e+30
    %v9444 = vsel %vm6994, %v9380, -1e+30
    %v9445 = vsel %vm6995, %v9381, -1e+30
    %v9446 = vsel %vm6996, %v9382, -1e+30
    %v9447 = vsel %vm6997, %v9383, -1e+30
    %v9448 = vsel %vm6998, %v9384, -1e+30
    %v9449 = vsel %vm6999, %v9385, -1e+30
    %v9450 = vsel %vm7000, %v9386, -1e+30
    %v9451 = vsel %vm7001, %v9387, -1e+30
    %v9452 = vsel %vm7002, %v9388, -1e+30
    %v9453 = vsel %vm7003, %v9389, -1e+30
    %v9454 = vsel %vm7004, %v9390, -1e+30
    %v9455 = vsel %vm7005, %v9391, -1e+30
    %v9456 = vsel %vm7006, %v9392, -1e+30
    %v9457 = vsel %vm7007, %v9393, -1e+30
    %v9458 = vsel %vm7008, %v9394, -1e+30
    %v9459 = vsel %vm7009, %v9395, -1e+30
    %v9460 = vsel %vm7010, %v9396, -1e+30
    %v9461 = vsel %vm7011, %v9397, -1e+30
    %v9462 = vsel %vm7012, %v9398, -1e+30
    %v9463 = vsel %vm7013, %v9399, -1e+30
    %v9464 = vsel %vm7014, %v9400, -1e+30
    %v9465 = vsel %vm7015, %v9401, -1e+30
    %v9466 = vsel %vm7016, %v9402, -1e+30
    %v9467 = vsel %vm7017, %v9403, -1e+30
    %v9468 = vsel %vm7018, %v9404, -1e+30
    %v9469 = vsel %vm7019, %v9405, -1e+30
    %v9470 = vsel %vm7020, %v9406, -1e+30
    %v9471 = vsel %vm7021, %v9407, -1e+30
    %v9472 = vsel %vm7022, %v9408, -1e+30
    %v9473 = vsel %vm7023, %v9409, -1e+30
    %v9474 = vsel %vm7024, %v9410, -1e+30
    %v9475 = vsel %vm7025, %v9411, -1e+30
    %v9476 = vsel %vm7026, %v9412, -1e+30
    %v9477 = vsel %vm7027, %v9413, -1e+30
    %v9478 = vsel %vm7028, %v9414, -1e+30
    %v9479 = vsel %vm7029, %v9415, -1e+30
    %v9480 = vsel %vm7030, %v9416, -1e+30
    %v9481 = vsel %vm7031, %v9417, -1e+30
    %v9482 = vsel %vm7032, %v9418, -1e+30
    %v9483 = vsel %vm7033, %v9419, -1e+30
    %v9484 = vsel %vm7034, %v9420, -1e+30
    %v9485 = vsel %vm7035, %v9421, -1e+30
    %v9486 = vsel %vm7036, %v9422, -1e+30
    %v9487 = vsel %vm7037, %v9423, -1e+30
    %v9488 = vsel %vm7038, %v9424, -1e+30
    %v9489 = vsel %vm7039, %v9425, -1e+30
    %v9490 = vsel %vm7040, %v9426, -1e+30
    %v9491 = vsel %vm7041, %v9427, -1e+30
    %v9492 = vsel %vm7042, %v9428, -1e+30
    %v9493 = vsel %vm7043, %v9429, -1e+30
    %v9494 = vsel %vm7044, %v9430, -1e+30
    %v9495 = vmax.f32 %v9431, %v9432
    %9496 = vmax.xlane.f32.xlu0 %v9495
    %v9497 = vpop.xlane.xlu0 %9496
    %v9498 = vmax.f32 %v9433, %v9434
    %9499 = vmax.xlane.f32.xlu0 %v9498
    %v9500 = vpop.xlane.xlu0 %9499
    %v9501 = vmax.f32 %v9435, %v9436
    %9502 = vmax.xlane.f32.xlu0 %v9501
    %v9503 = vpop.xlane.xlu0 %9502
    %v9504 = vmax.f32 %v9437, %v9438
    %9505 = vmax.xlane.f32.xlu0 %v9504
    %v9506 = vpop.xlane.xlu0 %9505
    %v9507 = vmax.f32 %v9439, %v9440
    %9508 = vmax.xlane.f32.xlu0 %v9507
    %v9509 = vpop.xlane.xlu0 %9508
    %v9510 = vmax.f32 %v9441, %v9442
    %9511 = vmax.xlane.f32.xlu0 %v9510
    %v9512 = vpop.xlane.xlu0 %9511
    %v9513 = vmax.f32 %v9443, %v9444
    %9514 = vmax.xlane.f32.xlu0 %v9513
    %v9515 = vpop.xlane.xlu0 %9514
    %v9516 = vmax.f32 %v9445, %v9446
    %9517 = vmax.xlane.f32.xlu0 %v9516
    %v9518 = vpop.xlane.xlu0 %9517
    %v9519 = vmax.f32 %v9447, %v9448
    %9520 = vmax.xlane.f32.xlu0 %v9519
    %v9521 = vpop.xlane.xlu0 %9520
    %v9522 = vmax.f32 %v9449, %v9450
    %9523 = vmax.xlane.f32.xlu0 %v9522
    %v9524 = vpop.xlane.xlu0 %9523
    %v9525 = vmax.f32 %v9451, %v9452
    %9526 = vmax.xlane.f32.xlu0 %v9525
    %v9527 = vpop.xlane.xlu0 %9526
    %v9528 = vmax.f32 %v9453, %v9454
    %9529 = vmax.xlane.f32.xlu0 %v9528
    %v9530 = vpop.xlane.xlu0 %9529
    %v9531 = vmax.f32 %v9455, %v9456
    %9532 = vmax.xlane.f32.xlu0 %v9531
    %v9533 = vpop.xlane.xlu0 %9532
    %v9534 = vmax.f32 %v9457, %v9458
    %9535 = vmax.xlane.f32.xlu0 %v9534
    %v9536 = vpop.xlane.xlu0 %9535
    %v9537 = vmax.f32 %v9459, %v9460
    %9538 = vmax.xlane.f32.xlu0 %v9537
    %v9539 = vpop.xlane.xlu0 %9538
    %v9540 = vmax.f32 %v9461, %v9462
    %9541 = vmax.xlane.f32.xlu0 %v9540
    %v9542 = vpop.xlane.xlu0 %9541
    %v9543 = vmax.f32 %v9463, %v9464
    %9544 = vmax.xlane.f32.xlu0 %v9543
    %v9545 = vpop.xlane.xlu0 %9544
    %v9546 = vmax.f32 %v9465, %v9466
    %9547 = vmax.xlane.f32.xlu0 %v9546
    %v9548 = vpop.xlane.xlu0 %9547
    %v9549 = vmax.f32 %v9467, %v9468
    %9550 = vmax.xlane.f32.xlu0 %v9549
    %v9551 = vpop.xlane.xlu0 %9550
    %v9552 = vmax.f32 %v9469, %v9470
    %9553 = vmax.xlane.f32.xlu0 %v9552
    %v9554 = vpop.xlane.xlu0 %9553
    %v9555 = vmax.f32 %v9471, %v9472
    %9556 = vmax.xlane.f32.xlu0 %v9555
    %v9557 = vpop.xlane.xlu0 %9556
    %v9558 = vmax.f32 %v9473, %v9474
    %9559 = vmax.xlane.f32.xlu0 %v9558
    %v9560 = vpop.xlane.xlu0 %9559
    %v9561 = vmax.f32 %v9475, %v9476
    %9562 = vmax.xlane.f32.xlu0 %v9561
    %v9563 = vpop.xlane.xlu0 %9562
    %v9564 = vmax.f32 %v9477, %v9478
    %9565 = vmax.xlane.f32.xlu0 %v9564
    %v9566 = vpop.xlane.xlu0 %9565
    %v9567 = vmax.f32 %v9479, %v9480
    %9568 = vmax.xlane.f32.xlu0 %v9567
    %v9569 = vpop.xlane.xlu0 %9568
    %v9570 = vmax.f32 %v9481, %v9482
    %9571 = vmax.xlane.f32.xlu0 %v9570
    %v9572 = vpop.xlane.xlu0 %9571
    %v9573 = vmax.f32 %v9483, %v9484
    %9574 = vmax.xlane.f32.xlu0 %v9573
    %v9575 = vpop.xlane.xlu0 %9574
    %v9576 = vmax.f32 %v9485, %v9486
    %9577 = vmax.xlane.f32.xlu0 %v9576
    %v9578 = vpop.xlane.xlu0 %9577
    %v9579 = vmax.f32 %v9487, %v9488
    %9580 = vmax.xlane.f32.xlu0 %v9579
    %v9581 = vpop.xlane.xlu0 %9580
    %v9582 = vmax.f32 %v9489, %v9490
    %9583 = vmax.xlane.f32.xlu0 %v9582
    %v9584 = vpop.xlane.xlu0 %9583
    %v9585 = vmax.f32 %v9491, %v9492
    %9586 = vmax.xlane.f32.xlu0 %v9585
    %v9587 = vpop.xlane.xlu0 %9586
    %v9588 = vmax.f32 %v9493, %v9494
    %9589 = vmax.xlane.f32.xlu0 %v9588
    %v9590 = vpop.xlane.xlu0 %9589
    %v9591 = vsub.f32 %v9431, %v9497
    %v9592 = vsub.f32 %v9432, %v9497
    %v9593 = vsub.f32 %v9433, %v9500
    %v9594 = vsub.f32 %v9434, %v9500
    %v9595 = vsub.f32 %v9435, %v9503
    %v9596 = vsub.f32 %v9436, %v9503
    %v9597 = vsub.f32 %v9437, %v9506
    %v9598 = vsub.f32 %v9438, %v9506
    %v9599 = vsub.f32 %v9439, %v9509
    %v9600 = vsub.f32 %v9440, %v9509
    %v9601 = vsub.f32 %v9441, %v9512
    %v9602 = vsub.f32 %v9442, %v9512
    %v9603 = vsub.f32 %v9443, %v9515
    %v9604 = vsub.f32 %v9444, %v9515
    %v9605 = vsub.f32 %v9445, %v9518
    %v9606 = vsub.f32 %v9446, %v9518
    %v9607 = vsub.f32 %v9447, %v9521
    %v9608 = vsub.f32 %v9448, %v9521
    %v9609 = vsub.f32 %v9449, %v9524
    %v9610 = vsub.f32 %v9450, %v9524
    %v9611 = vsub.f32 %v9451, %v9527
    %v9612 = vsub.f32 %v9452, %v9527
    %v9613 = vsub.f32 %v9453, %v9530
    %v9614 = vsub.f32 %v9454, %v9530
    %v9615 = vsub.f32 %v9455, %v9533
    %v9616 = vsub.f32 %v9456, %v9533
    %v9617 = vsub.f32 %v9457, %v9536
    %v9618 = vsub.f32 %v9458, %v9536
    %v9619 = vsub.f32 %v9459, %v9539
    %v9620 = vsub.f32 %v9460, %v9539
    %v9621 = vsub.f32 %v9461, %v9542
    %v9622 = vsub.f32 %v9462, %v9542
    %v9623 = vsub.f32 %v9463, %v9545
    %v9624 = vsub.f32 %v9464, %v9545
    %v9625 = vsub.f32 %v9465, %v9548
    %v9626 = vsub.f32 %v9466, %v9548
    %v9627 = vsub.f32 %v9467, %v9551
    %v9628 = vsub.f32 %v9468, %v9551
    %v9629 = vsub.f32 %v9469, %v9554
    %v9630 = vsub.f32 %v9470, %v9554
    %v9631 = vsub.f32 %v9471, %v9557
    %v9632 = vsub.f32 %v9472, %v9557
    %v9633 = vsub.f32 %v9473, %v9560
    %v9634 = vsub.f32 %v9474, %v9560
    %v9635 = vsub.f32 %v9475, %v9563
    %v9636 = vsub.f32 %v9476, %v9563
    %v9637 = vsub.f32 %v9477, %v9566
    %v9638 = vsub.f32 %v9478, %v9566
    %v9639 = vsub.f32 %v9479, %v9569
    %v9640 = vsub.f32 %v9480, %v9569
    %v9641 = vsub.f32 %v9481, %v9572
    %v9642 = vsub.f32 %v9482, %v9572
    %v9643 = vsub.f32 %v9483, %v9575
    %v9644 = vsub.f32 %v9484, %v9575
    %v9645 = vsub.f32 %v9485, %v9578
    %v9646 = vsub.f32 %v9486, %v9578
    %v9647 = vsub.f32 %v9487, %v9581
    %v9648 = vsub.f32 %v9488, %v9581
    %v9649 = vsub.f32 %v9489, %v9584
    %v9650 = vsub.f32 %v9490, %v9584
    %v9651 = vsub.f32 %v9491, %v9587
    %v9652 = vsub.f32 %v9492, %v9587
    %v9653 = vsub.f32 %v9493, %v9590
    %v9654 = vsub.f32 %v9494, %v9590
    %v9655 = vmul.f32 %v9591, 1.442695
    %v9656 = vpow.pop %v9655
    %v9657 = vmul.f32 %v9592, 1.442695
    %v9658 = vpow.pop %v9657
    %v9659 = vmul.f32 %v9593, 1.442695
    %v9660 = vpow.pop %v9659
    %v9661 = vmul.f32 %v9594, 1.442695
    %v9662 = vpow.pop %v9661
    %v9663 = vmul.f32 %v9595, 1.442695
    %v9664 = vpow.pop %v9663
    %v9665 = vmul.f32 %v9596, 1.442695
    %v9666 = vpow.pop %v9665
    %v9667 = vmul.f32 %v9597, 1.442695
    %v9668 = vpow.pop %v9667
    %v9669 = vmul.f32 %v9598, 1.442695
    %v9670 = vpow.pop %v9669
    %v9671 = vmul.f32 %v9599, 1.442695
    %v9672 = vpow.pop %v9671
    %v9673 = vmul.f32 %v9600, 1.442695
    %v9674 = vpow.pop %v9673
    %v9675 = vmul.f32 %v9601, 1.442695
    %v9676 = vpow.pop %v9675
    %v9677 = vmul.f32 %v9602, 1.442695
    %v9678 = vpow.pop %v9677
    %v9679 = vmul.f32 %v9603, 1.442695
    %v9680 = vpow.pop %v9679
    %v9681 = vmul.f32 %v9604, 1.442695
    %v9682 = vpow.pop %v9681
    %v9683 = vmul.f32 %v9605, 1.442695
    %v9684 = vpow.pop %v9683
    %v9685 = vmul.f32 %v9606, 1.442695
    %v9686 = vpow.pop %v9685
    %v9687 = vmul.f32 %v9607, 1.442695
    %v9688 = vpow.pop %v9687
    %v9689 = vmul.f32 %v9608, 1.442695
    %v9690 = vpow.pop %v9689
    %v9691 = vmul.f32 %v9609, 1.442695
    %v9692 = vpow.pop %v9691
    %v9693 = vmul.f32 %v9610, 1.442695
    %v9694 = vpow.pop %v9693
    %v9695 = vmul.f32 %v9611, 1.442695
    %v9696 = vpow.pop %v9695
    %v9697 = vmul.f32 %v9612, 1.442695
    %v9698 = vpow.pop %v9697
    %v9699 = vmul.f32 %v9613, 1.442695
    %v9700 = vpow.pop %v9699
    %v9701 = vmul.f32 %v9614, 1.442695
    %v9702 = vpow.pop %v9701
    %v9703 = vmul.f32 %v9615, 1.442695
    %v9704 = vpow.pop %v9703
    %v9705 = vmul.f32 %v9616, 1.442695
    %v9706 = vpow.pop %v9705
    %v9707 = vmul.f32 %v9617, 1.442695
    %v9708 = vpow.pop %v9707
    %v9709 = vmul.f32 %v9618, 1.442695
    %v9710 = vpow.pop %v9709
    %v9711 = vmul.f32 %v9619, 1.442695
    %v9712 = vpow.pop %v9711
    %v9713 = vmul.f32 %v9620, 1.442695
    %v9714 = vpow.pop %v9713
    %v9715 = vmul.f32 %v9621, 1.442695
    %v9716 = vpow.pop %v9715
    %v9717 = vmul.f32 %v9622, 1.442695
    %v9718 = vpow.pop %v9717
    %v9719 = vmul.f32 %v9623, 1.442695
    %v9720 = vpow.pop %v9719
    %v9721 = vmul.f32 %v9624, 1.442695
    %v9722 = vpow.pop %v9721
    %v9723 = vmul.f32 %v9625, 1.442695
    %v9724 = vpow.pop %v9723
    %v9725 = vmul.f32 %v9626, 1.442695
    %v9726 = vpow.pop %v9725
    %v9727 = vmul.f32 %v9627, 1.442695
    %v9728 = vpow.pop %v9727
    %v9729 = vmul.f32 %v9628, 1.442695
    %v9730 = vpow.pop %v9729
    %v9731 = vmul.f32 %v9629, 1.442695
    %v9732 = vpow.pop %v9731
    %v9733 = vmul.f32 %v9630, 1.442695
    %v9734 = vpow.pop %v9733
    %v9735 = vmul.f32 %v9631, 1.442695
    %v9736 = vpow.pop %v9735
    %v9737 = vmul.f32 %v9632, 1.442695
    %v9738 = vpow.pop %v9737
    %v9739 = vmul.f32 %v9633, 1.442695
    %v9740 = vpow.pop %v9739
    %v9741 = vmul.f32 %v9634, 1.442695
    %v9742 = vpow.pop %v9741
    %v9743 = vmul.f32 %v9635, 1.442695
    %v9744 = vpow.pop %v9743
    %v9745 = vmul.f32 %v9636, 1.442695
    %v9746 = vpow.pop %v9745
    %v9747 = vmul.f32 %v9637, 1.442695
    %v9748 = vpow.pop %v9747
    %v9749 = vmul.f32 %v9638, 1.442695
    %v9750 = vpow.pop %v9749
    %v9751 = vmul.f32 %v9639, 1.442695
    %v9752 = vpow.pop %v9751
    %v9753 = vmul.f32 %v9640, 1.442695
    %v9754 = vpow.pop %v9753
    %v9755 = vmul.f32 %v9641, 1.442695
    %v9756 = vpow.pop %v9755
    %v9757 = vmul.f32 %v9642, 1.442695
    %v9758 = vpow.pop %v9757
    %v9759 = vmul.f32 %v9643, 1.442695
    %v9760 = vpow.pop %v9759
    %v9761 = vmul.f32 %v9644, 1.442695
    %v9762 = vpow.pop %v9761
    %v9763 = vmul.f32 %v9645, 1.442695
    %v9764 = vpow.pop %v9763
    %v9765 = vmul.f32 %v9646, 1.442695
    %v9766 = vpow.pop %v9765
    %v9767 = vmul.f32 %v9647, 1.442695
    %v9768 = vpow.pop %v9767
    %v9769 = vmul.f32 %v9648, 1.442695
    %v9770 = vpow.pop %v9769
    %v9771 = vmul.f32 %v9649, 1.442695
    %v9772 = vpow.pop %v9771
    %v9773 = vmul.f32 %v9650, 1.442695
    %v9774 = vpow.pop %v9773
    %v9775 = vmul.f32 %v9651, 1.442695
    %v9776 = vpow.pop %v9775
    %v9777 = vmul.f32 %v9652, 1.442695
    %v9778 = vpow.pop %v9777
    %v9779 = vmul.f32 %v9653, 1.442695
    %v9780 = vpow.pop %v9779
    %v9781 = vmul.f32 %v9654, 1.442695
    %v9782 = vpow.pop %v9781
    %v9783 = vsel %vm6981, %v9656, 0.0
    %v9784 = vsel %vm6982, %v9658, 0.0
    %v9785 = vsel %vm6983, %v9660, 0.0
    %v9786 = vsel %vm6984, %v9662, 0.0
    %v9787 = vsel %vm6985, %v9664, 0.0
    %v9788 = vsel %vm6986, %v9666, 0.0
    %v9789 = vsel %vm6987, %v9668, 0.0
    %v9790 = vsel %vm6988, %v9670, 0.0
    %v9791 = vsel %vm6989, %v9672, 0.0
    %v9792 = vsel %vm6990, %v9674, 0.0
    %v9793 = vsel %vm6991, %v9676, 0.0
    %v9794 = vsel %vm6992, %v9678, 0.0
    %v9795 = vsel %vm6993, %v9680, 0.0
    %v9796 = vsel %vm6994, %v9682, 0.0
    %v9797 = vsel %vm6995, %v9684, 0.0
    %v9798 = vsel %vm6996, %v9686, 0.0
    %v9799 = vsel %vm6997, %v9688, 0.0
    %v9800 = vsel %vm6998, %v9690, 0.0
    %v9801 = vsel %vm6999, %v9692, 0.0
    %v9802 = vsel %vm7000, %v9694, 0.0
    %v9803 = vsel %vm7001, %v9696, 0.0
    %v9804 = vsel %vm7002, %v9698, 0.0
    %v9805 = vsel %vm7003, %v9700, 0.0
    %v9806 = vsel %vm7004, %v9702, 0.0
    %v9807 = vsel %vm7005, %v9704, 0.0
    %v9808 = vsel %vm7006, %v9706, 0.0
    %v9809 = vsel %vm7007, %v9708, 0.0
    %v9810 = vsel %vm7008, %v9710, 0.0
    %v9811 = vsel %vm7009, %v9712, 0.0
    %v9812 = vsel %vm7010, %v9714, 0.0
    %v9813 = vsel %vm7011, %v9716, 0.0
    %v9814 = vsel %vm7012, %v9718, 0.0
    %v9815 = vsel %vm7013, %v9720, 0.0
    %v9816 = vsel %vm7014, %v9722, 0.0
    %v9817 = vsel %vm7015, %v9724, 0.0
    %v9818 = vsel %vm7016, %v9726, 0.0
    %v9819 = vsel %vm7017, %v9728, 0.0
    %v9820 = vsel %vm7018, %v9730, 0.0
    %v9821 = vsel %vm7019, %v9732, 0.0
    %v9822 = vsel %vm7020, %v9734, 0.0
    %v9823 = vsel %vm7021, %v9736, 0.0
    %v9824 = vsel %vm7022, %v9738, 0.0
    %v9825 = vsel %vm7023, %v9740, 0.0
    %v9826 = vsel %vm7024, %v9742, 0.0
    %v9827 = vsel %vm7025, %v9744, 0.0
    %v9828 = vsel %vm7026, %v9746, 0.0
    %v9829 = vsel %vm7027, %v9748, 0.0
    %v9830 = vsel %vm7028, %v9750, 0.0
    %v9831 = vsel %vm7029, %v9752, 0.0
    %v9832 = vsel %vm7030, %v9754, 0.0
    %v9833 = vsel %vm7031, %v9756, 0.0
    %v9834 = vsel %vm7032, %v9758, 0.0
    %v9835 = vsel %vm7033, %v9760, 0.0
    %v9836 = vsel %vm7034, %v9762, 0.0
    %v9837 = vsel %vm7035, %v9764, 0.0
    %v9838 = vsel %vm7036, %v9766, 0.0
    %v9839 = vsel %vm7037, %v9768, 0.0
    %v9840 = vsel %vm7038, %v9770, 0.0
    %v9841 = vsel %vm7039, %v9772, 0.0
    %v9842 = vsel %vm7040, %v9774, 0.0
    %v9843 = vsel %vm7041, %v9776, 0.0
    %v9844 = vsel %vm7042, %v9778, 0.0
    %v9845 = vsel %vm7043, %v9780, 0.0
    %v9846 = vsel %vm7044, %v9782, 0.0
    %v9847 = vadd.f32 %v9783, %v9784
    %9848 = vadd.xlane.f32.xlu0 %v9847
    %v9849 = vpop.xlane.xlu0 %9848
    %v9850 = vadd.f32 %v9785, %v9786
    %9851 = vadd.xlane.f32.xlu0 %v9850
    %v9852 = vpop.xlane.xlu0 %9851
    %v9853 = vadd.f32 %v9787, %v9788
    %9854 = vadd.xlane.f32.xlu0 %v9853
    %v9855 = vpop.xlane.xlu0 %9854
    %v9856 = vadd.f32 %v9789, %v9790
    %9857 = vadd.xlane.f32.xlu0 %v9856
    %v9858 = vpop.xlane.xlu0 %9857
    %v9859 = vadd.f32 %v9791, %v9792
    %9860 = vadd.xlane.f32.xlu0 %v9859
    %v9861 = vpop.xlane.xlu0 %9860
    %v9862 = vadd.f32 %v9793, %v9794
    %9863 = vadd.xlane.f32.xlu0 %v9862
    %v9864 = vpop.xlane.xlu0 %9863
    %v9865 = vadd.f32 %v9795, %v9796
    %9866 = vadd.xlane.f32.xlu0 %v9865
    %v9867 = vpop.xlane.xlu0 %9866
    %v9868 = vadd.f32 %v9797, %v9798
    %9869 = vadd.xlane.f32.xlu0 %v9868
    %v9870 = vpop.xlane.xlu0 %9869
    %v9871 = vadd.f32 %v9799, %v9800
    %9872 = vadd.xlane.f32.xlu0 %v9871
    %v9873 = vpop.xlane.xlu0 %9872
    %v9874 = vadd.f32 %v9801, %v9802
    %9875 = vadd.xlane.f32.xlu0 %v9874
    %v9876 = vpop.xlane.xlu0 %9875
    %v9877 = vadd.f32 %v9803, %v9804
    %9878 = vadd.xlane.f32.xlu0 %v9877
    %v9879 = vpop.xlane.xlu0 %9878
    %v9880 = vadd.f32 %v9805, %v9806
    %9881 = vadd.xlane.f32.xlu0 %v9880
    %v9882 = vpop.xlane.xlu0 %9881
    %v9883 = vadd.f32 %v9807, %v9808
    %9884 = vadd.xlane.f32.xlu0 %v9883
    %v9885 = vpop.xlane.xlu0 %9884
    %v9886 = vadd.f32 %v9809, %v9810
    %9887 = vadd.xlane.f32.xlu0 %v9886
    %v9888 = vpop.xlane.xlu0 %9887
    %v9889 = vadd.f32 %v9811, %v9812
    %9890 = vadd.xlane.f32.xlu0 %v9889
    %v9891 = vpop.xlane.xlu0 %9890
    %v9892 = vadd.f32 %v9813, %v9814
    %9893 = vadd.xlane.f32.xlu0 %v9892
    %v9894 = vpop.xlane.xlu0 %9893
    %v9895 = vadd.f32 %v9815, %v9816
    %9896 = vadd.xlane.f32.xlu0 %v9895
    %v9897 = vpop.xlane.xlu0 %9896
    %v9898 = vadd.f32 %v9817, %v9818
    %9899 = vadd.xlane.f32.xlu0 %v9898
    %v9900 = vpop.xlane.xlu0 %9899
    %v9901 = vadd.f32 %v9819, %v9820
    %9902 = vadd.xlane.f32.xlu0 %v9901
    %v9903 = vpop.xlane.xlu0 %9902
    %v9904 = vadd.f32 %v9821, %v9822
    %9905 = vadd.xlane.f32.xlu0 %v9904
    %v9906 = vpop.xlane.xlu0 %9905
    %v9907 = vadd.f32 %v9823, %v9824
    %9908 = vadd.xlane.f32.xlu0 %v9907
    %v9909 = vpop.xlane.xlu0 %9908
    %v9910 = vadd.f32 %v9825, %v9826
    %9911 = vadd.xlane.f32.xlu0 %v9910
    %v9912 = vpop.xlane.xlu0 %9911
    %v9913 = vadd.f32 %v9827, %v9828
    %9914 = vadd.xlane.f32.xlu0 %v9913
    %v9915 = vpop.xlane.xlu0 %9914
    %v9916 = vadd.f32 %v9829, %v9830
    %9917 = vadd.xlane.f32.xlu0 %v9916
    %v9918 = vpop.xlane.xlu0 %9917
    %v9919 = vadd.f32 %v9831, %v9832
    %9920 = vadd.xlane.f32.xlu0 %v9919
    %v9921 = vpop.xlane.xlu0 %9920
    %v9922 = vadd.f32 %v9833, %v9834
    %9923 = vadd.xlane.f32.xlu0 %v9922
    %v9924 = vpop.xlane.xlu0 %9923
    %v9925 = vadd.f32 %v9835, %v9836
    %9926 = vadd.xlane.f32.xlu0 %v9925
    %v9927 = vpop.xlane.xlu0 %9926
    %v9928 = vadd.f32 %v9837, %v9838
    %9929 = vadd.xlane.f32.xlu0 %v9928
    %v9930 = vpop.xlane.xlu0 %9929
    %v9931 = vadd.f32 %v9839, %v9840
    %9932 = vadd.xlane.f32.xlu0 %v9931
    %v9933 = vpop.xlane.xlu0 %9932
    %v9934 = vadd.f32 %v9841, %v9842
    %9935 = vadd.xlane.f32.xlu0 %v9934
    %v9936 = vpop.xlane.xlu0 %9935
    %v9937 = vadd.f32 %v9843, %v9844
    %9938 = vadd.xlane.f32.xlu0 %v9937
    %v9939 = vpop.xlane.xlu0 %9938
    %v9940 = vadd.f32 %v9845, %v9846
    %9941 = vadd.xlane.f32.xlu0 %v9940
    %v9942 = vpop.xlane.xlu0 %9941
    %v9943 = vmax.f32 %v9849, 1e-20
    %v9944 = vmax.f32 %v9852, 1e-20
    %v9945 = vmax.f32 %v9855, 1e-20
    %v9946 = vmax.f32 %v9858, 1e-20
    %v9947 = vmax.f32 %v9861, 1e-20
    %v9948 = vmax.f32 %v9864, 1e-20
    %v9949 = vmax.f32 %v9867, 1e-20
    %v9950 = vmax.f32 %v9870, 1e-20
    %v9951 = vmax.f32 %v9873, 1e-20
    %v9952 = vmax.f32 %v9876, 1e-20
    %v9953 = vmax.f32 %v9879, 1e-20
    %v9954 = vmax.f32 %v9882, 1e-20
    %v9955 = vmax.f32 %v9885, 1e-20
    %v9956 = vmax.f32 %v9888, 1e-20
    %v9957 = vmax.f32 %v9891, 1e-20
    %v9958 = vmax.f32 %v9894, 1e-20
    %v9959 = vmax.f32 %v9897, 1e-20
    %v9960 = vmax.f32 %v9900, 1e-20
    %v9961 = vmax.f32 %v9903, 1e-20
    %v9962 = vmax.f32 %v9906, 1e-20
    %v9963 = vmax.f32 %v9909, 1e-20
    %v9964 = vmax.f32 %v9912, 1e-20
    %v9965 = vmax.f32 %v9915, 1e-20
    %v9966 = vmax.f32 %v9918, 1e-20
    %v9967 = vmax.f32 %v9921, 1e-20
    %v9968 = vmax.f32 %v9924, 1e-20
    %v9969 = vmax.f32 %v9927, 1e-20
    %v9970 = vmax.f32 %v9930, 1e-20
    %v9971 = vmax.f32 %v9933, 1e-20
    %v9972 = vmax.f32 %v9936, 1e-20
    %v9973 = vmax.f32 %v9939, 1e-20
    %v9974 = vmax.f32 %v9942, 1e-20
    %v9975 = vrcp.pop %v9943
    %v9976 = vmul.f32 1.0, %v9975
    %v9977 = vrcp.pop %v9944
    %v9978 = vmul.f32 1.0, %v9977
    %v9979 = vrcp.pop %v9945
    %v9980 = vmul.f32 1.0, %v9979
    %v9981 = vrcp.pop %v9946
    %v9982 = vmul.f32 1.0, %v9981
    %v9983 = vrcp.pop %v9947
    %v9984 = vmul.f32 1.0, %v9983
    %v9985 = vrcp.pop %v9948
    %v9986 = vmul.f32 1.0, %v9985
    %v9987 = vrcp.pop %v9949
    %v9988 = vmul.f32 1.0, %v9987
    %v9989 = vrcp.pop %v9950
    %v9990 = vmul.f32 1.0, %v9989
    %v9991 = vrcp.pop %v9951
    %v9992 = vmul.f32 1.0, %v9991
    %v9993 = vrcp.pop %v9952
    %v9994 = vmul.f32 1.0, %v9993
    %v9995 = vrcp.pop %v9953
    %v9996 = vmul.f32 1.0, %v9995
    %v9997 = vrcp.pop %v9954
    %v9998 = vmul.f32 1.0, %v9997
    %v9999 = vrcp.pop %v9955
    %v10000 = vmul.f32 1.0, %v9999
    %v10001 = vrcp.pop %v9956
    %v10002 = vmul.f32 1.0, %v10001
    %v10003 = vrcp.pop %v9957
    %v10004 = vmul.f32 1.0, %v10003
    %v10005 = vrcp.pop %v9958
    %v10006 = vmul.f32 1.0, %v10005
    %v10007 = vrcp.pop %v9959
    %v10008 = vmul.f32 1.0, %v10007
    %v10009 = vrcp.pop %v9960
    %v10010 = vmul.f32 1.0, %v10009
    %v10011 = vrcp.pop %v9961
    %v10012 = vmul.f32 1.0, %v10011
    %v10013 = vrcp.pop %v9962
    %v10014 = vmul.f32 1.0, %v10013
    %v10015 = vrcp.pop %v9963
    %v10016 = vmul.f32 1.0, %v10015
    %v10017 = vrcp.pop %v9964
    %v10018 = vmul.f32 1.0, %v10017
    %v10019 = vrcp.pop %v9965
    %v10020 = vmul.f32 1.0, %v10019
    %v10021 = vrcp.pop %v9966
    %v10022 = vmul.f32 1.0, %v10021
    %v10023 = vrcp.pop %v9967
    %v10024 = vmul.f32 1.0, %v10023
    %v10025 = vrcp.pop %v9968
    %v10026 = vmul.f32 1.0, %v10025
    %v10027 = vrcp.pop %v9969
    %v10028 = vmul.f32 1.0, %v10027
    %v10029 = vrcp.pop %v9970
    %v10030 = vmul.f32 1.0, %v10029
    %v10031 = vrcp.pop %v9971
    %v10032 = vmul.f32 1.0, %v10031
    %v10033 = vrcp.pop %v9972
    %v10034 = vmul.f32 1.0, %v10033
    %v10035 = vrcp.pop %v9973
    %v10036 = vmul.f32 1.0, %v10035
    %v10037 = vrcp.pop %v9974
    %v10038 = vmul.f32 1.0, %v10037
    %v10039 = vmul.f32 %v9783, %v9976
    %v10040 = vmul.f32 %v9784, %v9976
    %v10041 = vmul.f32 %v9785, %v9978
    %v10042 = vmul.f32 %v9786, %v9978
    %v10043 = vmul.f32 %v9787, %v9980
    %v10044 = vmul.f32 %v9788, %v9980
    %v10045 = vmul.f32 %v9789, %v9982
    %v10046 = vmul.f32 %v9790, %v9982
    %v10047 = vmul.f32 %v9791, %v9984
    %v10048 = vmul.f32 %v9792, %v9984
    %v10049 = vmul.f32 %v9793, %v9986
    %v10050 = vmul.f32 %v9794, %v9986
    %v10051 = vmul.f32 %v9795, %v9988
    %v10052 = vmul.f32 %v9796, %v9988
    %v10053 = vmul.f32 %v9797, %v9990
    %v10054 = vmul.f32 %v9798, %v9990
    %v10055 = vmul.f32 %v9799, %v9992
    %v10056 = vmul.f32 %v9800, %v9992
    %v10057 = vmul.f32 %v9801, %v9994
    %v10058 = vmul.f32 %v9802, %v9994
    %v10059 = vmul.f32 %v9803, %v9996
    %v10060 = vmul.f32 %v9804, %v9996
    %v10061 = vmul.f32 %v9805, %v9998
    %v10062 = vmul.f32 %v9806, %v9998
    %v10063 = vmul.f32 %v9807, %v10000
    %v10064 = vmul.f32 %v9808, %v10000
    %v10065 = vmul.f32 %v9809, %v10002
    %v10066 = vmul.f32 %v9810, %v10002
    %v10067 = vmul.f32 %v9811, %v10004
    %v10068 = vmul.f32 %v9812, %v10004
    %v10069 = vmul.f32 %v9813, %v10006
    %v10070 = vmul.f32 %v9814, %v10006
    %v10071 = vmul.f32 %v9815, %v10008
    %v10072 = vmul.f32 %v9816, %v10008
    %v10073 = vmul.f32 %v9817, %v10010
    %v10074 = vmul.f32 %v9818, %v10010
    %v10075 = vmul.f32 %v9819, %v10012
    %v10076 = vmul.f32 %v9820, %v10012
    %v10077 = vmul.f32 %v9821, %v10014
    %v10078 = vmul.f32 %v9822, %v10014
    %v10079 = vmul.f32 %v9823, %v10016
    %v10080 = vmul.f32 %v9824, %v10016
    %v10081 = vmul.f32 %v9825, %v10018
    %v10082 = vmul.f32 %v9826, %v10018
    %v10083 = vmul.f32 %v9827, %v10020
    %v10084 = vmul.f32 %v9828, %v10020
    %v10085 = vmul.f32 %v9829, %v10022
    %v10086 = vmul.f32 %v9830, %v10022
    %v10087 = vmul.f32 %v9831, %v10024
    %v10088 = vmul.f32 %v9832, %v10024
    %v10089 = vmul.f32 %v9833, %v10026
    %v10090 = vmul.f32 %v9834, %v10026
    %v10091 = vmul.f32 %v9835, %v10028
    %v10092 = vmul.f32 %v9836, %v10028
    %v10093 = vmul.f32 %v9837, %v10030
    %v10094 = vmul.f32 %v9838, %v10030
    %v10095 = vmul.f32 %v9839, %v10032
    %v10096 = vmul.f32 %v9840, %v10032
    %v10097 = vmul.f32 %v9841, %v10034
    %v10098 = vmul.f32 %v9842, %v10034
    %v10099 = vmul.f32 %v9843, %v10036
    %v10100 = vmul.f32 %v9844, %v10036
    %v10101 = vmul.f32 %v9845, %v10038
    %v10102 = vmul.f32 %v9846, %v10038
    %v10103 = vpack.c.bf16 %v10041, %v10039
    %v10104 = vpack.c.bf16 %v10042, %v10040
    %v10105 = vpack.c.bf16 %v10045, %v10043
    %v10106 = vpack.c.bf16 %v10046, %v10044
    %v10107 = vpack.c.bf16 %v10049, %v10047
    %v10108 = vpack.c.bf16 %v10050, %v10048
    %v10109 = vpack.c.bf16 %v10053, %v10051
    %v10110 = vpack.c.bf16 %v10054, %v10052
    %v10111 = vpack.c.bf16 %v10057, %v10055
    %v10112 = vpack.c.bf16 %v10058, %v10056
    %v10113 = vpack.c.bf16 %v10061, %v10059
    %v10114 = vpack.c.bf16 %v10062, %v10060
    %v10115 = vpack.c.bf16 %v10065, %v10063
    %v10116 = vpack.c.bf16 %v10066, %v10064
    %v10117 = vpack.c.bf16 %v10069, %v10067
    %v10118 = vpack.c.bf16 %v10070, %v10068
    %v10119 = vpack.c.bf16 %v10073, %v10071
    %v10120 = vpack.c.bf16 %v10074, %v10072
    %v10121 = vpack.c.bf16 %v10077, %v10075
    %v10122 = vpack.c.bf16 %v10078, %v10076
    %v10123 = vpack.c.bf16 %v10081, %v10079
    %v10124 = vpack.c.bf16 %v10082, %v10080
    %v10125 = vpack.c.bf16 %v10085, %v10083
    %v10126 = vpack.c.bf16 %v10086, %v10084
    %v10127 = vpack.c.bf16 %v10089, %v10087
    %v10128 = vpack.c.bf16 %v10090, %v10088
    %v10129 = vpack.c.bf16 %v10093, %v10091
    %v10130 = vpack.c.bf16 %v10094, %v10092
    %v10131 = vpack.c.bf16 %v10097, %v10095
    %v10132 = vpack.c.bf16 %v10098, %v10096
    %v10133 = vpack.c.bf16 %v10101, %v10099
    %v10134 = vpack.c.bf16 %v10102, %v10100
    %10135 = vmatprep.subr.bf16.mxu0 0
    %10136 = vmatpush1.bf16.msra.mxu0 %v6091
    %10137 = vmatprep.subr.bf16.mxu0 0
    %10138 = vmatpush1.bf16.msra.mxu0 %v6094
    %10139 = vmatprep.subr.bf16.mxu0 0
    %10140 = vmatpush1.bf16.msra.mxu0 %v6097
    %10141 = vmatprep.subr.bf16.mxu0 0
    %10142 = vmatpush1.bf16.msra.mxu0 %v6100
    %10143 = vmatprep.subr.bf16.mxu0 0
    %10144 = vmatpush1.bf16.msra.mxu0 %v6103
    %10145 = vmatprep.subr.bf16.mxu0 0
    %10146 = vmatpush1.bf16.msra.mxu0 %v6106
    %10147 = vmatprep.subr.bf16.mxu0 0
    %10148 = vmatpush1.bf16.msra.mxu0 %v6109
    %10149 = vmatprep.subr.bf16.mxu0 0
    %10150 = vmatpush1.bf16.msra.mxu0 %v6112
    %10151 = vmatprep.subr.bf16.mxu0 0
    %10152 = vmatpush1.bf16.msra.mxu0 %v6115
    %10153 = vmatprep.subr.bf16.mxu0 0
    %10154 = vmatpush1.bf16.msra.mxu0 %v6118
    %10155 = vmatprep.subr.bf16.mxu0 0
    %10156 = vmatpush1.bf16.msra.mxu0 %v6121
    %10157 = vmatprep.subr.bf16.mxu0 0
    %10158 = vmatpush1.bf16.msra.mxu0 %v6124
    %10159 = vmatprep.subr.bf16.mxu0 0
    %10160 = vmatpush1.bf16.msra.mxu0 %v6127
    %10161 = vmatprep.subr.bf16.mxu0 0
    %10162 = vmatpush1.bf16.msra.mxu0 %v6130
    %10163 = vmatprep.subr.bf16.mxu0 0
    %10164 = vmatpush1.bf16.msra.mxu0 %v6133
    %10165 = vmatprep.subr.bf16.mxu0 0
    %10166 = vmatpush1.bf16.msra.mxu0 %v6136
    %10167 = vmatprep.mubr.bf16.mxu0 %v10104
    %10168 = vmatmul.mubr.bf16.gmra.mrb[0].mxu0 %v10103
    %v10169 = vpop.f32.mrb[0].mxu0
    %v10170 = vadd.f32 0.0, %v10169
    %v10171 = vpop.f32.mrb[0].mxu0
    %v10172 = vpop.f32.mrb[0].mxu0
    %v10173 = vadd.f32 0.0, %v10172
    %v10174 = vpop.f32.mrb[0].mxu0
    %10175 = vmatprep.mubr.bf16.mxu0 %v10106
    %10176 = vmatmul.mubr.bf16.gmra.mrb[0].mxu0 %v10105
    %v10177 = vpop.f32.mrb[0].mxu0
    %v10178 = vadd.f32 0.0, %v10177
    %v10179 = vpop.f32.mrb[0].mxu0
    %v10180 = vpop.f32.mrb[0].mxu0
    %v10181 = vadd.f32 0.0, %v10180
    %v10182 = vpop.f32.mrb[0].mxu0
    %10183 = vmatprep.mubr.bf16.mxu0 %v10108
    %10184 = vmatmul.mubr.bf16.gmra.mrb[0].mxu0 %v10107
    %v10185 = vpop.f32.mrb[0].mxu0
    %v10186 = vadd.f32 0.0, %v10185
    %v10187 = vpop.f32.mrb[0].mxu0
    %v10188 = vpop.f32.mrb[0].mxu0
    %v10189 = vadd.f32 0.0, %v10188
    %v10190 = vpop.f32.mrb[0].mxu0
    %10191 = vmatprep.mubr.bf16.mxu0 %v10110
    %10192 = vmatmul.mubr.bf16.gmra.mrb[0].mxu0 %v10109
    %v10193 = vpop.f32.mrb[0].mxu0
    %v10194 = vadd.f32 0.0, %v10193
    %v10195 = vpop.f32.mrb[0].mxu0
    %v10196 = vpop.f32.mrb[0].mxu0
    %v10197 = vadd.f32 0.0, %v10196
    %v10198 = vpop.f32.mrb[0].mxu0
    %10199 = vmatprep.mubr.bf16.mxu0 %v10112
    %10200 = vmatmul.mubr.bf16.gmra.mrb[0].mxu0 %v10111
    %v10201 = vpop.f32.mrb[0].mxu0
    %v10202 = vadd.f32 0.0, %v10201
    %v10203 = vpop.f32.mrb[0].mxu0
    %v10204 = vpop.f32.mrb[0].mxu0
    %v10205 = vadd.f32 0.0, %v10204
    %v10206 = vpop.f32.mrb[0].mxu0
    %10207 = vmatprep.mubr.bf16.mxu0 %v10114
    %10208 = vmatmul.mubr.bf16.gmra.mrb[0].mxu0 %v10113
    %v10209 = vpop.f32.mrb[0].mxu0
    %v10210 = vadd.f32 0.0, %v10209
    %v10211 = vpop.f32.mrb[0].mxu0
    %v10212 = vpop.f32.mrb[0].mxu0
    %v10213 = vadd.f32 0.0, %v10212
    %v10214 = vpop.f32.mrb[0].mxu0
    %10215 = vmatprep.mubr.bf16.mxu0 %v10116
    %10216 = vmatmul.mubr.bf16.gmra.mrb[0].mxu0 %v10115
    %v10217 = vpop.f32.mrb[0].mxu0
    %v10218 = vadd.f32 0.0, %v10217
    %v10219 = vpop.f32.mrb[0].mxu0
    %v10220 = vpop.f32.mrb[0].mxu0
    %v10221 = vadd.f32 0.0, %v10220
    %v10222 = vpop.f32.mrb[0].mxu0
    %10223 = vmatprep.mubr.bf16.mxu0 %v10118
    %10224 = vmatmul.mubr.bf16.gmra.mrb[0].mxu0 %v10117
    %v10225 = vpop.f32.mrb[0].mxu0
    %v10226 = vadd.f32 0.0, %v10225
    %v10227 = vpop.f32.mrb[0].mxu0
    %v10228 = vpop.f32.mrb[0].mxu0
    %v10229 = vadd.f32 0.0, %v10228
    %v10230 = vpop.f32.mrb[0].mxu0
    %10231 = vmatprep.mubr.bf16.mxu0 %v10120
    %10232 = vmatmul.mubr.bf16.gmra.mrb[0].mxu0 %v10119
    %v10233 = vpop.f32.mrb[0].mxu0
    %v10234 = vadd.f32 0.0, %v10233
    %v10235 = vpop.f32.mrb[0].mxu0
    %v10236 = vpop.f32.mrb[0].mxu0
    %v10237 = vadd.f32 0.0, %v10236
    %v10238 = vpop.f32.mrb[0].mxu0
    %10239 = vmatprep.mubr.bf16.mxu0 %v10122
    %10240 = vmatmul.mubr.bf16.gmra.mrb[0].mxu0 %v10121
    %v10241 = vpop.f32.mrb[0].mxu0
    %v10242 = vadd.f32 0.0, %v10241
    %v10243 = vpop.f32.mrb[0].mxu0
    %v10244 = vpop.f32.mrb[0].mxu0
    %v10245 = vadd.f32 0.0, %v10244
    %v10246 = vpop.f32.mrb[0].mxu0
    %10247 = vmatprep.mubr.bf16.mxu0 %v10124
    %10248 = vmatmul.mubr.bf16.gmra.mrb[0].mxu0 %v10123
    %v10249 = vpop.f32.mrb[0].mxu0
    %v10250 = vadd.f32 0.0, %v10249
    %v10251 = vpop.f32.mrb[0].mxu0
    %v10252 = vpop.f32.mrb[0].mxu0
    %v10253 = vadd.f32 0.0, %v10252
    %v10254 = vpop.f32.mrb[0].mxu0
    %10255 = vmatprep.mubr.bf16.mxu0 %v10126
    %10256 = vmatmul.mubr.bf16.gmra.mrb[0].mxu0 %v10125
    %v10257 = vpop.f32.mrb[0].mxu0
    %v10258 = vadd.f32 0.0, %v10257
    %v10259 = vpop.f32.mrb[0].mxu0
    %v10260 = vpop.f32.mrb[0].mxu0
    %v10261 = vadd.f32 0.0, %v10260
    %v10262 = vpop.f32.mrb[0].mxu0
    %10263 = vmatprep.mubr.bf16.mxu0 %v10128
    %10264 = vmatmul.mubr.bf16.gmra.mrb[0].mxu0 %v10127
    %v10265 = vpop.f32.mrb[0].mxu0
    %v10266 = vadd.f32 0.0, %v10265
    %v10267 = vpop.f32.mrb[0].mxu0
    %v10268 = vpop.f32.mrb[0].mxu0
    %v10269 = vadd.f32 0.0, %v10268
    %v10270 = vpop.f32.mrb[0].mxu0
    %10271 = vmatprep.mubr.bf16.mxu0 %v10130
    %10272 = vmatmul.mubr.bf16.gmra.mrb[0].mxu0 %v10129
    %v10273 = vpop.f32.mrb[0].mxu0
    %v10274 = vadd.f32 0.0, %v10273
    %v10275 = vpop.f32.mrb[0].mxu0
    %v10276 = vpop.f32.mrb[0].mxu0
    %v10277 = vadd.f32 0.0, %v10276
    %v10278 = vpop.f32.mrb[0].mxu0
    %10279 = vmatprep.mubr.bf16.mxu0 %v10132
    %10280 = vmatmul.mubr.bf16.gmra.mrb[0].mxu0 %v10131
    %v10281 = vpop.f32.mrb[0].mxu0
    %v10282 = vadd.f32 0.0, %v10281
    %v10283 = vpop.f32.mrb[0].mxu0
    %v10284 = vpop.f32.mrb[0].mxu0
    %v10285 = vadd.f32 0.0, %v10284
    %v10286 = vpop.f32.mrb[0].mxu0
    %10287 = vmatprep.mubr.bf16.mxu0 %v10134
    %10288 = vmatmul.mubr.bf16.gmra.mrb[0].mxu0 %v10133
    %v10289 = vpop.f32.mrb[0].mxu0
    %v10290 = vadd.f32 0.0, %v10289
    %v10291 = vpop.f32.mrb[0].mxu0
    %v10292 = vpop.f32.mrb[0].mxu0
    %v10293 = vadd.f32 0.0, %v10292
    %v10294 = vpop.f32.mrb[0].mxu0
    %10295 = vdwg.mxu0
    %v10296 = vadd.f32 %v8977, %v10170
    %v10297 = vadd.f32 %v8980, %v10173
    %v10298 = vadd.f32 %v8985, %v10178
    %v10299 = vadd.f32 %v8988, %v10181
    %v10300 = vadd.f32 %v8993, %v10186
    %v10301 = vadd.f32 %v8996, %v10189
    %v10302 = vadd.f32 %v9001, %v10194
    %v10303 = vadd.f32 %v9004, %v10197
    %v10304 = vadd.f32 %v9009, %v10202
    %v10305 = vadd.f32 %v9012, %v10205
    %v10306 = vadd.f32 %v9017, %v10210
    %v10307 = vadd.f32 %v9020, %v10213
    %v10308 = vadd.f32 %v9025, %v10218
    %v10309 = vadd.f32 %v9028, %v10221
    %v10310 = vadd.f32 %v9033, %v10226
    %v10311 = vadd.f32 %v9036, %v10229
    %v10312 = vadd.f32 %v9041, %v10234
    %v10313 = vadd.f32 %v9044, %v10237
    %v10314 = vadd.f32 %v9049, %v10242
    %v10315 = vadd.f32 %v9052, %v10245
    %v10316 = vadd.f32 %v9057, %v10250
    %v10317 = vadd.f32 %v9060, %v10253
    %v10318 = vadd.f32 %v9065, %v10258
    %v10319 = vadd.f32 %v9068, %v10261
    %v10320 = vadd.f32 %v9073, %v10266
    %v10321 = vadd.f32 %v9076, %v10269
    %v10322 = vadd.f32 %v9081, %v10274
    %v10323 = vadd.f32 %v9084, %v10277
    %v10324 = vadd.f32 %v9089, %v10282
    %v10325 = vadd.f32 %v9092, %v10285
    %v10326 = vadd.f32 %v9097, %v10290
    %v10327 = vadd.f32 %v9100, %v10293
    %10328 = vst [vmem:[#allocation6] sm:$0xff] %v10296
    %10329 = vst [vmem:[#allocation6 + $0x8] sm:$0xff] %v10297
    %10330 = vst [vmem:[#allocation6 + $0x10] sm:$0xff] %v10298
    %10331 = vst [vmem:[#allocation6 + $0x18] sm:$0xff] %v10299
    %10332 = vst [vmem:[#allocation6 + $0x20] sm:$0xff] %v10300
    %10333 = vst [vmem:[#allocation6 + $0x28] sm:$0xff] %v10301
    %10334 = vst [vmem:[#allocation6 + $0x30] sm:$0xff] %v10302
    %10335 = vst [vmem:[#allocation6 + $0x38] sm:$0xff] %v10303
    %10336 = vst [vmem:[#allocation6 + $0x40] sm:$0xff] %v10304
    %10337 = vst [vmem:[#allocation6 + $0x48] sm:$0xff] %v10305
    %10338 = vst [vmem:[#allocation6 + $0x50] sm:$0xff] %v10306
    %10339 = vst [vmem:[#allocation6 + $0x58] sm:$0xff] %v10307
    %10340 = vst [vmem:[#allocation6 + $0x60] sm:$0xff] %v10308
    %10341 = vst [vmem:[#allocation6 + $0x68] sm:$0xff] %v10309
    %10342 = vst [vmem:[#allocation6 + $0x70] sm:$0xff] %v10310
    %10343 = vst [vmem:[#allocation6 + $0x78] sm:$0xff] %v10311
    %10344 = vst [vmem:[#allocation6 + $0x80] sm:$0xff] %v10312
    %10345 = vst [vmem:[#allocation6 + $0x88] sm:$0xff] %v10313
    %10346 = vst [vmem:[#allocation6 + $0x90] sm:$0xff] %v10314
    %10347 = vst [vmem:[#allocation6 + $0x98] sm:$0xff] %v10315
    %10348 = vst [vmem:[#allocation6 + $0xa0] sm:$0xff] %v10316
    %10349 = vst [vmem:[#allocation6 + $0xa8] sm:$0xff] %v10317
    %10350 = vst [vmem:[#allocation6 + $0xb0] sm:$0xff] %v10318
    %10351 = vst [vmem:[#allocation6 + $0xb8] sm:$0xff] %v10319
    %10352 = vst [vmem:[#allocation6 + $0xc0] sm:$0xff] %v10320
    %10353 = vst [vmem:[#allocation6 + $0xc8] sm:$0xff] %v10321
    %10354 = vst [vmem:[#allocation6 + $0xd0] sm:$0xff] %v10322
    %10355 = vst [vmem:[#allocation6 + $0xd8] sm:$0xff] %v10323
    %10356 = vst [vmem:[#allocation6 + $0xe0] sm:$0xff] %v10324
    %10357 = vst [vmem:[#allocation6 + $0xe8] sm:$0xff] %v10325
    %10358 = vst [vmem:[#allocation6 + $0xf0] sm:$0xff] %v10326
    %10359 = vst [vmem:[#allocation6 + $0xf8] sm:$0xff] %v10327
    %v10360 = vld [vmem:[#allocation6] sm:$0xff]
    %v10361 = vld [vmem:[#allocation6 + $0x8] sm:$0xff]
    %v10362 = vld [vmem:[#allocation6 + $0x10] sm:$0xff]
    %v10363 = vld [vmem:[#allocation6 + $0x18] sm:$0xff]
    %v10364 = vld [vmem:[#allocation6 + $0x20] sm:$0xff]
    %v10365 = vld [vmem:[#allocation6 + $0x28] sm:$0xff]
    %v10366 = vld [vmem:[#allocation6 + $0x30] sm:$0xff]
    %v10367 = vld [vmem:[#allocation6 + $0x38] sm:$0xff]
    %v10368 = vld [vmem:[#allocation6 + $0x40] sm:$0xff]
    %v10369 = vld [vmem:[#allocation6 + $0x48] sm:$0xff]
    %v10370 = vld [vmem:[#allocation6 + $0x50] sm:$0xff]
    %v10371 = vld [vmem:[#allocation6 + $0x58] sm:$0xff]
    %v10372 = vld [vmem:[#allocation6 + $0x60] sm:$0xff]
    %v10373 = vld [vmem:[#allocation6 + $0x68] sm:$0xff]
    %v10374 = vld [vmem:[#allocation6 + $0x70] sm:$0xff]
    %v10375 = vld [vmem:[#allocation6 + $0x78] sm:$0xff]
    %v10376 = vld [vmem:[#allocation6 + $0x80] sm:$0xff]
    %v10377 = vld [vmem:[#allocation6 + $0x88] sm:$0xff]
    %v10378 = vld [vmem:[#allocation6 + $0x90] sm:$0xff]
    %v10379 = vld [vmem:[#allocation6 + $0x98] sm:$0xff]
    %v10380 = vld [vmem:[#allocation6 + $0xa0] sm:$0xff]
    %v10381 = vld [vmem:[#allocation6 + $0xa8] sm:$0xff]
    %v10382 = vld [vmem:[#allocation6 + $0xb0] sm:$0xff]
    %v10383 = vld [vmem:[#allocation6 + $0xb8] sm:$0xff]
    %v10384 = vld [vmem:[#allocation6 + $0xc0] sm:$0xff]
    %v10385 = vld [vmem:[#allocation6 + $0xc8] sm:$0xff]
    %v10386 = vld [vmem:[#allocation6 + $0xd0] sm:$0xff]
    %v10387 = vld [vmem:[#allocation6 + $0xd8] sm:$0xff]
    %v10388 = vld [vmem:[#allocation6 + $0xe0] sm:$0xff]
    %v10389 = vld [vmem:[#allocation6 + $0xe8] sm:$0xff]
    %v10390 = vld [vmem:[#allocation6 + $0xf0] sm:$0xff]
    %v10391 = vld [vmem:[#allocation6 + $0xf8] sm:$0xff]
    %v10392 = vadd.f32 %v10360, %v10361
    %v10393 = vadd.f32 %v10392, %v10362
    %v10394 = vadd.f32 %v10393, %v10363
    %v10395 = vadd.f32 %v10394, %v10364
    %v10396 = vadd.f32 %v10395, %v10365
    %v10397 = vadd.f32 %v10396, %v10366
    %v10398 = vadd.f32 %v10397, %v10367
    %v10399 = vadd.f32 %v10398, %v10368
    %v10400 = vadd.f32 %v10399, %v10369
    %v10401 = vadd.f32 %v10400, %v10370
    %v10402 = vadd.f32 %v10401, %v10371
    %v10403 = vadd.f32 %v10402, %v10372
    %v10404 = vadd.f32 %v10403, %v10373
    %v10405 = vadd.f32 %v10404, %v10374
    %v10406 = vadd.f32 %v10405, %v10375
    %v10407 = vadd.f32 %v10406, %v10376
    %v10408 = vadd.f32 %v10407, %v10377
    %v10409 = vadd.f32 %v10408, %v10378
    %v10410 = vadd.f32 %v10409, %v10379
    %v10411 = vadd.f32 %v10410, %v10380
    %v10412 = vadd.f32 %v10411, %v10381
    %v10413 = vadd.f32 %v10412, %v10382
    %v10414 = vadd.f32 %v10413, %v10383
    %v10415 = vadd.f32 %v10414, %v10384
    %v10416 = vadd.f32 %v10415, %v10385
    %v10417 = vadd.f32 %v10416, %v10386
    %v10418 = vadd.f32 %v10417, %v10387
    %v10419 = vadd.f32 %v10418, %v10388
    %v10420 = vadd.f32 %v10419, %v10389
    %v10421 = vadd.f32 %v10420, %v10390
    %v10422 = vadd.f32 %v10421, %v10391
    %v10423 = vrot.slane %v10422, 4
    %v10424 = vadd.f32 %v10422, %v10423
    %v10425 = vrot.slane %v10424, 2
    %v10426 = vadd.f32 %v10424, %v10425
    %v10427 = vrot.slane %v10426, 1
    %v10428 = vadd.f32 %v10426, %v10427
    %v10429 = vmul.f32 %v10428, 0.0625
    %v10430 = vmul.f32 %v10360, %v10360
    %v10431 = vmul.f32 %v10361, %v10361
    %v10432 = vmul.f32 %v10362, %v10362
    %v10433 = vmul.f32 %v10363, %v10363
    %v10434 = vmul.f32 %v10364, %v10364
    %v10435 = vmul.f32 %v10365, %v10365
    %v10436 = vmul.f32 %v10366, %v10366
    %v10437 = vmul.f32 %v10367, %v10367
    %v10438 = vmul.f32 %v10368, %v10368
    %v10439 = vmul.f32 %v10369, %v10369
    %v10440 = vmul.f32 %v10370, %v10370
    %v10441 = vmul.f32 %v10371, %v10371
    %v10442 = vmul.f32 %v10372, %v10372
    %v10443 = vmul.f32 %v10373, %v10373
    %v10444 = vmul.f32 %v10374, %v10374
    %v10445 = vmul.f32 %v10375, %v10375
    %v10446 = vmul.f32 %v10376, %v10376
    %v10447 = vmul.f32 %v10377, %v10377
    %v10448 = vmul.f32 %v10378, %v10378
    %v10449 = vmul.f32 %v10379, %v10379
    %v10450 = vmul.f32 %v10380, %v10380
    %v10451 = vmul.f32 %v10381, %v10381
    %v10452 = vmul.f32 %v10382, %v10382
    %v10453 = vmul.f32 %v10383, %v10383
    %v10454 = vmul.f32 %v10384, %v10384
    %v10455 = vmul.f32 %v10385, %v10385
    %v10456 = vmul.f32 %v10386, %v10386
    %v10457 = vmul.f32 %v10387, %v10387
    %v10458 = vmul.f32 %v10388, %v10388
    %v10459 = vmul.f32 %v10389, %v10389
    %v10460 = vmul.f32 %v10390, %v10390
    %v10461 = vmul.f32 %v10391, %v10391
    %v10462 = vadd.f32 %v10430, %v10431
    %v10463 = vadd.f32 %v10462, %v10432
    %v10464 = vadd.f32 %v10463, %v10433
    %v10465 = vadd.f32 %v10464, %v10434
    %v10466 = vadd.f32 %v10465, %v10435
    %v10467 = vadd.f32 %v10466, %v10436
    %v10468 = vadd.f32 %v10467, %v10437
    %v10469 = vadd.f32 %v10468, %v10438
    %v10470 = vadd.f32 %v10469, %v10439
    %v10471 = vadd.f32 %v10470, %v10440
    %v10472 = vadd.f32 %v10471, %v10441
    %v10473 = vadd.f32 %v10472, %v10442
    %v10474 = vadd.f32 %v10473, %v10443
    %v10475 = vadd.f32 %v10474, %v10444
    %v10476 = vadd.f32 %v10475, %v10445
    %v10477 = vadd.f32 %v10476, %v10446
    %v10478 = vadd.f32 %v10477, %v10447
    %v10479 = vadd.f32 %v10478, %v10448
    %v10480 = vadd.f32 %v10479, %v10449
    %v10481 = vadd.f32 %v10480, %v10450
    %v10482 = vadd.f32 %v10481, %v10451
    %v10483 = vadd.f32 %v10482, %v10452
    %v10484 = vadd.f32 %v10483, %v10453
    %v10485 = vadd.f32 %v10484, %v10454
    %v10486 = vadd.f32 %v10485, %v10455
    %v10487 = vadd.f32 %v10486, %v10456
    %v10488 = vadd.f32 %v10487, %v10457
    %v10489 = vadd.f32 %v10488, %v10458
    %v10490 = vadd.f32 %v10489, %v10459
    %v10491 = vadd.f32 %v10490, %v10460
    %v10492 = vadd.f32 %v10491, %v10461
    %v10493 = vrot.slane %v10492, 4
    %v10494 = vadd.f32 %v10492, %v10493
    %v10495 = vrot.slane %v10494, 2
    %v10496 = vadd.f32 %v10494, %v10495
    %v10497 = vrot.slane %v10496, 1
    %v10498 = vadd.f32 %v10496, %v10497
    %v10499 = vmul.f32 %v10498, 0.0625
    %v10500 = vmul.f32 %v10429, %v10429
    %v10501 = vsub.f32 %v10499, %v10500
    %v10502 = vmax.f32 %v10501, 0.0
    %v10503 = vsub.f32 %v10360, %v10429
    %v10504 = vsub.f32 %v10361, %v10429
    %v10505 = vsub.f32 %v10362, %v10429
    %v10506 = vsub.f32 %v10363, %v10429
    %v10507 = vsub.f32 %v10364, %v10429
    %v10508 = vsub.f32 %v10365, %v10429
    %v10509 = vsub.f32 %v10366, %v10429
    %v10510 = vsub.f32 %v10367, %v10429
    %v10511 = vsub.f32 %v10368, %v10429
    %v10512 = vsub.f32 %v10369, %v10429
    %v10513 = vsub.f32 %v10370, %v10429
    %v10514 = vsub.f32 %v10371, %v10429
    %v10515 = vsub.f32 %v10372, %v10429
    %v10516 = vsub.f32 %v10373, %v10429
    %v10517 = vsub.f32 %v10374, %v10429
    %v10518 = vsub.f32 %v10375, %v10429
    %v10519 = vsub.f32 %v10376, %v10429
    %v10520 = vsub.f32 %v10377, %v10429
    %v10521 = vsub.f32 %v10378, %v10429
    %v10522 = vsub.f32 %v10379, %v10429
    %v10523 = vsub.f32 %v10380, %v10429
    %v10524 = vsub.f32 %v10381, %v10429
    %v10525 = vsub.f32 %v10382, %v10429
    %v10526 = vsub.f32 %v10383, %v10429
    %v10527 = vsub.f32 %v10384, %v10429
    %v10528 = vsub.f32 %v10385, %v10429
    %v10529 = vsub.f32 %v10386, %v10429
    %v10530 = vsub.f32 %v10387, %v10429
    %v10531 = vsub.f32 %v10388, %v10429
    %v10532 = vsub.f32 %v10389, %v10429
    %v10533 = vsub.f32 %v10390, %v10429
    %v10534 = vsub.f32 %v10391, %v10429
    %v10535 = vadd.f32 %v10502, 1e-05
    %v10536 = vrsqrt.pop %v10535
    %v10537 = vmul.f32 %v10503, %v10536
    %v10538 = vmul.f32 %v10504, %v10536
    %v10539 = vmul.f32 %v10505, %v10536
    %v10540 = vmul.f32 %v10506, %v10536
    %v10541 = vmul.f32 %v10507, %v10536
    %v10542 = vmul.f32 %v10508, %v10536
    %v10543 = vmul.f32 %v10509, %v10536
    %v10544 = vmul.f32 %v10510, %v10536
    %v10545 = vmul.f32 %v10511, %v10536
    %v10546 = vmul.f32 %v10512, %v10536
    %v10547 = vmul.f32 %v10513, %v10536
    %v10548 = vmul.f32 %v10514, %v10536
    %v10549 = vmul.f32 %v10515, %v10536
    %v10550 = vmul.f32 %v10516, %v10536
    %v10551 = vmul.f32 %v10517, %v10536
    %v10552 = vmul.f32 %v10518, %v10536
    %v10553 = vmul.f32 %v10519, %v10536
    %v10554 = vmul.f32 %v10520, %v10536
    %v10555 = vmul.f32 %v10521, %v10536
    %v10556 = vmul.f32 %v10522, %v10536
    %v10557 = vmul.f32 %v10523, %v10536
    %v10558 = vmul.f32 %v10524, %v10536
    %v10559 = vmul.f32 %v10525, %v10536
    %v10560 = vmul.f32 %v10526, %v10536
    %v10561 = vmul.f32 %v10527, %v10536
    %v10562 = vmul.f32 %v10528, %v10536
    %v10563 = vmul.f32 %v10529, %v10536
    %v10564 = vmul.f32 %v10530, %v10536
    %v10565 = vmul.f32 %v10531, %v10536
    %v10566 = vmul.f32 %v10532, %v10536
    %v10567 = vmul.f32 %v10533, %v10536
    %v10568 = vmul.f32 %v10534, %v10536
    %v10569 = vld [vmem:[#allocation19] sm:$0x1]
    %v10571 = vlaneseq
    %v10572 = vshrl.u32 %v10571, 7
    %v10573 = vsub.s32 0, %v10572
    %v10574 = vrot.slane %v10569, %v10573
    %v10576 = vmul.f32 %v10537, %v10574
    %v10577 = vmul.f32 %v10538, %v10574
    %v10578 = vmul.f32 %v10539, %v10574
    %v10579 = vmul.f32 %v10540, %v10574
    %v10580 = vmul.f32 %v10541, %v10574
    %v10581 = vmul.f32 %v10542, %v10574
    %v10582 = vmul.f32 %v10543, %v10574
    %v10583 = vmul.f32 %v10544, %v10574
    %v10584 = vmul.f32 %v10545, %v10574
    %v10585 = vmul.f32 %v10546, %v10574
    %v10586 = vmul.f32 %v10547, %v10574
    %v10587 = vmul.f32 %v10548, %v10574
    %v10588 = vmul.f32 %v10549, %v10574
    %v10589 = vmul.f32 %v10550, %v10574
    %v10590 = vmul.f32 %v10551, %v10574
    %v10591 = vmul.f32 %v10552, %v10574
    %v10592 = vmul.f32 %v10553, %v10574
    %v10593 = vmul.f32 %v10554, %v10574
    %v10594 = vmul.f32 %v10555, %v10574
    %v10595 = vmul.f32 %v10556, %v10574
    %v10596 = vmul.f32 %v10557, %v10574
    %v10597 = vmul.f32 %v10558, %v10574
    %v10598 = vmul.f32 %v10559, %v10574
    %v10599 = vmul.f32 %v10560, %v10574
    %v10600 = vmul.f32 %v10561, %v10574
    %v10601 = vmul.f32 %v10562, %v10574
    %v10602 = vmul.f32 %v10563, %v10574
    %v10603 = vmul.f32 %v10564, %v10574
    %v10604 = vmul.f32 %v10565, %v10574
    %v10605 = vmul.f32 %v10566, %v10574
    %v10606 = vmul.f32 %v10567, %v10574
    %v10607 = vmul.f32 %v10568, %v10574
    %v10608 = vld [vmem:[#allocation21] sm:$0x1]
    %v10610 = vlaneseq
    %v10611 = vshrl.u32 %v10610, 7
    %v10612 = vsub.s32 0, %v10611
    %v10613 = vrot.slane %v10608, %v10612
    %v10615 = vadd.f32 %v10576, %v10613
    %v10616 = vadd.f32 %v10577, %v10613
    %v10617 = vadd.f32 %v10578, %v10613
    %v10618 = vadd.f32 %v10579, %v10613
    %v10619 = vadd.f32 %v10580, %v10613
    %v10620 = vadd.f32 %v10581, %v10613
    %v10621 = vadd.f32 %v10582, %v10613
    %v10622 = vadd.f32 %v10583, %v10613
    %v10623 = vadd.f32 %v10584, %v10613
    %v10624 = vadd.f32 %v10585, %v10613
    %v10625 = vadd.f32 %v10586, %v10613
    %v10626 = vadd.f32 %v10587, %v10613
    %v10627 = vadd.f32 %v10588, %v10613
    %v10628 = vadd.f32 %v10589, %v10613
    %v10629 = vadd.f32 %v10590, %v10613
    %v10630 = vadd.f32 %v10591, %v10613
    %v10631 = vadd.f32 %v10592, %v10613
    %v10632 = vadd.f32 %v10593, %v10613
    %v10633 = vadd.f32 %v10594, %v10613
    %v10634 = vadd.f32 %v10595, %v10613
    %v10635 = vadd.f32 %v10596, %v10613
    %v10636 = vadd.f32 %v10597, %v10613
    %v10637 = vadd.f32 %v10598, %v10613
    %v10638 = vadd.f32 %v10599, %v10613
    %v10639 = vadd.f32 %v10600, %v10613
    %v10640 = vadd.f32 %v10601, %v10613
    %v10641 = vadd.f32 %v10602, %v10613
    %v10642 = vadd.f32 %v10603, %v10613
    %v10643 = vadd.f32 %v10604, %v10613
    %v10644 = vadd.f32 %v10605, %v10613
    %v10645 = vadd.f32 %v10606, %v10613
    %v10646 = vadd.f32 %v10607, %v10613
    %v10647 = vtanh.pop %v10615
    %v10648 = vtanh.pop %v10616
    %v10649 = vtanh.pop %v10617
    %v10650 = vtanh.pop %v10618
    %v10651 = vtanh.pop %v10619
    %v10652 = vtanh.pop %v10620
    %v10653 = vtanh.pop %v10621
    %v10654 = vtanh.pop %v10622
    %v10655 = vtanh.pop %v10623
    %v10656 = vtanh.pop %v10624
    %v10657 = vtanh.pop %v10625
    %v10658 = vtanh.pop %v10626
    %v10659 = vtanh.pop %v10627
    %v10660 = vtanh.pop %v10628
    %v10661 = vtanh.pop %v10629
    %v10662 = vtanh.pop %v10630
    %v10663 = vtanh.pop %v10631
    %v10664 = vtanh.pop %v10632
    %v10665 = vtanh.pop %v10633
    %v10666 = vtanh.pop %v10634
    %v10667 = vtanh.pop %v10635
    %v10668 = vtanh.pop %v10636
    %v10669 = vtanh.pop %v10637
    %v10670 = vtanh.pop %v10638
    %v10671 = vtanh.pop %v10639
    %v10672 = vtanh.pop %v10640
    %v10673 = vtanh.pop %v10641
    %v10674 = vtanh.pop %v10642
    %v10675 = vtanh.pop %v10643
    %v10676 = vtanh.pop %v10644
    %v10677 = vtanh.pop %v10645
    %v10678 = vtanh.pop %v10646
    %v10679 = vpack.c.bf16 %v10648, %v10647
    %v10680 = vpack.c.bf16 %v10650, %v10649
    %v10681 = vpack.c.bf16 %v10652, %v10651
    %v10682 = vpack.c.bf16 %v10654, %v10653
    %v10683 = vpack.c.bf16 %v10656, %v10655
    %v10684 = vpack.c.bf16 %v10658, %v10657
    %v10685 = vpack.c.bf16 %v10660, %v10659
    %v10686 = vpack.c.bf16 %v10662, %v10661
    %v10687 = vpack.c.bf16 %v10664, %v10663
    %v10688 = vpack.c.bf16 %v10666, %v10665
    %v10689 = vpack.c.bf16 %v10668, %v10667
    %v10690 = vpack.c.bf16 %v10670, %v10669
    %v10691 = vpack.c.bf16 %v10672, %v10671
    %v10692 = vpack.c.bf16 %v10674, %v10673
    %v10693 = vpack.c.bf16 %v10676, %v10675
    %v10694 = vpack.c.bf16 %v10678, %v10677
    %v10695 = vld [vmem:[#allocation10] sm:$0x3]
    %v10698 = vunpack.c.l.s4 1966171168
    %v10699 = vunpack.c.0.s8 %v10698
    %v10700 = vlaneseq
    %v10701 = vshrl.u32 %v10700, 7
    %v10702 = vsub.s32 %v10699, %v10701
    %v10703 = vrot.slane %v10695, %v10702
    %v10704 = vcombine.high %v10703, %v10703
    %v10706 = vunpack.c.l.s4 1966171168
    %v10707 = vunpack.c.0.s8 %v10706
    %v10708 = vlaneseq
    %v10709 = vshrl.u32 %v10708, 7
    %v10710 = vsub.s32 %v10707, %v10709
    %v10711 = vrot.slane %v10703, %v10710
    %v10713 = vunpack.c.l.s4 1966171168
    %v10714 = vunpack.c.0.s8 %v10713
    %v10715 = vlaneseq
    %v10716 = vshrl.u32 %v10715, 7
    %v10717 = vsub.s32 %v10714, %v10716
    %v10718 = vrot.slane %v10704, %v10717
    %10721 = vmatprep.subr.bf16.mxu0 0
    %10722 = vmatpush1.bf16.msra.mxu0 %v10679
    %10723 = vmatprep.subr.bf16.mxu0 0
    %10724 = vmatpush1.bf16.msra.mxu0 %v10680
    %10725 = vmatprep.subr.bf16.mxu0 0
    %10726 = vmatpush1.bf16.msra.mxu0 %v10681
    %10727 = vmatprep.subr.bf16.mxu0 0
    %10728 = vmatpush1.bf16.msra.mxu0 %v10682
    %10729 = vmatprep.subr.bf16.mxu0 0
    %10730 = vmatpush1.bf16.msra.mxu0 %v10683
    %10731 = vmatprep.subr.bf16.mxu0 0
    %10732 = vmatpush1.bf16.msra.mxu0 %v10684
    %10733 = vmatprep.subr.bf16.mxu0 0
    %10734 = vmatpush1.bf16.msra.mxu0 %v10685
    %10735 = vmatprep.subr.bf16.mxu0 0
    %10736 = vmatpush1.bf16.msra.mxu0 %v10686
    %10737 = vmatprep.subr.bf16.mxu0 0
    %10738 = vmatpush1.bf16.msra.mxu0 %v10687
    %10739 = vmatprep.subr.bf16.mxu0 0
    %10740 = vmatpush1.bf16.msra.mxu0 %v10688
    %10741 = vmatprep.subr.bf16.mxu0 0
    %10742 = vmatpush1.bf16.msra.mxu0 %v10689
    %10743 = vmatprep.subr.bf16.mxu0 0
    %10744 = vmatpush1.bf16.msra.mxu0 %v10690
    %10745 = vmatprep.subr.bf16.mxu0 0
    %10746 = vmatpush1.bf16.msra.mxu0 %v10691
    %10747 = vmatprep.subr.bf16.mxu0 0
    %10748 = vmatpush1.bf16.msra.mxu0 %v10692
    %10749 = vmatprep.subr.bf16.mxu0 0
    %10750 = vmatpush1.bf16.msra.mxu0 %v10693
    %10751 = vmatprep.subr.bf16.mxu0 0
    %10752 = vmatpush1.bf16.msra.mxu0 %v10694
    %10753 = vmatprep.mubr.bf16.mxu0 %v10718
    %10754 = vmatmul.mubr.bf16.gmra.mrb[0].mxu0 %v10711
    %v10755 = vpop.f32.mrb[0].mxu0
    %v10756 = vadd.f32 0.0, %v10755
    %v10757 = vpop.f32.mrb[0].mxu0
    %v10758 = vpop.f32.mrb[0].mxu0
    %v10759 = vpop.f32.mrb[0].mxu0
    %10760 = vdwg.mxu0
    %v10761 = vld [vmem:[#allocation12] sm:$0x3]
    %10763 = vset.pattern.permute.xlu0 0
    %10764 = vperm.xlu0 %10763, %v10761
    %v10765 = vpop.permute.xlu0 %10764
    %v10767 = vmul.f32 %v10756, %v10765
    %v10768 = vpack.c.bf16 %v10767, %v10767
    %v10769 = vld [vmem:[#allocation22] sm:$0xf]
    %v10770 = vld [vmem:[#allocation22 + $0x4] sm:$0xf]
    %v10771 = vld [vmem:[#allocation22 + $0x8] sm:$0xf]
    %v10772 = vld [vmem:[#allocation22 + $0xc] sm:$0xf]
    %v10773 = vld [vmem:[#allocation22 + $0x10] sm:$0xf]
    %v10774 = vld [vmem:[#allocation22 + $0x14] sm:$0xf]
    %v10775 = vld [vmem:[#allocation22 + $0x18] sm:$0xf]
    %v10776 = vld [vmem:[#allocation22 + $0x1c] sm:$0xf]
    %v10777 = vld [vmem:[#allocation22 + $0x20] sm:$0xf]
    %v10778 = vld [vmem:[#allocation22 + $0x24] sm:$0xf]
    %v10779 = vld [vmem:[#allocation22 + $0x28] sm:$0xf]
    %v10780 = vld [vmem:[#allocation22 + $0x2c] sm:$0xf]
    %v10781 = vld [vmem:[#allocation22 + $0x30] sm:$0xf]
    %v10782 = vld [vmem:[#allocation22 + $0x34] sm:$0xf]
    %v10783 = vld [vmem:[#allocation22 + $0x38] sm:$0xf]
    %v10784 = vld [vmem:[#allocation22 + $0x3c] sm:$0xf]
    %v10801 = vunpack.c.l.b16 %v10769
    %v10802 = vunpack.c.l.b16 %v10770
    %v10803 = vunpack.c.l.b16 %v10771
    %v10804 = vunpack.c.l.b16 %v10772
    %v10805 = vunpack.c.l.b16 %v10773
    %v10806 = vunpack.c.l.b16 %v10774
    %v10807 = vunpack.c.l.b16 %v10775
    %v10808 = vunpack.c.l.b16 %v10776
    %v10809 = vunpack.c.l.b16 %v10777
    %v10810 = vunpack.c.l.b16 %v10778
    %v10811 = vunpack.c.l.b16 %v10779
    %v10812 = vunpack.c.l.b16 %v10780
    %v10813 = vunpack.c.l.b16 %v10781
    %v10814 = vunpack.c.l.b16 %v10782
    %v10815 = vunpack.c.l.b16 %v10783
    %v10816 = vunpack.c.l.b16 %v10784
    %v10817 = vpack.c.b16 %v10802, %v10801
    %v10818 = vpack.c.b16 %v10804, %v10803
    %v10819 = vpack.c.b16 %v10806, %v10805
    %v10820 = vpack.c.b16 %v10808, %v10807
    %v10821 = vpack.c.b16 %v10810, %v10809
    %v10822 = vpack.c.b16 %v10812, %v10811
    %v10823 = vpack.c.b16 %v10814, %v10813
    %v10824 = vpack.c.b16 %v10816, %v10815
    %10833 = vmatprep.subr.bf16.mxu0 0
    %10834 = vmatpush1.bf16.msra.mxu0 %v10817
    %10835 = vmatprep.subr.bf16.mxu0 0
    %10836 = vmatpush1.bf16.msra.mxu0 %v10818
    %10837 = vmatprep.subr.bf16.mxu0 0
    %10838 = vmatpush1.bf16.msra.mxu0 %v10819
    %10839 = vmatprep.subr.bf16.mxu0 0
    %10840 = vmatpush1.bf16.msra.mxu0 %v10820
    %10841 = vmatprep.subr.bf16.mxu0 0
    %10842 = vmatpush1.bf16.msra.mxu0 %v10821
    %10843 = vmatprep.subr.bf16.mxu0 0
    %10844 = vmatpush1.bf16.msra.mxu0 %v10822
    %10845 = vmatprep.subr.bf16.mxu0 0
    %10846 = vmatpush1.bf16.msra.mxu0 %v10823
    %10847 = vmatprep.subr.bf16.mxu0 0
    %10848 = vmatpush1.bf16.msra.mxu0 %v10824
    %10849 = vmatprep.subr.bf16.mxu0 0
    %10850 = vmatpush1.bf16.msra.mxu0 0
    %10851 = vmatprep.subr.bf16.mxu0 0
    %10852 = vmatpush1.bf16.msra.mxu0 0
    %10853 = vmatprep.subr.bf16.mxu0 0
    %10854 = vmatpush1.bf16.msra.mxu0 0
    %10855 = vmatprep.subr.bf16.mxu0 0
    %10856 = vmatpush1.bf16.msra.mxu0 0
    %10857 = vmatprep.subr.bf16.mxu0 0
    %10858 = vmatpush1.bf16.msra.mxu0 0
    %10859 = vmatprep.subr.bf16.mxu0 0
    %10860 = vmatpush1.bf16.msra.mxu0 0
    %10861 = vmatprep.subr.bf16.mxu0 0
    %10862 = vmatpush1.bf16.msra.mxu0 0
    %10863 = vmatprep.subr.bf16.mxu0 0
    %10864 = vmatpush1.bf16.msra.mxu0 0
    %10865 = vmatprep.mubr.bf16.mxu0 0
    %10866 = vmatmul.mubr.bf16.gmra.mrb[0].mxu0 %v10768
    %v10867 = vpop.f32.mrb[0].mxu0
    %v10868 = vadd.f32 0.0, %v10867
    %v10869 = vpop.f32.mrb[0].mxu0
    %v10870 = vpop.f32.mrb[0].mxu0
    %v10871 = vpop.f32.mrb[0].mxu0
    %10872 = vdwg.mxu0
    %vm10873 = vcmask 25600
    %v10874 = vsel %vm10873, %v10868, 0.0
    %v10875 = vrot.slane %v10874, 4
    %v10876 = vadd.f32 %v10874, %v10875
    %v10877 = vrot.slane %v10876, 2
    %v10878 = vadd.f32 %v10876, %v10877
    %v10879 = vrot.slane %v10878, 1
    %v10880 = vadd.f32 %v10878, %v10879
    %v10881 = vrcp.pop 2.0
    %v10882 = vmul.f32 %v10880, %v10881
    %v10883 = vsub.f32 %v10868, %v10882
    %v10884 = vmul.f32 %v10883, %v10883
    %v10885 = vsel %vm10873, %v10884, 0.0
    %v10886 = vrot.slane %v10885, 4
    %v10887 = vadd.f32 %v10885, %v10886
    %v10888 = vrot.slane %v10887, 2
    %v10889 = vadd.f32 %v10887, %v10888
    %v10890 = vrot.slane %v10889, 1
    %v10891 = vadd.f32 %v10889, %v10890
    %v10892 = vmul.f32 %v10891, %v10881
    %v10893 = vadd.f32 %v10892, 1e-05
    %v10894 = vrsqrt.pop %v10893
    %v10895 = vmul.f32 %v10883, %v10894
    %v10896 = vld [vmem:[#allocation24] sm:$0x1]
    %v10898 = vlaneseq
    %v10899 = vshrl.u32 %v10898, 7
    %v10900 = vsub.s32 0, %v10899
    %v10901 = vrot.slane %v10896, %v10900
    %v10903 = vmul.f32 %v10895, %v10901
    %v10904 = vld [vmem:[#allocation25] sm:$0x1]
    %v10906 = vlaneseq
    %v10907 = vshrl.u32 %v10906, 7
    %v10908 = vsub.s32 0, %v10907
    %v10909 = vrot.slane %v10904, %v10908
    %v10911 = vadd.f32 %v10903, %v10909
    %v10912 = vsel %vm10873, %v10911, -inf
    %10913 = vmax.xlane.f32.xlu0 %v10912
    %v10914 = vpop.xlane.xlu0 %10913
    %v10915 = vsub.f32 %v10911, %v10914
    %v10916 = vmul.f32 %v10915, 1.442695
    %v10917 = vpow.pop %v10916
    %v10918 = vsel %vm10873, %v10917, 0.0
    %10919 = vadd.xlane.f32.xlu0 %v10918
    %v10920 = vpop.xlane.xlu0 %10919
    %v10921 = vlog2.pop %v10920
    %v10922 = vmul.f32 %v10921, 0.6931472
    %v10923 = vadd.f32 %v10922, %v10914
    %v10924 = vsub.f32 %v10911, %v10923
    %10925 = vst.msk [vmem:[#allocation27] sm:$0x3] %vm10873, %v10924
    // Predicated region
    $region98: #{tpu_custom_call.1} parent=1 // pred_check
      _
    $region99: #{tpu_custom_call.1} parent=1 // pred_check_branch
      %10927 = sbr.rel (0) target = $region101
    $region100: #{tpu_custom_call.1} parent=1 // pred_region
      %s10929 = ssub.s32 32, 32
      %10930 = vsyncadd [#allocation9], %s10929
      %s10932 = sshll.u32 [#allocation27], 4
      %s10933 = int_to_ptr.vmem [resolvable:$true] %s10932
      %10935 = dma.vmem_to_hbm [thread:$0]  %s10933, 32, %s13, [#allocation9]
    $region101: #{tpu_custom_call.1} parent=1 // pred_fallthru
      _
    // Predicated region
    $region102: #{tpu_custom_call.1} parent=1 // pred_check
      _
    $region103: #{tpu_custom_call.1} parent=1 // pred_check_branch
      %10937 = sbr.rel (0) target = $region105
    $region104: #{tpu_custom_call.1} parent=1 // pred_region
      %10938 = dma.done [#allocation9], 32
    $region105: #{tpu_custom_call.1} parent=1 // pred_fallthru
      _
    %10939 = vsyncpa [#allocation8], 1
    %10940 = vsyncpa [#allocation11], 1
    %10941 = vsyncpa [#allocation14], 1
    %10942 = vsyncpa [#allocation17], 1
    %10943 = vsyncpa [#allocation20], 1
    %10944 = vsyncpa [#allocation23], 1
    %10945 = vsyncpa [#allocation26], 1
    %10946 = vsyncpa [#allocation9], 1
  %10947 = vsyncmov [#allocation3]
  %s10948 = vpop.sfrf %10947
  %p10949 = scmp.eq.s32.totalorder %s10948, 0
  %p10950 = pneg %p10949
  %10952 = shalt.err (%p10950)
  %s10953 = scalar_lea.sflag [#allocation3], 1
  %10954 = vsyncmov %s10953
  %s10955 = vpop.sfrf %10954
  %p10956 = scmp.eq.s32.totalorder %s10955, 0
  %p10957 = pneg %p10956
  %10959 = shalt.err (%p10957)

</llo_original>
